<compile_context>
chip_gen: v7x
topology: tpu7x:2x2x1
jax: 0.10.0
libtpu: 0.0.40
codegen_flags: <defaults>
</compile_context>

<pallas_src>
import functools

import jax
import jax.numpy as jnp
from jax.experimental import pallas as pl
from jax.experimental.pallas import tpu as pltpu


# ----------------------------------------------------------------------------
# Kernel 1: tiled matmul + bias  (patch-embed projections)
#   bf16 A/W on the MXU, f32 accumulate, lane-dense (N multiple of 128) output
# ----------------------------------------------------------------------------
def _matmul_bias_kernel(a_ref, w_ref, bias_ref, o_ref):
    # a_ref: (TM, K) bf16, w_ref: (K, Np) bf16, bias_ref: (1, Np) f32
    o_ref[...] = (
        jnp.dot(a_ref[...], w_ref[...], preferred_element_type=jnp.float32)
        + bias_ref[...]
    )


def pallas_matmul_bias(a_bf16, w, b, tm):
    """(M, K) bf16 @ (K, N) + (N,)  ->  (M, N) f32.

    `tm` must divide M exactly and be a multiple of 8 (or equal M); the output
    lane dim is padded to a multiple of 128 in-kernel and sliced here.
    """
    M, K = a_bf16.shape
    K2, N = w.shape
    assert K == K2
    assert M % tm == 0 and (tm % 8 == 0 or tm == M)

    Np = pl.cdiv(N, 128) * 128                      # lane-dense output
    w_p = jnp.pad(w, ((0, 0), (0, Np - N))).astype(jnp.bfloat16)
    b_p = jnp.pad(b, (0, Np - N)).reshape(1, Np).astype(jnp.float32)

    out = pl.pallas_call(
        _matmul_bias_kernel,
        out_shape=jax.ShapeDtypeStruct((M, Np), jnp.float32),
        grid=(M // tm,),
        in_specs=[
            pl.BlockSpec((tm, K), lambda i: (i, 0)),
            pl.BlockSpec((K, Np), lambda i: (0, 0)),
            pl.BlockSpec((1, Np), lambda i: (0, 0)),
        ],
        out_specs=pl.BlockSpec((tm, Np), lambda i: (i, 0)),
        compiler_params=pltpu.CompilerParams(
            dimension_semantics=("parallel",)
        ),
    )(a_bf16, w_p, b_p)
    return out[:, :N] if Np != N else out


# ----------------------------------------------------------------------------
# Kernel 2: TFM fusion linear — two bf16 dots into one f32 accumulator
#   (avoids materializing the (half, 196, 512) concat in HBM)
# ----------------------------------------------------------------------------
def _tfm_kernel(rgb_ref, dep_ref, w1_ref, w2_ref, bias_ref, o_ref):
    acc = jnp.dot(rgb_ref[...], w1_ref[...], preferred_element_type=jnp.float32)
    acc = acc + jnp.dot(dep_ref[...], w2_ref[...],
                        preferred_element_type=jnp.float32)
    o_ref[...] = acc + bias_ref[...]


def pallas_tfm(rgb2d_bf16, dep2d_bf16, w, b):
    """rgb/dep: (M, 256) bf16;  w: (512, 64);  returns (M, 64) f32."""
    M, K = rgb2d_bf16.shape
    K2, N = w.shape
    assert K2 == 2 * K
    Np = pl.cdiv(N, 128) * 128                      # lane-dense output
    w1 = jnp.pad(w[:K], ((0, 0), (0, Np - N))).astype(jnp.bfloat16)
    w2 = jnp.pad(w[K:], ((0, 0), (0, Np - N))).astype(jnp.bfloat16)
    b_p = jnp.pad(b, (0, Np - N)).reshape(1, Np).astype(jnp.float32)

    out = pl.pallas_call(
        _tfm_kernel,
        out_shape=jax.ShapeDtypeStruct((M, Np), jnp.float32),
        in_specs=[pl.BlockSpec(memory_space=pltpu.MemorySpace.VMEM)] * 5,
        out_specs=pl.BlockSpec(memory_space=pltpu.MemorySpace.VMEM),
    )(rgb2d_bf16, dep2d_bf16, w1, w2, b_p)
    return out[:, :N] if Np != N else out


# ----------------------------------------------------------------------------
# Kernel 3: fused 3x3 conv score heads (stride 1, pad 1, Cout = 1)
#   * both 256-channel heads handled in one call with per-batch weights
#   * the 64-channel head rides along in the same call
#   * channel reduction hoisted out of the 9-tap loop (single XLU reduce)
#   * scalar biases in SMEM
# ----------------------------------------------------------------------------
def _score_heads_kernel(x256_ref, w256_ref, x64_ref, w64_ref,
                        b256_ref, b64_ref, o256_ref, o64_ref):
    # x256_ref: (B, H+2, W+2, 256)   pre-padded NHWC (f32)
    # w256_ref: (B, 9, 256)          per-batch taps
    # x64_ref : (Bh, H+2, W+2, 64)
    # w64_ref : (9, 64)
    # b256_ref: (B,)   SMEM scalars ; b64_ref: (1,) SMEM scalar
    B, Hp, Wp, C256 = x256_ref.shape
    H, W = Hp - 2, Wp - 2

    # ---- 256-channel heads (pre_rgb / pre_depth) ----
    w256 = w256_ref[...]                                        # (B, 9, 256)
    acc256 = jnp.zeros((B, H, W, C256), jnp.float32)
    for dy in range(3):
        for dx in range(3):
            patch = x256_ref[:, dy:dy + H, dx:dx + W, :]        # (B,H,W,256)
            tap = w256[:, dy * 3 + dx, :][:, None, None, :]     # (B,1,1,256)
            acc256 = acc256 + patch * tap
    s256 = jnp.sum(acc256, axis=-1)                             # (B, H, W)
    for bi in range(B):
        o256_ref[bi] = s256[bi] + b256_ref[bi]

    # ---- 64-channel head (pre_rgbd) ----
    Bh, _, _, C64 = x64_ref.shape
    w64 = w64_ref[...]                                          # (9, 64)
    acc64 = jnp.zeros((Bh, H, W, C64), jnp.float32)
    for dy in range(3):
        for dx in range(3):
            patch = x64_ref[:, dy:dy + H, dx:dx + W, :]         # (Bh,H,W,64)
            tap = w64[dy * 3 + dx, :][None, None, None, :]      # (1,1,1,64)
            acc64 = acc64 + patch * tap
    s64 = jnp.sum(acc64, axis=-1)                               # (Bh, H, W)
    for bi in range(Bh):
        o64_ref[bi] = s64[bi] + b64_ref[0]


def pallas_score_heads(x256_nhwc, x64_nhwc, params, half):
    """Runs the three score-head convolutions in a single pallas_call."""
    B, H, W, _ = x256_nhwc.shape
    x256p = jnp.pad(x256_nhwc, ((0, 0), (1, 1), (1, 1), (0, 0)))
    x64p = jnp.pad(x64_nhwc, ((0, 0), (1, 1), (1, 1), (0, 0)))

    w256 = jnp.concatenate(
        [jnp.broadcast_to(params["score0_w"][None], (half, 9, 256)),
         jnp.broadcast_to(params["score1_w"][None], (half, 9, 256))],
        axis=0).astype(jnp.float32)
    b256 = jnp.concatenate(
        [jnp.broadcast_to(params["score0_b"], (half,)),
         jnp.broadcast_to(params["score1_b"], (half,))],
        axis=0).astype(jnp.float32)
    w64 = params["score2_w"].astype(jnp.float32)
    b64 = params["score2_b"].astype(jnp.float32)

    o256, o64 = pl.pallas_call(
        _score_heads_kernel,
        out_shape=(
            jax.ShapeDtypeStruct((B, H, W), jnp.float32),
            jax.ShapeDtypeStruct((x64_nhwc.shape[0], H, W), jnp.float32),
        ),
        in_specs=[
            pl.BlockSpec(memory_space=pltpu.MemorySpace.VMEM),   # x256p
            pl.BlockSpec(memory_space=pltpu.MemorySpace.VMEM),   # w256
            pl.BlockSpec(memory_space=pltpu.MemorySpace.VMEM),   # x64p
            pl.BlockSpec(memory_space=pltpu.MemorySpace.VMEM),   # w64
            pl.BlockSpec(memory_space=pltpu.MemorySpace.SMEM),   # b256 scalars
            pl.BlockSpec(memory_space=pltpu.MemorySpace.SMEM),   # b64 scalar
        ],
        out_specs=(
            pl.BlockSpec(memory_space=pltpu.MemorySpace.VMEM),
            pl.BlockSpec(memory_space=pltpu.MemorySpace.VMEM),
        ),
    )(x256p, w256, x64p, w64, b256, b64)
    return o256, o64


# ----------------------------------------------------------------------------
# Glue: patchify (backbone stub helper) — done in bf16 to halve copy traffic
# ----------------------------------------------------------------------------
def _patchify(x_nchw, p):
    B, C, H, W = x_nchw.shape
    x = jnp.transpose(x_nchw, (0, 2, 3, 1))                      # NHWC
    x = x.reshape(B, H // p, p, W // p, p, C)
    x = jnp.transpose(x, (0, 1, 3, 2, 4, 5))
    return x.reshape(B, (H // p) * (W // p), p * p * C)


def _token_embed(image_bf16, p, w, b, tm):
    B = image_bf16.shape[0]
    patches = _patchify(image_bf16, p)                           # (B, Ntok, p*p*3) bf16
    Ntok, D = patches.shape[1], patches.shape[2]
    tok = pallas_matmul_bias(patches.reshape(B * Ntok, D), w, b, tm=tm)
    return tok.reshape(B, Ntok, w.shape[1])


# ----------------------------------------------------------------------------
# Encoder forward
# ----------------------------------------------------------------------------
def encoder_forward(image_input, params):
    B = image_input.shape[0]
    half = B // 2

    image_bf16 = image_input.astype(jnp.bfloat16)

    # --- backbone: T2t_vit_10 ------------------------------------------------
    # TODO(synk): real pretrained T2T-ViT-10 backbone not available in-script;
    # replaced by deterministic patch-embed projections with matching shapes.
    token_16 = _token_embed(image_bf16, 16, params["w16"], params["b16"],
                            tm=B * 196)                          # (B, 196, 256), grid=1
    siameae_fea_8 = _token_embed(image_bf16, 8, params["w8"], params["b8"],
                                 tm=784)                         # (B, 784, 64), grid=2
    siameae_fea_4 = _token_embed(image_bf16, 4, params["w4"], params["b4"],
                                 tm=784)                         # (B, 3136, 64), grid=8

    # siameae_fea_16 = token_16.transpose(1, 2).reshape(B, 256, 14, 14)
    siameae_fea_16 = jnp.transpose(token_16, (0, 2, 1)).reshape(B, 256, 14, 14)

    # --- TFM(256, 64) ---------------------------------------------------------
    # TODO(synk): TFM module definition not provided; approximated as RGB/Depth
    # batch-halves fusion + linear 512->64 (split into two 256->64 dots in-kernel).
    rgb2d = token_16[:half].reshape(half * 196, 256).astype(jnp.bfloat16)
    dep2d = token_16[half:].reshape(half * 196, 256).astype(jnp.bfloat16)
    fea_tok = pallas_tfm(rgb2d, dep2d, params["tfm_w"], params["tfm_b"])
    fea_tok = fea_tok.reshape(half, 196, 64)
    fea_16 = jnp.transpose(fea_tok, (0, 2, 1)).reshape(half, 64, 14, 14)

    # --- score heads (single fused pallas_call) -------------------------------
    # NHWC conv inputs come straight from the token layout (no NCHW round-trip).
    x256_nhwc = token_16.reshape(B, 14, 14, 256)
    x64_nhwc = fea_tok.reshape(half, 14, 14, 64)
    o256, o64 = pallas_score_heads(x256_nhwc, x64_nhwc, params, half)

    pre_rgb = o256[:half, None]                                  # (half, 1, 14, 14)
    pre_depth = o256[half:, None]
    pre_rgbd = o64[:, None]

    top_preds = [pre_rgb, pre_depth, pre_rgbd]
    return fea_16, siameae_fea_16, siameae_fea_8, siameae_fea_4, top_preds


# ----------------------------------------------------------------------------
# Deterministic parameter init
# ----------------------------------------------------------------------------
def init_params(key):
    ks = jax.random.split(key, 16)
    n = lambda k, shape, s=0.02: s * jax.random.normal(k, shape, jnp.float32)
    return {
        # backbone-stub patch embeds
        "w16": n(ks[0], (16 * 16 * 3, 256)),
        "b16": n(ks[1], (256,)),
        "w8": n(ks[2], (8 * 8 * 3, 64)),
        "b8": n(ks[3], (64,)),
        "w4": n(ks[4], (4 * 4 * 3, 64)),
        "b4": n(ks[5], (64,)),
        # TFM linear 512 -> 64
        "tfm_w": n(ks[6], (512, 64)),
        "tfm_b": n(ks[7], (64,)),
        # score convs; PyTorch weight (1, Cin, 3, 3) stored here as (9, Cin)
        "score0_w": n(ks[8], (9, 256)),
        "score0_b": n(ks[9], (1,)),
        "score1_w": n(ks[10], (9, 256)),
        "score1_b": n(ks[11], (1,)),
        "score2_w": n(ks[12], (9, 64)),
        "score2_b": n(ks[13], (1,)),
    }


if __name__ == "__main__":
    key = jax.random.PRNGKey(0)
    k_img, k_par = jax.random.split(key)

    # batch = 2  (first half = RGB, second half = depth, as required by chunk(2))
    image_Input = jax.random.normal(k_img, (2, 3, 224, 224), jnp.float32)
    params = init_params(k_par)

    fwd = jax.jit(functools.partial(encoder_forward, params=params))
    fea_16, fea_16_s, fea_8, fea_4, preds = fwd(image_Input)

    jax.block_until_ready((fea_16, fea_16_s, fea_8, fea_4, preds))

    assert fea_16.shape == (1, 64, 14, 14)
    assert fea_16_s.shape == (2, 256, 14, 14)
    assert fea_8.shape == (2, 784, 64)
    assert fea_4.shape == (2, 3136, 64)
    assert preds[0].shape == (1, 1, 14, 14)
    assert preds[1].shape == (1, 1, 14, 14)
    assert preds[2].shape == (1, 1, 14, 14)

    print("KERNEL_OK")
</pallas_src>

<mosaic_0001>
module attributes {stable_mosaic.version = 11 : i64} {
  func.func @_matmul_bias_kernel(%arg0: i32, %arg1: memref<392x768xbf16, #tpu.memory_space<vmem>>, %arg2: memref<768x256xbf16, #tpu.memory_space<vmem>>, %arg3: memref<1x256xf32, #tpu.memory_space<vmem>>, %arg4: memref<392x256xf32, #tpu.memory_space<vmem>>) attributes {dimension_semantics = [#tpu.dimension_semantics<parallel>], iteration_bounds = array<i64: 1>, scalar_prefetch = 0 : i64, scratch_operands = 0 : i64, tpu.core_type = #tpu.core_type<tc>, window_params = [{transform_indices = @transform_0, window_bounds = array<i64: 392, 768>}, {pipeline_mode = #tpu.pipeline_mode<synchronous>, transform_indices = @transform_1, window_bounds = array<i64: 768, 256>}, {pipeline_mode = #tpu.pipeline_mode<synchronous>, transform_indices = @transform_2, window_bounds = array<i64: 1, 256>}, {transform_indices = @transform_3, window_bounds = array<i64: 392, 256>}]} {
    %c0 = arith.constant 0 : index
    %c0_0 = arith.constant 0 : index
    %0 = vector.load %arg1[%c0, %c0_0] : memref<392x768xbf16, #tpu.memory_space<vmem>>, vector<392x768xbf16>
    %c0_1 = arith.constant 0 : index
    %c0_2 = arith.constant 0 : index
    %1 = vector.load %arg2[%c0_1, %c0_2] : memref<768x256xbf16, #tpu.memory_space<vmem>>, vector<768x256xbf16>
    %cst = arith.constant dense<0.000000e+00> : vector<392x256xf32>
    %2 = tpu.matmul %0, %1, %cst {dimension_numbers = #tpu.dot_dimension_numbers<[1], [0], [0], [1], [0, 0, 1, 1], [], []>} : vector<392x768xbf16>, vector<768x256xbf16>, vector<392x256xf32> -> vector<392x256xf32>
    %c0_3 = arith.constant 0 : index
    %c0_4 = arith.constant 0 : index
    %3 = vector.load %arg3[%c0_3, %c0_4] : memref<1x256xf32, #tpu.memory_space<vmem>>, vector<1x256xf32>
    %4 = vector.broadcast %3 : vector<1x256xf32> to vector<392x256xf32>
    %5 = arith.addf %2, %4 : vector<392x256xf32>
    %c0_5 = arith.constant 0 : index
    %c0_6 = arith.constant 0 : index
    %6 = vector.load %arg4[%c0_5, %c0_6] : memref<392x256xf32, #tpu.memory_space<vmem>>, vector<392x256xf32>
    tpu.vector_store %arg4[%c0_5, %c0_6], %5 {strides = array<i32>} : memref<392x256xf32, #tpu.memory_space<vmem>>, vector<392x256xf32>,
    return
  }
  func.func @transform_0(%arg0: i32) -> (i32, i32) {
    %c0_i32 = arith.constant 0 : i32
    %c0_i32_0 = arith.constant 0 : i32
    return %arg0, %c0_i32 : i32, i32
  }
  func.func @transform_1(%arg0: i32) -> (i32, i32) {
    %c0_i32 = arith.constant 0 : i32
    %c0_i32_0 = arith.constant 0 : i32
    %c0_i32_1 = arith.constant 0 : i32
    return %c0_i32, %c0_i32_0 : i32, i32
  }
  func.func @transform_2(%arg0: i32) -> (i32, i32) {
    %c0_i32 = arith.constant 0 : i32
    %c0_i32_0 = arith.constant 0 : i32
    %c0_i32_1 = arith.constant 0 : i32
    return %c0_i32, %c0_i32_0 : i32, i32
  }
  func.func @transform_3(%arg0: i32) -> (i32, i32) {
    %c0_i32 = arith.constant 0 : i32
    %c0_i32_0 = arith.constant 0 : i32
    return %arg0, %c0_i32 : i32, i32
  }
}

module attributes {stable_mosaic.version = 11 : i64} {
  func.func @_tfm_kernel(%arg0: memref<196x256xbf16, #tpu.memory_space<vmem>>, %arg1: memref<196x256xbf16, #tpu.memory_space<vmem>>, %arg2: memref<256x128xbf16, #tpu.memory_space<vmem>>, %arg3: memref<256x128xbf16, #tpu.memory_space<vmem>>, %arg4: memref<1x128xf32, #tpu.memory_space<vmem>>, %arg5: memref<196x128xf32, #tpu.memory_space<vmem>>) attributes {dimension_semantics = [], scalar_prefetch = 0 : i64, scratch_operands = 0 : i64, tpu.core_type = #tpu.core_type<tc>} {
    %c0 = arith.constant 0 : index
    %c0_0 = arith.constant 0 : index
    %0 = vector.load %arg0[%c0, %c0_0] : memref<196x256xbf16, #tpu.memory_space<vmem>>, vector<196x256xbf16>
    %c0_1 = arith.constant 0 : index
    %c0_2 = arith.constant 0 : index
    %1 = vector.load %arg2[%c0_1, %c0_2] : memref<256x128xbf16, #tpu.memory_space<vmem>>, vector<256x128xbf16>
    %cst = arith.constant dense<0.000000e+00> : vector<196x128xf32>
    %2 = tpu.matmul %0, %1, %cst {dimension_numbers = #tpu.dot_dimension_numbers<[1], [0], [0], [1], [0, 0, 1, 1], [], []>} : vector<196x256xbf16>, vector<256x128xbf16>, vector<196x128xf32> -> vector<196x128xf32>
    %c0_3 = arith.constant 0 : index
    %c0_4 = arith.constant 0 : index
    %3 = vector.load %arg1[%c0_3, %c0_4] : memref<196x256xbf16, #tpu.memory_space<vmem>>, vector<196x256xbf16>
    %c0_5 = arith.constant 0 : index
    %c0_6 = arith.constant 0 : index
    %4 = vector.load %arg3[%c0_5, %c0_6] : memref<256x128xbf16, #tpu.memory_space<vmem>>, vector<256x128xbf16>
    %cst_7 = arith.constant dense<0.000000e+00> : vector<196x128xf32>
    %5 = tpu.matmul %3, %4, %cst_7 {dimension_numbers = #tpu.dot_dimension_numbers<[1], [0], [0], [1], [0, 0, 1, 1], [], []>} : vector<196x256xbf16>, vector<256x128xbf16>, vector<196x128xf32> -> vector<196x128xf32>
    %6 = arith.addf %2, %5 : vector<196x128xf32>
    %c0_8 = arith.constant 0 : index
    %c0_9 = arith.constant 0 : index
    %7 = vector.load %arg4[%c0_8, %c0_9] : memref<1x128xf32, #tpu.memory_space<vmem>>, vector<1x128xf32>
    %8 = vector.broadcast %7 : vector<1x128xf32> to vector<196x128xf32>
    %9 = arith.addf %6, %8 : vector<196x128xf32>
    %c0_10 = arith.constant 0 : index
    %c0_11 = arith.constant 0 : index
    %10 = vector.load %arg5[%c0_10, %c0_11] : memref<196x128xf32, #tpu.memory_space<vmem>>, vector<196x128xf32>
    tpu.vector_store %arg5[%c0_10, %c0_11], %9 {strides = array<i32>} : memref<196x128xf32, #tpu.memory_space<vmem>>, vector<196x128xf32>,
    return
  }
}

module attributes {stable_mosaic.version = 11 : i64} {
  func.func @_score_heads_kernel(%arg0: memref<2x16x16x256xf32, #tpu.memory_space<vmem>>, %arg1: memref<2x9x256xf32, #tpu.memory_space<vmem>>, %arg2: memref<1x16x16x64xf32, #tpu.memory_space<vmem>>, %arg3: memref<9x64xf32, #tpu.memory_space<vmem>>, %arg4: memref<2xf32, #tpu.memory_space<smem>>, %arg5: memref<1xf32, #tpu.memory_space<smem>>, %arg6: memref<2x14x14xf32, #tpu.memory_space<vmem>>, %arg7: memref<1x14x14xf32, #tpu.memory_space<vmem>>) attributes {dimension_semantics = [], scalar_prefetch = 0 : i64, scratch_operands = 0 : i64, tpu.core_type = #tpu.core_type<tc>} {
    %c0 = arith.constant 0 : index
    %c0_0 = arith.constant 0 : index
    %c0_1 = arith.constant 0 : index
    %0 = vector.load %arg1[%c0, %c0_0, %c0_1] : memref<2x9x256xf32, #tpu.memory_space<vmem>>, vector<2x9x256xf32>
    %cst = arith.constant 0.000000e+00 : f32
    %1 = vector.broadcast %cst : f32 to vector<2x14x14x256xf32>
    %c0_2 = arith.constant 0 : index
    %c0_3 = arith.constant 0 : index
    %c0_4 = arith.constant 0 : index
    %c0_5 = arith.constant 0 : index
    %2 = vector.load %arg0[%c0_2, %c0_3, %c0_4, %c0_5] : memref<2x16x16x256xf32, #tpu.memory_space<vmem>>, vector<2x14x14x256xf32>
    %3 = vector.extract_strided_slice %0 {offsets = [0, 0, 0], sizes = [2, 1, 256], strides = [1, 1, 1]} : vector<2x9x256xf32> to vector<2x1x256xf32>
    %4 = vector.shape_cast %3 : vector<2x1x256xf32> to vector<2x256xf32>
    %5 = vector.shape_cast %4 : vector<2x256xf32> to vector<2x1x1x256xf32>
    %6 = vector.broadcast %5 : vector<2x1x1x256xf32> to vector<2x14x14x256xf32>
    %7 = arith.mulf %2, %6 : vector<2x14x14x256xf32>
    %8 = arith.addf %1, %7 : vector<2x14x14x256xf32>
    %c0_6 = arith.constant 0 : index
    %c0_7 = arith.constant 0 : index
    %c1 = arith.constant 1 : index
    %c0_8 = arith.constant 0 : index
    %9 = vector.load %arg0[%c0_6, %c0_7, %c1, %c0_8] : memref<2x16x16x256xf32, #tpu.memory_space<vmem>>, vector<2x14x14x256xf32>
    %10 = vector.extract_strided_slice %0 {offsets = [0, 1, 0], sizes = [2, 1, 256], strides = [1, 1, 1]} : vector<2x9x256xf32> to vector<2x1x256xf32>
    %11 = vector.shape_cast %10 : vector<2x1x256xf32> to vector<2x256xf32>
    %12 = vector.shape_cast %11 : vector<2x256xf32> to vector<2x1x1x256xf32>
    %13 = vector.broadcast %12 : vector<2x1x1x256xf32> to vector<2x14x14x256xf32>
    %14 = arith.mulf %9, %13 : vector<2x14x14x256xf32>
    %15 = arith.addf %8, %14 : vector<2x14x14x256xf32>
    %c0_9 = arith.constant 0 : index
    %c0_10 = arith.constant 0 : index
    %c2 = arith.constant 2 : index
    %c0_11 = arith.constant 0 : index
    %16 = vector.load %arg0[%c0_9, %c0_10, %c2, %c0_11] : memref<2x16x16x256xf32, #tpu.memory_space<vmem>>, vector<2x14x14x256xf32>
    %17 = vector.extract_strided_slice %0 {offsets = [0, 2, 0], sizes = [2, 1, 256], strides = [1, 1, 1]} : vector<2x9x256xf32> to vector<2x1x256xf32>
    %18 = vector.shape_cast %17 : vector<2x1x256xf32> to vector<2x256xf32>
    %19 = vector.shape_cast %18 : vector<2x256xf32> to vector<2x1x1x256xf32>
    %20 = vector.broadcast %19 : vector<2x1x1x256xf32> to vector<2x14x14x256xf32>
    %21 = arith.mulf %16, %20 : vector<2x14x14x256xf32>
    %22 = arith.addf %15, %21 : vector<2x14x14x256xf32>
    %c0_12 = arith.constant 0 : index
    %c1_13 = arith.constant 1 : index
    %c0_14 = arith.constant 0 : index
    %c0_15 = arith.constant 0 : index
    %23 = vector.load %arg0[%c0_12, %c1_13, %c0_14, %c0_15] : memref<2x16x16x256xf32, #tpu.memory_space<vmem>>, vector<2x14x14x256xf32>
    %24 = vector.extract_strided_slice %0 {offsets = [0, 3, 0], sizes = [2, 1, 256], strides = [1, 1, 1]} : vector<2x9x256xf32> to vector<2x1x256xf32>
    %25 = vector.shape_cast %24 : vector<2x1x256xf32> to vector<2x256xf32>
    %26 = vector.shape_cast %25 : vector<2x256xf32> to vector<2x1x1x256xf32>
    %27 = vector.broadcast %26 : vector<2x1x1x256xf32> to vector<2x14x14x256xf32>
    %28 = arith.mulf %23, %27 : vector<2x14x14x256xf32>
    %29 = arith.addf %22, %28 : vector<2x14x14x256xf32>
    %c0_16 = arith.constant 0 : index
    %c1_17 = arith.constant 1 : index
    %c1_18 = arith.constant 1 : index
    %c0_19 = arith.constant 0 : index
    %30 = vector.load %arg0[%c0_16, %c1_17, %c1_18, %c0_19] : memref<2x16x16x256xf32, #tpu.memory_space<vmem>>, vector<2x14x14x256xf32>
    %31 = vector.extract_strided_slice %0 {offsets = [0, 4, 0], sizes = [2, 1, 256], strides = [1, 1, 1]} : vector<2x9x256xf32> to vector<2x1x256xf32>
    %32 = vector.shape_cast %31 : vector<2x1x256xf32> to vector<2x256xf32>
    %33 = vector.shape_cast %32 : vector<2x256xf32> to vector<2x1x1x256xf32>
    %34 = vector.broadcast %33 : vector<2x1x1x256xf32> to vector<2x14x14x256xf32>
    %35 = arith.mulf %30, %34 : vector<2x14x14x256xf32>
    %36 = arith.addf %29, %35 : vector<2x14x14x256xf32>
    %c0_20 = arith.constant 0 : index
    %c1_21 = arith.constant 1 : index
    %c2_22 = arith.constant 2 : index
    %c0_23 = arith.constant 0 : index
    %37 = vector.load %arg0[%c0_20, %c1_21, %c2_22, %c0_23] : memref<2x16x16x256xf32, #tpu.memory_space<vmem>>, vector<2x14x14x256xf32>
    %38 = vector.extract_strided_slice %0 {offsets = [0, 5, 0], sizes = [2, 1, 256], strides = [1, 1, 1]} : vector<2x9x256xf32> to vector<2x1x256xf32>
    %39 = vector.shape_cast %38 : vector<2x1x256xf32> to vector<2x256xf32>
    %40 = vector.shape_cast %39 : vector<2x256xf32> to vector<2x1x1x256xf32>
    %41 = vector.broadcast %40 : vector<2x1x1x256xf32> to vector<2x14x14x256xf32>
    %42 = arith.mulf %37, %41 : vector<2x14x14x256xf32>
    %43 = arith.addf %36, %42 : vector<2x14x14x256xf32>
    %c0_24 = arith.constant 0 : index
    %c2_25 = arith.constant 2 : index
    %c0_26 = arith.constant 0 : index
    %c0_27 = arith.constant 0 : index
    %44 = vector.load %arg0[%c0_24, %c2_25, %c0_26, %c0_27] : memref<2x16x16x256xf32, #tpu.memory_space<vmem>>, vector<2x14x14x256xf32>
    %45 = vector.extract_strided_slice %0 {offsets = [0, 6, 0], sizes = [2, 1, 256], strides = [1, 1, 1]} : vector<2x9x256xf32> to vector<2x1x256xf32>
    %46 = vector.shape_cast %45 : vector<2x1x256xf32> to vector<2x256xf32>
    %47 = vector.shape_cast %46 : vector<2x256xf32> to vector<2x1x1x256xf32>
    %48 = vector.broadcast %47 : vector<2x1x1x256xf32> to vector<2x14x14x256xf32>
    %49 = arith.mulf %44, %48 : vector<2x14x14x256xf32>
    %50 = arith.addf %43, %49 : vector<2x14x14x256xf32>
    %c0_28 = arith.constant 0 : index
    %c2_29 = arith.constant 2 : index
    %c1_30 = arith.constant 1 : index
    %c0_31 = arith.constant 0 : index
    %51 = vector.load %arg0[%c0_28, %c2_29, %c1_30, %c0_31] : memref<2x16x16x256xf32, #tpu.memory_space<vmem>>, vector<2x14x14x256xf32>
    %52 = vector.extract_strided_slice %0 {offsets = [0, 7, 0], sizes = [2, 1, 256], strides = [1, 1, 1]} : vector<2x9x256xf32> to vector<2x1x256xf32>
    %53 = vector.shape_cast %52 : vector<2x1x256xf32> to vector<2x256xf32>
    %54 = vector.shape_cast %53 : vector<2x256xf32> to vector<2x1x1x256xf32>
    %55 = vector.broadcast %54 : vector<2x1x1x256xf32> to vector<2x14x14x256xf32>
    %56 = arith.mulf %51, %55 : vector<2x14x14x256xf32>
    %57 = arith.addf %50, %56 : vector<2x14x14x256xf32>
    %c0_32 = arith.constant 0 : index
    %c2_33 = arith.constant 2 : index
    %c2_34 = arith.constant 2 : index
    %c0_35 = arith.constant 0 : index
    %58 = vector.load %arg0[%c0_32, %c2_33, %c2_34, %c0_35] : memref<2x16x16x256xf32, #tpu.memory_space<vmem>>, vector<2x14x14x256xf32>
    %59 = vector.extract_strided_slice %0 {offsets = [0, 8, 0], sizes = [2, 1, 256], strides = [1, 1, 1]} : vector<2x9x256xf32> to vector<2x1x256xf32>
    %60 = vector.shape_cast %59 : vector<2x1x256xf32> to vector<2x256xf32>
    %61 = vector.shape_cast %60 : vector<2x256xf32> to vector<2x1x1x256xf32>
    %62 = vector.broadcast %61 : vector<2x1x1x256xf32> to vector<2x14x14x256xf32>
    %63 = arith.mulf %58, %62 : vector<2x14x14x256xf32>
    %64 = arith.addf %57, %63 : vector<2x14x14x256xf32>
    %cst_36 = arith.constant dense<0.000000e+00> : vector<2x14x14xf32>
    %65 = vector.multi_reduction <add>, %64, %cst_36 [3] : vector<2x14x14x256xf32> to vector<2x14x14xf32>
    %66 = vector.extract_strided_slice %65 {offsets = [0, 0, 0], sizes = [1, 14, 14], strides = [1, 1, 1]} : vector<2x14x14xf32> to vector<1x14x14xf32>
    %67 = vector.shape_cast %66 : vector<1x14x14xf32> to vector<14x14xf32>
    %c0_37 = arith.constant 0 : index
    %68 = memref.load %arg4[%c0_37] : memref<2xf32, #tpu.memory_space<smem>>
    %69 = vector.broadcast %68 : f32 to vector<14x14xf32>
    %70 = arith.addf %67, %69 : vector<14x14xf32>
    %c0_38 = arith.constant 0 : index
    %c0_39 = arith.constant 0 : index
    %c0_40 = arith.constant 0 : index
    %71 = vector.load %arg6[%c0_38, %c0_39, %c0_40] : memref<2x14x14xf32, #tpu.memory_space<vmem>>, vector<1x14x14xf32>
    %72 = vector.shape_cast %71 : vector<1x14x14xf32> to vector<14x14xf32>
    %73 = vector.shape_cast %70 : vector<14x14xf32> to vector<1x14x14xf32>
    tpu.vector_store %arg6[%c0_38, %c0_39, %c0_40], %73 {strides = array<i32>} : memref<2x14x14xf32, #tpu.memory_space<vmem>>, vector<1x14x14xf32>,
    %74 = vector.extract_strided_slice %65 {offsets = [1, 0, 0], sizes = [1, 14, 14], strides = [1, 1, 1]} : vector<2x14x14xf32> to vector<1x14x14xf32>
    %75 = vector.shape_cast %74 : vector<1x14x14xf32> to vector<14x14xf32>
    %c1_41 = arith.constant 1 : index
    %76 = memref.load %arg4[%c1_41] : memref<2xf32, #tpu.memory_space<smem>>
    %77 = vector.broadcast %76 : f32 to vector<14x14xf32>
    %78 = arith.addf %75, %77 : vector<14x14xf32>
    %c1_42 = arith.constant 1 : index
    %c0_43 = arith.constant 0 : index
    %c0_44 = arith.constant 0 : index
    %79 = vector.load %arg6[%c1_42, %c0_43, %c0_44] : memref<2x14x14xf32, #tpu.memory_space<vmem>>, vector<1x14x14xf32>
    %80 = vector.shape_cast %79 : vector<1x14x14xf32> to vector<14x14xf32>
    %81 = vector.shape_cast %78 : vector<14x14xf32> to vector<1x14x14xf32>
    tpu.vector_store %arg6[%c1_42, %c0_43, %c0_44], %81 {strides = array<i32>} : memref<2x14x14xf32, #tpu.memory_space<vmem>>, vector<1x14x14xf32>,
    %c0_45 = arith.constant 0 : index
    %c0_46 = arith.constant 0 : index
    %82 = vector.load %arg3[%c0_45, %c0_46] : memref<9x64xf32, #tpu.memory_space<vmem>>, vector<9x64xf32>
    %cst_47 = arith.constant 0.000000e+00 : f32
    %83 = vector.broadcast %cst_47 : f32 to vector<1x14x14x64xf32>
    %c0_48 = arith.constant 0 : index
    %c0_49 = arith.constant 0 : index
    %c0_50 = arith.constant 0 : index
    %c0_51 = arith.constant 0 : index
    %84 = vector.load %arg2[%c0_48, %c0_49, %c0_50, %c0_51] : memref<1x16x16x64xf32, #tpu.memory_space<vmem>>, vector<1x14x14x64xf32>
    %85 = vector.extract_strided_slice %82 {offsets = [0, 0], sizes = [1, 64], strides = [1, 1]} : vector<9x64xf32> to vector<1x64xf32>
    %86 = vector.shape_cast %85 : vector<1x64xf32> to vector<64xf32>
    %87 = vector.shape_cast %86 : vector<64xf32> to vector<1x1x1x64xf32>
    %88 = vector.broadcast %87 : vector<1x1x1x64xf32> to vector<1x14x14x64xf32>
    %89 = arith.mulf %84, %88 : vector<1x14x14x64xf32>
    %90 = arith.addf %83, %89 : vector<1x14x14x64xf32>
    %c0_52 = arith.constant 0 : index
    %c0_53 = arith.constant 0 : index
    %c1_54 = arith.constant 1 : index
    %c0_55 = arith.constant 0 : index
    %91 = vector.load %arg2[%c0_52, %c0_53, %c1_54, %c0_55] : memref<1x16x16x64xf32, #tpu.memory_space<vmem>>, vector<1x14x14x64xf32>
    %92 = vector.extract_strided_slice %82 {offsets = [1, 0], sizes = [1, 64], strides = [1, 1]} : vector<9x64xf32> to vector<1x64xf32>
    %93 = vector.shape_cast %92 : vector<1x64xf32> to vector<64xf32>
    %94 = vector.shape_cast %93 : vector<64xf32> to vector<1x1x1x64xf32>
    %95 = vector.broadcast %94 : vector<1x1x1x64xf32> to vector<1x14x14x64xf32>
    %96 = arith.mulf %91, %95 : vector<1x14x14x64xf32>
    %97 = arith.addf %90, %96 : vector<1x14x14x64xf32>
    %c0_56 = arith.constant 0 : index
    %c0_57 = arith.constant 0 : index
    %c2_58 = arith.constant 2 : index
    %c0_59 = arith.constant 0 : index
    %98 = vector.load %arg2[%c0_56, %c0_57, %c2_58, %c0_59] : memref<1x16x16x64xf32, #tpu.memory_space<vmem>>, vector<1x14x14x64xf32>
    %99 = vector.extract_strided_slice %82 {offsets = [2, 0], sizes = [1, 64], strides = [1, 1]} : vector<9x64xf32> to vector<1x64xf32>
    %100 = vector.shape_cast %99 : vector<1x64xf32> to vector<64xf32>
    %101 = vector.shape_cast %100 : vector<64xf32> to vector<1x1x1x64xf32>
    %102 = vector.broadcast %101 : vector<1x1x1x64xf32> to vector<1x14x14x64xf32>
    %103 = arith.mulf %98, %102 : vector<1x14x14x64xf32>
    %104 = arith.addf %97, %103 : vector<1x14x14x64xf32>
    %c0_60 = arith.constant 0 : index
    %c1_61 = arith.constant 1 : index
    %c0_62 = arith.constant 0 : index
    %c0_63 = arith.constant 0 : index
    %105 = vector.load %arg2[%c0_60, %c1_61, %c0_62, %c0_63] : memref<1x16x16x64xf32, #tpu.memory_space<vmem>>, vector<1x14x14x64xf32>
    %106 = vector.extract_strided_slice %82 {offsets = [3, 0], sizes = [1, 64], strides = [1, 1]} : vector<9x64xf32> to vector<1x64xf32>
    %107 = vector.shape_cast %106 : vector<1x64xf32> to vector<64xf32>
    %108 = vector.shape_cast %107 : vector<64xf32> to vector<1x1x1x64xf32>
    %109 = vector.broadcast %108 : vector<1x1x1x64xf32> to vector<1x14x14x64xf32>
    %110 = arith.mulf %105, %109 : vector<1x14x14x64xf32>
    %111 = arith.addf %104, %110 : vector<1x14x14x64xf32>
    %c0_64 = arith.constant 0 : index
    %c1_65 = arith.constant 1 : index
    %c1_66 = arith.constant 1 : index
    %c0_67 = arith.constant 0 : index
    %112 = vector.load %arg2[%c0_64, %c1_65, %c1_66, %c0_67] : memref<1x16x16x64xf32, #tpu.memory_space<vmem>>, vector<1x14x14x64xf32>
    %113 = vector.extract_strided_slice %82 {offsets = [4, 0], sizes = [1, 64], strides = [1, 1]} : vector<9x64xf32> to vector<1x64xf32>
    %114 = vector.shape_cast %113 : vector<1x64xf32> to vector<64xf32>
    %115 = vector.shape_cast %114 : vector<64xf32> to vector<1x1x1x64xf32>
    %116 = vector.broadcast %115 : vector<1x1x1x64xf32> to vector<1x14x14x64xf32>
    %117 = arith.mulf %112, %116 : vector<1x14x14x64xf32>
    %118 = arith.addf %111, %117 : vector<1x14x14x64xf32>
    %c0_68 = arith.constant 0 : index
    %c1_69 = arith.constant 1 : index
    %c2_70 = arith.constant 2 : index
    %c0_71 = arith.constant 0 : index
    %119 = vector.load %arg2[%c0_68, %c1_69, %c2_70, %c0_71] : memref<1x16x16x64xf32, #tpu.memory_space<vmem>>, vector<1x14x14x64xf32>
    %120 = vector.extract_strided_slice %82 {offsets = [5, 0], sizes = [1, 64], strides = [1, 1]} : vector<9x64xf32> to vector<1x64xf32>
    %121 = vector.shape_cast %120 : vector<1x64xf32> to vector<64xf32>
    %122 = vector.shape_cast %121 : vector<64xf32> to vector<1x1x1x64xf32>
    %123 = vector.broadcast %122 : vector<1x1x1x64xf32> to vector<1x14x14x64xf32>
    %124 = arith.mulf %119, %123 : vector<1x14x14x64xf32>
    %125 = arith.addf %118, %124 : vector<1x14x14x64xf32>
    %c0_72 = arith.constant 0 : index
    %c2_73 = arith.constant 2 : index
    %c0_74 = arith.constant 0 : index
    %c0_75 = arith.constant 0 : index
    %126 = vector.load %arg2[%c0_72, %c2_73, %c0_74, %c0_75] : memref<1x16x16x64xf32, #tpu.memory_space<vmem>>, vector<1x14x14x64xf32>
    %127 = vector.extract_strided_slice %82 {offsets = [6, 0], sizes = [1, 64], strides = [1, 1]} : vector<9x64xf32> to vector<1x64xf32>
    %128 = vector.shape_cast %127 : vector<1x64xf32> to vector<64xf32>
    %129 = vector.shape_cast %128 : vector<64xf32> to vector<1x1x1x64xf32>
    %130 = vector.broadcast %129 : vector<1x1x1x64xf32> to vector<1x14x14x64xf32>
    %131 = arith.mulf %126, %130 : vector<1x14x14x64xf32>
    %132 = arith.addf %125, %131 : vector<1x14x14x64xf32>
    %c0_76 = arith.constant 0 : index
    %c2_77 = arith.constant 2 : index
    %c1_78 = arith.constant 1 : index
    %c0_79 = arith.constant 0 : index
    %133 = vector.load %arg2[%c0_76, %c2_77, %c1_78, %c0_79] : memref<1x16x16x64xf32, #tpu.memory_space<vmem>>, vector<1x14x14x64xf32>
    %134 = vector.extract_strided_slice %82 {offsets = [7, 0], sizes = [1, 64], strides = [1, 1]} : vector<9x64xf32> to vector<1x64xf32>
    %135 = vector.shape_cast %134 : vector<1x64xf32> to vector<64xf32>
    %136 = vector.shape_cast %135 : vector<64xf32> to vector<1x1x1x64xf32>
    %137 = vector.broadcast %136 : vector<1x1x1x64xf32> to vector<1x14x14x64xf32>
    %138 = arith.mulf %133, %137 : vector<1x14x14x64xf32>
    %139 = arith.addf %132, %138 : vector<1x14x14x64xf32>
    %c0_80 = arith.constant 0 : index
    %c2_81 = arith.constant 2 : index
    %c2_82 = arith.constant 2 : index
    %c0_83 = arith.constant 0 : index
    %140 = vector.load %arg2[%c0_80, %c2_81, %c2_82, %c0_83] : memref<1x16x16x64xf32, #tpu.memory_space<vmem>>, vector<1x14x14x64xf32>
    %141 = vector.extract_strided_slice %82 {offsets = [8, 0], sizes = [1, 64], strides = [1, 1]} : vector<9x64xf32> to vector<1x64xf32>
    %142 = vector.shape_cast %141 : vector<1x64xf32> to vector<64xf32>
    %143 = vector.shape_cast %142 : vector<64xf32> to vector<1x1x1x64xf32>
    %144 = vector.broadcast %143 : vector<1x1x1x64xf32> to vector<1x14x14x64xf32>
    %145 = arith.mulf %140, %144 : vector<1x14x14x64xf32>
    %146 = arith.addf %139, %145 : vector<1x14x14x64xf32>
    %cst_84 = arith.constant dense<0.000000e+00> : vector<1x14x14xf32>
    %147 = vector.multi_reduction <add>, %146, %cst_84 [3] : vector<1x14x14x64xf32> to vector<1x14x14xf32>
    %148 = vector.shape_cast %147 : vector<1x14x14xf32> to vector<14x14xf32>
    %c0_85 = arith.constant 0 : index
    %149 = memref.load %arg5[%c0_85] : memref<1xf32, #tpu.memory_space<smem>>
    %150 = vector.broadcast %149 : f32 to vector<14x14xf32>
    %151 = arith.addf %148, %150 : vector<14x14xf32>
    %c0_86 = arith.constant 0 : index
    %c0_87 = arith.constant 0 : index
    %c0_88 = arith.constant 0 : index
    %152 = vector.load %arg7[%c0_86, %c0_87, %c0_88] : memref<1x14x14xf32, #tpu.memory_space<vmem>>, vector<1x14x14xf32>
    %153 = vector.shape_cast %152 : vector<1x14x14xf32> to vector<14x14xf32>
    %154 = vector.shape_cast %151 : vector<14x14xf32> to vector<1x14x14xf32>
    tpu.vector_store %arg7[%c0_86, %c0_87, %c0_88], %154 {strides = array<i32>} : memref<1x14x14xf32, #tpu.memory_space<vmem>>, vector<1x14x14xf32>,
    return
  }
}

module attributes {stable_mosaic.version = 11 : i64} {
  func.func @_matmul_bias_kernel(%arg0: i32, %arg1: memref<784x192xbf16, #tpu.memory_space<vmem>>, %arg2: memref<192x128xbf16, #tpu.memory_space<vmem>>, %arg3: memref<1x128xf32, #tpu.memory_space<vmem>>, %arg4: memref<784x128xf32, #tpu.memory_space<vmem>>) attributes {dimension_semantics = [#tpu.dimension_semantics<parallel>], iteration_bounds = array<i64: 2>, scalar_prefetch = 0 : i64, scratch_operands = 0 : i64, tpu.core_type = #tpu.core_type<tc>, window_params = [{transform_indices = @transform_0, window_bounds = array<i64: 784, 192>}, {pipeline_mode = #tpu.pipeline_mode<synchronous>, transform_indices = @transform_1, window_bounds = array<i64: 192, 128>}, {pipeline_mode = #tpu.pipeline_mode<synchronous>, transform_indices = @transform_2, window_bounds = array<i64: 1, 128>}, {transform_indices = @transform_3, window_bounds = array<i64: 784, 128>}]} {
    %c0 = arith.constant 0 : index
    %c0_0 = arith.constant 0 : index
    %0 = vector.load %arg1[%c0, %c0_0] : memref<784x192xbf16, #tpu.memory_space<vmem>>, vector<784x192xbf16>
    %c0_1 = arith.constant 0 : index
    %c0_2 = arith.constant 0 : index
    %1 = vector.load %arg2[%c0_1, %c0_2] : memref<192x128xbf16, #tpu.memory_space<vmem>>, vector<192x128xbf16>
    %cst = arith.constant dense<0.000000e+00> : vector<784x128xf32>
    %2 = tpu.matmul %0, %1, %cst {dimension_numbers = #tpu.dot_dimension_numbers<[1], [0], [0], [1], [0, 0, 1, 1], [], []>} : vector<784x192xbf16>, vector<192x128xbf16>, vector<784x128xf32> -> vector<784x128xf32>
    %c0_3 = arith.constant 0 : index
    %c0_4 = arith.constant 0 : index
    %3 = vector.load %arg3[%c0_3, %c0_4] : memref<1x128xf32, #tpu.memory_space<vmem>>, vector<1x128xf32>
    %4 = vector.broadcast %3 : vector<1x128xf32> to vector<784x128xf32>
    %5 = arith.addf %2, %4 : vector<784x128xf32>
    %c0_5 = arith.constant 0 : index
    %c0_6 = arith.constant 0 : index
    %6 = vector.load %arg4[%c0_5, %c0_6] : memref<784x128xf32, #tpu.memory_space<vmem>>, vector<784x128xf32>
    tpu.vector_store %arg4[%c0_5, %c0_6], %5 {strides = array<i32>} : memref<784x128xf32, #tpu.memory_space<vmem>>, vector<784x128xf32>,
    return
  }
  func.func @transform_0(%arg0: i32) -> (i32, i32) {
    %c0_i32 = arith.constant 0 : i32
    %c0_i32_0 = arith.constant 0 : i32
    return %arg0, %c0_i32 : i32, i32
  }
  func.func @transform_1(%arg0: i32) -> (i32, i32) {
    %c0_i32 = arith.constant 0 : i32
    %c0_i32_0 = arith.constant 0 : i32
    %c0_i32_1 = arith.constant 0 : i32
    return %c0_i32, %c0_i32_0 : i32, i32
  }
  func.func @transform_2(%arg0: i32) -> (i32, i32) {
    %c0_i32 = arith.constant 0 : i32
    %c0_i32_0 = arith.constant 0 : i32
    %c0_i32_1 = arith.constant 0 : i32
    return %c0_i32, %c0_i32_0 : i32, i32
  }
  func.func @transform_3(%arg0: i32) -> (i32, i32) {
    %c0_i32 = arith.constant 0 : i32
    %c0_i32_0 = arith.constant 0 : i32
    return %arg0, %c0_i32 : i32, i32
  }
}

module attributes {stable_mosaic.version = 11 : i64} {
  func.func @_matmul_bias_kernel(%arg0: i32, %arg1: memref<784x48xbf16, #tpu.memory_space<vmem>>, %arg2: memref<48x128xbf16, #tpu.memory_space<vmem>>, %arg3: memref<1x128xf32, #tpu.memory_space<vmem>>, %arg4: memref<784x128xf32, #tpu.memory_space<vmem>>) attributes {dimension_semantics = [#tpu.dimension_semantics<parallel>], iteration_bounds = array<i64: 8>, scalar_prefetch = 0 : i64, scratch_operands = 0 : i64, tpu.core_type = #tpu.core_type<tc>, window_params = [{transform_indices = @transform_0, window_bounds = array<i64: 784, 48>}, {pipeline_mode = #tpu.pipeline_mode<synchronous>, transform_indices = @transform_1, window_bounds = array<i64: 48, 128>}, {pipeline_mode = #tpu.pipeline_mode<synchronous>, transform_indices = @transform_2, window_bounds = array<i64: 1, 128>}, {transform_indices = @transform_3, window_bounds = array<i64: 784, 128>}]} {
    %c0 = arith.constant 0 : index
    %c0_0 = arith.constant 0 : index
    %0 = vector.load %arg1[%c0, %c0_0] : memref<784x48xbf16, #tpu.memory_space<vmem>>, vector<784x48xbf16>
    %c0_1 = arith.constant 0 : index
    %c0_2 = arith.constant 0 : index
    %1 = vector.load %arg2[%c0_1, %c0_2] : memref<48x128xbf16, #tpu.memory_space<vmem>>, vector<48x128xbf16>
    %cst = arith.constant dense<0.000000e+00> : vector<784x128xf32>
    %2 = tpu.matmul %0, %1, %cst {dimension_numbers = #tpu.dot_dimension_numbers<[1], [0], [0], [1], [0, 0, 1, 1], [], []>} : vector<784x48xbf16>, vector<48x128xbf16>, vector<784x128xf32> -> vector<784x128xf32>
    %c0_3 = arith.constant 0 : index
    %c0_4 = arith.constant 0 : index
    %3 = vector.load %arg3[%c0_3, %c0_4] : memref<1x128xf32, #tpu.memory_space<vmem>>, vector<1x128xf32>
    %4 = vector.broadcast %3 : vector<1x128xf32> to vector<784x128xf32>
    %5 = arith.addf %2, %4 : vector<784x128xf32>
    %c0_5 = arith.constant 0 : index
    %c0_6 = arith.constant 0 : index
    %6 = vector.load %arg4[%c0_5, %c0_6] : memref<784x128xf32, #tpu.memory_space<vmem>>, vector<784x128xf32>
    tpu.vector_store %arg4[%c0_5, %c0_6], %5 {strides = array<i32>} : memref<784x128xf32, #tpu.memory_space<vmem>>, vector<784x128xf32>,
    return
  }
  func.func @transform_0(%arg0: i32) -> (i32, i32) {
    %c0_i32 = arith.constant 0 : i32
    %c0_i32_0 = arith.constant 0 : i32
    return %arg0, %c0_i32 : i32, i32
  }
  func.func @transform_1(%arg0: i32) -> (i32, i32) {
    %c0_i32 = arith.constant 0 : i32
    %c0_i32_0 = arith.constant 0 : i32
    %c0_i32_1 = arith.constant 0 : i32
    return %c0_i32, %c0_i32_0 : i32, i32
  }
  func.func @transform_2(%arg0: i32) -> (i32, i32) {
    %c0_i32 = arith.constant 0 : i32
    %c0_i32_0 = arith.constant 0 : i32
    %c0_i32_1 = arith.constant 0 : i32
    return %c0_i32, %c0_i32_0 : i32, i32
  }
  func.func @transform_3(%arg0: i32) -> (i32, i32) {
    %c0_i32 = arith.constant 0 : i32
    %c0_i32_0 = arith.constant 0 : i32
    return %arg0, %c0_i32 : i32, i32
  }
}

</mosaic_0001>

<llo_original>
// kernel: encoder_forward.5
$region0: #{encoder_forward.5}
  #allocation0 [shape = 'u32[]', space=smem, size = 0x4, offset = 0x4, fixed_abs, tag = 'smem constant byte address 0x4 - core index']
  #allocation1 [shape = 'u32[144,128]{1,0:T(1,128)}', space=vmem, size = 0x12000, scoped, tag = 'internal scratch']
  %s0 = inlined_call_operand.vmem [shape: bf16[392,768], index: 0, kind: input, shape index: {}]
  %s1 = inlined_call_operand.vmem [shape: bf16[768,256], index: 1, kind: input, shape index: {}]
  %s2 = inlined_call_operand.vmem [shape: f32[1,256], index: 2, kind: input, shape index: {}]
  %s3 = inlined_call_operand.vmem [shape: f32[392,256], index: 3, kind: output, shape index: {}]
  %s4 = sld [smem:[#allocation0]]
  $region22: #{encoder_forward.5} parent=0
    _
  %s6 = ssub.s32 1, %s4
  %s7 = scalar_select 0, %s6, %s4
  // Predicated region
  $region2: #{encoder_forward.5} parent=0 // pred_check
    _
  $region3: #{encoder_forward.5} parent=0 // pred_check_branch
    %9 = sbr.rel (0) target = $region5
  $region4: #{encoder_forward.5} parent=0 // pred_region
    _
  $region5: #{encoder_forward.5} parent=0 // pred_fallthru
    _
  // Predicated region
  $region6: #{encoder_forward.5} parent=0 // pred_check
    _
  $region7: #{encoder_forward.5} parent=0 // pred_check_branch
    %11 = sbr.rel (0) target = $region9
  $region8: #{encoder_forward.5} parent=0 // pred_region
    _
  $region9: #{encoder_forward.5} parent=0 // pred_fallthru
    _
  // Predicated region
  $region10: #{encoder_forward.5} parent=0 // pred_check
    _
  $region11: #{encoder_forward.5} parent=0 // pred_check_branch
    %13 = sbr.rel (0) target = $region13
  $region12: #{encoder_forward.5} parent=0 // pred_region
    _
  $region13: #{encoder_forward.5} parent=0 // pred_fallthru
    _
  %v14 = vld [vmem:[%s0] sm:$0xff]
  %v15 = vld [vmem:[%s0 + $0x8] sm:$0xff]
  %v16 = vld [vmem:[%s0 + $0x10] sm:$0xff]
  %v17 = vld [vmem:[%s0 + $0x18] sm:$0xff]
  %v18 = vld [vmem:[%s0 + $0x20] sm:$0xff]
  %v19 = vld [vmem:[%s0 + $0x28] sm:$0xff]
  %v20 = vld [vmem:[%s0 + $0x30] sm:$0xff]
  %v21 = vld [vmem:[%s0 + $0x38] sm:$0xff]
  %v22 = vld [vmem:[%s0 + $0x40] sm:$0xff]
  %v23 = vld [vmem:[%s0 + $0x48] sm:$0xff]
  %v24 = vld [vmem:[%s0 + $0x50] sm:$0xff]
  %v25 = vld [vmem:[%s0 + $0x58] sm:$0xff]
  %v26 = vld [vmem:[%s0 + $0x60] sm:$0xff]
  %v27 = vld [vmem:[%s0 + $0x68] sm:$0xff]
  %v28 = vld [vmem:[%s0 + $0x70] sm:$0xff]
  %v29 = vld [vmem:[%s0 + $0x78] sm:$0xff]
  %v30 = vld [vmem:[%s0 + $0x80] sm:$0xff]
  %v31 = vld [vmem:[%s0 + $0x88] sm:$0xff]
  %v32 = vld [vmem:[%s0 + $0x90] sm:$0xff]
  %v33 = vld [vmem:[%s0 + $0x98] sm:$0xff]
  %v34 = vld [vmem:[%s0 + $0xa0] sm:$0xff]
  %v35 = vld [vmem:[%s0 + $0xa8] sm:$0xff]
  %v36 = vld [vmem:[%s0 + $0xb0] sm:$0xff]
  %v37 = vld [vmem:[%s0 + $0xb8] sm:$0xff]
  %v38 = vld [vmem:[%s0 + $0xc0] sm:$0xff]
  %v39 = vld [vmem:[%s0 + $0xc8] sm:$0xff]
  %v40 = vld [vmem:[%s0 + $0xd0] sm:$0xff]
  %v41 = vld [vmem:[%s0 + $0xd8] sm:$0xff]
  %v42 = vld [vmem:[%s0 + $0xe0] sm:$0xff]
  %v43 = vld [vmem:[%s0 + $0xe8] sm:$0xff]
  %v44 = vld [vmem:[%s0 + $0xf0] sm:$0xff]
  %v45 = vld [vmem:[%s0 + $0xf8] sm:$0xff]
  %v46 = vld [vmem:[%s0 + $0x100] sm:$0xff]
  %v47 = vld [vmem:[%s0 + $0x108] sm:$0xff]
  %v48 = vld [vmem:[%s0 + $0x110] sm:$0xff]
  %v49 = vld [vmem:[%s0 + $0x118] sm:$0xff]
  %v50 = vld [vmem:[%s0 + $0x120] sm:$0xff]
  %v51 = vld [vmem:[%s0 + $0x128] sm:$0xff]
  %v52 = vld [vmem:[%s0 + $0x130] sm:$0xff]
  %v53 = vld [vmem:[%s0 + $0x138] sm:$0xff]
  %v54 = vld [vmem:[%s0 + $0x140] sm:$0xff]
  %v55 = vld [vmem:[%s0 + $0x148] sm:$0xff]
  %v56 = vld [vmem:[%s0 + $0x150] sm:$0xff]
  %v57 = vld [vmem:[%s0 + $0x158] sm:$0xff]
  %v58 = vld [vmem:[%s0 + $0x160] sm:$0xff]
  %v59 = vld [vmem:[%s0 + $0x168] sm:$0xff]
  %v60 = vld [vmem:[%s0 + $0x170] sm:$0xff]
  %v61 = vld [vmem:[%s0 + $0x178] sm:$0xff]
  %v62 = vld [vmem:[%s0 + $0x180] sm:$0xff]
  %v63 = vld [vmem:[%s0 + $0x188] sm:$0xff]
  %v64 = vld [vmem:[%s0 + $0x190] sm:$0xff]
  %v65 = vld [vmem:[%s0 + $0x198] sm:$0xff]
  %v66 = vld [vmem:[%s0 + $0x1a0] sm:$0xff]
  %v67 = vld [vmem:[%s0 + $0x1a8] sm:$0xff]
  %v68 = vld [vmem:[%s0 + $0x1b0] sm:$0xff]
  %v69 = vld [vmem:[%s0 + $0x1b8] sm:$0xff]
  %v70 = vld [vmem:[%s0 + $0x1c0] sm:$0xff]
  %v71 = vld [vmem:[%s0 + $0x1c8] sm:$0xff]
  %v72 = vld [vmem:[%s0 + $0x1d0] sm:$0xff]
  %v73 = vld [vmem:[%s0 + $0x1d8] sm:$0xff]
  %v74 = vld [vmem:[%s0 + $0x1e0] sm:$0xff]
  %v75 = vld [vmem:[%s0 + $0x1e8] sm:$0xff]
  %v76 = vld [vmem:[%s0 + $0x1f0] sm:$0xff]
  %v77 = vld [vmem:[%s0 + $0x1f8] sm:$0xff]
  %v78 = vld [vmem:[%s0 + $0x200] sm:$0xff]
  %v79 = vld [vmem:[%s0 + $0x208] sm:$0xff]
  %v80 = vld [vmem:[%s0 + $0x210] sm:$0xff]
  %v81 = vld [vmem:[%s0 + $0x218] sm:$0xff]
  %v82 = vld [vmem:[%s0 + $0x220] sm:$0xff]
  %v83 = vld [vmem:[%s0 + $0x228] sm:$0xff]
  %v84 = vld [vmem:[%s0 + $0x230] sm:$0xff]
  %v85 = vld [vmem:[%s0 + $0x238] sm:$0xff]
  %v86 = vld [vmem:[%s0 + $0x240] sm:$0xff]
  %v87 = vld [vmem:[%s0 + $0x248] sm:$0xff]
  %v88 = vld [vmem:[%s0 + $0x250] sm:$0xff]
  %v89 = vld [vmem:[%s0 + $0x258] sm:$0xff]
  %v90 = vld [vmem:[%s0 + $0x260] sm:$0xff]
  %v91 = vld [vmem:[%s0 + $0x268] sm:$0xff]
  %v92 = vld [vmem:[%s0 + $0x270] sm:$0xff]
  %v93 = vld [vmem:[%s0 + $0x278] sm:$0xff]
  %v94 = vld [vmem:[%s0 + $0x280] sm:$0xff]
  %v95 = vld [vmem:[%s0 + $0x288] sm:$0xff]
  %v96 = vld [vmem:[%s0 + $0x290] sm:$0xff]
  %v97 = vld [vmem:[%s0 + $0x298] sm:$0xff]
  %v98 = vld [vmem:[%s0 + $0x2a0] sm:$0xff]
  %v99 = vld [vmem:[%s0 + $0x2a8] sm:$0xff]
  %v100 = vld [vmem:[%s0 + $0x2b0] sm:$0xff]
  %v101 = vld [vmem:[%s0 + $0x2b8] sm:$0xff]
  %v102 = vld [vmem:[%s0 + $0x2c0] sm:$0xff]
  %v103 = vld [vmem:[%s0 + $0x2c8] sm:$0xff]
  %v104 = vld [vmem:[%s0 + $0x2d0] sm:$0xff]
  %v105 = vld [vmem:[%s0 + $0x2d8] sm:$0xff]
  %v106 = vld [vmem:[%s0 + $0x2e0] sm:$0xff]
  %v107 = vld [vmem:[%s0 + $0x2e8] sm:$0xff]
  %v108 = vld [vmem:[%s0 + $0x2f0] sm:$0xff]
  %v109 = vld [vmem:[%s0 + $0x2f8] sm:$0xff]
  %v110 = vld [vmem:[%s0 + $0x300] sm:$0xff]
  %v111 = vld [vmem:[%s0 + $0x308] sm:$0xff]
  %v112 = vld [vmem:[%s0 + $0x310] sm:$0xff]
  %v113 = vld [vmem:[%s0 + $0x318] sm:$0xff]
  %v114 = vld [vmem:[%s0 + $0x320] sm:$0xff]
  %v115 = vld [vmem:[%s0 + $0x328] sm:$0xff]
  %v116 = vld [vmem:[%s0 + $0x330] sm:$0xff]
  %v117 = vld [vmem:[%s0 + $0x338] sm:$0xff]
  %v118 = vld [vmem:[%s0 + $0x340] sm:$0xff]
  %v119 = vld [vmem:[%s0 + $0x348] sm:$0xff]
  %v120 = vld [vmem:[%s0 + $0x350] sm:$0xff]
  %v121 = vld [vmem:[%s0 + $0x358] sm:$0xff]
  %v122 = vld [vmem:[%s0 + $0x360] sm:$0xff]
  %v123 = vld [vmem:[%s0 + $0x368] sm:$0xff]
  %v124 = vld [vmem:[%s0 + $0x370] sm:$0xff]
  %v125 = vld [vmem:[%s0 + $0x378] sm:$0xff]
  %v126 = vld [vmem:[%s0 + $0x380] sm:$0xff]
  %v127 = vld [vmem:[%s0 + $0x388] sm:$0xff]
  %v128 = vld [vmem:[%s0 + $0x390] sm:$0xff]
  %v129 = vld [vmem:[%s0 + $0x398] sm:$0xff]
  %v130 = vld [vmem:[%s0 + $0x3a0] sm:$0xff]
  %v131 = vld [vmem:[%s0 + $0x3a8] sm:$0xff]
  %v132 = vld [vmem:[%s0 + $0x3b0] sm:$0xff]
  %v133 = vld [vmem:[%s0 + $0x3b8] sm:$0xff]
  %v134 = vld [vmem:[%s0 + $0x3c0] sm:$0xff]
  %v135 = vld [vmem:[%s0 + $0x3c8] sm:$0xff]
  %v136 = vld [vmem:[%s0 + $0x3d0] sm:$0xff]
  %v137 = vld [vmem:[%s0 + $0x3d8] sm:$0xff]
  %v138 = vld [vmem:[%s0 + $0x3e0] sm:$0xff]
  %v139 = vld [vmem:[%s0 + $0x3e8] sm:$0xff]
  %v140 = vld [vmem:[%s0 + $0x3f0] sm:$0xff]
  %v141 = vld [vmem:[%s0 + $0x3f8] sm:$0xff]
  %v142 = vld [vmem:[%s0 + $0x400] sm:$0xff]
  %v143 = vld [vmem:[%s0 + $0x408] sm:$0xff]
  %v144 = vld [vmem:[%s0 + $0x410] sm:$0xff]
  %v145 = vld [vmem:[%s0 + $0x418] sm:$0xff]
  %v146 = vld [vmem:[%s0 + $0x420] sm:$0xff]
  %v147 = vld [vmem:[%s0 + $0x428] sm:$0xff]
  %v148 = vld [vmem:[%s0 + $0x430] sm:$0xff]
  %v149 = vld [vmem:[%s0 + $0x438] sm:$0xff]
  %v150 = vld [vmem:[%s0 + $0x440] sm:$0xff]
  %v151 = vld [vmem:[%s0 + $0x448] sm:$0xff]
  %v152 = vld [vmem:[%s0 + $0x450] sm:$0xff]
  %v153 = vld [vmem:[%s0 + $0x458] sm:$0xff]
  %v154 = vld [vmem:[%s0 + $0x460] sm:$0xff]
  %v155 = vld [vmem:[%s0 + $0x468] sm:$0xff]
  %v156 = vld [vmem:[%s0 + $0x470] sm:$0xff]
  %v157 = vld [vmem:[%s0 + $0x478] sm:$0xff]
  %v158 = vld [vmem:[%s0 + $0x480] sm:$0xff]
  %v159 = vld [vmem:[%s0 + $0x488] sm:$0xff]
  %v160 = vld [vmem:[%s0 + $0x490] sm:$0xff]
  %v161 = vld [vmem:[%s1] sm:$0xff]
  %v162 = vld [vmem:[%s1 + $0x8] sm:$0xff]
  %v163 = vld [vmem:[%s1 + $0x10] sm:$0xff]
  %v164 = vld [vmem:[%s1 + $0x18] sm:$0xff]
  %v165 = vld [vmem:[%s1 + $0x20] sm:$0xff]
  %v166 = vld [vmem:[%s1 + $0x28] sm:$0xff]
  %v167 = vld [vmem:[%s1 + $0x30] sm:$0xff]
  %v168 = vld [vmem:[%s1 + $0x38] sm:$0xff]
  %v169 = vld [vmem:[%s1 + $0x40] sm:$0xff]
  %v170 = vld [vmem:[%s1 + $0x48] sm:$0xff]
  %v171 = vld [vmem:[%s1 + $0x50] sm:$0xff]
  %v172 = vld [vmem:[%s1 + $0x58] sm:$0xff]
  %v173 = vld [vmem:[%s1 + $0x60] sm:$0xff]
  %v174 = vld [vmem:[%s1 + $0x68] sm:$0xff]
  %v175 = vld [vmem:[%s1 + $0x70] sm:$0xff]
  %v176 = vld [vmem:[%s1 + $0x78] sm:$0xff]
  %v177 = vld [vmem:[%s1 + $0x80] sm:$0xff]
  %v178 = vld [vmem:[%s1 + $0x88] sm:$0xff]
  %v179 = vld [vmem:[%s1 + $0x90] sm:$0xff]
  %v180 = vld [vmem:[%s1 + $0x98] sm:$0xff]
  %v181 = vld [vmem:[%s1 + $0xa0] sm:$0xff]
  %v182 = vld [vmem:[%s1 + $0xa8] sm:$0xff]
  %v183 = vld [vmem:[%s1 + $0xb0] sm:$0xff]
  %v184 = vld [vmem:[%s1 + $0xb8] sm:$0xff]
  %v185 = vld [vmem:[%s1 + $0xc0] sm:$0xff]
  %v186 = vld [vmem:[%s1 + $0xc8] sm:$0xff]
  %v187 = vld [vmem:[%s1 + $0xd0] sm:$0xff]
  %v188 = vld [vmem:[%s1 + $0xd8] sm:$0xff]
  %v189 = vld [vmem:[%s1 + $0xe0] sm:$0xff]
  %v190 = vld [vmem:[%s1 + $0xe8] sm:$0xff]
  %v191 = vld [vmem:[%s1 + $0xf0] sm:$0xff]
  %v192 = vld [vmem:[%s1 + $0xf8] sm:$0xff]
  %v193 = vld [vmem:[%s1 + $0x100] sm:$0xff]
  %v194 = vld [vmem:[%s1 + $0x108] sm:$0xff]
  %v195 = vld [vmem:[%s1 + $0x110] sm:$0xff]
  %v196 = vld [vmem:[%s1 + $0x118] sm:$0xff]
  %v197 = vld [vmem:[%s1 + $0x120] sm:$0xff]
  %v198 = vld [vmem:[%s1 + $0x128] sm:$0xff]
  %v199 = vld [vmem:[%s1 + $0x130] sm:$0xff]
  %v200 = vld [vmem:[%s1 + $0x138] sm:$0xff]
  %v201 = vld [vmem:[%s1 + $0x140] sm:$0xff]
  %v202 = vld [vmem:[%s1 + $0x148] sm:$0xff]
  %v203 = vld [vmem:[%s1 + $0x150] sm:$0xff]
  %v204 = vld [vmem:[%s1 + $0x158] sm:$0xff]
  %v205 = vld [vmem:[%s1 + $0x160] sm:$0xff]
  %v206 = vld [vmem:[%s1 + $0x168] sm:$0xff]
  %v207 = vld [vmem:[%s1 + $0x170] sm:$0xff]
  %v208 = vld [vmem:[%s1 + $0x178] sm:$0xff]
  %v209 = vld [vmem:[%s1 + $0x180] sm:$0xff]
  %v210 = vld [vmem:[%s1 + $0x188] sm:$0xff]
  %v211 = vld [vmem:[%s1 + $0x190] sm:$0xff]
  %v212 = vld [vmem:[%s1 + $0x198] sm:$0xff]
  %v213 = vld [vmem:[%s1 + $0x1a0] sm:$0xff]
  %v214 = vld [vmem:[%s1 + $0x1a8] sm:$0xff]
  %v215 = vld [vmem:[%s1 + $0x1b0] sm:$0xff]
  %v216 = vld [vmem:[%s1 + $0x1b8] sm:$0xff]
  %v217 = vld [vmem:[%s1 + $0x1c0] sm:$0xff]
  %v218 = vld [vmem:[%s1 + $0x1c8] sm:$0xff]
  %v219 = vld [vmem:[%s1 + $0x1d0] sm:$0xff]
  %v220 = vld [vmem:[%s1 + $0x1d8] sm:$0xff]
  %v221 = vld [vmem:[%s1 + $0x1e0] sm:$0xff]
  %v222 = vld [vmem:[%s1 + $0x1e8] sm:$0xff]
  %v223 = vld [vmem:[%s1 + $0x1f0] sm:$0xff]
  %v224 = vld [vmem:[%s1 + $0x1f8] sm:$0xff]
  %v225 = vld [vmem:[%s1 + $0x200] sm:$0xff]
  %v226 = vld [vmem:[%s1 + $0x208] sm:$0xff]
  %v227 = vld [vmem:[%s1 + $0x210] sm:$0xff]
  %v228 = vld [vmem:[%s1 + $0x218] sm:$0xff]
  %v229 = vld [vmem:[%s1 + $0x220] sm:$0xff]
  %v230 = vld [vmem:[%s1 + $0x228] sm:$0xff]
  %v231 = vld [vmem:[%s1 + $0x230] sm:$0xff]
  %v232 = vld [vmem:[%s1 + $0x238] sm:$0xff]
  %v233 = vld [vmem:[%s1 + $0x240] sm:$0xff]
  %v234 = vld [vmem:[%s1 + $0x248] sm:$0xff]
  %v235 = vld [vmem:[%s1 + $0x250] sm:$0xff]
  %v236 = vld [vmem:[%s1 + $0x258] sm:$0xff]
  %v237 = vld [vmem:[%s1 + $0x260] sm:$0xff]
  %v238 = vld [vmem:[%s1 + $0x268] sm:$0xff]
  %v239 = vld [vmem:[%s1 + $0x270] sm:$0xff]
  %v240 = vld [vmem:[%s1 + $0x278] sm:$0xff]
  %v241 = vld [vmem:[%s1 + $0x280] sm:$0xff]
  %v242 = vld [vmem:[%s1 + $0x288] sm:$0xff]
  %v243 = vld [vmem:[%s1 + $0x290] sm:$0xff]
  %v244 = vld [vmem:[%s1 + $0x298] sm:$0xff]
  %v245 = vld [vmem:[%s1 + $0x2a0] sm:$0xff]
  %v246 = vld [vmem:[%s1 + $0x2a8] sm:$0xff]
  %v247 = vld [vmem:[%s1 + $0x2b0] sm:$0xff]
  %v248 = vld [vmem:[%s1 + $0x2b8] sm:$0xff]
  %v249 = vld [vmem:[%s1 + $0x2c0] sm:$0xff]
  %v250 = vld [vmem:[%s1 + $0x2c8] sm:$0xff]
  %v251 = vld [vmem:[%s1 + $0x2d0] sm:$0xff]
  %v252 = vld [vmem:[%s1 + $0x2d8] sm:$0xff]
  %v253 = vld [vmem:[%s1 + $0x2e0] sm:$0xff]
  %v254 = vld [vmem:[%s1 + $0x2e8] sm:$0xff]
  %v255 = vld [vmem:[%s1 + $0x2f0] sm:$0xff]
  %v256 = vld [vmem:[%s1 + $0x2f8] sm:$0xff]
  %v257 = vld [vmem:[%s2] sm:$0x3]
  %v259 = vlaneseq
  %v260 = vshrl.u32 %v259, 7
  %v261 = vsub.s32 0, %v260
  %v262 = vrot.slane %v257, %v261
  %v263 = vlaneseq
  %v264 = vshrl.u32 %v263, 7
  %v265 = vsub.s32 1, %v264
  %v266 = vrot.slane %v257, %v265
  %v416 = vunpack.c.l.b16 %v14
  %v417 = vunpack.c.h.b16 %v14
  %v418 = vunpack.c.l.b16 %v15
  %v419 = vunpack.c.h.b16 %v15
  %v420 = vunpack.c.l.b16 %v16
  %v421 = vunpack.c.h.b16 %v16
  %v422 = vunpack.c.l.b16 %v17
  %v423 = vunpack.c.h.b16 %v17
  %v424 = vunpack.c.l.b16 %v18
  %v425 = vunpack.c.h.b16 %v18
  %v426 = vunpack.c.l.b16 %v19
  %v427 = vunpack.c.h.b16 %v19
  %v428 = vunpack.c.l.b16 %v20
  %v429 = vunpack.c.h.b16 %v20
  %v430 = vunpack.c.l.b16 %v21
  %v431 = vunpack.c.h.b16 %v21
  %v432 = vunpack.c.l.b16 %v22
  %v433 = vunpack.c.h.b16 %v22
  %v434 = vunpack.c.l.b16 %v23
  %v435 = vunpack.c.h.b16 %v23
  %v436 = vunpack.c.l.b16 %v24
  %v437 = vunpack.c.h.b16 %v24
  %v438 = vunpack.c.l.b16 %v25
  %v439 = vunpack.c.h.b16 %v25
  %v440 = vunpack.c.l.b16 %v26
  %v441 = vunpack.c.h.b16 %v26
  %v442 = vunpack.c.l.b16 %v27
  %v443 = vunpack.c.h.b16 %v27
  %v444 = vunpack.c.l.b16 %v28
  %v445 = vunpack.c.h.b16 %v28
  %v446 = vunpack.c.l.b16 %v29
  %v447 = vunpack.c.h.b16 %v29
  %v448 = vunpack.c.l.b16 %v30
  %v449 = vunpack.c.h.b16 %v30
  %v450 = vunpack.c.l.b16 %v31
  %v451 = vunpack.c.h.b16 %v31
  %v452 = vunpack.c.l.b16 %v32
  %v453 = vunpack.c.h.b16 %v32
  %v454 = vunpack.c.l.b16 %v33
  %v455 = vunpack.c.h.b16 %v33
  %v456 = vunpack.c.l.b16 %v34
  %v457 = vunpack.c.h.b16 %v34
  %v458 = vunpack.c.l.b16 %v35
  %v459 = vunpack.c.h.b16 %v35
  %v460 = vunpack.c.l.b16 %v36
  %v461 = vunpack.c.h.b16 %v36
  %v462 = vunpack.c.l.b16 %v37
  %v463 = vunpack.c.h.b16 %v37
  %v464 = vunpack.c.l.b16 %v38
  %v465 = vunpack.c.h.b16 %v38
  %v466 = vunpack.c.l.b16 %v39
  %v467 = vunpack.c.h.b16 %v39
  %v468 = vunpack.c.l.b16 %v40
  %v469 = vunpack.c.h.b16 %v40
  %v470 = vunpack.c.l.b16 %v41
  %v471 = vunpack.c.h.b16 %v41
  %v472 = vunpack.c.l.b16 %v42
  %v473 = vunpack.c.h.b16 %v42
  %v474 = vunpack.c.l.b16 %v43
  %v475 = vunpack.c.h.b16 %v43
  %v476 = vunpack.c.l.b16 %v44
  %v477 = vunpack.c.h.b16 %v44
  %v478 = vunpack.c.l.b16 %v45
  %v479 = vunpack.c.h.b16 %v45
  %v480 = vunpack.c.l.b16 %v46
  %v481 = vunpack.c.h.b16 %v46
  %v482 = vunpack.c.l.b16 %v47
  %v483 = vunpack.c.h.b16 %v47
  %v484 = vunpack.c.l.b16 %v48
  %v485 = vunpack.c.h.b16 %v48
  %v486 = vunpack.c.l.b16 %v49
  %v487 = vunpack.c.h.b16 %v49
  %v488 = vunpack.c.l.b16 %v50
  %v489 = vunpack.c.h.b16 %v50
  %v490 = vunpack.c.l.b16 %v51
  %v491 = vunpack.c.h.b16 %v51
  %v492 = vunpack.c.l.b16 %v52
  %v493 = vunpack.c.h.b16 %v52
  %v494 = vunpack.c.l.b16 %v53
  %v495 = vunpack.c.h.b16 %v53
  %v496 = vunpack.c.l.b16 %v54
  %v497 = vunpack.c.h.b16 %v54
  %v498 = vunpack.c.l.b16 %v55
  %v499 = vunpack.c.h.b16 %v55
  %v500 = vunpack.c.l.b16 %v56
  %v501 = vunpack.c.h.b16 %v56
  %v502 = vunpack.c.l.b16 %v57
  %v503 = vunpack.c.h.b16 %v57
  %v504 = vunpack.c.l.b16 %v58
  %v505 = vunpack.c.h.b16 %v58
  %v506 = vunpack.c.l.b16 %v59
  %v507 = vunpack.c.h.b16 %v59
  %v508 = vunpack.c.l.b16 %v60
  %v509 = vunpack.c.h.b16 %v60
  %v510 = vunpack.c.l.b16 %v61
  %v511 = vunpack.c.h.b16 %v61
  %v512 = vunpack.c.l.b16 %v62
  %v513 = vunpack.c.h.b16 %v62
  %v514 = vunpack.c.l.b16 %v63
  %v515 = vunpack.c.h.b16 %v63
  %v516 = vunpack.c.l.b16 %v64
  %v517 = vunpack.c.h.b16 %v64
  %v518 = vunpack.c.l.b16 %v65
  %v519 = vunpack.c.h.b16 %v65
  %v520 = vunpack.c.l.b16 %v66
  %v521 = vunpack.c.h.b16 %v66
  %v522 = vunpack.c.l.b16 %v67
  %v523 = vunpack.c.h.b16 %v67
  %v524 = vunpack.c.l.b16 %v68
  %v525 = vunpack.c.h.b16 %v68
  %v526 = vunpack.c.l.b16 %v69
  %v527 = vunpack.c.h.b16 %v69
  %v528 = vunpack.c.l.b16 %v70
  %v529 = vunpack.c.h.b16 %v70
  %v530 = vunpack.c.l.b16 %v71
  %v531 = vunpack.c.h.b16 %v71
  %v532 = vunpack.c.l.b16 %v72
  %v533 = vunpack.c.h.b16 %v72
  %v534 = vunpack.c.l.b16 %v73
  %v535 = vunpack.c.h.b16 %v73
  %v536 = vunpack.c.l.b16 %v74
  %v537 = vunpack.c.h.b16 %v74
  %v538 = vunpack.c.l.b16 %v75
  %v539 = vunpack.c.h.b16 %v75
  %v540 = vunpack.c.l.b16 %v76
  %v541 = vunpack.c.h.b16 %v76
  %v542 = vunpack.c.l.b16 %v77
  %v543 = vunpack.c.h.b16 %v77
  %v544 = vunpack.c.l.b16 %v78
  %v545 = vunpack.c.h.b16 %v78
  %v546 = vunpack.c.l.b16 %v79
  %v547 = vunpack.c.h.b16 %v79
  %v548 = vunpack.c.l.b16 %v80
  %v549 = vunpack.c.h.b16 %v80
  %v550 = vunpack.c.l.b16 %v81
  %v551 = vunpack.c.h.b16 %v81
  %v552 = vunpack.c.l.b16 %v82
  %v553 = vunpack.c.h.b16 %v82
  %v554 = vunpack.c.l.b16 %v83
  %v555 = vunpack.c.h.b16 %v83
  %v556 = vunpack.c.l.b16 %v84
  %v557 = vunpack.c.h.b16 %v84
  %v558 = vunpack.c.l.b16 %v85
  %v559 = vunpack.c.h.b16 %v85
  %v560 = vunpack.c.l.b16 %v86
  %v561 = vunpack.c.h.b16 %v86
  %v562 = vunpack.c.l.b16 %v87
  %v563 = vunpack.c.h.b16 %v87
  %v564 = vunpack.c.l.b16 %v88
  %v565 = vunpack.c.h.b16 %v88
  %v566 = vunpack.c.l.b16 %v89
  %v567 = vunpack.c.h.b16 %v89
  %v568 = vunpack.c.l.b16 %v90
  %v569 = vunpack.c.h.b16 %v90
  %v570 = vunpack.c.l.b16 %v91
  %v571 = vunpack.c.h.b16 %v91
  %v572 = vunpack.c.l.b16 %v92
  %v573 = vunpack.c.h.b16 %v92
  %v574 = vunpack.c.l.b16 %v93
  %v575 = vunpack.c.h.b16 %v93
  %v576 = vunpack.c.l.b16 %v94
  %v577 = vunpack.c.h.b16 %v94
  %v578 = vunpack.c.l.b16 %v95
  %v579 = vunpack.c.h.b16 %v95
  %v580 = vunpack.c.l.b16 %v96
  %v581 = vunpack.c.h.b16 %v96
  %v582 = vunpack.c.l.b16 %v97
  %v583 = vunpack.c.h.b16 %v97
  %v584 = vunpack.c.l.b16 %v98
  %v585 = vunpack.c.h.b16 %v98
  %v586 = vunpack.c.l.b16 %v99
  %v587 = vunpack.c.h.b16 %v99
  %v588 = vunpack.c.l.b16 %v100
  %v589 = vunpack.c.h.b16 %v100
  %v590 = vunpack.c.l.b16 %v101
  %v591 = vunpack.c.h.b16 %v101
  %v592 = vunpack.c.l.b16 %v102
  %v593 = vunpack.c.h.b16 %v102
  %v594 = vunpack.c.l.b16 %v103
  %v595 = vunpack.c.h.b16 %v103
  %v596 = vunpack.c.l.b16 %v104
  %v597 = vunpack.c.h.b16 %v104
  %v598 = vunpack.c.l.b16 %v105
  %v599 = vunpack.c.h.b16 %v105
  %v600 = vunpack.c.l.b16 %v106
  %v601 = vunpack.c.h.b16 %v106
  %v602 = vunpack.c.l.b16 %v107
  %v603 = vunpack.c.h.b16 %v107
  %v604 = vunpack.c.l.b16 %v108
  %v605 = vunpack.c.h.b16 %v108
  %v606 = vunpack.c.l.b16 %v109
  %v607 = vunpack.c.h.b16 %v109
  %v608 = vunpack.c.l.b16 %v110
  %v609 = vunpack.c.h.b16 %v110
  %v610 = vunpack.c.l.b16 %v111
  %v611 = vunpack.c.h.b16 %v111
  %v612 = vunpack.c.l.b16 %v112
  %v613 = vunpack.c.h.b16 %v112
  %v614 = vunpack.c.l.b16 %v113
  %v615 = vunpack.c.h.b16 %v113
  %v616 = vunpack.c.l.b16 %v114
  %v617 = vunpack.c.h.b16 %v114
  %v618 = vunpack.c.l.b16 %v115
  %v619 = vunpack.c.h.b16 %v115
  %v620 = vunpack.c.l.b16 %v116
  %v621 = vunpack.c.h.b16 %v116
  %v622 = vunpack.c.l.b16 %v117
  %v623 = vunpack.c.h.b16 %v117
  %v624 = vunpack.c.l.b16 %v118
  %v625 = vunpack.c.h.b16 %v118
  %v626 = vunpack.c.l.b16 %v119
  %v627 = vunpack.c.h.b16 %v119
  %v628 = vunpack.c.l.b16 %v120
  %v629 = vunpack.c.h.b16 %v120
  %v630 = vunpack.c.l.b16 %v121
  %v631 = vunpack.c.h.b16 %v121
  %v632 = vunpack.c.l.b16 %v122
  %v633 = vunpack.c.h.b16 %v122
  %v634 = vunpack.c.l.b16 %v123
  %v635 = vunpack.c.h.b16 %v123
  %v636 = vunpack.c.l.b16 %v124
  %v637 = vunpack.c.h.b16 %v124
  %v638 = vunpack.c.l.b16 %v125
  %v639 = vunpack.c.h.b16 %v125
  %v640 = vunpack.c.l.b16 %v126
  %v641 = vunpack.c.h.b16 %v126
  %v642 = vunpack.c.l.b16 %v127
  %v643 = vunpack.c.h.b16 %v127
  %v644 = vunpack.c.l.b16 %v128
  %v645 = vunpack.c.h.b16 %v128
  %v646 = vunpack.c.l.b16 %v129
  %v647 = vunpack.c.h.b16 %v129
  %v648 = vunpack.c.l.b16 %v130
  %v649 = vunpack.c.h.b16 %v130
  %v650 = vunpack.c.l.b16 %v131
  %v651 = vunpack.c.h.b16 %v131
  %v652 = vunpack.c.l.b16 %v132
  %v653 = vunpack.c.h.b16 %v132
  %v654 = vunpack.c.l.b16 %v133
  %v655 = vunpack.c.h.b16 %v133
  %v656 = vunpack.c.l.b16 %v134
  %v657 = vunpack.c.h.b16 %v134
  %v658 = vunpack.c.l.b16 %v135
  %v659 = vunpack.c.h.b16 %v135
  %v660 = vunpack.c.l.b16 %v136
  %v661 = vunpack.c.h.b16 %v136
  %v662 = vunpack.c.l.b16 %v137
  %v663 = vunpack.c.h.b16 %v137
  %v664 = vunpack.c.l.b16 %v138
  %v665 = vunpack.c.h.b16 %v138
  %v666 = vunpack.c.l.b16 %v139
  %v667 = vunpack.c.h.b16 %v139
  %v668 = vunpack.c.l.b16 %v140
  %v669 = vunpack.c.h.b16 %v140
  %v670 = vunpack.c.l.b16 %v141
  %v671 = vunpack.c.h.b16 %v141
  %v672 = vunpack.c.l.b16 %v142
  %v673 = vunpack.c.h.b16 %v142
  %v674 = vunpack.c.l.b16 %v143
  %v675 = vunpack.c.h.b16 %v143
  %v676 = vunpack.c.l.b16 %v144
  %v677 = vunpack.c.h.b16 %v144
  %v678 = vunpack.c.l.b16 %v145
  %v679 = vunpack.c.h.b16 %v145
  %v680 = vunpack.c.l.b16 %v146
  %v681 = vunpack.c.h.b16 %v146
  %v682 = vunpack.c.l.b16 %v147
  %v683 = vunpack.c.h.b16 %v147
  %v684 = vunpack.c.l.b16 %v148
  %v685 = vunpack.c.h.b16 %v148
  %v686 = vunpack.c.l.b16 %v149
  %v687 = vunpack.c.h.b16 %v149
  %v688 = vunpack.c.l.b16 %v150
  %v689 = vunpack.c.h.b16 %v150
  %v690 = vunpack.c.l.b16 %v151
  %v691 = vunpack.c.h.b16 %v151
  %v692 = vunpack.c.l.b16 %v152
  %v693 = vunpack.c.h.b16 %v152
  %v694 = vunpack.c.l.b16 %v153
  %v695 = vunpack.c.h.b16 %v153
  %v696 = vunpack.c.l.b16 %v154
  %v697 = vunpack.c.h.b16 %v154
  %v698 = vunpack.c.l.b16 %v155
  %v699 = vunpack.c.h.b16 %v155
  %v700 = vunpack.c.l.b16 %v156
  %v701 = vunpack.c.h.b16 %v156
  %v702 = vunpack.c.l.b16 %v157
  %v703 = vunpack.c.h.b16 %v157
  %v704 = vunpack.c.l.b16 %v158
  %v705 = vunpack.c.h.b16 %v158
  %v706 = vunpack.c.l.b16 %v159
  %v707 = vunpack.c.h.b16 %v159
  %v708 = vunpack.c.l.b16 %v160
  %v709 = vunpack.c.h.b16 %v160
  %v710 = vpack.c.b16 %v422, %v416
  %v711 = vpack.c.b16 %v423, %v417
  %v712 = vpack.c.b16 %v424, %v418
  %v713 = vpack.c.b16 %v425, %v419
  %v714 = vpack.c.b16 %v426, %v420
  %v715 = vpack.c.b16 %v427, %v421
  %v716 = vpack.c.b16 %v434, %v428
  %v717 = vpack.c.b16 %v435, %v429
  %v718 = vpack.c.b16 %v436, %v430
  %v719 = vpack.c.b16 %v437, %v431
  %v720 = vpack.c.b16 %v438, %v432
  %v721 = vpack.c.b16 %v439, %v433
  %v722 = vpack.c.b16 %v446, %v440
  %v723 = vpack.c.b16 %v447, %v441
  %v724 = vpack.c.b16 %v448, %v442
  %v725 = vpack.c.b16 %v449, %v443
  %v726 = vpack.c.b16 %v450, %v444
  %v727 = vpack.c.b16 %v451, %v445
  %v728 = vpack.c.b16 %v458, %v452
  %v729 = vpack.c.b16 %v459, %v453
  %v730 = vpack.c.b16 %v460, %v454
  %v731 = vpack.c.b16 %v461, %v455
  %v732 = vpack.c.b16 %v462, %v456
  %v733 = vpack.c.b16 %v463, %v457
  %v734 = vpack.c.b16 %v470, %v464
  %v735 = vpack.c.b16 %v471, %v465
  %v736 = vpack.c.b16 %v472, %v466
  %v737 = vpack.c.b16 %v473, %v467
  %v738 = vpack.c.b16 %v474, %v468
  %v739 = vpack.c.b16 %v475, %v469
  %v740 = vpack.c.b16 %v482, %v476
  %v741 = vpack.c.b16 %v483, %v477
  %v742 = vpack.c.b16 %v484, %v478
  %v743 = vpack.c.b16 %v485, %v479
  %v744 = vpack.c.b16 %v486, %v480
  %v745 = vpack.c.b16 %v487, %v481
  %v746 = vpack.c.b16 %v494, %v488
  %v747 = vpack.c.b16 %v495, %v489
  %v748 = vpack.c.b16 %v496, %v490
  %v749 = vpack.c.b16 %v497, %v491
  %v750 = vpack.c.b16 %v498, %v492
  %v751 = vpack.c.b16 %v499, %v493
  %v752 = vpack.c.b16 %v506, %v500
  %v753 = vpack.c.b16 %v507, %v501
  %v754 = vpack.c.b16 %v508, %v502
  %v755 = vpack.c.b16 %v509, %v503
  %v756 = vpack.c.b16 %v510, %v504
  %v757 = vpack.c.b16 %v511, %v505
  %v758 = vpack.c.b16 %v518, %v512
  %v759 = vpack.c.b16 %v519, %v513
  %v760 = vpack.c.b16 %v520, %v514
  %v761 = vpack.c.b16 %v521, %v515
  %v762 = vpack.c.b16 %v522, %v516
  %v763 = vpack.c.b16 %v523, %v517
  %v764 = vpack.c.b16 %v530, %v524
  %v765 = vpack.c.b16 %v531, %v525
  %v766 = vpack.c.b16 %v532, %v526
  %v767 = vpack.c.b16 %v533, %v527
  %v768 = vpack.c.b16 %v534, %v528
  %v769 = vpack.c.b16 %v535, %v529
  %v770 = vpack.c.b16 %v542, %v536
  %v771 = vpack.c.b16 %v543, %v537
  %v772 = vpack.c.b16 %v544, %v538
  %v773 = vpack.c.b16 %v545, %v539
  %v774 = vpack.c.b16 %v546, %v540
  %v775 = vpack.c.b16 %v547, %v541
  %v776 = vpack.c.b16 %v554, %v548
  %v777 = vpack.c.b16 %v555, %v549
  %v778 = vpack.c.b16 %v556, %v550
  %v779 = vpack.c.b16 %v557, %v551
  %v780 = vpack.c.b16 %v558, %v552
  %v781 = vpack.c.b16 %v559, %v553
  %v782 = vpack.c.b16 %v566, %v560
  %v783 = vpack.c.b16 %v567, %v561
  %v784 = vpack.c.b16 %v568, %v562
  %v785 = vpack.c.b16 %v569, %v563
  %v786 = vpack.c.b16 %v570, %v564
  %v787 = vpack.c.b16 %v571, %v565
  %v788 = vpack.c.b16 %v578, %v572
  %v789 = vpack.c.b16 %v579, %v573
  %v790 = vpack.c.b16 %v580, %v574
  %v791 = vpack.c.b16 %v581, %v575
  %v792 = vpack.c.b16 %v582, %v576
  %v793 = vpack.c.b16 %v583, %v577
  %v794 = vpack.c.b16 %v590, %v584
  %v795 = vpack.c.b16 %v591, %v585
  %v796 = vpack.c.b16 %v592, %v586
  %v797 = vpack.c.b16 %v593, %v587
  %v798 = vpack.c.b16 %v594, %v588
  %v799 = vpack.c.b16 %v595, %v589
  %v800 = vpack.c.b16 %v602, %v596
  %v801 = vpack.c.b16 %v603, %v597
  %v802 = vpack.c.b16 %v604, %v598
  %v803 = vpack.c.b16 %v605, %v599
  %v804 = vpack.c.b16 %v606, %v600
  %v805 = vpack.c.b16 %v607, %v601
  %v806 = vpack.c.b16 %v614, %v608
  %v807 = vpack.c.b16 %v615, %v609
  %v808 = vpack.c.b16 %v616, %v610
  %v809 = vpack.c.b16 %v617, %v611
  %v810 = vpack.c.b16 %v618, %v612
  %v811 = vpack.c.b16 %v619, %v613
  %v812 = vpack.c.b16 %v626, %v620
  %v813 = vpack.c.b16 %v627, %v621
  %v814 = vpack.c.b16 %v628, %v622
  %v815 = vpack.c.b16 %v629, %v623
  %v816 = vpack.c.b16 %v630, %v624
  %v817 = vpack.c.b16 %v631, %v625
  %v818 = vpack.c.b16 %v638, %v632
  %v819 = vpack.c.b16 %v639, %v633
  %v820 = vpack.c.b16 %v640, %v634
  %v821 = vpack.c.b16 %v641, %v635
  %v822 = vpack.c.b16 %v642, %v636
  %v823 = vpack.c.b16 %v643, %v637
  %v824 = vpack.c.b16 %v650, %v644
  %v825 = vpack.c.b16 %v651, %v645
  %v826 = vpack.c.b16 %v652, %v646
  %v827 = vpack.c.b16 %v653, %v647
  %v828 = vpack.c.b16 %v654, %v648
  %v829 = vpack.c.b16 %v655, %v649
  %v830 = vpack.c.b16 %v662, %v656
  %v831 = vpack.c.b16 %v663, %v657
  %v832 = vpack.c.b16 %v664, %v658
  %v833 = vpack.c.b16 %v665, %v659
  %v834 = vpack.c.b16 %v666, %v660
  %v835 = vpack.c.b16 %v667, %v661
  %v836 = vpack.c.b16 %v674, %v668
  %v837 = vpack.c.b16 %v675, %v669
  %v838 = vpack.c.b16 %v676, %v670
  %v839 = vpack.c.b16 %v677, %v671
  %v840 = vpack.c.b16 %v678, %v672
  %v841 = vpack.c.b16 %v679, %v673
  %v842 = vpack.c.b16 %v686, %v680
  %v843 = vpack.c.b16 %v687, %v681
  %v844 = vpack.c.b16 %v688, %v682
  %v845 = vpack.c.b16 %v689, %v683
  %v846 = vpack.c.b16 %v690, %v684
  %v847 = vpack.c.b16 %v691, %v685
  %v848 = vpack.c.b16 %v698, %v692
  %v849 = vpack.c.b16 %v699, %v693
  %v850 = vpack.c.b16 %v700, %v694
  %v851 = vpack.c.b16 %v701, %v695
  %v852 = vpack.c.b16 %v702, %v696
  %v853 = vpack.c.b16 %v703, %v697
  %v854 = vpack.c.b16 %v704, %v704
  %v855 = vpack.c.b16 %v705, %v705
  %v856 = vpack.c.b16 %v706, %v706
  %v857 = vpack.c.b16 %v707, %v707
  %v858 = vpack.c.b16 %v708, %v708
  %v859 = vpack.c.b16 %v709, %v709
  %v1106 = vunpack.c.l.b16 %v161
  %v1107 = vunpack.c.h.b16 %v161
  %v1108 = vunpack.c.l.b16 %v162
  %v1109 = vunpack.c.h.b16 %v162
  %v1110 = vunpack.c.l.b16 %v163
  %v1111 = vunpack.c.h.b16 %v163
  %v1112 = vunpack.c.l.b16 %v164
  %v1113 = vunpack.c.h.b16 %v164
  %v1114 = vunpack.c.l.b16 %v165
  %v1115 = vunpack.c.h.b16 %v165
  %v1116 = vunpack.c.l.b16 %v166
  %v1117 = vunpack.c.h.b16 %v166
  %v1118 = vunpack.c.l.b16 %v167
  %v1119 = vunpack.c.h.b16 %v167
  %v1120 = vunpack.c.l.b16 %v168
  %v1121 = vunpack.c.h.b16 %v168
  %v1122 = vunpack.c.l.b16 %v169
  %v1123 = vunpack.c.h.b16 %v169
  %v1124 = vunpack.c.l.b16 %v170
  %v1125 = vunpack.c.h.b16 %v170
  %v1126 = vunpack.c.l.b16 %v171
  %v1127 = vunpack.c.h.b16 %v171
  %v1128 = vunpack.c.l.b16 %v172
  %v1129 = vunpack.c.h.b16 %v172
  %v1130 = vunpack.c.l.b16 %v173
  %v1131 = vunpack.c.h.b16 %v173
  %v1132 = vunpack.c.l.b16 %v174
  %v1133 = vunpack.c.h.b16 %v174
  %v1134 = vunpack.c.l.b16 %v175
  %v1135 = vunpack.c.h.b16 %v175
  %v1136 = vunpack.c.l.b16 %v176
  %v1137 = vunpack.c.h.b16 %v176
  %v1138 = vunpack.c.l.b16 %v177
  %v1139 = vunpack.c.h.b16 %v177
  %v1140 = vunpack.c.l.b16 %v178
  %v1141 = vunpack.c.h.b16 %v178
  %v1142 = vunpack.c.l.b16 %v179
  %v1143 = vunpack.c.h.b16 %v179
  %v1144 = vunpack.c.l.b16 %v180
  %v1145 = vunpack.c.h.b16 %v180
  %v1146 = vunpack.c.l.b16 %v181
  %v1147 = vunpack.c.h.b16 %v181
  %v1148 = vunpack.c.l.b16 %v182
  %v1149 = vunpack.c.h.b16 %v182
  %v1150 = vunpack.c.l.b16 %v183
  %v1151 = vunpack.c.h.b16 %v183
  %v1152 = vunpack.c.l.b16 %v184
  %v1153 = vunpack.c.h.b16 %v184
  %v1154 = vunpack.c.l.b16 %v185
  %v1155 = vunpack.c.h.b16 %v185
  %v1156 = vunpack.c.l.b16 %v186
  %v1157 = vunpack.c.h.b16 %v186
  %v1158 = vunpack.c.l.b16 %v187
  %v1159 = vunpack.c.h.b16 %v187
  %v1160 = vunpack.c.l.b16 %v188
  %v1161 = vunpack.c.h.b16 %v188
  %v1162 = vunpack.c.l.b16 %v189
  %v1163 = vunpack.c.h.b16 %v189
  %v1164 = vunpack.c.l.b16 %v190
  %v1165 = vunpack.c.h.b16 %v190
  %v1166 = vunpack.c.l.b16 %v191
  %v1167 = vunpack.c.h.b16 %v191
  %v1168 = vunpack.c.l.b16 %v192
  %v1169 = vunpack.c.h.b16 %v192
  %v1170 = vunpack.c.l.b16 %v193
  %v1171 = vunpack.c.h.b16 %v193
  %v1172 = vunpack.c.l.b16 %v194
  %v1173 = vunpack.c.h.b16 %v194
  %v1174 = vunpack.c.l.b16 %v195
  %v1175 = vunpack.c.h.b16 %v195
  %v1176 = vunpack.c.l.b16 %v196
  %v1177 = vunpack.c.h.b16 %v196
  %v1178 = vunpack.c.l.b16 %v197
  %v1179 = vunpack.c.h.b16 %v197
  %v1180 = vunpack.c.l.b16 %v198
  %v1181 = vunpack.c.h.b16 %v198
  %v1182 = vunpack.c.l.b16 %v199
  %v1183 = vunpack.c.h.b16 %v199
  %v1184 = vunpack.c.l.b16 %v200
  %v1185 = vunpack.c.h.b16 %v200
  %v1186 = vunpack.c.l.b16 %v201
  %v1187 = vunpack.c.h.b16 %v201
  %v1188 = vunpack.c.l.b16 %v202
  %v1189 = vunpack.c.h.b16 %v202
  %v1190 = vunpack.c.l.b16 %v203
  %v1191 = vunpack.c.h.b16 %v203
  %v1192 = vunpack.c.l.b16 %v204
  %v1193 = vunpack.c.h.b16 %v204
  %v1194 = vunpack.c.l.b16 %v205
  %v1195 = vunpack.c.h.b16 %v205
  %v1196 = vunpack.c.l.b16 %v206
  %v1197 = vunpack.c.h.b16 %v206
  %v1198 = vunpack.c.l.b16 %v207
  %v1199 = vunpack.c.h.b16 %v207
  %v1200 = vunpack.c.l.b16 %v208
  %v1201 = vunpack.c.h.b16 %v208
  %v1202 = vunpack.c.l.b16 %v209
  %v1203 = vunpack.c.h.b16 %v209
  %v1204 = vunpack.c.l.b16 %v210
  %v1205 = vunpack.c.h.b16 %v210
  %v1206 = vunpack.c.l.b16 %v211
  %v1207 = vunpack.c.h.b16 %v211
  %v1208 = vunpack.c.l.b16 %v212
  %v1209 = vunpack.c.h.b16 %v212
  %v1210 = vunpack.c.l.b16 %v213
  %v1211 = vunpack.c.h.b16 %v213
  %v1212 = vunpack.c.l.b16 %v214
  %v1213 = vunpack.c.h.b16 %v214
  %v1214 = vunpack.c.l.b16 %v215
  %v1215 = vunpack.c.h.b16 %v215
  %v1216 = vunpack.c.l.b16 %v216
  %v1217 = vunpack.c.h.b16 %v216
  %v1218 = vunpack.c.l.b16 %v217
  %v1219 = vunpack.c.h.b16 %v217
  %v1220 = vunpack.c.l.b16 %v218
  %v1221 = vunpack.c.h.b16 %v218
  %v1222 = vunpack.c.l.b16 %v219
  %v1223 = vunpack.c.h.b16 %v219
  %v1224 = vunpack.c.l.b16 %v220
  %v1225 = vunpack.c.h.b16 %v220
  %v1226 = vunpack.c.l.b16 %v221
  %v1227 = vunpack.c.h.b16 %v221
  %v1228 = vunpack.c.l.b16 %v222
  %v1229 = vunpack.c.h.b16 %v222
  %v1230 = vunpack.c.l.b16 %v223
  %v1231 = vunpack.c.h.b16 %v223
  %v1232 = vunpack.c.l.b16 %v224
  %v1233 = vunpack.c.h.b16 %v224
  %v1234 = vunpack.c.l.b16 %v225
  %v1235 = vunpack.c.h.b16 %v225
  %v1236 = vunpack.c.l.b16 %v226
  %v1237 = vunpack.c.h.b16 %v226
  %v1238 = vunpack.c.l.b16 %v227
  %v1239 = vunpack.c.h.b16 %v227
  %v1240 = vunpack.c.l.b16 %v228
  %v1241 = vunpack.c.h.b16 %v228
  %v1242 = vunpack.c.l.b16 %v229
  %v1243 = vunpack.c.h.b16 %v229
  %v1244 = vunpack.c.l.b16 %v230
  %v1245 = vunpack.c.h.b16 %v230
  %v1246 = vunpack.c.l.b16 %v231
  %v1247 = vunpack.c.h.b16 %v231
  %v1248 = vunpack.c.l.b16 %v232
  %v1249 = vunpack.c.h.b16 %v232
  %v1250 = vunpack.c.l.b16 %v233
  %v1251 = vunpack.c.h.b16 %v233
  %v1252 = vunpack.c.l.b16 %v234
  %v1253 = vunpack.c.h.b16 %v234
  %v1254 = vunpack.c.l.b16 %v235
  %v1255 = vunpack.c.h.b16 %v235
  %v1256 = vunpack.c.l.b16 %v236
  %v1257 = vunpack.c.h.b16 %v236
  %v1258 = vunpack.c.l.b16 %v237
  %v1259 = vunpack.c.h.b16 %v237
  %v1260 = vunpack.c.l.b16 %v238
  %v1261 = vunpack.c.h.b16 %v238
  %v1262 = vunpack.c.l.b16 %v239
  %v1263 = vunpack.c.h.b16 %v239
  %v1264 = vunpack.c.l.b16 %v240
  %v1265 = vunpack.c.h.b16 %v240
  %v1266 = vunpack.c.l.b16 %v241
  %v1267 = vunpack.c.h.b16 %v241
  %v1268 = vunpack.c.l.b16 %v242
  %v1269 = vunpack.c.h.b16 %v242
  %v1270 = vunpack.c.l.b16 %v243
  %v1271 = vunpack.c.h.b16 %v243
  %v1272 = vunpack.c.l.b16 %v244
  %v1273 = vunpack.c.h.b16 %v244
  %v1274 = vunpack.c.l.b16 %v245
  %v1275 = vunpack.c.h.b16 %v245
  %v1276 = vunpack.c.l.b16 %v246
  %v1277 = vunpack.c.h.b16 %v246
  %v1278 = vunpack.c.l.b16 %v247
  %v1279 = vunpack.c.h.b16 %v247
  %v1280 = vunpack.c.l.b16 %v248
  %v1281 = vunpack.c.h.b16 %v248
  %v1282 = vunpack.c.l.b16 %v249
  %v1283 = vunpack.c.h.b16 %v249
  %v1284 = vunpack.c.l.b16 %v250
  %v1285 = vunpack.c.h.b16 %v250
  %v1286 = vunpack.c.l.b16 %v251
  %v1287 = vunpack.c.h.b16 %v251
  %v1288 = vunpack.c.l.b16 %v252
  %v1289 = vunpack.c.h.b16 %v252
  %v1290 = vunpack.c.l.b16 %v253
  %v1291 = vunpack.c.h.b16 %v253
  %v1292 = vunpack.c.l.b16 %v254
  %v1293 = vunpack.c.h.b16 %v254
  %v1294 = vunpack.c.l.b16 %v255
  %v1295 = vunpack.c.h.b16 %v255
  %v1296 = vunpack.c.l.b16 %v256
  %v1297 = vunpack.c.h.b16 %v256
  %v1298 = vpack.c.b16 %v1108, %v1106
  %v1299 = vpack.c.b16 %v1109, %v1107
  %v1300 = vpack.c.b16 %v1112, %v1110
  %v1301 = vpack.c.b16 %v1113, %v1111
  %v1302 = vpack.c.b16 %v1116, %v1114
  %v1303 = vpack.c.b16 %v1117, %v1115
  %v1304 = vpack.c.b16 %v1120, %v1118
  %v1305 = vpack.c.b16 %v1121, %v1119
  %v1306 = vpack.c.b16 %v1124, %v1122
  %v1307 = vpack.c.b16 %v1125, %v1123
  %v1308 = vpack.c.b16 %v1128, %v1126
  %v1309 = vpack.c.b16 %v1129, %v1127
  %v1310 = vpack.c.b16 %v1132, %v1130
  %v1311 = vpack.c.b16 %v1133, %v1131
  %v1312 = vpack.c.b16 %v1136, %v1134
  %v1313 = vpack.c.b16 %v1137, %v1135
  %v1314 = vpack.c.b16 %v1140, %v1138
  %v1315 = vpack.c.b16 %v1141, %v1139
  %v1316 = vpack.c.b16 %v1144, %v1142
  %v1317 = vpack.c.b16 %v1145, %v1143
  %v1318 = vpack.c.b16 %v1148, %v1146
  %v1319 = vpack.c.b16 %v1149, %v1147
  %v1320 = vpack.c.b16 %v1152, %v1150
  %v1321 = vpack.c.b16 %v1153, %v1151
  %v1322 = vpack.c.b16 %v1156, %v1154
  %v1323 = vpack.c.b16 %v1157, %v1155
  %v1324 = vpack.c.b16 %v1160, %v1158
  %v1325 = vpack.c.b16 %v1161, %v1159
  %v1326 = vpack.c.b16 %v1164, %v1162
  %v1327 = vpack.c.b16 %v1165, %v1163
  %v1328 = vpack.c.b16 %v1168, %v1166
  %v1329 = vpack.c.b16 %v1169, %v1167
  %v1330 = vpack.c.b16 %v1172, %v1170
  %v1331 = vpack.c.b16 %v1173, %v1171
  %v1332 = vpack.c.b16 %v1176, %v1174
  %v1333 = vpack.c.b16 %v1177, %v1175
  %v1334 = vpack.c.b16 %v1180, %v1178
  %v1335 = vpack.c.b16 %v1181, %v1179
  %v1336 = vpack.c.b16 %v1184, %v1182
  %v1337 = vpack.c.b16 %v1185, %v1183
  %v1338 = vpack.c.b16 %v1188, %v1186
  %v1339 = vpack.c.b16 %v1189, %v1187
  %v1340 = vpack.c.b16 %v1192, %v1190
  %v1341 = vpack.c.b16 %v1193, %v1191
  %v1342 = vpack.c.b16 %v1196, %v1194
  %v1343 = vpack.c.b16 %v1197, %v1195
  %v1344 = vpack.c.b16 %v1200, %v1198
  %v1345 = vpack.c.b16 %v1201, %v1199
  %v1346 = vpack.c.b16 %v1204, %v1202
  %v1347 = vpack.c.b16 %v1205, %v1203
  %v1348 = vpack.c.b16 %v1208, %v1206
  %v1349 = vpack.c.b16 %v1209, %v1207
  %v1350 = vpack.c.b16 %v1212, %v1210
  %v1351 = vpack.c.b16 %v1213, %v1211
  %v1352 = vpack.c.b16 %v1216, %v1214
  %v1353 = vpack.c.b16 %v1217, %v1215
  %v1354 = vpack.c.b16 %v1220, %v1218
  %v1355 = vpack.c.b16 %v1221, %v1219
  %v1356 = vpack.c.b16 %v1224, %v1222
  %v1357 = vpack.c.b16 %v1225, %v1223
  %v1358 = vpack.c.b16 %v1228, %v1226
  %v1359 = vpack.c.b16 %v1229, %v1227
  %v1360 = vpack.c.b16 %v1232, %v1230
  %v1361 = vpack.c.b16 %v1233, %v1231
  %v1362 = vpack.c.b16 %v1236, %v1234
  %v1363 = vpack.c.b16 %v1237, %v1235
  %v1364 = vpack.c.b16 %v1240, %v1238
  %v1365 = vpack.c.b16 %v1241, %v1239
  %v1366 = vpack.c.b16 %v1244, %v1242
  %v1367 = vpack.c.b16 %v1245, %v1243
  %v1368 = vpack.c.b16 %v1248, %v1246
  %v1369 = vpack.c.b16 %v1249, %v1247
  %v1370 = vpack.c.b16 %v1252, %v1250
  %v1371 = vpack.c.b16 %v1253, %v1251
  %v1372 = vpack.c.b16 %v1256, %v1254
  %v1373 = vpack.c.b16 %v1257, %v1255
  %v1374 = vpack.c.b16 %v1260, %v1258
  %v1375 = vpack.c.b16 %v1261, %v1259
  %v1376 = vpack.c.b16 %v1264, %v1262
  %v1377 = vpack.c.b16 %v1265, %v1263
  %v1378 = vpack.c.b16 %v1268, %v1266
  %v1379 = vpack.c.b16 %v1269, %v1267
  %v1380 = vpack.c.b16 %v1272, %v1270
  %v1381 = vpack.c.b16 %v1273, %v1271
  %v1382 = vpack.c.b16 %v1276, %v1274
  %v1383 = vpack.c.b16 %v1277, %v1275
  %v1384 = vpack.c.b16 %v1280, %v1278
  %v1385 = vpack.c.b16 %v1281, %v1279
  %v1386 = vpack.c.b16 %v1284, %v1282
  %v1387 = vpack.c.b16 %v1285, %v1283
  %v1388 = vpack.c.b16 %v1288, %v1286
  %v1389 = vpack.c.b16 %v1289, %v1287
  %v1390 = vpack.c.b16 %v1292, %v1290
  %v1391 = vpack.c.b16 %v1293, %v1291
  %v1392 = vpack.c.b16 %v1296, %v1294
  %v1393 = vpack.c.b16 %v1297, %v1295
  %1490 = vmatprep.subr.bf16.mxu0 %v1299
  %1491 = vmatpush1.bf16.msra.mxu0 %v1298
  %1492 = vmatprep.subr.bf16.mxu0 %v1301
  %1493 = vmatpush1.bf16.msra.mxu0 %v1300
  %1494 = vmatprep.subr.bf16.mxu0 %v1303
  %1495 = vmatpush1.bf16.msra.mxu0 %v1302
  %1496 = vmatprep.subr.bf16.mxu0 %v1305
  %1497 = vmatpush1.bf16.msra.mxu0 %v1304
  %1498 = vmatprep.subr.bf16.mxu0 %v1307
  %1499 = vmatpush1.bf16.msra.mxu0 %v1306
  %1500 = vmatprep.subr.bf16.mxu0 %v1309
  %1501 = vmatpush1.bf16.msra.mxu0 %v1308
  %1502 = vmatprep.subr.bf16.mxu0 %v1311
  %1503 = vmatpush1.bf16.msra.mxu0 %v1310
  %1504 = vmatprep.subr.bf16.mxu0 %v1313
  %1505 = vmatpush1.bf16.msra.mxu0 %v1312
  %1506 = vmatprep.subr.bf16.mxu0 %v1315
  %1507 = vmatpush1.bf16.msra.mxu0 %v1314
  %1508 = vmatprep.subr.bf16.mxu0 %v1317
  %1509 = vmatpush1.bf16.msra.mxu0 %v1316
  %1510 = vmatprep.subr.bf16.mxu0 %v1319
  %1511 = vmatpush1.bf16.msra.mxu0 %v1318
  %1512 = vmatprep.subr.bf16.mxu0 %v1321
  %1513 = vmatpush1.bf16.msra.mxu0 %v1320
  %1514 = vmatprep.subr.bf16.mxu0 %v1323
  %1515 = vmatpush1.bf16.msra.mxu0 %v1322
  %1516 = vmatprep.subr.bf16.mxu0 %v1325
  %1517 = vmatpush1.bf16.msra.mxu0 %v1324
  %1518 = vmatprep.subr.bf16.mxu0 %v1327
  %1519 = vmatpush1.bf16.msra.mxu0 %v1326
  %1520 = vmatprep.subr.bf16.mxu0 %v1329
  %1521 = vmatpush1.bf16.msra.mxu0 %v1328
  %1522 = vmatprep.mubr.bf16.mxu0 %v711
  %1523 = vmatmul.mubr.bf16.gmra.mrb[0].mxu0 %v710
  %v1524 = vpop.f32.mrb[0].mxu0
  %v1525 = vadd.f32 %v262, %v1524
  %v1526 = vpop.f32.mrb[0].mxu0
  %v1527 = vadd.f32 %v266, %v1526
  %v1528 = vpop.f32.mrb[0].mxu0
  %v1529 = vadd.f32 %v262, %v1528
  %v1530 = vpop.f32.mrb[0].mxu0
  %v1531 = vadd.f32 %v266, %v1530
  %1532 = vmatprep.mubr.bf16.mxu0 %v717
  %1533 = vmatmul.mubr.bf16.gmra.mrb[0].mxu0 %v716
  %v1534 = vpop.f32.mrb[0].mxu0
  %v1535 = vadd.f32 %v262, %v1534
  %v1536 = vpop.f32.mrb[0].mxu0
  %v1537 = vadd.f32 %v266, %v1536
  %v1538 = vpop.f32.mrb[0].mxu0
  %v1539 = vadd.f32 %v262, %v1538
  %v1540 = vpop.f32.mrb[0].mxu0
  %v1541 = vadd.f32 %v266, %v1540
  %1542 = vmatprep.mubr.bf16.mxu0 %v723
  %1543 = vmatmul.mubr.bf16.gmra.mrb[0].mxu0 %v722
  %v1544 = vpop.f32.mrb[0].mxu0
  %v1545 = vadd.f32 %v262, %v1544
  %v1546 = vpop.f32.mrb[0].mxu0
  %v1547 = vadd.f32 %v266, %v1546
  %v1548 = vpop.f32.mrb[0].mxu0
  %v1549 = vadd.f32 %v262, %v1548
  %v1550 = vpop.f32.mrb[0].mxu0
  %v1551 = vadd.f32 %v266, %v1550
  %1552 = vmatprep.mubr.bf16.mxu0 %v729
  %1553 = vmatmul.mubr.bf16.gmra.mrb[0].mxu0 %v728
  %v1554 = vpop.f32.mrb[0].mxu0
  %v1555 = vadd.f32 %v262, %v1554
  %v1556 = vpop.f32.mrb[0].mxu0
  %v1557 = vadd.f32 %v266, %v1556
  %v1558 = vpop.f32.mrb[0].mxu0
  %v1559 = vadd.f32 %v262, %v1558
  %v1560 = vpop.f32.mrb[0].mxu0
  %v1561 = vadd.f32 %v266, %v1560
  %1562 = vmatprep.mubr.bf16.mxu0 %v735
  %1563 = vmatmul.mubr.bf16.gmra.mrb[0].mxu0 %v734
  %v1564 = vpop.f32.mrb[0].mxu0
  %v1565 = vadd.f32 %v262, %v1564
  %v1566 = vpop.f32.mrb[0].mxu0
  %v1567 = vadd.f32 %v266, %v1566
  %v1568 = vpop.f32.mrb[0].mxu0
  %v1569 = vadd.f32 %v262, %v1568
  %v1570 = vpop.f32.mrb[0].mxu0
  %v1571 = vadd.f32 %v266, %v1570
  %1572 = vmatprep.mubr.bf16.mxu0 %v741
  %1573 = vmatmul.mubr.bf16.gmra.mrb[0].mxu0 %v740
  %v1574 = vpop.f32.mrb[0].mxu0
  %v1575 = vadd.f32 %v262, %v1574
  %v1576 = vpop.f32.mrb[0].mxu0
  %v1577 = vadd.f32 %v266, %v1576
  %v1578 = vpop.f32.mrb[0].mxu0
  %v1579 = vadd.f32 %v262, %v1578
  %v1580 = vpop.f32.mrb[0].mxu0
  %v1581 = vadd.f32 %v266, %v1580
  %1582 = vmatprep.mubr.bf16.mxu0 %v747
  %1583 = vmatmul.mubr.bf16.gmra.mrb[0].mxu0 %v746
  %v1584 = vpop.f32.mrb[0].mxu0
  %v1585 = vadd.f32 %v262, %v1584
  %v1586 = vpop.f32.mrb[0].mxu0
  %v1587 = vadd.f32 %v266, %v1586
  %v1588 = vpop.f32.mrb[0].mxu0
  %v1589 = vadd.f32 %v262, %v1588
  %v1590 = vpop.f32.mrb[0].mxu0
  %v1591 = vadd.f32 %v266, %v1590
  %1592 = vmatprep.mubr.bf16.mxu0 %v753
  %1593 = vmatmul.mubr.bf16.gmra.mrb[0].mxu0 %v752
  %v1594 = vpop.f32.mrb[0].mxu0
  %v1595 = vadd.f32 %v262, %v1594
  %v1596 = vpop.f32.mrb[0].mxu0
  %v1597 = vadd.f32 %v266, %v1596
  %v1598 = vpop.f32.mrb[0].mxu0
  %v1599 = vadd.f32 %v262, %v1598
  %v1600 = vpop.f32.mrb[0].mxu0
  %v1601 = vadd.f32 %v266, %v1600
  %1602 = vmatprep.mubr.bf16.mxu0 %v759
  %1603 = vmatmul.mubr.bf16.gmra.mrb[0].mxu0 %v758
  %v1604 = vpop.f32.mrb[0].mxu0
  %v1605 = vadd.f32 %v262, %v1604
  %v1606 = vpop.f32.mrb[0].mxu0
  %v1607 = vadd.f32 %v266, %v1606
  %v1608 = vpop.f32.mrb[0].mxu0
  %v1609 = vadd.f32 %v262, %v1608
  %v1610 = vpop.f32.mrb[0].mxu0
  %v1611 = vadd.f32 %v266, %v1610
  %1612 = vmatprep.mubr.bf16.mxu0 %v765
  %1613 = vmatmul.mubr.bf16.gmra.mrb[0].mxu0 %v764
  %v1614 = vpop.f32.mrb[0].mxu0
  %v1615 = vadd.f32 %v262, %v1614
  %v1616 = vpop.f32.mrb[0].mxu0
  %v1617 = vadd.f32 %v266, %v1616
  %v1618 = vpop.f32.mrb[0].mxu0
  %v1619 = vadd.f32 %v262, %v1618
  %v1620 = vpop.f32.mrb[0].mxu0
  %v1621 = vadd.f32 %v266, %v1620
  %1622 = vmatprep.mubr.bf16.mxu0 %v771
  %1623 = vmatmul.mubr.bf16.gmra.mrb[0].mxu0 %v770
  %v1624 = vpop.f32.mrb[0].mxu0
  %v1625 = vadd.f32 %v262, %v1624
  %v1626 = vpop.f32.mrb[0].mxu0
  %v1627 = vadd.f32 %v266, %v1626
  %v1628 = vpop.f32.mrb[0].mxu0
  %v1629 = vadd.f32 %v262, %v1628
  %v1630 = vpop.f32.mrb[0].mxu0
  %v1631 = vadd.f32 %v266, %v1630
  %1632 = vmatprep.mubr.bf16.mxu0 %v777
  %1633 = vmatmul.mubr.bf16.gmra.mrb[0].mxu0 %v776
  %v1634 = vpop.f32.mrb[0].mxu0
  %v1635 = vadd.f32 %v262, %v1634
  %v1636 = vpop.f32.mrb[0].mxu0
  %v1637 = vadd.f32 %v266, %v1636
  %v1638 = vpop.f32.mrb[0].mxu0
  %v1639 = vadd.f32 %v262, %v1638
  %v1640 = vpop.f32.mrb[0].mxu0
  %v1641 = vadd.f32 %v266, %v1640
  %1642 = vmatprep.mubr.bf16.mxu0 %v783
  %1643 = vmatmul.mubr.bf16.gmra.mrb[0].mxu0 %v782
  %v1644 = vpop.f32.mrb[0].mxu0
  %v1645 = vadd.f32 %v262, %v1644
  %v1646 = vpop.f32.mrb[0].mxu0
  %v1647 = vadd.f32 %v266, %v1646
  %v1648 = vpop.f32.mrb[0].mxu0
  %v1649 = vadd.f32 %v262, %v1648
  %v1650 = vpop.f32.mrb[0].mxu0
  %v1651 = vadd.f32 %v266, %v1650
  %1652 = vmatprep.mubr.bf16.mxu0 %v789
  %1653 = vmatmul.mubr.bf16.gmra.mrb[0].mxu0 %v788
  %v1654 = vpop.f32.mrb[0].mxu0
  %v1655 = vadd.f32 %v262, %v1654
  %v1656 = vpop.f32.mrb[0].mxu0
  %v1657 = vadd.f32 %v266, %v1656
  %v1658 = vpop.f32.mrb[0].mxu0
  %v1659 = vadd.f32 %v262, %v1658
  %v1660 = vpop.f32.mrb[0].mxu0
  %v1661 = vadd.f32 %v266, %v1660
  %1662 = vmatprep.mubr.bf16.mxu0 %v795
  %1663 = vmatmul.mubr.bf16.gmra.mrb[0].mxu0 %v794
  %v1664 = vpop.f32.mrb[0].mxu0
  %v1665 = vadd.f32 %v262, %v1664
  %v1666 = vpop.f32.mrb[0].mxu0
  %v1667 = vadd.f32 %v266, %v1666
  %v1668 = vpop.f32.mrb[0].mxu0
  %v1669 = vadd.f32 %v262, %v1668
  %v1670 = vpop.f32.mrb[0].mxu0
  %v1671 = vadd.f32 %v266, %v1670
  %1672 = vmatprep.mubr.bf16.mxu0 %v801
  %1673 = vmatmul.mubr.bf16.gmra.mrb[0].mxu0 %v800
  %v1674 = vpop.f32.mrb[0].mxu0
  %v1675 = vadd.f32 %v262, %v1674
  %v1676 = vpop.f32.mrb[0].mxu0
  %v1677 = vadd.f32 %v266, %v1676
  %v1678 = vpop.f32.mrb[0].mxu0
  %v1679 = vadd.f32 %v262, %v1678
  %v1680 = vpop.f32.mrb[0].mxu0
  %v1681 = vadd.f32 %v266, %v1680
  %1682 = vmatprep.mubr.bf16.mxu0 %v807
  %1683 = vmatmul.mubr.bf16.gmra.mrb[0].mxu0 %v806
  %v1684 = vpop.f32.mrb[0].mxu0
  %v1685 = vadd.f32 %v262, %v1684
  %v1686 = vpop.f32.mrb[0].mxu0
  %v1687 = vadd.f32 %v266, %v1686
  %v1688 = vpop.f32.mrb[0].mxu0
  %v1689 = vadd.f32 %v262, %v1688
  %v1690 = vpop.f32.mrb[0].mxu0
  %v1691 = vadd.f32 %v266, %v1690
  %1692 = vmatprep.mubr.bf16.mxu0 %v813
  %1693 = vmatmul.mubr.bf16.gmra.mrb[0].mxu0 %v812
  %v1694 = vpop.f32.mrb[0].mxu0
  %v1695 = vadd.f32 %v262, %v1694
  %v1696 = vpop.f32.mrb[0].mxu0
  %v1697 = vadd.f32 %v266, %v1696
  %v1698 = vpop.f32.mrb[0].mxu0
  %v1699 = vadd.f32 %v262, %v1698
  %v1700 = vpop.f32.mrb[0].mxu0
  %v1701 = vadd.f32 %v266, %v1700
  %1702 = vmatprep.mubr.bf16.mxu0 %v819
  %1703 = vmatmul.mubr.bf16.gmra.mrb[0].mxu0 %v818
  %v1704 = vpop.f32.mrb[0].mxu0
  %v1705 = vadd.f32 %v262, %v1704
  %v1706 = vpop.f32.mrb[0].mxu0
  %v1707 = vadd.f32 %v266, %v1706
  %v1708 = vpop.f32.mrb[0].mxu0
  %v1709 = vadd.f32 %v262, %v1708
  %v1710 = vpop.f32.mrb[0].mxu0
  %v1711 = vadd.f32 %v266, %v1710
  %1712 = vmatprep.mubr.bf16.mxu0 %v825
  %1713 = vmatmul.mubr.bf16.gmra.mrb[0].mxu0 %v824
  %v1714 = vpop.f32.mrb[0].mxu0
  %v1715 = vadd.f32 %v262, %v1714
  %v1716 = vpop.f32.mrb[0].mxu0
  %v1717 = vadd.f32 %v266, %v1716
  %v1718 = vpop.f32.mrb[0].mxu0
  %v1719 = vadd.f32 %v262, %v1718
  %v1720 = vpop.f32.mrb[0].mxu0
  %v1721 = vadd.f32 %v266, %v1720
  %1722 = vmatprep.mubr.bf16.mxu0 %v831
  %1723 = vmatmul.mubr.bf16.gmra.mrb[0].mxu0 %v830
  %v1724 = vpop.f32.mrb[0].mxu0
  %v1725 = vadd.f32 %v262, %v1724
  %v1726 = vpop.f32.mrb[0].mxu0
  %v1727 = vadd.f32 %v266, %v1726
  %v1728 = vpop.f32.mrb[0].mxu0
  %v1729 = vadd.f32 %v262, %v1728
  %v1730 = vpop.f32.mrb[0].mxu0
  %v1731 = vadd.f32 %v266, %v1730
  %1732 = vmatprep.mubr.bf16.mxu0 %v837
  %1733 = vmatmul.mubr.bf16.gmra.mrb[0].mxu0 %v836
  %v1734 = vpop.f32.mrb[0].mxu0
  %v1735 = vadd.f32 %v262, %v1734
  %v1736 = vpop.f32.mrb[0].mxu0
  %v1737 = vadd.f32 %v266, %v1736
  %v1738 = vpop.f32.mrb[0].mxu0
  %v1739 = vadd.f32 %v262, %v1738
  %v1740 = vpop.f32.mrb[0].mxu0
  %v1741 = vadd.f32 %v266, %v1740
  %1742 = vmatprep.mubr.bf16.mxu0 %v843
  %1743 = vmatmul.mubr.bf16.gmra.mrb[0].mxu0 %v842
  %v1744 = vpop.f32.mrb[0].mxu0
  %v1745 = vadd.f32 %v262, %v1744
  %v1746 = vpop.f32.mrb[0].mxu0
  %v1747 = vadd.f32 %v266, %v1746
  %v1748 = vpop.f32.mrb[0].mxu0
  %v1749 = vadd.f32 %v262, %v1748
  %v1750 = vpop.f32.mrb[0].mxu0
  %v1751 = vadd.f32 %v266, %v1750
  %1752 = vmatprep.mubr.bf16.mxu0 %v849
  %1753 = vmatmul.mubr.bf16.gmra.mrb[0].mxu0 %v848
  %v1754 = vpop.f32.mrb[0].mxu0
  %v1755 = vadd.f32 %v262, %v1754
  %v1756 = vpop.f32.mrb[0].mxu0
  %v1757 = vadd.f32 %v266, %v1756
  %v1758 = vpop.f32.mrb[0].mxu0
  %v1759 = vadd.f32 %v262, %v1758
  %v1760 = vpop.f32.mrb[0].mxu0
  %v1761 = vadd.f32 %v266, %v1760
  %1762 = vmatprep.mubr.bf16.mxu0 %v855
  %1763 = vmatmul.mubr.bf16.gmra.mrb[0].mxu0 %v854
  %v1764 = vpop.f32.mrb[0].mxu0
  %v1765 = vadd.f32 %v262, %v1764
  %v1766 = vpop.f32.mrb[0].mxu0
  %v1767 = vadd.f32 %v266, %v1766
  %v1768 = vpop.f32.mrb[0].mxu0
  %v1769 = vpop.f32.mrb[0].mxu0
  %1770 = vdwg.mxu0
  %1771 = vmatprep.subr.bf16.mxu0 %v1331
  %1772 = vmatpush1.bf16.msra.mxu0 %v1330
  %1773 = vmatprep.subr.bf16.mxu0 %v1333
  %1774 = vmatpush1.bf16.msra.mxu0 %v1332
  %1775 = vmatprep.subr.bf16.mxu0 %v1335
  %1776 = vmatpush1.bf16.msra.mxu0 %v1334
  %1777 = vmatprep.subr.bf16.mxu0 %v1337
  %1778 = vmatpush1.bf16.msra.mxu0 %v1336
  %1779 = vmatprep.subr.bf16.mxu0 %v1339
  %1780 = vmatpush1.bf16.msra.mxu0 %v1338
  %1781 = vmatprep.subr.bf16.mxu0 %v1341
  %1782 = vmatpush1.bf16.msra.mxu0 %v1340
  %1783 = vmatprep.subr.bf16.mxu0 %v1343
  %1784 = vmatpush1.bf16.msra.mxu0 %v1342
  %1785 = vmatprep.subr.bf16.mxu0 %v1345
  %1786 = vmatpush1.bf16.msra.mxu0 %v1344
  %1787 = vmatprep.subr.bf16.mxu0 %v1347
  %1788 = vmatpush1.bf16.msra.mxu0 %v1346
  %1789 = vmatprep.subr.bf16.mxu0 %v1349
  %1790 = vmatpush1.bf16.msra.mxu0 %v1348
  %1791 = vmatprep.subr.bf16.mxu0 %v1351
  %1792 = vmatpush1.bf16.msra.mxu0 %v1350
  %1793 = vmatprep.subr.bf16.mxu0 %v1353
  %1794 = vmatpush1.bf16.msra.mxu0 %v1352
  %1795 = vmatprep.subr.bf16.mxu0 %v1355
  %1796 = vmatpush1.bf16.msra.mxu0 %v1354
  %1797 = vmatprep.subr.bf16.mxu0 %v1357
  %1798 = vmatpush1.bf16.msra.mxu0 %v1356
  %1799 = vmatprep.subr.bf16.mxu0 %v1359
  %1800 = vmatpush1.bf16.msra.mxu0 %v1358
  %1801 = vmatprep.subr.bf16.mxu0 %v1361
  %1802 = vmatpush1.bf16.msra.mxu0 %v1360
  %1803 = vmatprep.mubr.bf16.mxu0 %v713
  %1804 = vmatmul.mubr.bf16.gmra.mrb[0].mxu0 %v712
  %v1805 = vpop.f32.mrb[0].mxu0
  %v1806 = vadd.f32 %v1525, %v1805
  %v1807 = vpop.f32.mrb[0].mxu0
  %v1808 = vadd.f32 %v1527, %v1807
  %v1809 = vpop.f32.mrb[0].mxu0
  %v1810 = vadd.f32 %v1529, %v1809
  %v1811 = vpop.f32.mrb[0].mxu0
  %v1812 = vadd.f32 %v1531, %v1811
  %1813 = vmatprep.mubr.bf16.mxu0 %v719
  %1814 = vmatmul.mubr.bf16.gmra.mrb[0].mxu0 %v718
  %v1815 = vpop.f32.mrb[0].mxu0
  %v1816 = vadd.f32 %v1535, %v1815
  %v1817 = vpop.f32.mrb[0].mxu0
  %v1818 = vadd.f32 %v1537, %v1817
  %v1819 = vpop.f32.mrb[0].mxu0
  %v1820 = vadd.f32 %v1539, %v1819
  %v1821 = vpop.f32.mrb[0].mxu0
  %v1822 = vadd.f32 %v1541, %v1821
  %1823 = vmatprep.mubr.bf16.mxu0 %v725
  %1824 = vmatmul.mubr.bf16.gmra.mrb[0].mxu0 %v724
  %v1825 = vpop.f32.mrb[0].mxu0
  %v1826 = vadd.f32 %v1545, %v1825
  %v1827 = vpop.f32.mrb[0].mxu0
  %v1828 = vadd.f32 %v1547, %v1827
  %v1829 = vpop.f32.mrb[0].mxu0
  %v1830 = vadd.f32 %v1549, %v1829
  %v1831 = vpop.f32.mrb[0].mxu0
  %v1832 = vadd.f32 %v1551, %v1831
  %1833 = vmatprep.mubr.bf16.mxu0 %v731
  %1834 = vmatmul.mubr.bf16.gmra.mrb[0].mxu0 %v730
  %v1835 = vpop.f32.mrb[0].mxu0
  %v1836 = vadd.f32 %v1555, %v1835
  %v1837 = vpop.f32.mrb[0].mxu0
  %v1838 = vadd.f32 %v1557, %v1837
  %v1839 = vpop.f32.mrb[0].mxu0
  %v1840 = vadd.f32 %v1559, %v1839
  %v1841 = vpop.f32.mrb[0].mxu0
  %v1842 = vadd.f32 %v1561, %v1841
  %1843 = vmatprep.mubr.bf16.mxu0 %v737
  %1844 = vmatmul.mubr.bf16.gmra.mrb[0].mxu0 %v736
  %v1845 = vpop.f32.mrb[0].mxu0
  %v1846 = vadd.f32 %v1565, %v1845
  %v1847 = vpop.f32.mrb[0].mxu0
  %v1848 = vadd.f32 %v1567, %v1847
  %v1849 = vpop.f32.mrb[0].mxu0
  %v1850 = vadd.f32 %v1569, %v1849
  %v1851 = vpop.f32.mrb[0].mxu0
  %v1852 = vadd.f32 %v1571, %v1851
  %1853 = vmatprep.mubr.bf16.mxu0 %v743
  %1854 = vmatmul.mubr.bf16.gmra.mrb[0].mxu0 %v742
  %v1855 = vpop.f32.mrb[0].mxu0
  %v1856 = vadd.f32 %v1575, %v1855
  %v1857 = vpop.f32.mrb[0].mxu0
  %v1858 = vadd.f32 %v1577, %v1857
  %v1859 = vpop.f32.mrb[0].mxu0
  %v1860 = vadd.f32 %v1579, %v1859
  %v1861 = vpop.f32.mrb[0].mxu0
  %v1862 = vadd.f32 %v1581, %v1861
  %1863 = vmatprep.mubr.bf16.mxu0 %v749
  %1864 = vmatmul.mubr.bf16.gmra.mrb[0].mxu0 %v748
  %v1865 = vpop.f32.mrb[0].mxu0
  %v1866 = vadd.f32 %v1585, %v1865
  %v1867 = vpop.f32.mrb[0].mxu0
  %v1868 = vadd.f32 %v1587, %v1867
  %v1869 = vpop.f32.mrb[0].mxu0
  %v1870 = vadd.f32 %v1589, %v1869
  %v1871 = vpop.f32.mrb[0].mxu0
  %v1872 = vadd.f32 %v1591, %v1871
  %1873 = vmatprep.mubr.bf16.mxu0 %v755
  %1874 = vmatmul.mubr.bf16.gmra.mrb[0].mxu0 %v754
  %v1875 = vpop.f32.mrb[0].mxu0
  %v1876 = vadd.f32 %v1595, %v1875
  %v1877 = vpop.f32.mrb[0].mxu0
  %v1878 = vadd.f32 %v1597, %v1877
  %v1879 = vpop.f32.mrb[0].mxu0
  %v1880 = vadd.f32 %v1599, %v1879
  %v1881 = vpop.f32.mrb[0].mxu0
  %v1882 = vadd.f32 %v1601, %v1881
  %1883 = vmatprep.mubr.bf16.mxu0 %v761
  %1884 = vmatmul.mubr.bf16.gmra.mrb[0].mxu0 %v760
  %v1885 = vpop.f32.mrb[0].mxu0
  %v1886 = vadd.f32 %v1605, %v1885
  %v1887 = vpop.f32.mrb[0].mxu0
  %v1888 = vadd.f32 %v1607, %v1887
  %v1889 = vpop.f32.mrb[0].mxu0
  %v1890 = vadd.f32 %v1609, %v1889
  %v1891 = vpop.f32.mrb[0].mxu0
  %v1892 = vadd.f32 %v1611, %v1891
  %1893 = vmatprep.mubr.bf16.mxu0 %v767
  %1894 = vmatmul.mubr.bf16.gmra.mrb[0].mxu0 %v766
  %v1895 = vpop.f32.mrb[0].mxu0
  %v1896 = vadd.f32 %v1615, %v1895
  %v1897 = vpop.f32.mrb[0].mxu0
  %v1898 = vadd.f32 %v1617, %v1897
  %v1899 = vpop.f32.mrb[0].mxu0
  %v1900 = vadd.f32 %v1619, %v1899
  %v1901 = vpop.f32.mrb[0].mxu0
  %v1902 = vadd.f32 %v1621, %v1901
  %1903 = vmatprep.mubr.bf16.mxu0 %v773
  %1904 = vmatmul.mubr.bf16.gmra.mrb[0].mxu0 %v772
  %v1905 = vpop.f32.mrb[0].mxu0
  %v1906 = vadd.f32 %v1625, %v1905
  %v1907 = vpop.f32.mrb[0].mxu0
  %v1908 = vadd.f32 %v1627, %v1907
  %v1909 = vpop.f32.mrb[0].mxu0
  %v1910 = vadd.f32 %v1629, %v1909
  %v1911 = vpop.f32.mrb[0].mxu0
  %v1912 = vadd.f32 %v1631, %v1911
  %1913 = vmatprep.mubr.bf16.mxu0 %v779
  %1914 = vmatmul.mubr.bf16.gmra.mrb[0].mxu0 %v778
  %v1915 = vpop.f32.mrb[0].mxu0
  %v1916 = vadd.f32 %v1635, %v1915
  %v1917 = vpop.f32.mrb[0].mxu0
  %v1918 = vadd.f32 %v1637, %v1917
  %v1919 = vpop.f32.mrb[0].mxu0
  %v1920 = vadd.f32 %v1639, %v1919
  %v1921 = vpop.f32.mrb[0].mxu0
  %v1922 = vadd.f32 %v1641, %v1921
  %1923 = vmatprep.mubr.bf16.mxu0 %v785
  %1924 = vmatmul.mubr.bf16.gmra.mrb[0].mxu0 %v784
  %v1925 = vpop.f32.mrb[0].mxu0
  %v1926 = vadd.f32 %v1645, %v1925
  %v1927 = vpop.f32.mrb[0].mxu0
  %v1928 = vadd.f32 %v1647, %v1927
  %v1929 = vpop.f32.mrb[0].mxu0
  %v1930 = vadd.f32 %v1649, %v1929
  %v1931 = vpop.f32.mrb[0].mxu0
  %v1932 = vadd.f32 %v1651, %v1931
  %1933 = vmatprep.mubr.bf16.mxu0 %v791
  %1934 = vmatmul.mubr.bf16.gmra.mrb[0].mxu0 %v790
  %v1935 = vpop.f32.mrb[0].mxu0
  %v1936 = vadd.f32 %v1655, %v1935
  %v1937 = vpop.f32.mrb[0].mxu0
  %v1938 = vadd.f32 %v1657, %v1937
  %v1939 = vpop.f32.mrb[0].mxu0
  %v1940 = vadd.f32 %v1659, %v1939
  %v1941 = vpop.f32.mrb[0].mxu0
  %v1942 = vadd.f32 %v1661, %v1941
  %1943 = vmatprep.mubr.bf16.mxu0 %v797
  %1944 = vmatmul.mubr.bf16.gmra.mrb[0].mxu0 %v796
  %v1945 = vpop.f32.mrb[0].mxu0
  %v1946 = vadd.f32 %v1665, %v1945
  %v1947 = vpop.f32.mrb[0].mxu0
  %v1948 = vadd.f32 %v1667, %v1947
  %v1949 = vpop.f32.mrb[0].mxu0
  %v1950 = vadd.f32 %v1669, %v1949
  %v1951 = vpop.f32.mrb[0].mxu0
  %v1952 = vadd.f32 %v1671, %v1951
  %1953 = vmatprep.mubr.bf16.mxu0 %v803
  %1954 = vmatmul.mubr.bf16.gmra.mrb[0].mxu0 %v802
  %v1955 = vpop.f32.mrb[0].mxu0
  %v1956 = vadd.f32 %v1675, %v1955
  %v1957 = vpop.f32.mrb[0].mxu0
  %v1958 = vadd.f32 %v1677, %v1957
  %v1959 = vpop.f32.mrb[0].mxu0
  %v1960 = vadd.f32 %v1679, %v1959
  %v1961 = vpop.f32.mrb[0].mxu0
  %v1962 = vadd.f32 %v1681, %v1961
  %1963 = vmatprep.mubr.bf16.mxu0 %v809
  %1964 = vmatmul.mubr.bf16.gmra.mrb[0].mxu0 %v808
  %v1965 = vpop.f32.mrb[0].mxu0
  %v1966 = vadd.f32 %v1685, %v1965
  %v1967 = vpop.f32.mrb[0].mxu0
  %v1968 = vadd.f32 %v1687, %v1967
  %v1969 = vpop.f32.mrb[0].mxu0
  %v1970 = vadd.f32 %v1689, %v1969
  %v1971 = vpop.f32.mrb[0].mxu0
  %v1972 = vadd.f32 %v1691, %v1971
  %1973 = vmatprep.mubr.bf16.mxu0 %v815
  %1974 = vmatmul.mubr.bf16.gmra.mrb[0].mxu0 %v814
  %v1975 = vpop.f32.mrb[0].mxu0
  %v1976 = vadd.f32 %v1695, %v1975
  %v1977 = vpop.f32.mrb[0].mxu0
  %v1978 = vadd.f32 %v1697, %v1977
  %v1979 = vpop.f32.mrb[0].mxu0
  %v1980 = vadd.f32 %v1699, %v1979
  %v1981 = vpop.f32.mrb[0].mxu0
  %v1982 = vadd.f32 %v1701, %v1981
  %1983 = vmatprep.mubr.bf16.mxu0 %v821
  %1984 = vmatmul.mubr.bf16.gmra.mrb[0].mxu0 %v820
  %v1985 = vpop.f32.mrb[0].mxu0
  %v1986 = vadd.f32 %v1705, %v1985
  %v1987 = vpop.f32.mrb[0].mxu0
  %v1988 = vadd.f32 %v1707, %v1987
  %v1989 = vpop.f32.mrb[0].mxu0
  %v1990 = vadd.f32 %v1709, %v1989
  %v1991 = vpop.f32.mrb[0].mxu0
  %v1992 = vadd.f32 %v1711, %v1991
  %1993 = vmatprep.mubr.bf16.mxu0 %v827
  %1994 = vmatmul.mubr.bf16.gmra.mrb[0].mxu0 %v826
  %v1995 = vpop.f32.mrb[0].mxu0
  %v1996 = vadd.f32 %v1715, %v1995
  %v1997 = vpop.f32.mrb[0].mxu0
  %v1998 = vadd.f32 %v1717, %v1997
  %v1999 = vpop.f32.mrb[0].mxu0
  %v2000 = vadd.f32 %v1719, %v1999
  %v2001 = vpop.f32.mrb[0].mxu0
  %v2002 = vadd.f32 %v1721, %v2001
  %2003 = vmatprep.mubr.bf16.mxu0 %v833
  %2004 = vmatmul.mubr.bf16.gmra.mrb[0].mxu0 %v832
  %v2005 = vpop.f32.mrb[0].mxu0
  %v2006 = vadd.f32 %v1725, %v2005
  %v2007 = vpop.f32.mrb[0].mxu0
  %v2008 = vadd.f32 %v1727, %v2007
  %v2009 = vpop.f32.mrb[0].mxu0
  %v2010 = vadd.f32 %v1729, %v2009
  %v2011 = vpop.f32.mrb[0].mxu0
  %v2012 = vadd.f32 %v1731, %v2011
  %2013 = vmatprep.mubr.bf16.mxu0 %v839
  %2014 = vmatmul.mubr.bf16.gmra.mrb[0].mxu0 %v838
  %v2015 = vpop.f32.mrb[0].mxu0
  %v2016 = vadd.f32 %v1735, %v2015
  %v2017 = vpop.f32.mrb[0].mxu0
  %v2018 = vadd.f32 %v1737, %v2017
  %v2019 = vpop.f32.mrb[0].mxu0
  %v2020 = vadd.f32 %v1739, %v2019
  %v2021 = vpop.f32.mrb[0].mxu0
  %v2022 = vadd.f32 %v1741, %v2021
  %2023 = vmatprep.mubr.bf16.mxu0 %v845
  %2024 = vmatmul.mubr.bf16.gmra.mrb[0].mxu0 %v844
  %v2025 = vpop.f32.mrb[0].mxu0
  %v2026 = vadd.f32 %v1745, %v2025
  %v2027 = vpop.f32.mrb[0].mxu0
  %v2028 = vadd.f32 %v1747, %v2027
  %v2029 = vpop.f32.mrb[0].mxu0
  %v2030 = vadd.f32 %v1749, %v2029
  %v2031 = vpop.f32.mrb[0].mxu0
  %v2032 = vadd.f32 %v1751, %v2031
  %2033 = vmatprep.mubr.bf16.mxu0 %v851
  %2034 = vmatmul.mubr.bf16.gmra.mrb[0].mxu0 %v850
  %v2035 = vpop.f32.mrb[0].mxu0
  %v2036 = vadd.f32 %v1755, %v2035
  %v2037 = vpop.f32.mrb[0].mxu0
  %v2038 = vadd.f32 %v1757, %v2037
  %v2039 = vpop.f32.mrb[0].mxu0
  %v2040 = vadd.f32 %v1759, %v2039
  %v2041 = vpop.f32.mrb[0].mxu0
  %v2042 = vadd.f32 %v1761, %v2041
  %2043 = vmatprep.mubr.bf16.mxu0 %v857
  %2044 = vmatmul.mubr.bf16.gmra.mrb[0].mxu0 %v856
  %v2045 = vpop.f32.mrb[0].mxu0
  %v2046 = vadd.f32 %v1765, %v2045
  %v2047 = vpop.f32.mrb[0].mxu0
  %v2048 = vadd.f32 %v1767, %v2047
  %v2049 = vpop.f32.mrb[0].mxu0
  %v2050 = vpop.f32.mrb[0].mxu0
  %2051 = vdwg.mxu0
  %2052 = vmatprep.subr.bf16.mxu0 %v1363
  %2053 = vmatpush1.bf16.msra.mxu0 %v1362
  %2054 = vmatprep.subr.bf16.mxu0 %v1365
  %2055 = vmatpush1.bf16.msra.mxu0 %v1364
  %2056 = vmatprep.subr.bf16.mxu0 %v1367
  %2057 = vmatpush1.bf16.msra.mxu0 %v1366
  %2058 = vmatprep.subr.bf16.mxu0 %v1369
  %2059 = vmatpush1.bf16.msra.mxu0 %v1368
  %2060 = vmatprep.subr.bf16.mxu0 %v1371
  %2061 = vmatpush1.bf16.msra.mxu0 %v1370
  %2062 = vmatprep.subr.bf16.mxu0 %v1373
  %2063 = vmatpush1.bf16.msra.mxu0 %v1372
  %2064 = vmatprep.subr.bf16.mxu0 %v1375
  %2065 = vmatpush1.bf16.msra.mxu0 %v1374
  %2066 = vmatprep.subr.bf16.mxu0 %v1377
  %2067 = vmatpush1.bf16.msra.mxu0 %v1376
  %2068 = vmatprep.subr.bf16.mxu0 %v1379
  %2069 = vmatpush1.bf16.msra.mxu0 %v1378
  %2070 = vmatprep.subr.bf16.mxu0 %v1381
  %2071 = vmatpush1.bf16.msra.mxu0 %v1380
  %2072 = vmatprep.subr.bf16.mxu0 %v1383
  %2073 = vmatpush1.bf16.msra.mxu0 %v1382
  %2074 = vmatprep.subr.bf16.mxu0 %v1385
  %2075 = vmatpush1.bf16.msra.mxu0 %v1384
  %2076 = vmatprep.subr.bf16.mxu0 %v1387
  %2077 = vmatpush1.bf16.msra.mxu0 %v1386
  %2078 = vmatprep.subr.bf16.mxu0 %v1389
  %2079 = vmatpush1.bf16.msra.mxu0 %v1388
  %2080 = vmatprep.subr.bf16.mxu0 %v1391
  %2081 = vmatpush1.bf16.msra.mxu0 %v1390
  %2082 = vmatprep.subr.bf16.mxu0 %v1393
  %2083 = vmatpush1.bf16.msra.mxu0 %v1392
  %2084 = vmatprep.mubr.bf16.mxu0 %v715
  %2085 = vmatmul.mubr.bf16.gmra.mrb[0].mxu0 %v714
  %v2086 = vpop.f32.mrb[0].mxu0
  %v2087 = vadd.f32 %v1806, %v2086
  %v2088 = vpop.f32.mrb[0].mxu0
  %v2089 = vadd.f32 %v1808, %v2088
  %v2090 = vpop.f32.mrb[0].mxu0
  %v2091 = vadd.f32 %v1810, %v2090
  %v2092 = vpop.f32.mrb[0].mxu0
  %v2093 = vadd.f32 %v1812, %v2092
  %2094 = vmatprep.mubr.bf16.mxu0 %v721
  %2095 = vmatmul.mubr.bf16.gmra.mrb[0].mxu0 %v720
  %v2096 = vpop.f32.mrb[0].mxu0
  %v2097 = vadd.f32 %v1816, %v2096
  %v2098 = vpop.f32.mrb[0].mxu0
  %v2099 = vadd.f32 %v1818, %v2098
  %v2100 = vpop.f32.mrb[0].mxu0
  %v2101 = vadd.f32 %v1820, %v2100
  %v2102 = vpop.f32.mrb[0].mxu0
  %v2103 = vadd.f32 %v1822, %v2102
  %2104 = vmatprep.mubr.bf16.mxu0 %v727
  %2105 = vmatmul.mubr.bf16.gmra.mrb[0].mxu0 %v726
  %v2106 = vpop.f32.mrb[0].mxu0
  %v2107 = vadd.f32 %v1826, %v2106
  %v2108 = vpop.f32.mrb[0].mxu0
  %v2109 = vadd.f32 %v1828, %v2108
  %v2110 = vpop.f32.mrb[0].mxu0
  %v2111 = vadd.f32 %v1830, %v2110
  %v2112 = vpop.f32.mrb[0].mxu0
  %v2113 = vadd.f32 %v1832, %v2112
  %2114 = vmatprep.mubr.bf16.mxu0 %v733
  %2115 = vmatmul.mubr.bf16.gmra.mrb[0].mxu0 %v732
  %v2116 = vpop.f32.mrb[0].mxu0
  %v2117 = vadd.f32 %v1836, %v2116
  %v2118 = vpop.f32.mrb[0].mxu0
  %v2119 = vadd.f32 %v1838, %v2118
  %v2120 = vpop.f32.mrb[0].mxu0
  %v2121 = vadd.f32 %v1840, %v2120
  %v2122 = vpop.f32.mrb[0].mxu0
  %v2123 = vadd.f32 %v1842, %v2122
  %2124 = vmatprep.mubr.bf16.mxu0 %v739
  %2125 = vmatmul.mubr.bf16.gmra.mrb[0].mxu0 %v738
  %v2126 = vpop.f32.mrb[0].mxu0
  %v2127 = vadd.f32 %v1846, %v2126
  %v2128 = vpop.f32.mrb[0].mxu0
  %v2129 = vadd.f32 %v1848, %v2128
  %v2130 = vpop.f32.mrb[0].mxu0
  %v2131 = vadd.f32 %v1850, %v2130
  %v2132 = vpop.f32.mrb[0].mxu0
  %v2133 = vadd.f32 %v1852, %v2132
  %2134 = vmatprep.mubr.bf16.mxu0 %v745
  %2135 = vmatmul.mubr.bf16.gmra.mrb[0].mxu0 %v744
  %v2136 = vpop.f32.mrb[0].mxu0
  %v2137 = vadd.f32 %v1856, %v2136
  %v2138 = vpop.f32.mrb[0].mxu0
  %v2139 = vadd.f32 %v1858, %v2138
  %v2140 = vpop.f32.mrb[0].mxu0
  %v2141 = vadd.f32 %v1860, %v2140
  %v2142 = vpop.f32.mrb[0].mxu0
  %v2143 = vadd.f32 %v1862, %v2142
  %2144 = vmatprep.mubr.bf16.mxu0 %v751
  %2145 = vmatmul.mubr.bf16.gmra.mrb[0].mxu0 %v750
  %v2146 = vpop.f32.mrb[0].mxu0
  %v2147 = vadd.f32 %v1866, %v2146
  %v2148 = vpop.f32.mrb[0].mxu0
  %v2149 = vadd.f32 %v1868, %v2148
  %v2150 = vpop.f32.mrb[0].mxu0
  %v2151 = vadd.f32 %v1870, %v2150
  %v2152 = vpop.f32.mrb[0].mxu0
  %v2153 = vadd.f32 %v1872, %v2152
  %2154 = vmatprep.mubr.bf16.mxu0 %v757
  %2155 = vmatmul.mubr.bf16.gmra.mrb[0].mxu0 %v756
  %v2156 = vpop.f32.mrb[0].mxu0
  %v2157 = vadd.f32 %v1876, %v2156
  %v2158 = vpop.f32.mrb[0].mxu0
  %v2159 = vadd.f32 %v1878, %v2158
  %v2160 = vpop.f32.mrb[0].mxu0
  %v2161 = vadd.f32 %v1880, %v2160
  %v2162 = vpop.f32.mrb[0].mxu0
  %v2163 = vadd.f32 %v1882, %v2162
  %2164 = vmatprep.mubr.bf16.mxu0 %v763
  %2165 = vmatmul.mubr.bf16.gmra.mrb[0].mxu0 %v762
  %v2166 = vpop.f32.mrb[0].mxu0
  %v2167 = vadd.f32 %v1886, %v2166
  %v2168 = vpop.f32.mrb[0].mxu0
  %v2169 = vadd.f32 %v1888, %v2168
  %v2170 = vpop.f32.mrb[0].mxu0
  %v2171 = vadd.f32 %v1890, %v2170
  %v2172 = vpop.f32.mrb[0].mxu0
  %v2173 = vadd.f32 %v1892, %v2172
  %2174 = vmatprep.mubr.bf16.mxu0 %v769
  %2175 = vmatmul.mubr.bf16.gmra.mrb[0].mxu0 %v768
  %v2176 = vpop.f32.mrb[0].mxu0
  %v2177 = vadd.f32 %v1896, %v2176
  %v2178 = vpop.f32.mrb[0].mxu0
  %v2179 = vadd.f32 %v1898, %v2178
  %v2180 = vpop.f32.mrb[0].mxu0
  %v2181 = vadd.f32 %v1900, %v2180
  %v2182 = vpop.f32.mrb[0].mxu0
  %v2183 = vadd.f32 %v1902, %v2182
  %2184 = vmatprep.mubr.bf16.mxu0 %v775
  %2185 = vmatmul.mubr.bf16.gmra.mrb[0].mxu0 %v774
  %v2186 = vpop.f32.mrb[0].mxu0
  %v2187 = vadd.f32 %v1906, %v2186
  %v2188 = vpop.f32.mrb[0].mxu0
  %v2189 = vadd.f32 %v1908, %v2188
  %v2190 = vpop.f32.mrb[0].mxu0
  %v2191 = vadd.f32 %v1910, %v2190
  %v2192 = vpop.f32.mrb[0].mxu0
  %v2193 = vadd.f32 %v1912, %v2192
  %2194 = vmatprep.mubr.bf16.mxu0 %v781
  %2195 = vmatmul.mubr.bf16.gmra.mrb[0].mxu0 %v780
  %v2196 = vpop.f32.mrb[0].mxu0
  %v2197 = vadd.f32 %v1916, %v2196
  %v2198 = vpop.f32.mrb[0].mxu0
  %v2199 = vadd.f32 %v1918, %v2198
  %v2200 = vpop.f32.mrb[0].mxu0
  %v2201 = vadd.f32 %v1920, %v2200
  %v2202 = vpop.f32.mrb[0].mxu0
  %v2203 = vadd.f32 %v1922, %v2202
  %2204 = vmatprep.mubr.bf16.mxu0 %v787
  %2205 = vmatmul.mubr.bf16.gmra.mrb[0].mxu0 %v786
  %v2206 = vpop.f32.mrb[0].mxu0
  %v2207 = vadd.f32 %v1926, %v2206
  %v2208 = vpop.f32.mrb[0].mxu0
  %v2209 = vadd.f32 %v1928, %v2208
  %v2210 = vpop.f32.mrb[0].mxu0
  %v2211 = vadd.f32 %v1930, %v2210
  %v2212 = vpop.f32.mrb[0].mxu0
  %v2213 = vadd.f32 %v1932, %v2212
  %2214 = vmatprep.mubr.bf16.mxu0 %v793
  %2215 = vmatmul.mubr.bf16.gmra.mrb[0].mxu0 %v792
  %v2216 = vpop.f32.mrb[0].mxu0
  %v2217 = vadd.f32 %v1936, %v2216
  %v2218 = vpop.f32.mrb[0].mxu0
  %v2219 = vadd.f32 %v1938, %v2218
  %v2220 = vpop.f32.mrb[0].mxu0
  %v2221 = vadd.f32 %v1940, %v2220
  %v2222 = vpop.f32.mrb[0].mxu0
  %v2223 = vadd.f32 %v1942, %v2222
  %2224 = vmatprep.mubr.bf16.mxu0 %v799
  %2225 = vmatmul.mubr.bf16.gmra.mrb[0].mxu0 %v798
  %v2226 = vpop.f32.mrb[0].mxu0
  %v2227 = vadd.f32 %v1946, %v2226
  %v2228 = vpop.f32.mrb[0].mxu0
  %v2229 = vadd.f32 %v1948, %v2228
  %v2230 = vpop.f32.mrb[0].mxu0
  %v2231 = vadd.f32 %v1950, %v2230
  %v2232 = vpop.f32.mrb[0].mxu0
  %v2233 = vadd.f32 %v1952, %v2232
  %2234 = vmatprep.mubr.bf16.mxu0 %v805
  %2235 = vmatmul.mubr.bf16.gmra.mrb[0].mxu0 %v804
  %v2236 = vpop.f32.mrb[0].mxu0
  %v2237 = vadd.f32 %v1956, %v2236
  %v2238 = vpop.f32.mrb[0].mxu0
  %v2239 = vadd.f32 %v1958, %v2238
  %v2240 = vpop.f32.mrb[0].mxu0
  %v2241 = vadd.f32 %v1960, %v2240
  %v2242 = vpop.f32.mrb[0].mxu0
  %v2243 = vadd.f32 %v1962, %v2242
  %2244 = vmatprep.mubr.bf16.mxu0 %v811
  %2245 = vmatmul.mubr.bf16.gmra.mrb[0].mxu0 %v810
  %v2246 = vpop.f32.mrb[0].mxu0
  %v2247 = vadd.f32 %v1966, %v2246
  %v2248 = vpop.f32.mrb[0].mxu0
  %v2249 = vadd.f32 %v1968, %v2248
  %v2250 = vpop.f32.mrb[0].mxu0
  %v2251 = vadd.f32 %v1970, %v2250
  %v2252 = vpop.f32.mrb[0].mxu0
  %v2253 = vadd.f32 %v1972, %v2252
  %2254 = vmatprep.mubr.bf16.mxu0 %v817
  %2255 = vmatmul.mubr.bf16.gmra.mrb[0].mxu0 %v816
  %v2256 = vpop.f32.mrb[0].mxu0
  %v2257 = vadd.f32 %v1976, %v2256
  %v2258 = vpop.f32.mrb[0].mxu0
  %v2259 = vadd.f32 %v1978, %v2258
  %v2260 = vpop.f32.mrb[0].mxu0
  %v2261 = vadd.f32 %v1980, %v2260
  %v2262 = vpop.f32.mrb[0].mxu0
  %v2263 = vadd.f32 %v1982, %v2262
  %2264 = vmatprep.mubr.bf16.mxu0 %v823
  %2265 = vmatmul.mubr.bf16.gmra.mrb[0].mxu0 %v822
  %v2266 = vpop.f32.mrb[0].mxu0
  %v2267 = vadd.f32 %v1986, %v2266
  %v2268 = vpop.f32.mrb[0].mxu0
  %v2269 = vadd.f32 %v1988, %v2268
  %v2270 = vpop.f32.mrb[0].mxu0
  %v2271 = vadd.f32 %v1990, %v2270
  %v2272 = vpop.f32.mrb[0].mxu0
  %v2273 = vadd.f32 %v1992, %v2272
  %2274 = vmatprep.mubr.bf16.mxu0 %v829
  %2275 = vmatmul.mubr.bf16.gmra.mrb[0].mxu0 %v828
  %v2276 = vpop.f32.mrb[0].mxu0
  %v2277 = vadd.f32 %v1996, %v2276
  %v2278 = vpop.f32.mrb[0].mxu0
  %v2279 = vadd.f32 %v1998, %v2278
  %v2280 = vpop.f32.mrb[0].mxu0
  %v2281 = vadd.f32 %v2000, %v2280
  %v2282 = vpop.f32.mrb[0].mxu0
  %v2283 = vadd.f32 %v2002, %v2282
  %2284 = vmatprep.mubr.bf16.mxu0 %v835
  %2285 = vmatmul.mubr.bf16.gmra.mrb[0].mxu0 %v834
  %v2286 = vpop.f32.mrb[0].mxu0
  %v2287 = vadd.f32 %v2006, %v2286
  %v2288 = vpop.f32.mrb[0].mxu0
  %v2289 = vadd.f32 %v2008, %v2288
  %v2290 = vpop.f32.mrb[0].mxu0
  %v2291 = vadd.f32 %v2010, %v2290
  %v2292 = vpop.f32.mrb[0].mxu0
  %v2293 = vadd.f32 %v2012, %v2292
  %2294 = vmatprep.mubr.bf16.mxu0 %v841
  %2295 = vmatmul.mubr.bf16.gmra.mrb[0].mxu0 %v840
  %v2296 = vpop.f32.mrb[0].mxu0
  %v2297 = vadd.f32 %v2016, %v2296
  %v2298 = vpop.f32.mrb[0].mxu0
  %v2299 = vadd.f32 %v2018, %v2298
  %v2300 = vpop.f32.mrb[0].mxu0
  %v2301 = vadd.f32 %v2020, %v2300
  %v2302 = vpop.f32.mrb[0].mxu0
  %v2303 = vadd.f32 %v2022, %v2302
  %2304 = vmatprep.mubr.bf16.mxu0 %v847
  %2305 = vmatmul.mubr.bf16.gmra.mrb[0].mxu0 %v846
  %v2306 = vpop.f32.mrb[0].mxu0
  %v2307 = vadd.f32 %v2026, %v2306
  %v2308 = vpop.f32.mrb[0].mxu0
  %v2309 = vadd.f32 %v2028, %v2308
  %v2310 = vpop.f32.mrb[0].mxu0
  %v2311 = vadd.f32 %v2030, %v2310
  %v2312 = vpop.f32.mrb[0].mxu0
  %v2313 = vadd.f32 %v2032, %v2312
  %2314 = vmatprep.mubr.bf16.mxu0 %v853
  %2315 = vmatmul.mubr.bf16.gmra.mrb[0].mxu0 %v852
  %v2316 = vpop.f32.mrb[0].mxu0
  %v2317 = vadd.f32 %v2036, %v2316
  %v2318 = vpop.f32.mrb[0].mxu0
  %v2319 = vadd.f32 %v2038, %v2318
  %v2320 = vpop.f32.mrb[0].mxu0
  %v2321 = vadd.f32 %v2040, %v2320
  %v2322 = vpop.f32.mrb[0].mxu0
  %v2323 = vadd.f32 %v2042, %v2322
  %2324 = vmatprep.mubr.bf16.mxu0 %v859
  %2325 = vmatmul.mubr.bf16.gmra.mrb[0].mxu0 %v858
  %v2326 = vpop.f32.mrb[0].mxu0
  %v2327 = vadd.f32 %v2046, %v2326
  %v2328 = vpop.f32.mrb[0].mxu0
  %v2329 = vadd.f32 %v2048, %v2328
  %v2330 = vpop.f32.mrb[0].mxu0
  %v2331 = vpop.f32.mrb[0].mxu0
  %2332 = vdwg.mxu0
  %2333 = vst [vmem:[%s3] sm:$0xff] %v2087
  %2334 = vst [vmem:[%s3 + $0x8] sm:$0xff] %v2089
  %2335 = vst [vmem:[%s3 + $0x10] sm:$0xff] %v2091
  %2336 = vst [vmem:[%s3 + $0x18] sm:$0xff] %v2093
  %2337 = vst [vmem:[%s3 + $0x20] sm:$0xff] %v2097
  %2338 = vst [vmem:[%s3 + $0x28] sm:$0xff] %v2099
  %2339 = vst [vmem:[%s3 + $0x30] sm:$0xff] %v2101
  %2340 = vst [vmem:[%s3 + $0x38] sm:$0xff] %v2103
  %2341 = vst [vmem:[%s3 + $0x40] sm:$0xff] %v2107
  %2342 = vst [vmem:[%s3 + $0x48] sm:$0xff] %v2109
  %2343 = vst [vmem:[%s3 + $0x50] sm:$0xff] %v2111
  %2344 = vst [vmem:[%s3 + $0x58] sm:$0xff] %v2113
  %2345 = vst [vmem:[%s3 + $0x60] sm:$0xff] %v2117
  %2346 = vst [vmem:[%s3 + $0x68] sm:$0xff] %v2119
  %2347 = vst [vmem:[%s3 + $0x70] sm:$0xff] %v2121
  %2348 = vst [vmem:[%s3 + $0x78] sm:$0xff] %v2123
  %2349 = vst [vmem:[%s3 + $0x80] sm:$0xff] %v2127
  %2350 = vst [vmem:[%s3 + $0x88] sm:$0xff] %v2129
  %2351 = vst [vmem:[%s3 + $0x90] sm:$0xff] %v2131
  %2352 = vst [vmem:[%s3 + $0x98] sm:$0xff] %v2133
  %2353 = vst [vmem:[%s3 + $0xa0] sm:$0xff] %v2137
  %2354 = vst [vmem:[%s3 + $0xa8] sm:$0xff] %v2139
  %2355 = vst [vmem:[%s3 + $0xb0] sm:$0xff] %v2141
  %2356 = vst [vmem:[%s3 + $0xb8] sm:$0xff] %v2143
  %2357 = vst [vmem:[%s3 + $0xc0] sm:$0xff] %v2147
  %2358 = vst [vmem:[%s3 + $0xc8] sm:$0xff] %v2149
  %2359 = vst [vmem:[%s3 + $0xd0] sm:$0xff] %v2151
  %2360 = vst [vmem:[%s3 + $0xd8] sm:$0xff] %v2153
  %2361 = vst [vmem:[%s3 + $0xe0] sm:$0xff] %v2157
  %2362 = vst [vmem:[%s3 + $0xe8] sm:$0xff] %v2159
  %2363 = vst [vmem:[%s3 + $0xf0] sm:$0xff] %v2161
  %2364 = vst [vmem:[%s3 + $0xf8] sm:$0xff] %v2163
  %2365 = vst [vmem:[%s3 + $0x100] sm:$0xff] %v2167
  %2366 = vst [vmem:[%s3 + $0x108] sm:$0xff] %v2169
  %2367 = vst [vmem:[%s3 + $0x110] sm:$0xff] %v2171
  %2368 = vst [vmem:[%s3 + $0x118] sm:$0xff] %v2173
  %2369 = vst [vmem:[%s3 + $0x120] sm:$0xff] %v2177
  %2370 = vst [vmem:[%s3 + $0x128] sm:$0xff] %v2179
  %2371 = vst [vmem:[%s3 + $0x130] sm:$0xff] %v2181
  %2372 = vst [vmem:[%s3 + $0x138] sm:$0xff] %v2183
  %2373 = vst [vmem:[%s3 + $0x140] sm:$0xff] %v2187
  %2374 = vst [vmem:[%s3 + $0x148] sm:$0xff] %v2189
  %2375 = vst [vmem:[%s3 + $0x150] sm:$0xff] %v2191
  %2376 = vst [vmem:[%s3 + $0x158] sm:$0xff] %v2193
  %2377 = vst [vmem:[%s3 + $0x160] sm:$0xff] %v2197
  %2378 = vst [vmem:[%s3 + $0x168] sm:$0xff] %v2199
  %2379 = vst [vmem:[%s3 + $0x170] sm:$0xff] %v2201
  %2380 = vst [vmem:[%s3 + $0x178] sm:$0xff] %v2203
  %2381 = vst [vmem:[%s3 + $0x180] sm:$0xff] %v2207
  %2382 = vst [vmem:[%s3 + $0x188] sm:$0xff] %v2209
  %2383 = vst [vmem:[%s3 + $0x190] sm:$0xff] %v2211
  %2384 = vst [vmem:[%s3 + $0x198] sm:$0xff] %v2213
  %2385 = vst [vmem:[%s3 + $0x1a0] sm:$0xff] %v2217
  %2386 = vst [vmem:[%s3 + $0x1a8] sm:$0xff] %v2219
  %2387 = vst [vmem:[%s3 + $0x1b0] sm:$0xff] %v2221
  %2388 = vst [vmem:[%s3 + $0x1b8] sm:$0xff] %v2223
  %2389 = vst [vmem:[%s3 + $0x1c0] sm:$0xff] %v2227
  %2390 = vst [vmem:[%s3 + $0x1c8] sm:$0xff] %v2229
  %2391 = vst [vmem:[%s3 + $0x1d0] sm:$0xff] %v2231
  %2392 = vst [vmem:[%s3 + $0x1d8] sm:$0xff] %v2233
  %2393 = vst [vmem:[%s3 + $0x1e0] sm:$0xff] %v2237
  %2394 = vst [vmem:[%s3 + $0x1e8] sm:$0xff] %v2239
  %2395 = vst [vmem:[%s3 + $0x1f0] sm:$0xff] %v2241
  %2396 = vst [vmem:[%s3 + $0x1f8] sm:$0xff] %v2243
  %2397 = vst [vmem:[%s3 + $0x200] sm:$0xff] %v2247
  %2398 = vst [vmem:[%s3 + $0x208] sm:$0xff] %v2249
  %2399 = vst [vmem:[%s3 + $0x210] sm:$0xff] %v2251
  %2400 = vst [vmem:[%s3 + $0x218] sm:$0xff] %v2253
  %2401 = vst [vmem:[%s3 + $0x220] sm:$0xff] %v2257
  %2402 = vst [vmem:[%s3 + $0x228] sm:$0xff] %v2259
  %2403 = vst [vmem:[%s3 + $0x230] sm:$0xff] %v2261
  %2404 = vst [vmem:[%s3 + $0x238] sm:$0xff] %v2263
  %2405 = vst [vmem:[%s3 + $0x240] sm:$0xff] %v2267
  %2406 = vst [vmem:[%s3 + $0x248] sm:$0xff] %v2269
  %2407 = vst [vmem:[%s3 + $0x250] sm:$0xff] %v2271
  %2408 = vst [vmem:[%s3 + $0x258] sm:$0xff] %v2273
  %2409 = vst [vmem:[%s3 + $0x260] sm:$0xff] %v2277
  %2410 = vst [vmem:[%s3 + $0x268] sm:$0xff] %v2279
  %2411 = vst [vmem:[%s3 + $0x270] sm:$0xff] %v2281
  %2412 = vst [vmem:[%s3 + $0x278] sm:$0xff] %v2283
  %2413 = vst [vmem:[%s3 + $0x280] sm:$0xff] %v2287
  %2414 = vst [vmem:[%s3 + $0x288] sm:$0xff] %v2289
  %2415 = vst [vmem:[%s3 + $0x290] sm:$0xff] %v2291
  %2416 = vst [vmem:[%s3 + $0x298] sm:$0xff] %v2293
  %2417 = vst [vmem:[%s3 + $0x2a0] sm:$0xff] %v2297
  %2418 = vst [vmem:[%s3 + $0x2a8] sm:$0xff] %v2299
  %2419 = vst [vmem:[%s3 + $0x2b0] sm:$0xff] %v2301
  %2420 = vst [vmem:[%s3 + $0x2b8] sm:$0xff] %v2303
  %2421 = vst [vmem:[%s3 + $0x2c0] sm:$0xff] %v2307
  %2422 = vst [vmem:[%s3 + $0x2c8] sm:$0xff] %v2309
  %2423 = vst [vmem:[%s3 + $0x2d0] sm:$0xff] %v2311
  %2424 = vst [vmem:[%s3 + $0x2d8] sm:$0xff] %v2313
  %2425 = vst [vmem:[%s3 + $0x2e0] sm:$0xff] %v2317
  %2426 = vst [vmem:[%s3 + $0x2e8] sm:$0xff] %v2319
  %2427 = vst [vmem:[%s3 + $0x2f0] sm:$0xff] %v2321
  %2428 = vst [vmem:[%s3 + $0x2f8] sm:$0xff] %v2323
  %2429 = vst [vmem:[%s3 + $0x300] sm:$0xff] %v2327
  %2430 = vst [vmem:[%s3 + $0x308] sm:$0xff] %v2329
  // Predicated region
  $region14: #{encoder_forward.5} parent=0 // pred_check
    _
  $region15: #{encoder_forward.5} parent=0 // pred_check_branch
    %2432 = sbr.rel (0) target = $region17
  $region16: #{encoder_forward.5} parent=0 // pred_region
    _
  $region17: #{encoder_forward.5} parent=0 // pred_fallthru
    _
  // Predicated region
  $region18: #{encoder_forward.5} parent=0 // pred_check
    _
  $region19: #{encoder_forward.5} parent=0 // pred_check_branch
    %2434 = sbr.rel (0) target = $region21
  $region20: #{encoder_forward.5} parent=0 // pred_region
    _
  $region21: #{encoder_forward.5} parent=0 // pred_fallthru
    _

// kernel: encoder_forward.8
$region0: #{encoder_forward.8}
  #allocation0 [shape = 'u32[]', space=smem, size = 0x4, offset = 0x4, fixed_abs, tag = 'smem constant byte address 0x4 - core index']
  #allocation1 [shape = 'u32[144,128]{1,0:T(1,128)}', space=vmem, size = 0x12000, scoped, tag = 'internal scratch']
  %s0 = inlined_call_operand.vmem [shape: bf16[196,256], index: 0, kind: input, shape index: {}]
  %s1 = inlined_call_operand.vmem [shape: bf16[196,256], index: 1, kind: input, shape index: {}]
  %s2 = inlined_call_operand.vmem [shape: bf16[256,128], index: 2, kind: input, shape index: {}]
  %s3 = inlined_call_operand.vmem [shape: bf16[256,128], index: 3, kind: input, shape index: {}]
  %s4 = inlined_call_operand.vmem [shape: f32[1,128], index: 4, kind: input, shape index: {}]
  %s5 = inlined_call_operand.vmem [shape: f32[196,128], index: 5, kind: output, shape index: {}]
  %s6 = sld [smem:[#allocation0]]
  $region30: #{encoder_forward.8} parent=0
    _
  %s8 = ssub.s32 1, %s6
  %s9 = scalar_select 0, %s8, %s6
  // Predicated region
  $region2: #{encoder_forward.8} parent=0 // pred_check
    _
  $region3: #{encoder_forward.8} parent=0 // pred_check_branch
    %11 = sbr.rel (0) target = $region5
  $region4: #{encoder_forward.8} parent=0 // pred_region
    _
  $region5: #{encoder_forward.8} parent=0 // pred_fallthru
    _
  // Predicated region
  $region6: #{encoder_forward.8} parent=0 // pred_check
    _
  $region7: #{encoder_forward.8} parent=0 // pred_check_branch
    %13 = sbr.rel (0) target = $region9
  $region8: #{encoder_forward.8} parent=0 // pred_region
    _
  $region9: #{encoder_forward.8} parent=0 // pred_fallthru
    _
  // Predicated region
  $region10: #{encoder_forward.8} parent=0 // pred_check
    _
  $region11: #{encoder_forward.8} parent=0 // pred_check_branch
    %15 = sbr.rel (0) target = $region13
  $region12: #{encoder_forward.8} parent=0 // pred_region
    _
  $region13: #{encoder_forward.8} parent=0 // pred_fallthru
    _
  // Predicated region
  $region14: #{encoder_forward.8} parent=0 // pred_check
    _
  $region15: #{encoder_forward.8} parent=0 // pred_check_branch
    %17 = sbr.rel (0) target = $region17
  $region16: #{encoder_forward.8} parent=0 // pred_region
    _
  $region17: #{encoder_forward.8} parent=0 // pred_fallthru
    _
  // Predicated region
  $region18: #{encoder_forward.8} parent=0 // pred_check
    _
  $region19: #{encoder_forward.8} parent=0 // pred_check_branch
    %19 = sbr.rel (0) target = $region21
  $region20: #{encoder_forward.8} parent=0 // pred_region
    _
  $region21: #{encoder_forward.8} parent=0 // pred_fallthru
    _
  %v21 = vld [vmem:[%s0] sm:$0xff]
  %v22 = vld [vmem:[%s0 + $0x8] sm:$0xff]
  %v23 = vld [vmem:[%s0 + $0x10] sm:$0xff]
  %v24 = vld [vmem:[%s0 + $0x18] sm:$0xff]
  %v25 = vld [vmem:[%s0 + $0x20] sm:$0xff]
  %v26 = vld [vmem:[%s0 + $0x28] sm:$0xff]
  %v27 = vld [vmem:[%s0 + $0x30] sm:$0xff]
  %v28 = vld [vmem:[%s0 + $0x38] sm:$0xff]
  %v29 = vld [vmem:[%s0 + $0x40] sm:$0xff]
  %v30 = vld [vmem:[%s0 + $0x48] sm:$0xff]
  %v31 = vld [vmem:[%s0 + $0x50] sm:$0xff]
  %v32 = vld [vmem:[%s0 + $0x58] sm:$0xff]
  %v33 = vld [vmem:[%s0 + $0x60] sm:$0xff]
  %v34 = vld [vmem:[%s0 + $0x68] sm:$0xff]
  %v35 = vld [vmem:[%s0 + $0x70] sm:$0xff]
  %v36 = vld [vmem:[%s0 + $0x78] sm:$0xff]
  %v37 = vld [vmem:[%s0 + $0x80] sm:$0xff]
  %v38 = vld [vmem:[%s0 + $0x88] sm:$0xff]
  %v39 = vld [vmem:[%s0 + $0x90] sm:$0xff]
  %v40 = vld [vmem:[%s0 + $0x98] sm:$0xff]
  %v41 = vld [vmem:[%s0 + $0xa0] sm:$0xff]
  %v42 = vld [vmem:[%s0 + $0xa8] sm:$0xff]
  %v43 = vld [vmem:[%s0 + $0xb0] sm:$0xff]
  %v44 = vld [vmem:[%s0 + $0xb8] sm:$0xff]
  %v45 = vld [vmem:[%s0 + $0xc0] sm:$0x33]
  %v46 = vld [vmem:[%s2] sm:$0xf]
  %v47 = vld [vmem:[%s2 + $0x4] sm:$0xf]
  %v48 = vld [vmem:[%s2 + $0x8] sm:$0xf]
  %v49 = vld [vmem:[%s2 + $0xc] sm:$0xf]
  %v50 = vld [vmem:[%s2 + $0x10] sm:$0xf]
  %v51 = vld [vmem:[%s2 + $0x14] sm:$0xf]
  %v52 = vld [vmem:[%s2 + $0x18] sm:$0xf]
  %v53 = vld [vmem:[%s2 + $0x1c] sm:$0xf]
  %v54 = vld [vmem:[%s2 + $0x20] sm:$0xf]
  %v55 = vld [vmem:[%s2 + $0x24] sm:$0xf]
  %v56 = vld [vmem:[%s2 + $0x28] sm:$0xf]
  %v57 = vld [vmem:[%s2 + $0x2c] sm:$0xf]
  %v58 = vld [vmem:[%s2 + $0x30] sm:$0xf]
  %v59 = vld [vmem:[%s2 + $0x34] sm:$0xf]
  %v60 = vld [vmem:[%s2 + $0x38] sm:$0xf]
  %v61 = vld [vmem:[%s2 + $0x3c] sm:$0xf]
  %v62 = vld [vmem:[%s2 + $0x40] sm:$0xf]
  %v63 = vld [vmem:[%s2 + $0x44] sm:$0xf]
  %v64 = vld [vmem:[%s2 + $0x48] sm:$0xf]
  %v65 = vld [vmem:[%s2 + $0x4c] sm:$0xf]
  %v66 = vld [vmem:[%s2 + $0x50] sm:$0xf]
  %v67 = vld [vmem:[%s2 + $0x54] sm:$0xf]
  %v68 = vld [vmem:[%s2 + $0x58] sm:$0xf]
  %v69 = vld [vmem:[%s2 + $0x5c] sm:$0xf]
  %v70 = vld [vmem:[%s2 + $0x60] sm:$0xf]
  %v71 = vld [vmem:[%s2 + $0x64] sm:$0xf]
  %v72 = vld [vmem:[%s2 + $0x68] sm:$0xf]
  %v73 = vld [vmem:[%s2 + $0x6c] sm:$0xf]
  %v74 = vld [vmem:[%s2 + $0x70] sm:$0xf]
  %v75 = vld [vmem:[%s2 + $0x74] sm:$0xf]
  %v76 = vld [vmem:[%s2 + $0x78] sm:$0xf]
  %v77 = vld [vmem:[%s2 + $0x7c] sm:$0xf]
  %v78 = vld [vmem:[%s1] sm:$0xff]
  %v79 = vld [vmem:[%s1 + $0x8] sm:$0xff]
  %v80 = vld [vmem:[%s1 + $0x10] sm:$0xff]
  %v81 = vld [vmem:[%s1 + $0x18] sm:$0xff]
  %v82 = vld [vmem:[%s1 + $0x20] sm:$0xff]
  %v83 = vld [vmem:[%s1 + $0x28] sm:$0xff]
  %v84 = vld [vmem:[%s1 + $0x30] sm:$0xff]
  %v85 = vld [vmem:[%s1 + $0x38] sm:$0xff]
  %v86 = vld [vmem:[%s1 + $0x40] sm:$0xff]
  %v87 = vld [vmem:[%s1 + $0x48] sm:$0xff]
  %v88 = vld [vmem:[%s1 + $0x50] sm:$0xff]
  %v89 = vld [vmem:[%s1 + $0x58] sm:$0xff]
  %v90 = vld [vmem:[%s1 + $0x60] sm:$0xff]
  %v91 = vld [vmem:[%s1 + $0x68] sm:$0xff]
  %v92 = vld [vmem:[%s1 + $0x70] sm:$0xff]
  %v93 = vld [vmem:[%s1 + $0x78] sm:$0xff]
  %v94 = vld [vmem:[%s1 + $0x80] sm:$0xff]
  %v95 = vld [vmem:[%s1 + $0x88] sm:$0xff]
  %v96 = vld [vmem:[%s1 + $0x90] sm:$0xff]
  %v97 = vld [vmem:[%s1 + $0x98] sm:$0xff]
  %v98 = vld [vmem:[%s1 + $0xa0] sm:$0xff]
  %v99 = vld [vmem:[%s1 + $0xa8] sm:$0xff]
  %v100 = vld [vmem:[%s1 + $0xb0] sm:$0xff]
  %v101 = vld [vmem:[%s1 + $0xb8] sm:$0xff]
  %v102 = vld [vmem:[%s1 + $0xc0] sm:$0x33]
  %v103 = vld [vmem:[%s3] sm:$0xf]
  %v104 = vld [vmem:[%s3 + $0x4] sm:$0xf]
  %v105 = vld [vmem:[%s3 + $0x8] sm:$0xf]
  %v106 = vld [vmem:[%s3 + $0xc] sm:$0xf]
  %v107 = vld [vmem:[%s3 + $0x10] sm:$0xf]
  %v108 = vld [vmem:[%s3 + $0x14] sm:$0xf]
  %v109 = vld [vmem:[%s3 + $0x18] sm:$0xf]
  %v110 = vld [vmem:[%s3 + $0x1c] sm:$0xf]
  %v111 = vld [vmem:[%s3 + $0x20] sm:$0xf]
  %v112 = vld [vmem:[%s3 + $0x24] sm:$0xf]
  %v113 = vld [vmem:[%s3 + $0x28] sm:$0xf]
  %v114 = vld [vmem:[%s3 + $0x2c] sm:$0xf]
  %v115 = vld [vmem:[%s3 + $0x30] sm:$0xf]
  %v116 = vld [vmem:[%s3 + $0x34] sm:$0xf]
  %v117 = vld [vmem:[%s3 + $0x38] sm:$0xf]
  %v118 = vld [vmem:[%s3 + $0x3c] sm:$0xf]
  %v119 = vld [vmem:[%s3 + $0x40] sm:$0xf]
  %v120 = vld [vmem:[%s3 + $0x44] sm:$0xf]
  %v121 = vld [vmem:[%s3 + $0x48] sm:$0xf]
  %v122 = vld [vmem:[%s3 + $0x4c] sm:$0xf]
  %v123 = vld [vmem:[%s3 + $0x50] sm:$0xf]
  %v124 = vld [vmem:[%s3 + $0x54] sm:$0xf]
  %v125 = vld [vmem:[%s3 + $0x58] sm:$0xf]
  %v126 = vld [vmem:[%s3 + $0x5c] sm:$0xf]
  %v127 = vld [vmem:[%s3 + $0x60] sm:$0xf]
  %v128 = vld [vmem:[%s3 + $0x64] sm:$0xf]
  %v129 = vld [vmem:[%s3 + $0x68] sm:$0xf]
  %v130 = vld [vmem:[%s3 + $0x6c] sm:$0xf]
  %v131 = vld [vmem:[%s3 + $0x70] sm:$0xf]
  %v132 = vld [vmem:[%s3 + $0x74] sm:$0xf]
  %v133 = vld [vmem:[%s3 + $0x78] sm:$0xf]
  %v134 = vld [vmem:[%s3 + $0x7c] sm:$0xf]
  %v160 = vunpack.c.l.b16 %v78
  %v161 = vunpack.c.h.b16 %v78
  %v162 = vunpack.c.l.b16 %v79
  %v163 = vunpack.c.h.b16 %v79
  %v164 = vunpack.c.l.b16 %v80
  %v165 = vunpack.c.h.b16 %v80
  %v166 = vunpack.c.l.b16 %v81
  %v167 = vunpack.c.h.b16 %v81
  %v168 = vunpack.c.l.b16 %v82
  %v169 = vunpack.c.h.b16 %v82
  %v170 = vunpack.c.l.b16 %v83
  %v171 = vunpack.c.h.b16 %v83
  %v172 = vunpack.c.l.b16 %v84
  %v173 = vunpack.c.h.b16 %v84
  %v174 = vunpack.c.l.b16 %v85
  %v175 = vunpack.c.h.b16 %v85
  %v176 = vunpack.c.l.b16 %v86
  %v177 = vunpack.c.h.b16 %v86
  %v178 = vunpack.c.l.b16 %v87
  %v179 = vunpack.c.h.b16 %v87
  %v180 = vunpack.c.l.b16 %v88
  %v181 = vunpack.c.h.b16 %v88
  %v182 = vunpack.c.l.b16 %v89
  %v183 = vunpack.c.h.b16 %v89
  %v184 = vunpack.c.l.b16 %v90
  %v185 = vunpack.c.h.b16 %v90
  %v186 = vunpack.c.l.b16 %v91
  %v187 = vunpack.c.h.b16 %v91
  %v188 = vunpack.c.l.b16 %v92
  %v189 = vunpack.c.h.b16 %v92
  %v190 = vunpack.c.l.b16 %v93
  %v191 = vunpack.c.h.b16 %v93
  %v192 = vunpack.c.l.b16 %v94
  %v193 = vunpack.c.h.b16 %v94
  %v194 = vunpack.c.l.b16 %v95
  %v195 = vunpack.c.h.b16 %v95
  %v196 = vunpack.c.l.b16 %v96
  %v197 = vunpack.c.h.b16 %v96
  %v198 = vunpack.c.l.b16 %v97
  %v199 = vunpack.c.h.b16 %v97
  %v200 = vunpack.c.l.b16 %v98
  %v201 = vunpack.c.h.b16 %v98
  %v202 = vunpack.c.l.b16 %v99
  %v203 = vunpack.c.h.b16 %v99
  %v204 = vunpack.c.l.b16 %v100
  %v205 = vunpack.c.h.b16 %v100
  %v206 = vunpack.c.l.b16 %v101
  %v207 = vunpack.c.h.b16 %v101
  %v208 = vunpack.c.l.b16 %v102
  %v209 = vunpack.c.h.b16 %v102
  %v210 = vpack.c.b16 %v162, %v160
  %v211 = vpack.c.b16 %v163, %v161
  %v212 = vpack.c.b16 %v166, %v164
  %v213 = vpack.c.b16 %v167, %v165
  %v214 = vpack.c.b16 %v170, %v168
  %v215 = vpack.c.b16 %v171, %v169
  %v216 = vpack.c.b16 %v174, %v172
  %v217 = vpack.c.b16 %v175, %v173
  %v218 = vpack.c.b16 %v178, %v176
  %v219 = vpack.c.b16 %v179, %v177
  %v220 = vpack.c.b16 %v182, %v180
  %v221 = vpack.c.b16 %v183, %v181
  %v222 = vpack.c.b16 %v186, %v184
  %v223 = vpack.c.b16 %v187, %v185
  %v224 = vpack.c.b16 %v190, %v188
  %v225 = vpack.c.b16 %v191, %v189
  %v226 = vpack.c.b16 %v194, %v192
  %v227 = vpack.c.b16 %v195, %v193
  %v228 = vpack.c.b16 %v198, %v196
  %v229 = vpack.c.b16 %v199, %v197
  %v230 = vpack.c.b16 %v202, %v200
  %v231 = vpack.c.b16 %v203, %v201
  %v232 = vpack.c.b16 %v206, %v204
  %v233 = vpack.c.b16 %v207, %v205
  %v234 = vpack.c.b16 %v208, %v208
  %v235 = vpack.c.b16 %v209, %v209
  %v294 = vunpack.c.l.b16 %v103
  %v295 = vunpack.c.l.b16 %v104
  %v296 = vunpack.c.l.b16 %v105
  %v297 = vunpack.c.l.b16 %v106
  %v298 = vunpack.c.l.b16 %v107
  %v299 = vunpack.c.l.b16 %v108
  %v300 = vunpack.c.l.b16 %v109
  %v301 = vunpack.c.l.b16 %v110
  %v302 = vunpack.c.l.b16 %v111
  %v303 = vunpack.c.l.b16 %v112
  %v304 = vunpack.c.l.b16 %v113
  %v305 = vunpack.c.l.b16 %v114
  %v306 = vunpack.c.l.b16 %v115
  %v307 = vunpack.c.l.b16 %v116
  %v308 = vunpack.c.l.b16 %v117
  %v309 = vunpack.c.l.b16 %v118
  %v310 = vunpack.c.l.b16 %v119
  %v311 = vunpack.c.l.b16 %v120
  %v312 = vunpack.c.l.b16 %v121
  %v313 = vunpack.c.l.b16 %v122
  %v314 = vunpack.c.l.b16 %v123
  %v315 = vunpack.c.l.b16 %v124
  %v316 = vunpack.c.l.b16 %v125
  %v317 = vunpack.c.l.b16 %v126
  %v318 = vunpack.c.l.b16 %v127
  %v319 = vunpack.c.l.b16 %v128
  %v320 = vunpack.c.l.b16 %v129
  %v321 = vunpack.c.l.b16 %v130
  %v322 = vunpack.c.l.b16 %v131
  %v323 = vunpack.c.l.b16 %v132
  %v324 = vunpack.c.l.b16 %v133
  %v325 = vunpack.c.l.b16 %v134
  %v326 = vpack.c.b16 %v295, %v294
  %v327 = vpack.c.b16 %v297, %v296
  %v328 = vpack.c.b16 %v299, %v298
  %v329 = vpack.c.b16 %v301, %v300
  %v330 = vpack.c.b16 %v303, %v302
  %v331 = vpack.c.b16 %v305, %v304
  %v332 = vpack.c.b16 %v307, %v306
  %v333 = vpack.c.b16 %v309, %v308
  %v334 = vpack.c.b16 %v311, %v310
  %v335 = vpack.c.b16 %v313, %v312
  %v336 = vpack.c.b16 %v315, %v314
  %v337 = vpack.c.b16 %v317, %v316
  %v338 = vpack.c.b16 %v319, %v318
  %v339 = vpack.c.b16 %v321, %v320
  %v340 = vpack.c.b16 %v323, %v322
  %v341 = vpack.c.b16 %v325, %v324
  %358 = vmatprep.subr.bf16.mxu0 0
  %359 = vmatpush1.bf16.msra.mxu0 %v326
  %360 = vmatprep.subr.bf16.mxu0 0
  %361 = vmatpush1.bf16.msra.mxu0 %v327
  %362 = vmatprep.subr.bf16.mxu0 0
  %363 = vmatpush1.bf16.msra.mxu0 %v328
  %364 = vmatprep.subr.bf16.mxu0 0
  %365 = vmatpush1.bf16.msra.mxu0 %v329
  %366 = vmatprep.subr.bf16.mxu0 0
  %367 = vmatpush1.bf16.msra.mxu0 %v330
  %368 = vmatprep.subr.bf16.mxu0 0
  %369 = vmatpush1.bf16.msra.mxu0 %v331
  %370 = vmatprep.subr.bf16.mxu0 0
  %371 = vmatpush1.bf16.msra.mxu0 %v332
  %372 = vmatprep.subr.bf16.mxu0 0
  %373 = vmatpush1.bf16.msra.mxu0 %v333
  %374 = vmatprep.subr.bf16.mxu0 0
  %375 = vmatpush1.bf16.msra.mxu0 %v334
  %376 = vmatprep.subr.bf16.mxu0 0
  %377 = vmatpush1.bf16.msra.mxu0 %v335
  %378 = vmatprep.subr.bf16.mxu0 0
  %379 = vmatpush1.bf16.msra.mxu0 %v336
  %380 = vmatprep.subr.bf16.mxu0 0
  %381 = vmatpush1.bf16.msra.mxu0 %v337
  %382 = vmatprep.subr.bf16.mxu0 0
  %383 = vmatpush1.bf16.msra.mxu0 %v338
  %384 = vmatprep.subr.bf16.mxu0 0
  %385 = vmatpush1.bf16.msra.mxu0 %v339
  %386 = vmatprep.subr.bf16.mxu0 0
  %387 = vmatpush1.bf16.msra.mxu0 %v340
  %388 = vmatprep.subr.bf16.mxu0 0
  %389 = vmatpush1.bf16.msra.mxu0 %v341
  %390 = vmatprep.mubr.bf16.mxu0 %v211
  %391 = vmatmul.mubr.bf16.gmra.mrb[0].mxu0 %v210
  %v392 = vpop.f32.mrb[0].mxu0
  %v393 = vadd.f32 0.0, %v392
  %v394 = vpop.f32.mrb[0].mxu0
  %v395 = vpop.f32.mrb[0].mxu0
  %v396 = vadd.f32 0.0, %v395
  %v397 = vpop.f32.mrb[0].mxu0
  %398 = vmatprep.mubr.bf16.mxu0 %v213
  %399 = vmatmul.mubr.bf16.gmra.mrb[0].mxu0 %v212
  %v400 = vpop.f32.mrb[0].mxu0
  %v401 = vadd.f32 0.0, %v400
  %v402 = vpop.f32.mrb[0].mxu0
  %v403 = vpop.f32.mrb[0].mxu0
  %v404 = vadd.f32 0.0, %v403
  %v405 = vpop.f32.mrb[0].mxu0
  %406 = vmatprep.mubr.bf16.mxu0 %v215
  %407 = vmatmul.mubr.bf16.gmra.mrb[0].mxu0 %v214
  %v408 = vpop.f32.mrb[0].mxu0
  %v409 = vadd.f32 0.0, %v408
  %v410 = vpop.f32.mrb[0].mxu0
  %v411 = vpop.f32.mrb[0].mxu0
  %v412 = vadd.f32 0.0, %v411
  %v413 = vpop.f32.mrb[0].mxu0
  %414 = vmatprep.mubr.bf16.mxu0 %v217
  %415 = vmatmul.mubr.bf16.gmra.mrb[0].mxu0 %v216
  %v416 = vpop.f32.mrb[0].mxu0
  %v417 = vadd.f32 0.0, %v416
  %v418 = vpop.f32.mrb[0].mxu0
  %v419 = vpop.f32.mrb[0].mxu0
  %v420 = vadd.f32 0.0, %v419
  %v421 = vpop.f32.mrb[0].mxu0
  %422 = vmatprep.mubr.bf16.mxu0 %v219
  %423 = vmatmul.mubr.bf16.gmra.mrb[0].mxu0 %v218
  %v424 = vpop.f32.mrb[0].mxu0
  %v425 = vadd.f32 0.0, %v424
  %v426 = vpop.f32.mrb[0].mxu0
  %v427 = vpop.f32.mrb[0].mxu0
  %v428 = vadd.f32 0.0, %v427
  %v429 = vpop.f32.mrb[0].mxu0
  %430 = vmatprep.mubr.bf16.mxu0 %v221
  %431 = vmatmul.mubr.bf16.gmra.mrb[0].mxu0 %v220
  %v432 = vpop.f32.mrb[0].mxu0
  %v433 = vadd.f32 0.0, %v432
  %v434 = vpop.f32.mrb[0].mxu0
  %v435 = vpop.f32.mrb[0].mxu0
  %v436 = vadd.f32 0.0, %v435
  %v437 = vpop.f32.mrb[0].mxu0
  %438 = vmatprep.mubr.bf16.mxu0 %v223
  %439 = vmatmul.mubr.bf16.gmra.mrb[0].mxu0 %v222
  %v440 = vpop.f32.mrb[0].mxu0
  %v441 = vadd.f32 0.0, %v440
  %v442 = vpop.f32.mrb[0].mxu0
  %v443 = vpop.f32.mrb[0].mxu0
  %v444 = vadd.f32 0.0, %v443
  %v445 = vpop.f32.mrb[0].mxu0
  %446 = vmatprep.mubr.bf16.mxu0 %v225
  %447 = vmatmul.mubr.bf16.gmra.mrb[0].mxu0 %v224
  %v448 = vpop.f32.mrb[0].mxu0
  %v449 = vadd.f32 0.0, %v448
  %v450 = vpop.f32.mrb[0].mxu0
  %v451 = vpop.f32.mrb[0].mxu0
  %v452 = vadd.f32 0.0, %v451
  %v453 = vpop.f32.mrb[0].mxu0
  %454 = vmatprep.mubr.bf16.mxu0 %v227
  %455 = vmatmul.mubr.bf16.gmra.mrb[0].mxu0 %v226
  %v456 = vpop.f32.mrb[0].mxu0
  %v457 = vadd.f32 0.0, %v456
  %v458 = vpop.f32.mrb[0].mxu0
  %v459 = vpop.f32.mrb[0].mxu0
  %v460 = vadd.f32 0.0, %v459
  %v461 = vpop.f32.mrb[0].mxu0
  %462 = vmatprep.mubr.bf16.mxu0 %v229
  %463 = vmatmul.mubr.bf16.gmra.mrb[0].mxu0 %v228
  %v464 = vpop.f32.mrb[0].mxu0
  %v465 = vadd.f32 0.0, %v464
  %v466 = vpop.f32.mrb[0].mxu0
  %v467 = vpop.f32.mrb[0].mxu0
  %v468 = vadd.f32 0.0, %v467
  %v469 = vpop.f32.mrb[0].mxu0
  %470 = vmatprep.mubr.bf16.mxu0 %v231
  %471 = vmatmul.mubr.bf16.gmra.mrb[0].mxu0 %v230
  %v472 = vpop.f32.mrb[0].mxu0
  %v473 = vadd.f32 0.0, %v472
  %v474 = vpop.f32.mrb[0].mxu0
  %v475 = vpop.f32.mrb[0].mxu0
  %v476 = vadd.f32 0.0, %v475
  %v477 = vpop.f32.mrb[0].mxu0
  %478 = vmatprep.mubr.bf16.mxu0 %v233
  %479 = vmatmul.mubr.bf16.gmra.mrb[0].mxu0 %v232
  %v480 = vpop.f32.mrb[0].mxu0
  %v481 = vadd.f32 0.0, %v480
  %v482 = vpop.f32.mrb[0].mxu0
  %v483 = vpop.f32.mrb[0].mxu0
  %v484 = vadd.f32 0.0, %v483
  %v485 = vpop.f32.mrb[0].mxu0
  %486 = vmatprep.mubr.bf16.mxu0 %v235
  %487 = vmatmul.mubr.bf16.gmra.mrb[0].mxu0 %v234
  %v488 = vpop.f32.mrb[0].mxu0
  %v489 = vadd.f32 0.0, %v488
  %v490 = vpop.f32.mrb[0].mxu0
  %v491 = vpop.f32.mrb[0].mxu0
  %v492 = vpop.f32.mrb[0].mxu0
  %493 = vdwg.mxu0
  %v519 = vunpack.c.l.b16 %v21
  %v520 = vunpack.c.h.b16 %v21
  %v521 = vunpack.c.l.b16 %v22
  %v522 = vunpack.c.h.b16 %v22
  %v523 = vunpack.c.l.b16 %v23
  %v524 = vunpack.c.h.b16 %v23
  %v525 = vunpack.c.l.b16 %v24
  %v526 = vunpack.c.h.b16 %v24
  %v527 = vunpack.c.l.b16 %v25
  %v528 = vunpack.c.h.b16 %v25
  %v529 = vunpack.c.l.b16 %v26
  %v530 = vunpack.c.h.b16 %v26
  %v531 = vunpack.c.l.b16 %v27
  %v532 = vunpack.c.h.b16 %v27
  %v533 = vunpack.c.l.b16 %v28
  %v534 = vunpack.c.h.b16 %v28
  %v535 = vunpack.c.l.b16 %v29
  %v536 = vunpack.c.h.b16 %v29
  %v537 = vunpack.c.l.b16 %v30
  %v538 = vunpack.c.h.b16 %v30
  %v539 = vunpack.c.l.b16 %v31
  %v540 = vunpack.c.h.b16 %v31
  %v541 = vunpack.c.l.b16 %v32
  %v542 = vunpack.c.h.b16 %v32
  %v543 = vunpack.c.l.b16 %v33
  %v544 = vunpack.c.h.b16 %v33
  %v545 = vunpack.c.l.b16 %v34
  %v546 = vunpack.c.h.b16 %v34
  %v547 = vunpack.c.l.b16 %v35
  %v548 = vunpack.c.h.b16 %v35
  %v549 = vunpack.c.l.b16 %v36
  %v550 = vunpack.c.h.b16 %v36
  %v551 = vunpack.c.l.b16 %v37
  %v552 = vunpack.c.h.b16 %v37
  %v553 = vunpack.c.l.b16 %v38
  %v554 = vunpack.c.h.b16 %v38
  %v555 = vunpack.c.l.b16 %v39
  %v556 = vunpack.c.h.b16 %v39
  %v557 = vunpack.c.l.b16 %v40
  %v558 = vunpack.c.h.b16 %v40
  %v559 = vunpack.c.l.b16 %v41
  %v560 = vunpack.c.h.b16 %v41
  %v561 = vunpack.c.l.b16 %v42
  %v562 = vunpack.c.h.b16 %v42
  %v563 = vunpack.c.l.b16 %v43
  %v564 = vunpack.c.h.b16 %v43
  %v565 = vunpack.c.l.b16 %v44
  %v566 = vunpack.c.h.b16 %v44
  %v567 = vunpack.c.l.b16 %v45
  %v568 = vunpack.c.h.b16 %v45
  %v569 = vpack.c.b16 %v521, %v519
  %v570 = vpack.c.b16 %v522, %v520
  %v571 = vpack.c.b16 %v525, %v523
  %v572 = vpack.c.b16 %v526, %v524
  %v573 = vpack.c.b16 %v529, %v527
  %v574 = vpack.c.b16 %v530, %v528
  %v575 = vpack.c.b16 %v533, %v531
  %v576 = vpack.c.b16 %v534, %v532
  %v577 = vpack.c.b16 %v537, %v535
  %v578 = vpack.c.b16 %v538, %v536
  %v579 = vpack.c.b16 %v541, %v539
  %v580 = vpack.c.b16 %v542, %v540
  %v581 = vpack.c.b16 %v545, %v543
  %v582 = vpack.c.b16 %v546, %v544
  %v583 = vpack.c.b16 %v549, %v547
  %v584 = vpack.c.b16 %v550, %v548
  %v585 = vpack.c.b16 %v553, %v551
  %v586 = vpack.c.b16 %v554, %v552
  %v587 = vpack.c.b16 %v557, %v555
  %v588 = vpack.c.b16 %v558, %v556
  %v589 = vpack.c.b16 %v561, %v559
  %v590 = vpack.c.b16 %v562, %v560
  %v591 = vpack.c.b16 %v565, %v563
  %v592 = vpack.c.b16 %v566, %v564
  %v593 = vpack.c.b16 %v567, %v567
  %v594 = vpack.c.b16 %v568, %v568
  %v653 = vunpack.c.l.b16 %v46
  %v654 = vunpack.c.l.b16 %v47
  %v655 = vunpack.c.l.b16 %v48
  %v656 = vunpack.c.l.b16 %v49
  %v657 = vunpack.c.l.b16 %v50
  %v658 = vunpack.c.l.b16 %v51
  %v659 = vunpack.c.l.b16 %v52
  %v660 = vunpack.c.l.b16 %v53
  %v661 = vunpack.c.l.b16 %v54
  %v662 = vunpack.c.l.b16 %v55
  %v663 = vunpack.c.l.b16 %v56
  %v664 = vunpack.c.l.b16 %v57
  %v665 = vunpack.c.l.b16 %v58
  %v666 = vunpack.c.l.b16 %v59
  %v667 = vunpack.c.l.b16 %v60
  %v668 = vunpack.c.l.b16 %v61
  %v669 = vunpack.c.l.b16 %v62
  %v670 = vunpack.c.l.b16 %v63
  %v671 = vunpack.c.l.b16 %v64
  %v672 = vunpack.c.l.b16 %v65
  %v673 = vunpack.c.l.b16 %v66
  %v674 = vunpack.c.l.b16 %v67
  %v675 = vunpack.c.l.b16 %v68
  %v676 = vunpack.c.l.b16 %v69
  %v677 = vunpack.c.l.b16 %v70
  %v678 = vunpack.c.l.b16 %v71
  %v679 = vunpack.c.l.b16 %v72
  %v680 = vunpack.c.l.b16 %v73
  %v681 = vunpack.c.l.b16 %v74
  %v682 = vunpack.c.l.b16 %v75
  %v683 = vunpack.c.l.b16 %v76
  %v684 = vunpack.c.l.b16 %v77
  %v685 = vpack.c.b16 %v654, %v653
  %v686 = vpack.c.b16 %v656, %v655
  %v687 = vpack.c.b16 %v658, %v657
  %v688 = vpack.c.b16 %v660, %v659
  %v689 = vpack.c.b16 %v662, %v661
  %v690 = vpack.c.b16 %v664, %v663
  %v691 = vpack.c.b16 %v666, %v665
  %v692 = vpack.c.b16 %v668, %v667
  %v693 = vpack.c.b16 %v670, %v669
  %v694 = vpack.c.b16 %v672, %v671
  %v695 = vpack.c.b16 %v674, %v673
  %v696 = vpack.c.b16 %v676, %v675
  %v697 = vpack.c.b16 %v678, %v677
  %v698 = vpack.c.b16 %v680, %v679
  %v699 = vpack.c.b16 %v682, %v681
  %v700 = vpack.c.b16 %v684, %v683
  %717 = vmatprep.subr.bf16.mxu0 0
  %718 = vmatpush1.bf16.msra.mxu0 %v685
  %719 = vmatprep.subr.bf16.mxu0 0
  %720 = vmatpush1.bf16.msra.mxu0 %v686
  %721 = vmatprep.subr.bf16.mxu0 0
  %722 = vmatpush1.bf16.msra.mxu0 %v687
  %723 = vmatprep.subr.bf16.mxu0 0
  %724 = vmatpush1.bf16.msra.mxu0 %v688
  %725 = vmatprep.subr.bf16.mxu0 0
  %726 = vmatpush1.bf16.msra.mxu0 %v689
  %727 = vmatprep.subr.bf16.mxu0 0
  %728 = vmatpush1.bf16.msra.mxu0 %v690
  %729 = vmatprep.subr.bf16.mxu0 0
  %730 = vmatpush1.bf16.msra.mxu0 %v691
  %731 = vmatprep.subr.bf16.mxu0 0
  %732 = vmatpush1.bf16.msra.mxu0 %v692
  %733 = vmatprep.subr.bf16.mxu0 0
  %734 = vmatpush1.bf16.msra.mxu0 %v693
  %735 = vmatprep.subr.bf16.mxu0 0
  %736 = vmatpush1.bf16.msra.mxu0 %v694
  %737 = vmatprep.subr.bf16.mxu0 0
  %738 = vmatpush1.bf16.msra.mxu0 %v695
  %739 = vmatprep.subr.bf16.mxu0 0
  %740 = vmatpush1.bf16.msra.mxu0 %v696
  %741 = vmatprep.subr.bf16.mxu0 0
  %742 = vmatpush1.bf16.msra.mxu0 %v697
  %743 = vmatprep.subr.bf16.mxu0 0
  %744 = vmatpush1.bf16.msra.mxu0 %v698
  %745 = vmatprep.subr.bf16.mxu0 0
  %746 = vmatpush1.bf16.msra.mxu0 %v699
  %747 = vmatprep.subr.bf16.mxu0 0
  %748 = vmatpush1.bf16.msra.mxu0 %v700
  %749 = vmatprep.mubr.bf16.mxu0 %v570
  %750 = vmatmul.mubr.bf16.gmra.mrb[0].mxu0 %v569
  %v751 = vpop.f32.mrb[0].mxu0
  %v752 = vadd.f32 %v393, %v751
  %v753 = vpop.f32.mrb[0].mxu0
  %v754 = vpop.f32.mrb[0].mxu0
  %v755 = vadd.f32 %v396, %v754
  %v756 = vpop.f32.mrb[0].mxu0
  %757 = vmatprep.mubr.bf16.mxu0 %v572
  %758 = vmatmul.mubr.bf16.gmra.mrb[0].mxu0 %v571
  %v759 = vpop.f32.mrb[0].mxu0
  %v760 = vadd.f32 %v401, %v759
  %v761 = vpop.f32.mrb[0].mxu0
  %v762 = vpop.f32.mrb[0].mxu0
  %v763 = vadd.f32 %v404, %v762
  %v764 = vpop.f32.mrb[0].mxu0
  %765 = vmatprep.mubr.bf16.mxu0 %v574
  %766 = vmatmul.mubr.bf16.gmra.mrb[0].mxu0 %v573
  %v767 = vpop.f32.mrb[0].mxu0
  %v768 = vadd.f32 %v409, %v767
  %v769 = vpop.f32.mrb[0].mxu0
  %v770 = vpop.f32.mrb[0].mxu0
  %v771 = vadd.f32 %v412, %v770
  %v772 = vpop.f32.mrb[0].mxu0
  %773 = vmatprep.mubr.bf16.mxu0 %v576
  %774 = vmatmul.mubr.bf16.gmra.mrb[0].mxu0 %v575
  %v775 = vpop.f32.mrb[0].mxu0
  %v776 = vadd.f32 %v417, %v775
  %v777 = vpop.f32.mrb[0].mxu0
  %v778 = vpop.f32.mrb[0].mxu0
  %v779 = vadd.f32 %v420, %v778
  %v780 = vpop.f32.mrb[0].mxu0
  %781 = vmatprep.mubr.bf16.mxu0 %v578
  %782 = vmatmul.mubr.bf16.gmra.mrb[0].mxu0 %v577
  %v783 = vpop.f32.mrb[0].mxu0
  %v784 = vadd.f32 %v425, %v783
  %v785 = vpop.f32.mrb[0].mxu0
  %v786 = vpop.f32.mrb[0].mxu0
  %v787 = vadd.f32 %v428, %v786
  %v788 = vpop.f32.mrb[0].mxu0
  %789 = vmatprep.mubr.bf16.mxu0 %v580
  %790 = vmatmul.mubr.bf16.gmra.mrb[0].mxu0 %v579
  %v791 = vpop.f32.mrb[0].mxu0
  %v792 = vadd.f32 %v433, %v791
  %v793 = vpop.f32.mrb[0].mxu0
  %v794 = vpop.f32.mrb[0].mxu0
  %v795 = vadd.f32 %v436, %v794
  %v796 = vpop.f32.mrb[0].mxu0
  %797 = vmatprep.mubr.bf16.mxu0 %v582
  %798 = vmatmul.mubr.bf16.gmra.mrb[0].mxu0 %v581
  %v799 = vpop.f32.mrb[0].mxu0
  %v800 = vadd.f32 %v441, %v799
  %v801 = vpop.f32.mrb[0].mxu0
  %v802 = vpop.f32.mrb[0].mxu0
  %v803 = vadd.f32 %v444, %v802
  %v804 = vpop.f32.mrb[0].mxu0
  %805 = vmatprep.mubr.bf16.mxu0 %v584
  %806 = vmatmul.mubr.bf16.gmra.mrb[0].mxu0 %v583
  %v807 = vpop.f32.mrb[0].mxu0
  %v808 = vadd.f32 %v449, %v807
  %v809 = vpop.f32.mrb[0].mxu0
  %v810 = vpop.f32.mrb[0].mxu0
  %v811 = vadd.f32 %v452, %v810
  %v812 = vpop.f32.mrb[0].mxu0
  %813 = vmatprep.mubr.bf16.mxu0 %v586
  %814 = vmatmul.mubr.bf16.gmra.mrb[0].mxu0 %v585
  %v815 = vpop.f32.mrb[0].mxu0
  %v816 = vadd.f32 %v457, %v815
  %v817 = vpop.f32.mrb[0].mxu0
  %v818 = vpop.f32.mrb[0].mxu0
  %v819 = vadd.f32 %v460, %v818
  %v820 = vpop.f32.mrb[0].mxu0
  %821 = vmatprep.mubr.bf16.mxu0 %v588
  %822 = vmatmul.mubr.bf16.gmra.mrb[0].mxu0 %v587
  %v823 = vpop.f32.mrb[0].mxu0
  %v824 = vadd.f32 %v465, %v823
  %v825 = vpop.f32.mrb[0].mxu0
  %v826 = vpop.f32.mrb[0].mxu0
  %v827 = vadd.f32 %v468, %v826
  %v828 = vpop.f32.mrb[0].mxu0
  %829 = vmatprep.mubr.bf16.mxu0 %v590
  %830 = vmatmul.mubr.bf16.gmra.mrb[0].mxu0 %v589
  %v831 = vpop.f32.mrb[0].mxu0
  %v832 = vadd.f32 %v473, %v831
  %v833 = vpop.f32.mrb[0].mxu0
  %v834 = vpop.f32.mrb[0].mxu0
  %v835 = vadd.f32 %v476, %v834
  %v836 = vpop.f32.mrb[0].mxu0
  %837 = vmatprep.mubr.bf16.mxu0 %v592
  %838 = vmatmul.mubr.bf16.gmra.mrb[0].mxu0 %v591
  %v839 = vpop.f32.mrb[0].mxu0
  %v840 = vadd.f32 %v481, %v839
  %v841 = vpop.f32.mrb[0].mxu0
  %v842 = vpop.f32.mrb[0].mxu0
  %v843 = vadd.f32 %v484, %v842
  %v844 = vpop.f32.mrb[0].mxu0
  %845 = vmatprep.mubr.bf16.mxu0 %v594
  %846 = vmatmul.mubr.bf16.gmra.mrb[0].mxu0 %v593
  %v847 = vpop.f32.mrb[0].mxu0
  %v848 = vadd.f32 %v489, %v847
  %v849 = vpop.f32.mrb[0].mxu0
  %v850 = vpop.f32.mrb[0].mxu0
  %v851 = vpop.f32.mrb[0].mxu0
  %852 = vdwg.mxu0
  %v853 = vld [vmem:[%s4] sm:$0x1]
  %v855 = vlaneseq
  %v856 = vshrl.u32 %v855, 7
  %v857 = vsub.s32 0, %v856
  %v858 = vrot.slane %v853, %v857
  %v860 = vadd.f32 %v752, %v858
  %v861 = vadd.f32 %v755, %v858
  %v862 = vadd.f32 %v760, %v858
  %v863 = vadd.f32 %v763, %v858
  %v864 = vadd.f32 %v768, %v858
  %v865 = vadd.f32 %v771, %v858
  %v866 = vadd.f32 %v776, %v858
  %v867 = vadd.f32 %v779, %v858
  %v868 = vadd.f32 %v784, %v858
  %v869 = vadd.f32 %v787, %v858
  %v870 = vadd.f32 %v792, %v858
  %v871 = vadd.f32 %v795, %v858
  %v872 = vadd.f32 %v800, %v858
  %v873 = vadd.f32 %v803, %v858
  %v874 = vadd.f32 %v808, %v858
  %v875 = vadd.f32 %v811, %v858
  %v876 = vadd.f32 %v816, %v858
  %v877 = vadd.f32 %v819, %v858
  %v878 = vadd.f32 %v824, %v858
  %v879 = vadd.f32 %v827, %v858
  %v880 = vadd.f32 %v832, %v858
  %v881 = vadd.f32 %v835, %v858
  %v882 = vadd.f32 %v840, %v858
  %v883 = vadd.f32 %v843, %v858
  %v884 = vadd.f32 %v848, %v858
  %885 = vst [vmem:[%s5] sm:$0xff] %v860
  %886 = vst [vmem:[%s5 + $0x8] sm:$0xff] %v861
  %887 = vst [vmem:[%s5 + $0x10] sm:$0xff] %v862
  %888 = vst [vmem:[%s5 + $0x18] sm:$0xff] %v863
  %889 = vst [vmem:[%s5 + $0x20] sm:$0xff] %v864
  %890 = vst [vmem:[%s5 + $0x28] sm:$0xff] %v865
  %891 = vst [vmem:[%s5 + $0x30] sm:$0xff] %v866
  %892 = vst [vmem:[%s5 + $0x38] sm:$0xff] %v867
  %893 = vst [vmem:[%s5 + $0x40] sm:$0xff] %v868
  %894 = vst [vmem:[%s5 + $0x48] sm:$0xff] %v869
  %895 = vst [vmem:[%s5 + $0x50] sm:$0xff] %v870
  %896 = vst [vmem:[%s5 + $0x58] sm:$0xff] %v871
  %897 = vst [vmem:[%s5 + $0x60] sm:$0xff] %v872
  %898 = vst [vmem:[%s5 + $0x68] sm:$0xff] %v873
  %899 = vst [vmem:[%s5 + $0x70] sm:$0xff] %v874
  %900 = vst [vmem:[%s5 + $0x78] sm:$0xff] %v875
  %901 = vst [vmem:[%s5 + $0x80] sm:$0xff] %v876
  %902 = vst [vmem:[%s5 + $0x88] sm:$0xff] %v877
  %903 = vst [vmem:[%s5 + $0x90] sm:$0xff] %v878
  %904 = vst [vmem:[%s5 + $0x98] sm:$0xff] %v879
  %905 = vst [vmem:[%s5 + $0xa0] sm:$0xff] %v880
  %906 = vst [vmem:[%s5 + $0xa8] sm:$0xff] %v881
  %907 = vst [vmem:[%s5 + $0xb0] sm:$0xff] %v882
  %908 = vst [vmem:[%s5 + $0xb8] sm:$0xff] %v883
  %909 = vst [vmem:[%s5 + $0xc0] sm:$0xf] %v884
  // Predicated region
  $region22: #{encoder_forward.8} parent=0 // pred_check
    _
  $region23: #{encoder_forward.8} parent=0 // pred_check_branch
    %911 = sbr.rel (0) target = $region25
  $region24: #{encoder_forward.8} parent=0 // pred_region
    _
  $region25: #{encoder_forward.8} parent=0 // pred_fallthru
    _
  // Predicated region
  $region26: #{encoder_forward.8} parent=0 // pred_check
    _
  $region27: #{encoder_forward.8} parent=0 // pred_check_branch
    %913 = sbr.rel (0) target = $region29
  $region28: #{encoder_forward.8} parent=0 // pred_region
    _
  $region29: #{encoder_forward.8} parent=0 // pred_fallthru
    _

// kernel: encoder_forward.9
$region0: #{encoder_forward.9}
  #allocation0 [shape = 'u32[]', space=smem, size = 0x4, offset = 0x4, fixed_abs, tag = 'smem constant byte address 0x4 - core index']
  #allocation1 [shape = 'u32[144,128]{1,0:T(1,128)}', space=vmem, size = 0x12000, scoped, tag = 'internal scratch']
  #allocation2 [shape = 'f32[1]{0:T(128)S(6)}', space=smem, size = 0x200, scoped, tag = 'scoped memory for encoder_forward.9']
  %s0 = inlined_call_operand.vmem [shape: f32[2,16,16,256], index: 0, kind: input, shape index: {}]
  %s1 = inlined_call_operand.vmem [shape: f32[2,9,256], index: 1, kind: input, shape index: {}]
  %s2 = inlined_call_operand.vmem [shape: f32[1,16,16,64], index: 2, kind: input, shape index: {}]
  %s3 = inlined_call_operand.vmem [shape: f32[9,64], index: 3, kind: input, shape index: {}]
  %s4 = inlined_call_operand.vmem [shape: f32[2], index: 4, kind: input, shape index: {}]
  %s5 = inlined_call_operand.<no memory space> [shape: f32[1], index: 5, kind: input, shape index: {}]
  %s6 = inlined_call_operand.vmem [shape: f32[2,14,14], index: 6, kind: output, shape index: {0}]
  %s7 = inlined_call_operand.vmem [shape: f32[1,14,14], index: 7, kind: output, shape index: {1}]
  %8 = xla_tuple %s6, %s7
  %s9 = sld [smem:[#allocation0]]
  $region46: #{encoder_forward.9} parent=0
    _
  %s11 = ssub.s32 1, %s9
  %s12 = scalar_select 0, %s11, %s9
  %13 = sst [smem:[#allocation2]] %s5
  $region1: #{encoder_forward.9} parent=0
    #allocation3 [shape = 'u8[512]{0}', space=smem, size = 0x200, scoped, tag = 'input window, operand 4, single buffered']
    #allocation4 [shape = 's32[1]{0}', space=sflag, size = 0x4, scoped, tag = 'scoped memory for encoder_forward.9']
    %14 = vsyncpa [#allocation4], 0
    // Predicated region
    $region2: #{encoder_forward.9} parent=1 // pred_check
      _
    $region3: #{encoder_forward.9} parent=1 // pred_check_branch
      %16 = sbr.rel (0) target = $region5
    $region4: #{encoder_forward.9} parent=1 // pred_region
      _
    $region5: #{encoder_forward.9} parent=1 // pred_fallthru
      _
    // Predicated region
    $region6: #{encoder_forward.9} parent=1 // pred_check
      _
    $region7: #{encoder_forward.9} parent=1 // pred_check_branch
      %18 = sbr.rel (0) target = $region9
    $region8: #{encoder_forward.9} parent=1 // pred_region
      _
    $region9: #{encoder_forward.9} parent=1 // pred_fallthru
      _
    // Predicated region
    $region10: #{encoder_forward.9} parent=1 // pred_check
      _
    $region11: #{encoder_forward.9} parent=1 // pred_check_branch
      %20 = sbr.rel (0) target = $region13
    $region12: #{encoder_forward.9} parent=1 // pred_region
      _
    $region13: #{encoder_forward.9} parent=1 // pred_fallthru
      _
    // Predicated region
    $region14: #{encoder_forward.9} parent=1 // pred_check
      _
    $region15: #{encoder_forward.9} parent=1 // pred_check_branch
      %22 = sbr.rel (0) target = $region17
    $region16: #{encoder_forward.9} parent=1 // pred_region
      _
    $region17: #{encoder_forward.9} parent=1 // pred_fallthru
      _
    // Predicated region
    $region18: #{encoder_forward.9} parent=1 // pred_check
      _
    $region19: #{encoder_forward.9} parent=1 // pred_check_branch
      %24 = sbr.rel (0) target = $region21
    $region20: #{encoder_forward.9} parent=1 // pred_region
      %s26 = ssub.s32 16, 16
      %27 = vsyncadd [#allocation4], %s26
      %s29 = sshll.u32 %s4, 4
      %s30 = int_to_ptr.vmem [resolvable:$true] %s29
      %32 = dma.vmem_to_smem %s30, 16, [#allocation3], [#allocation4]
    $region21: #{encoder_forward.9} parent=1 // pred_fallthru
      _
    // Predicated region
    $region22: #{encoder_forward.9} parent=1 // pred_check
      _
    $region23: #{encoder_forward.9} parent=1 // pred_check_branch
      %34 = sbr.rel (0) target = $region25
    $region24: #{encoder_forward.9} parent=1 // pred_region
      _
    $region25: #{encoder_forward.9} parent=1 // pred_fallthru
      _
    // Predicated region
    $region26: #{encoder_forward.9} parent=1 // pred_check
      _
    $region27: #{encoder_forward.9} parent=1 // pred_check_branch
      %36 = sbr.rel (0) target = $region29
    $region28: #{encoder_forward.9} parent=1 // pred_region
      %37 = dma.done [#allocation4], 16
    $region29: #{encoder_forward.9} parent=1 // pred_fallthru
      _
    %38 = sfence
    %v39 = vld [vmem:[%s1] sm:$0xff]
    %v40 = vld [vmem:[%s1 + $0x8] sm:$0xff]
    %v41 = vld [vmem:[%s1 + $0x10] sm:$0x1]
    %v42 = vld [vmem:[%s1 + $0x18] sm:$0x1]
    %v43 = vld [vmem:[%s1 + $0x20] sm:$0xff]
    %v44 = vld [vmem:[%s1 + $0x28] sm:$0xff]
    %v45 = vld [vmem:[%s1 + $0x30] sm:$0x1]
    %v46 = vld [vmem:[%s1 + $0x38] sm:$0x1]
    %v47 = vld [vmem:[%s0] sm:$0xff]
    %v48 = vld [vmem:[%s0 + $0x8] sm:$0xff]
    %v49 = vld [vmem:[%s0 + $0x10] sm:$0x3f]
    %v50 = vld [vmem:[%s0 + $0x18] sm:$0x3f]
    %v51 = vld [vmem:[%s0 + $0x20] sm:$0xff]
    %v52 = vld [vmem:[%s0 + $0x28] sm:$0xff]
    %v53 = vld [vmem:[%s0 + $0x30] sm:$0x3f]
    %v54 = vld [vmem:[%s0 + $0x38] sm:$0x3f]
    %v55 = vld [vmem:[%s0 + $0x40] sm:$0xff]
    %v56 = vld [vmem:[%s0 + $0x48] sm:$0xff]
    %v57 = vld [vmem:[%s0 + $0x50] sm:$0x3f]
    %v58 = vld [vmem:[%s0 + $0x58] sm:$0x3f]
    %v59 = vld [vmem:[%s0 + $0x60] sm:$0xff]
    %v60 = vld [vmem:[%s0 + $0x68] sm:$0xff]
    %v61 = vld [vmem:[%s0 + $0x70] sm:$0x3f]
    %v62 = vld [vmem:[%s0 + $0x78] sm:$0x3f]
    %v63 = vld [vmem:[%s0 + $0x80] sm:$0xff]
    %v64 = vld [vmem:[%s0 + $0x88] sm:$0xff]
    %v65 = vld [vmem:[%s0 + $0x90] sm:$0x3f]
    %v66 = vld [vmem:[%s0 + $0x98] sm:$0x3f]
    %v67 = vld [vmem:[%s0 + $0xa0] sm:$0xff]
    %v68 = vld [vmem:[%s0 + $0xa8] sm:$0xff]
    %v69 = vld [vmem:[%s0 + $0xb0] sm:$0x3f]
    %v70 = vld [vmem:[%s0 + $0xb8] sm:$0x3f]
    %v71 = vld [vmem:[%s0 + $0xc0] sm:$0xff]
    %v72 = vld [vmem:[%s0 + $0xc8] sm:$0xff]
    %v73 = vld [vmem:[%s0 + $0xd0] sm:$0x3f]
    %v74 = vld [vmem:[%s0 + $0xd8] sm:$0x3f]
    %v75 = vld [vmem:[%s0 + $0xe0] sm:$0xff]
    %v76 = vld [vmem:[%s0 + $0xe8] sm:$0xff]
    %v77 = vld [vmem:[%s0 + $0xf0] sm:$0x3f]
    %v78 = vld [vmem:[%s0 + $0xf8] sm:$0x3f]
    %v79 = vld [vmem:[%s0 + $0x100] sm:$0xff]
    %v80 = vld [vmem:[%s0 + $0x108] sm:$0xff]
    %v81 = vld [vmem:[%s0 + $0x110] sm:$0x3f]
    %v82 = vld [vmem:[%s0 + $0x118] sm:$0x3f]
    %v83 = vld [vmem:[%s0 + $0x120] sm:$0xff]
    %v84 = vld [vmem:[%s0 + $0x128] sm:$0xff]
    %v85 = vld [vmem:[%s0 + $0x130] sm:$0x3f]
    %v86 = vld [vmem:[%s0 + $0x138] sm:$0x3f]
    %v87 = vld [vmem:[%s0 + $0x140] sm:$0xff]
    %v88 = vld [vmem:[%s0 + $0x148] sm:$0xff]
    %v89 = vld [vmem:[%s0 + $0x150] sm:$0x3f]
    %v90 = vld [vmem:[%s0 + $0x158] sm:$0x3f]
    %v91 = vld [vmem:[%s0 + $0x160] sm:$0xff]
    %v92 = vld [vmem:[%s0 + $0x168] sm:$0xff]
    %v93 = vld [vmem:[%s0 + $0x170] sm:$0x3f]
    %v94 = vld [vmem:[%s0 + $0x178] sm:$0x3f]
    %v95 = vld [vmem:[%s0 + $0x180] sm:$0xff]
    %v96 = vld [vmem:[%s0 + $0x188] sm:$0xff]
    %v97 = vld [vmem:[%s0 + $0x190] sm:$0x3f]
    %v98 = vld [vmem:[%s0 + $0x198] sm:$0x3f]
    %v99 = vld [vmem:[%s0 + $0x1a0] sm:$0xff]
    %v100 = vld [vmem:[%s0 + $0x1a8] sm:$0xff]
    %v101 = vld [vmem:[%s0 + $0x1b0] sm:$0x3f]
    %v102 = vld [vmem:[%s0 + $0x1b8] sm:$0x3f]
    %v103 = vld [vmem:[%s0 + $0x200] sm:$0xff]
    %v104 = vld [vmem:[%s0 + $0x208] sm:$0xff]
    %v105 = vld [vmem:[%s0 + $0x210] sm:$0x3f]
    %v106 = vld [vmem:[%s0 + $0x218] sm:$0x3f]
    %v107 = vld [vmem:[%s0 + $0x220] sm:$0xff]
    %v108 = vld [vmem:[%s0 + $0x228] sm:$0xff]
    %v109 = vld [vmem:[%s0 + $0x230] sm:$0x3f]
    %v110 = vld [vmem:[%s0 + $0x238] sm:$0x3f]
    %v111 = vld [vmem:[%s0 + $0x240] sm:$0xff]
    %v112 = vld [vmem:[%s0 + $0x248] sm:$0xff]
    %v113 = vld [vmem:[%s0 + $0x250] sm:$0x3f]
    %v114 = vld [vmem:[%s0 + $0x258] sm:$0x3f]
    %v115 = vld [vmem:[%s0 + $0x260] sm:$0xff]
    %v116 = vld [vmem:[%s0 + $0x268] sm:$0xff]
    %v117 = vld [vmem:[%s0 + $0x270] sm:$0x3f]
    %v118 = vld [vmem:[%s0 + $0x278] sm:$0x3f]
    %v119 = vld [vmem:[%s0 + $0x280] sm:$0xff]
    %v120 = vld [vmem:[%s0 + $0x288] sm:$0xff]
    %v121 = vld [vmem:[%s0 + $0x290] sm:$0x3f]
    %v122 = vld [vmem:[%s0 + $0x298] sm:$0x3f]
    %v123 = vld [vmem:[%s0 + $0x2a0] sm:$0xff]
    %v124 = vld [vmem:[%s0 + $0x2a8] sm:$0xff]
    %v125 = vld [vmem:[%s0 + $0x2b0] sm:$0x3f]
    %v126 = vld [vmem:[%s0 + $0x2b8] sm:$0x3f]
    %v127 = vld [vmem:[%s0 + $0x2c0] sm:$0xff]
    %v128 = vld [vmem:[%s0 + $0x2c8] sm:$0xff]
    %v129 = vld [vmem:[%s0 + $0x2d0] sm:$0x3f]
    %v130 = vld [vmem:[%s0 + $0x2d8] sm:$0x3f]
    %v131 = vld [vmem:[%s0 + $0x2e0] sm:$0xff]
    %v132 = vld [vmem:[%s0 + $0x2e8] sm:$0xff]
    %v133 = vld [vmem:[%s0 + $0x2f0] sm:$0x3f]
    %v134 = vld [vmem:[%s0 + $0x2f8] sm:$0x3f]
    %v135 = vld [vmem:[%s0 + $0x300] sm:$0xff]
    %v136 = vld [vmem:[%s0 + $0x308] sm:$0xff]
    %v137 = vld [vmem:[%s0 + $0x310] sm:$0x3f]
    %v138 = vld [vmem:[%s0 + $0x318] sm:$0x3f]
    %v139 = vld [vmem:[%s0 + $0x320] sm:$0xff]
    %v140 = vld [vmem:[%s0 + $0x328] sm:$0xff]
    %v141 = vld [vmem:[%s0 + $0x330] sm:$0x3f]
    %v142 = vld [vmem:[%s0 + $0x338] sm:$0x3f]
    %v143 = vld [vmem:[%s0 + $0x340] sm:$0xff]
    %v144 = vld [vmem:[%s0 + $0x348] sm:$0xff]
    %v145 = vld [vmem:[%s0 + $0x350] sm:$0x3f]
    %v146 = vld [vmem:[%s0 + $0x358] sm:$0x3f]
    %v147 = vld [vmem:[%s0 + $0x360] sm:$0xff]
    %v148 = vld [vmem:[%s0 + $0x368] sm:$0xff]
    %v149 = vld [vmem:[%s0 + $0x370] sm:$0x3f]
    %v150 = vld [vmem:[%s0 + $0x378] sm:$0x3f]
    %v151 = vld [vmem:[%s0 + $0x380] sm:$0xff]
    %v152 = vld [vmem:[%s0 + $0x388] sm:$0xff]
    %v153 = vld [vmem:[%s0 + $0x390] sm:$0x3f]
    %v154 = vld [vmem:[%s0 + $0x398] sm:$0x3f]
    %v155 = vld [vmem:[%s0 + $0x3a0] sm:$0xff]
    %v156 = vld [vmem:[%s0 + $0x3a8] sm:$0xff]
    %v157 = vld [vmem:[%s0 + $0x3b0] sm:$0x3f]
    %v158 = vld [vmem:[%s0 + $0x3b8] sm:$0x3f]
    %v159 = vlaneseq
    %v160 = vshrl.u32 %v159, 7
    %v161 = vsub.s32 0, %v160
    %v162 = vrot.slane %v39, %v161
    %v163 = vlaneseq
    %v164 = vshrl.u32 %v163, 7
    %v165 = vsub.s32 0, %v164
    %v166 = vrot.slane %v40, %v165
    %v167 = vlaneseq
    %v168 = vshrl.u32 %v167, 7
    %v169 = vsub.s32 0, %v168
    %v170 = vrot.slane %v43, %v169
    %v171 = vlaneseq
    %v172 = vshrl.u32 %v171, 7
    %v173 = vsub.s32 0, %v172
    %v174 = vrot.slane %v44, %v173
    %v175 = vmul.f32 %v47, %v162
    %v176 = vmul.f32 %v48, %v166
    %v177 = vmul.f32 %v49, %v162
    %v178 = vmul.f32 %v50, %v166
    %v179 = vmul.f32 %v51, %v162
    %v180 = vmul.f32 %v52, %v166
    %v181 = vmul.f32 %v53, %v162
    %v182 = vmul.f32 %v54, %v166
    %v183 = vmul.f32 %v55, %v162
    %v184 = vmul.f32 %v56, %v166
    %v185 = vmul.f32 %v57, %v162
    %v186 = vmul.f32 %v58, %v166
    %v187 = vmul.f32 %v59, %v162
    %v188 = vmul.f32 %v60, %v166
    %v189 = vmul.f32 %v61, %v162
    %v190 = vmul.f32 %v62, %v166
    %v191 = vmul.f32 %v63, %v162
    %v192 = vmul.f32 %v64, %v166
    %v193 = vmul.f32 %v65, %v162
    %v194 = vmul.f32 %v66, %v166
    %v195 = vmul.f32 %v67, %v162
    %v196 = vmul.f32 %v68, %v166
    %v197 = vmul.f32 %v69, %v162
    %v198 = vmul.f32 %v70, %v166
    %v199 = vmul.f32 %v71, %v162
    %v200 = vmul.f32 %v72, %v166
    %v201 = vmul.f32 %v73, %v162
    %v202 = vmul.f32 %v74, %v166
    %v203 = vmul.f32 %v75, %v162
    %v204 = vmul.f32 %v76, %v166
    %v205 = vmul.f32 %v77, %v162
    %v206 = vmul.f32 %v78, %v166
    %v207 = vmul.f32 %v79, %v162
    %v208 = vmul.f32 %v80, %v166
    %v209 = vmul.f32 %v81, %v162
    %v210 = vmul.f32 %v82, %v166
    %v211 = vmul.f32 %v83, %v162
    %v212 = vmul.f32 %v84, %v166
    %v213 = vmul.f32 %v85, %v162
    %v214 = vmul.f32 %v86, %v166
    %v215 = vmul.f32 %v87, %v162
    %v216 = vmul.f32 %v88, %v166
    %v217 = vmul.f32 %v89, %v162
    %v218 = vmul.f32 %v90, %v166
    %v219 = vmul.f32 %v91, %v162
    %v220 = vmul.f32 %v92, %v166
    %v221 = vmul.f32 %v93, %v162
    %v222 = vmul.f32 %v94, %v166
    %v223 = vmul.f32 %v95, %v162
    %v224 = vmul.f32 %v96, %v166
    %v225 = vmul.f32 %v97, %v162
    %v226 = vmul.f32 %v98, %v166
    %v227 = vmul.f32 %v99, %v162
    %v228 = vmul.f32 %v100, %v166
    %v229 = vmul.f32 %v101, %v162
    %v230 = vmul.f32 %v102, %v166
    %v231 = vmul.f32 %v103, %v170
    %v232 = vmul.f32 %v104, %v174
    %v233 = vmul.f32 %v105, %v170
    %v234 = vmul.f32 %v106, %v174
    %v235 = vmul.f32 %v107, %v170
    %v236 = vmul.f32 %v108, %v174
    %v237 = vmul.f32 %v109, %v170
    %v238 = vmul.f32 %v110, %v174
    %v239 = vmul.f32 %v111, %v170
    %v240 = vmul.f32 %v112, %v174
    %v241 = vmul.f32 %v113, %v170
    %v242 = vmul.f32 %v114, %v174
    %v243 = vmul.f32 %v115, %v170
    %v244 = vmul.f32 %v116, %v174
    %v245 = vmul.f32 %v117, %v170
    %v246 = vmul.f32 %v118, %v174
    %v247 = vmul.f32 %v119, %v170
    %v248 = vmul.f32 %v120, %v174
    %v249 = vmul.f32 %v121, %v170
    %v250 = vmul.f32 %v122, %v174
    %v251 = vmul.f32 %v123, %v170
    %v252 = vmul.f32 %v124, %v174
    %v253 = vmul.f32 %v125, %v170
    %v254 = vmul.f32 %v126, %v174
    %v255 = vmul.f32 %v127, %v170
    %v256 = vmul.f32 %v128, %v174
    %v257 = vmul.f32 %v129, %v170
    %v258 = vmul.f32 %v130, %v174
    %v259 = vmul.f32 %v131, %v170
    %v260 = vmul.f32 %v132, %v174
    %v261 = vmul.f32 %v133, %v170
    %v262 = vmul.f32 %v134, %v174
    %v263 = vmul.f32 %v135, %v170
    %v264 = vmul.f32 %v136, %v174
    %v265 = vmul.f32 %v137, %v170
    %v266 = vmul.f32 %v138, %v174
    %v267 = vmul.f32 %v139, %v170
    %v268 = vmul.f32 %v140, %v174
    %v269 = vmul.f32 %v141, %v170
    %v270 = vmul.f32 %v142, %v174
    %v271 = vmul.f32 %v143, %v170
    %v272 = vmul.f32 %v144, %v174
    %v273 = vmul.f32 %v145, %v170
    %v274 = vmul.f32 %v146, %v174
    %v275 = vmul.f32 %v147, %v170
    %v276 = vmul.f32 %v148, %v174
    %v277 = vmul.f32 %v149, %v170
    %v278 = vmul.f32 %v150, %v174
    %v279 = vmul.f32 %v151, %v170
    %v280 = vmul.f32 %v152, %v174
    %v281 = vmul.f32 %v153, %v170
    %v282 = vmul.f32 %v154, %v174
    %v283 = vmul.f32 %v155, %v170
    %v284 = vmul.f32 %v156, %v174
    %v285 = vmul.f32 %v157, %v170
    %v286 = vmul.f32 %v158, %v174
    %v287 = vadd.f32 %v175, 0.0
    %v288 = vadd.f32 %v176, 0.0
    %v289 = vadd.f32 %v177, 0.0
    %v290 = vadd.f32 %v178, 0.0
    %v291 = vadd.f32 %v179, 0.0
    %v292 = vadd.f32 %v180, 0.0
    %v293 = vadd.f32 %v181, 0.0
    %v294 = vadd.f32 %v182, 0.0
    %v295 = vadd.f32 %v183, 0.0
    %v296 = vadd.f32 %v184, 0.0
    %v297 = vadd.f32 %v185, 0.0
    %v298 = vadd.f32 %v186, 0.0
    %v299 = vadd.f32 %v187, 0.0
    %v300 = vadd.f32 %v188, 0.0
    %v301 = vadd.f32 %v189, 0.0
    %v302 = vadd.f32 %v190, 0.0
    %v303 = vadd.f32 %v191, 0.0
    %v304 = vadd.f32 %v192, 0.0
    %v305 = vadd.f32 %v193, 0.0
    %v306 = vadd.f32 %v194, 0.0
    %v307 = vadd.f32 %v195, 0.0
    %v308 = vadd.f32 %v196, 0.0
    %v309 = vadd.f32 %v197, 0.0
    %v310 = vadd.f32 %v198, 0.0
    %v311 = vadd.f32 %v199, 0.0
    %v312 = vadd.f32 %v200, 0.0
    %v313 = vadd.f32 %v201, 0.0
    %v314 = vadd.f32 %v202, 0.0
    %v315 = vadd.f32 %v203, 0.0
    %v316 = vadd.f32 %v204, 0.0
    %v317 = vadd.f32 %v205, 0.0
    %v318 = vadd.f32 %v206, 0.0
    %v319 = vadd.f32 %v207, 0.0
    %v320 = vadd.f32 %v208, 0.0
    %v321 = vadd.f32 %v209, 0.0
    %v322 = vadd.f32 %v210, 0.0
    %v323 = vadd.f32 %v211, 0.0
    %v324 = vadd.f32 %v212, 0.0
    %v325 = vadd.f32 %v213, 0.0
    %v326 = vadd.f32 %v214, 0.0
    %v327 = vadd.f32 %v215, 0.0
    %v328 = vadd.f32 %v216, 0.0
    %v329 = vadd.f32 %v217, 0.0
    %v330 = vadd.f32 %v218, 0.0
    %v331 = vadd.f32 %v219, 0.0
    %v332 = vadd.f32 %v220, 0.0
    %v333 = vadd.f32 %v221, 0.0
    %v334 = vadd.f32 %v222, 0.0
    %v335 = vadd.f32 %v223, 0.0
    %v336 = vadd.f32 %v224, 0.0
    %v337 = vadd.f32 %v225, 0.0
    %v338 = vadd.f32 %v226, 0.0
    %v339 = vadd.f32 %v227, 0.0
    %v340 = vadd.f32 %v228, 0.0
    %v341 = vadd.f32 %v229, 0.0
    %v342 = vadd.f32 %v230, 0.0
    %v343 = vadd.f32 %v231, 0.0
    %v344 = vadd.f32 %v232, 0.0
    %v345 = vadd.f32 %v233, 0.0
    %v346 = vadd.f32 %v234, 0.0
    %v347 = vadd.f32 %v235, 0.0
    %v348 = vadd.f32 %v236, 0.0
    %v349 = vadd.f32 %v237, 0.0
    %v350 = vadd.f32 %v238, 0.0
    %v351 = vadd.f32 %v239, 0.0
    %v352 = vadd.f32 %v240, 0.0
    %v353 = vadd.f32 %v241, 0.0
    %v354 = vadd.f32 %v242, 0.0
    %v355 = vadd.f32 %v243, 0.0
    %v356 = vadd.f32 %v244, 0.0
    %v357 = vadd.f32 %v245, 0.0
    %v358 = vadd.f32 %v246, 0.0
    %v359 = vadd.f32 %v247, 0.0
    %v360 = vadd.f32 %v248, 0.0
    %v361 = vadd.f32 %v249, 0.0
    %v362 = vadd.f32 %v250, 0.0
    %v363 = vadd.f32 %v251, 0.0
    %v364 = vadd.f32 %v252, 0.0
    %v365 = vadd.f32 %v253, 0.0
    %v366 = vadd.f32 %v254, 0.0
    %v367 = vadd.f32 %v255, 0.0
    %v368 = vadd.f32 %v256, 0.0
    %v369 = vadd.f32 %v257, 0.0
    %v370 = vadd.f32 %v258, 0.0
    %v371 = vadd.f32 %v259, 0.0
    %v372 = vadd.f32 %v260, 0.0
    %v373 = vadd.f32 %v261, 0.0
    %v374 = vadd.f32 %v262, 0.0
    %v375 = vadd.f32 %v263, 0.0
    %v376 = vadd.f32 %v264, 0.0
    %v377 = vadd.f32 %v265, 0.0
    %v378 = vadd.f32 %v266, 0.0
    %v379 = vadd.f32 %v267, 0.0
    %v380 = vadd.f32 %v268, 0.0
    %v381 = vadd.f32 %v269, 0.0
    %v382 = vadd.f32 %v270, 0.0
    %v383 = vadd.f32 %v271, 0.0
    %v384 = vadd.f32 %v272, 0.0
    %v385 = vadd.f32 %v273, 0.0
    %v386 = vadd.f32 %v274, 0.0
    %v387 = vadd.f32 %v275, 0.0
    %v388 = vadd.f32 %v276, 0.0
    %v389 = vadd.f32 %v277, 0.0
    %v390 = vadd.f32 %v278, 0.0
    %v391 = vadd.f32 %v279, 0.0
    %v392 = vadd.f32 %v280, 0.0
    %v393 = vadd.f32 %v281, 0.0
    %v394 = vadd.f32 %v282, 0.0
    %v395 = vadd.f32 %v283, 0.0
    %v396 = vadd.f32 %v284, 0.0
    %v397 = vadd.f32 %v285, 0.0
    %v398 = vadd.f32 %v286, 0.0
    %v399 = vld [vmem:[%s0] sm:$0xfe]
    %v400 = vld [vmem:[%s0 + $0x8] sm:$0xfe]
    %v401 = vld [vmem:[%s0 + $0x10] sm:$0x7f]
    %v402 = vld [vmem:[%s0 + $0x18] sm:$0x7f]
    %v403 = vld [vmem:[%s0 + $0x20] sm:$0xfe]
    %v404 = vld [vmem:[%s0 + $0x28] sm:$0xfe]
    %v405 = vld [vmem:[%s0 + $0x30] sm:$0x7f]
    %v406 = vld [vmem:[%s0 + $0x38] sm:$0x7f]
    %v407 = vld [vmem:[%s0 + $0x40] sm:$0xfe]
    %v408 = vld [vmem:[%s0 + $0x48] sm:$0xfe]
    %v409 = vld [vmem:[%s0 + $0x50] sm:$0x7f]
    %v410 = vld [vmem:[%s0 + $0x58] sm:$0x7f]
    %v411 = vld [vmem:[%s0 + $0x60] sm:$0xfe]
    %v412 = vld [vmem:[%s0 + $0x68] sm:$0xfe]
    %v413 = vld [vmem:[%s0 + $0x70] sm:$0x7f]
    %v414 = vld [vmem:[%s0 + $0x78] sm:$0x7f]
    %v415 = vld [vmem:[%s0 + $0x80] sm:$0xfe]
    %v416 = vld [vmem:[%s0 + $0x88] sm:$0xfe]
    %v417 = vld [vmem:[%s0 + $0x90] sm:$0x7f]
    %v418 = vld [vmem:[%s0 + $0x98] sm:$0x7f]
    %v419 = vld [vmem:[%s0 + $0xa0] sm:$0xfe]
    %v420 = vld [vmem:[%s0 + $0xa8] sm:$0xfe]
    %v421 = vld [vmem:[%s0 + $0xb0] sm:$0x7f]
    %v422 = vld [vmem:[%s0 + $0xb8] sm:$0x7f]
    %v423 = vld [vmem:[%s0 + $0xc0] sm:$0xfe]
    %v424 = vld [vmem:[%s0 + $0xc8] sm:$0xfe]
    %v425 = vld [vmem:[%s0 + $0xd0] sm:$0x7f]
    %v426 = vld [vmem:[%s0 + $0xd8] sm:$0x7f]
    %v427 = vld [vmem:[%s0 + $0xe0] sm:$0xfe]
    %v428 = vld [vmem:[%s0 + $0xe8] sm:$0xfe]
    %v429 = vld [vmem:[%s0 + $0xf0] sm:$0x7f]
    %v430 = vld [vmem:[%s0 + $0xf8] sm:$0x7f]
    %v431 = vld [vmem:[%s0 + $0x100] sm:$0xfe]
    %v432 = vld [vmem:[%s0 + $0x108] sm:$0xfe]
    %v433 = vld [vmem:[%s0 + $0x110] sm:$0x7f]
    %v434 = vld [vmem:[%s0 + $0x118] sm:$0x7f]
    %v435 = vld [vmem:[%s0 + $0x120] sm:$0xfe]
    %v436 = vld [vmem:[%s0 + $0x128] sm:$0xfe]
    %v437 = vld [vmem:[%s0 + $0x130] sm:$0x7f]
    %v438 = vld [vmem:[%s0 + $0x138] sm:$0x7f]
    %v439 = vld [vmem:[%s0 + $0x140] sm:$0xfe]
    %v440 = vld [vmem:[%s0 + $0x148] sm:$0xfe]
    %v441 = vld [vmem:[%s0 + $0x150] sm:$0x7f]
    %v442 = vld [vmem:[%s0 + $0x158] sm:$0x7f]
    %v443 = vld [vmem:[%s0 + $0x160] sm:$0xfe]
    %v444 = vld [vmem:[%s0 + $0x168] sm:$0xfe]
    %v445 = vld [vmem:[%s0 + $0x170] sm:$0x7f]
    %v446 = vld [vmem:[%s0 + $0x178] sm:$0x7f]
    %v447 = vld [vmem:[%s0 + $0x180] sm:$0xfe]
    %v448 = vld [vmem:[%s0 + $0x188] sm:$0xfe]
    %v449 = vld [vmem:[%s0 + $0x190] sm:$0x7f]
    %v450 = vld [vmem:[%s0 + $0x198] sm:$0x7f]
    %v451 = vld [vmem:[%s0 + $0x1a0] sm:$0xfe]
    %v452 = vld [vmem:[%s0 + $0x1a8] sm:$0xfe]
    %v453 = vld [vmem:[%s0 + $0x1b0] sm:$0x7f]
    %v454 = vld [vmem:[%s0 + $0x1b8] sm:$0x7f]
    %v455 = vld [vmem:[%s0 + $0x200] sm:$0xfe]
    %v456 = vld [vmem:[%s0 + $0x208] sm:$0xfe]
    %v457 = vld [vmem:[%s0 + $0x210] sm:$0x7f]
    %v458 = vld [vmem:[%s0 + $0x218] sm:$0x7f]
    %v459 = vld [vmem:[%s0 + $0x220] sm:$0xfe]
    %v460 = vld [vmem:[%s0 + $0x228] sm:$0xfe]
    %v461 = vld [vmem:[%s0 + $0x230] sm:$0x7f]
    %v462 = vld [vmem:[%s0 + $0x238] sm:$0x7f]
    %v463 = vld [vmem:[%s0 + $0x240] sm:$0xfe]
    %v464 = vld [vmem:[%s0 + $0x248] sm:$0xfe]
    %v465 = vld [vmem:[%s0 + $0x250] sm:$0x7f]
    %v466 = vld [vmem:[%s0 + $0x258] sm:$0x7f]
    %v467 = vld [vmem:[%s0 + $0x260] sm:$0xfe]
    %v468 = vld [vmem:[%s0 + $0x268] sm:$0xfe]
    %v469 = vld [vmem:[%s0 + $0x270] sm:$0x7f]
    %v470 = vld [vmem:[%s0 + $0x278] sm:$0x7f]
    %v471 = vld [vmem:[%s0 + $0x280] sm:$0xfe]
    %v472 = vld [vmem:[%s0 + $0x288] sm:$0xfe]
    %v473 = vld [vmem:[%s0 + $0x290] sm:$0x7f]
    %v474 = vld [vmem:[%s0 + $0x298] sm:$0x7f]
    %v475 = vld [vmem:[%s0 + $0x2a0] sm:$0xfe]
    %v476 = vld [vmem:[%s0 + $0x2a8] sm:$0xfe]
    %v477 = vld [vmem:[%s0 + $0x2b0] sm:$0x7f]
    %v478 = vld [vmem:[%s0 + $0x2b8] sm:$0x7f]
    %v479 = vld [vmem:[%s0 + $0x2c0] sm:$0xfe]
    %v480 = vld [vmem:[%s0 + $0x2c8] sm:$0xfe]
    %v481 = vld [vmem:[%s0 + $0x2d0] sm:$0x7f]
    %v482 = vld [vmem:[%s0 + $0x2d8] sm:$0x7f]
    %v483 = vld [vmem:[%s0 + $0x2e0] sm:$0xfe]
    %v484 = vld [vmem:[%s0 + $0x2e8] sm:$0xfe]
    %v485 = vld [vmem:[%s0 + $0x2f0] sm:$0x7f]
    %v486 = vld [vmem:[%s0 + $0x2f8] sm:$0x7f]
    %v487 = vld [vmem:[%s0 + $0x300] sm:$0xfe]
    %v488 = vld [vmem:[%s0 + $0x308] sm:$0xfe]
    %v489 = vld [vmem:[%s0 + $0x310] sm:$0x7f]
    %v490 = vld [vmem:[%s0 + $0x318] sm:$0x7f]
    %v491 = vld [vmem:[%s0 + $0x320] sm:$0xfe]
    %v492 = vld [vmem:[%s0 + $0x328] sm:$0xfe]
    %v493 = vld [vmem:[%s0 + $0x330] sm:$0x7f]
    %v494 = vld [vmem:[%s0 + $0x338] sm:$0x7f]
    %v495 = vld [vmem:[%s0 + $0x340] sm:$0xfe]
    %v496 = vld [vmem:[%s0 + $0x348] sm:$0xfe]
    %v497 = vld [vmem:[%s0 + $0x350] sm:$0x7f]
    %v498 = vld [vmem:[%s0 + $0x358] sm:$0x7f]
    %v499 = vld [vmem:[%s0 + $0x360] sm:$0xfe]
    %v500 = vld [vmem:[%s0 + $0x368] sm:$0xfe]
    %v501 = vld [vmem:[%s0 + $0x370] sm:$0x7f]
    %v502 = vld [vmem:[%s0 + $0x378] sm:$0x7f]
    %v503 = vld [vmem:[%s0 + $0x380] sm:$0xfe]
    %v504 = vld [vmem:[%s0 + $0x388] sm:$0xfe]
    %v505 = vld [vmem:[%s0 + $0x390] sm:$0x7f]
    %v506 = vld [vmem:[%s0 + $0x398] sm:$0x7f]
    %v507 = vld [vmem:[%s0 + $0x3a0] sm:$0xfe]
    %v508 = vld [vmem:[%s0 + $0x3a8] sm:$0xfe]
    %v509 = vld [vmem:[%s0 + $0x3b0] sm:$0x7f]
    %v510 = vld [vmem:[%s0 + $0x3b8] sm:$0x7f]
    %v511 = vlaneseq
    %v512 = vshrl.u32 %v511, 7
    %v513 = vsub.s32 1, %v512
    %v514 = vrot.slane %v39, %v513
    %v515 = vlaneseq
    %v516 = vshrl.u32 %v515, 7
    %v517 = vsub.s32 1, %v516
    %v518 = vrot.slane %v40, %v517
    %v519 = vlaneseq
    %v520 = vshrl.u32 %v519, 7
    %v521 = vsub.s32 1, %v520
    %v522 = vrot.slane %v43, %v521
    %v523 = vlaneseq
    %v524 = vshrl.u32 %v523, 7
    %v525 = vsub.s32 1, %v524
    %v526 = vrot.slane %v44, %v525
    %v527 = vmul.f32 %v399, %v514
    %v528 = vmul.f32 %v400, %v518
    %v529 = vmul.f32 %v401, %v514
    %v530 = vmul.f32 %v402, %v518
    %v531 = vmul.f32 %v403, %v514
    %v532 = vmul.f32 %v404, %v518
    %v533 = vmul.f32 %v405, %v514
    %v534 = vmul.f32 %v406, %v518
    %v535 = vmul.f32 %v407, %v514
    %v536 = vmul.f32 %v408, %v518
    %v537 = vmul.f32 %v409, %v514
    %v538 = vmul.f32 %v410, %v518
    %v539 = vmul.f32 %v411, %v514
    %v540 = vmul.f32 %v412, %v518
    %v541 = vmul.f32 %v413, %v514
    %v542 = vmul.f32 %v414, %v518
    %v543 = vmul.f32 %v415, %v514
    %v544 = vmul.f32 %v416, %v518
    %v545 = vmul.f32 %v417, %v514
    %v546 = vmul.f32 %v418, %v518
    %v547 = vmul.f32 %v419, %v514
    %v548 = vmul.f32 %v420, %v518
    %v549 = vmul.f32 %v421, %v514
    %v550 = vmul.f32 %v422, %v518
    %v551 = vmul.f32 %v423, %v514
    %v552 = vmul.f32 %v424, %v518
    %v553 = vmul.f32 %v425, %v514
    %v554 = vmul.f32 %v426, %v518
    %v555 = vmul.f32 %v427, %v514
    %v556 = vmul.f32 %v428, %v518
    %v557 = vmul.f32 %v429, %v514
    %v558 = vmul.f32 %v430, %v518
    %v559 = vmul.f32 %v431, %v514
    %v560 = vmul.f32 %v432, %v518
    %v561 = vmul.f32 %v433, %v514
    %v562 = vmul.f32 %v434, %v518
    %v563 = vmul.f32 %v435, %v514
    %v564 = vmul.f32 %v436, %v518
    %v565 = vmul.f32 %v437, %v514
    %v566 = vmul.f32 %v438, %v518
    %v567 = vmul.f32 %v439, %v514
    %v568 = vmul.f32 %v440, %v518
    %v569 = vmul.f32 %v441, %v514
    %v570 = vmul.f32 %v442, %v518
    %v571 = vmul.f32 %v443, %v514
    %v572 = vmul.f32 %v444, %v518
    %v573 = vmul.f32 %v445, %v514
    %v574 = vmul.f32 %v446, %v518
    %v575 = vmul.f32 %v447, %v514
    %v576 = vmul.f32 %v448, %v518
    %v577 = vmul.f32 %v449, %v514
    %v578 = vmul.f32 %v450, %v518
    %v579 = vmul.f32 %v451, %v514
    %v580 = vmul.f32 %v452, %v518
    %v581 = vmul.f32 %v453, %v514
    %v582 = vmul.f32 %v454, %v518
    %v583 = vmul.f32 %v455, %v522
    %v584 = vmul.f32 %v456, %v526
    %v585 = vmul.f32 %v457, %v522
    %v586 = vmul.f32 %v458, %v526
    %v587 = vmul.f32 %v459, %v522
    %v588 = vmul.f32 %v460, %v526
    %v589 = vmul.f32 %v461, %v522
    %v590 = vmul.f32 %v462, %v526
    %v591 = vmul.f32 %v463, %v522
    %v592 = vmul.f32 %v464, %v526
    %v593 = vmul.f32 %v465, %v522
    %v594 = vmul.f32 %v466, %v526
    %v595 = vmul.f32 %v467, %v522
    %v596 = vmul.f32 %v468, %v526
    %v597 = vmul.f32 %v469, %v522
    %v598 = vmul.f32 %v470, %v526
    %v599 = vmul.f32 %v471, %v522
    %v600 = vmul.f32 %v472, %v526
    %v601 = vmul.f32 %v473, %v522
    %v602 = vmul.f32 %v474, %v526
    %v603 = vmul.f32 %v475, %v522
    %v604 = vmul.f32 %v476, %v526
    %v605 = vmul.f32 %v477, %v522
    %v606 = vmul.f32 %v478, %v526
    %v607 = vmul.f32 %v479, %v522
    %v608 = vmul.f32 %v480, %v526
    %v609 = vmul.f32 %v481, %v522
    %v610 = vmul.f32 %v482, %v526
    %v611 = vmul.f32 %v483, %v522
    %v612 = vmul.f32 %v484, %v526
    %v613 = vmul.f32 %v485, %v522
    %v614 = vmul.f32 %v486, %v526
    %v615 = vmul.f32 %v487, %v522
    %v616 = vmul.f32 %v488, %v526
    %v617 = vmul.f32 %v489, %v522
    %v618 = vmul.f32 %v490, %v526
    %v619 = vmul.f32 %v491, %v522
    %v620 = vmul.f32 %v492, %v526
    %v621 = vmul.f32 %v493, %v522
    %v622 = vmul.f32 %v494, %v526
    %v623 = vmul.f32 %v495, %v522
    %v624 = vmul.f32 %v496, %v526
    %v625 = vmul.f32 %v497, %v522
    %v626 = vmul.f32 %v498, %v526
    %v627 = vmul.f32 %v499, %v522
    %v628 = vmul.f32 %v500, %v526
    %v629 = vmul.f32 %v501, %v522
    %v630 = vmul.f32 %v502, %v526
    %v631 = vmul.f32 %v503, %v522
    %v632 = vmul.f32 %v504, %v526
    %v633 = vmul.f32 %v505, %v522
    %v634 = vmul.f32 %v506, %v526
    %v635 = vmul.f32 %v507, %v522
    %v636 = vmul.f32 %v508, %v526
    %v637 = vmul.f32 %v509, %v522
    %v638 = vmul.f32 %v510, %v526
    %vm751 = vcmask 1046528
    %v752 = vrot.slane %v527, 1
    %v753 = vrot.slane %v529, 1
    %v754 = vsel %vm751, %v752, %v753
    %v755 = vrot.slane %v528, 1
    %v756 = vrot.slane %v530, 1
    %v757 = vsel %vm751, %v755, %v756
    %v758 = vrot.slane %v531, 1
    %v759 = vrot.slane %v533, 1
    %v760 = vsel %vm751, %v758, %v759
    %v761 = vrot.slane %v532, 1
    %v762 = vrot.slane %v534, 1
    %v763 = vsel %vm751, %v761, %v762
    %v764 = vrot.slane %v535, 1
    %v765 = vrot.slane %v537, 1
    %v766 = vsel %vm751, %v764, %v765
    %v767 = vrot.slane %v536, 1
    %v768 = vrot.slane %v538, 1
    %v769 = vsel %vm751, %v767, %v768
    %v770 = vrot.slane %v539, 1
    %v771 = vrot.slane %v541, 1
    %v772 = vsel %vm751, %v770, %v771
    %v773 = vrot.slane %v540, 1
    %v774 = vrot.slane %v542, 1
    %v775 = vsel %vm751, %v773, %v774
    %v776 = vrot.slane %v543, 1
    %v777 = vrot.slane %v545, 1
    %v778 = vsel %vm751, %v776, %v777
    %v779 = vrot.slane %v544, 1
    %v780 = vrot.slane %v546, 1
    %v781 = vsel %vm751, %v779, %v780
    %v782 = vrot.slane %v547, 1
    %v783 = vrot.slane %v549, 1
    %v784 = vsel %vm751, %v782, %v783
    %v785 = vrot.slane %v548, 1
    %v786 = vrot.slane %v550, 1
    %v787 = vsel %vm751, %v785, %v786
    %v788 = vrot.slane %v551, 1
    %v789 = vrot.slane %v553, 1
    %v790 = vsel %vm751, %v788, %v789
    %v791 = vrot.slane %v552, 1
    %v792 = vrot.slane %v554, 1
    %v793 = vsel %vm751, %v791, %v792
    %v794 = vrot.slane %v555, 1
    %v795 = vrot.slane %v557, 1
    %v796 = vsel %vm751, %v794, %v795
    %v797 = vrot.slane %v556, 1
    %v798 = vrot.slane %v558, 1
    %v799 = vsel %vm751, %v797, %v798
    %v800 = vrot.slane %v559, 1
    %v801 = vrot.slane %v561, 1
    %v802 = vsel %vm751, %v800, %v801
    %v803 = vrot.slane %v560, 1
    %v804 = vrot.slane %v562, 1
    %v805 = vsel %vm751, %v803, %v804
    %v806 = vrot.slane %v563, 1
    %v807 = vrot.slane %v565, 1
    %v808 = vsel %vm751, %v806, %v807
    %v809 = vrot.slane %v564, 1
    %v810 = vrot.slane %v566, 1
    %v811 = vsel %vm751, %v809, %v810
    %v812 = vrot.slane %v567, 1
    %v813 = vrot.slane %v569, 1
    %v814 = vsel %vm751, %v812, %v813
    %v815 = vrot.slane %v568, 1
    %v816 = vrot.slane %v570, 1
    %v817 = vsel %vm751, %v815, %v816
    %v818 = vrot.slane %v571, 1
    %v819 = vrot.slane %v573, 1
    %v820 = vsel %vm751, %v818, %v819
    %v821 = vrot.slane %v572, 1
    %v822 = vrot.slane %v574, 1
    %v823 = vsel %vm751, %v821, %v822
    %v824 = vrot.slane %v575, 1
    %v825 = vrot.slane %v577, 1
    %v826 = vsel %vm751, %v824, %v825
    %v827 = vrot.slane %v576, 1
    %v828 = vrot.slane %v578, 1
    %v829 = vsel %vm751, %v827, %v828
    %v830 = vrot.slane %v579, 1
    %v831 = vrot.slane %v581, 1
    %v832 = vsel %vm751, %v830, %v831
    %v833 = vrot.slane %v580, 1
    %v834 = vrot.slane %v582, 1
    %v835 = vsel %vm751, %v833, %v834
    %v836 = vrot.slane %v583, 1
    %v837 = vrot.slane %v585, 1
    %v838 = vsel %vm751, %v836, %v837
    %v839 = vrot.slane %v584, 1
    %v840 = vrot.slane %v586, 1
    %v841 = vsel %vm751, %v839, %v840
    %v842 = vrot.slane %v587, 1
    %v843 = vrot.slane %v589, 1
    %v844 = vsel %vm751, %v842, %v843
    %v845 = vrot.slane %v588, 1
    %v846 = vrot.slane %v590, 1
    %v847 = vsel %vm751, %v845, %v846
    %v848 = vrot.slane %v591, 1
    %v849 = vrot.slane %v593, 1
    %v850 = vsel %vm751, %v848, %v849
    %v851 = vrot.slane %v592, 1
    %v852 = vrot.slane %v594, 1
    %v853 = vsel %vm751, %v851, %v852
    %v854 = vrot.slane %v595, 1
    %v855 = vrot.slane %v597, 1
    %v856 = vsel %vm751, %v854, %v855
    %v857 = vrot.slane %v596, 1
    %v858 = vrot.slane %v598, 1
    %v859 = vsel %vm751, %v857, %v858
    %v860 = vrot.slane %v599, 1
    %v861 = vrot.slane %v601, 1
    %v862 = vsel %vm751, %v860, %v861
    %v863 = vrot.slane %v600, 1
    %v864 = vrot.slane %v602, 1
    %v865 = vsel %vm751, %v863, %v864
    %v866 = vrot.slane %v603, 1
    %v867 = vrot.slane %v605, 1
    %v868 = vsel %vm751, %v866, %v867
    %v869 = vrot.slane %v604, 1
    %v870 = vrot.slane %v606, 1
    %v871 = vsel %vm751, %v869, %v870
    %v872 = vrot.slane %v607, 1
    %v873 = vrot.slane %v609, 1
    %v874 = vsel %vm751, %v872, %v873
    %v875 = vrot.slane %v608, 1
    %v876 = vrot.slane %v610, 1
    %v877 = vsel %vm751, %v875, %v876
    %v878 = vrot.slane %v611, 1
    %v879 = vrot.slane %v613, 1
    %v880 = vsel %vm751, %v878, %v879
    %v881 = vrot.slane %v612, 1
    %v882 = vrot.slane %v614, 1
    %v883 = vsel %vm751, %v881, %v882
    %v884 = vrot.slane %v615, 1
    %v885 = vrot.slane %v617, 1
    %v886 = vsel %vm751, %v884, %v885
    %v887 = vrot.slane %v616, 1
    %v888 = vrot.slane %v618, 1
    %v889 = vsel %vm751, %v887, %v888
    %v890 = vrot.slane %v619, 1
    %v891 = vrot.slane %v621, 1
    %v892 = vsel %vm751, %v890, %v891
    %v893 = vrot.slane %v620, 1
    %v894 = vrot.slane %v622, 1
    %v895 = vsel %vm751, %v893, %v894
    %v896 = vrot.slane %v623, 1
    %v897 = vrot.slane %v625, 1
    %v898 = vsel %vm751, %v896, %v897
    %v899 = vrot.slane %v624, 1
    %v900 = vrot.slane %v626, 1
    %v901 = vsel %vm751, %v899, %v900
    %v902 = vrot.slane %v627, 1
    %v903 = vrot.slane %v629, 1
    %v904 = vsel %vm751, %v902, %v903
    %v905 = vrot.slane %v628, 1
    %v906 = vrot.slane %v630, 1
    %v907 = vsel %vm751, %v905, %v906
    %v908 = vrot.slane %v631, 1
    %v909 = vrot.slane %v633, 1
    %v910 = vsel %vm751, %v908, %v909
    %v911 = vrot.slane %v632, 1
    %v912 = vrot.slane %v634, 1
    %v913 = vsel %vm751, %v911, %v912
    %v914 = vrot.slane %v635, 1
    %v915 = vrot.slane %v637, 1
    %v916 = vsel %vm751, %v914, %v915
    %v917 = vrot.slane %v636, 1
    %v918 = vrot.slane %v638, 1
    %v919 = vsel %vm751, %v917, %v918
    %v1032 = vadd.f32 %v287, %v754
    %v1033 = vadd.f32 %v288, %v757
    %v1034 = vadd.f32 %v289, %v753
    %v1035 = vadd.f32 %v290, %v756
    %v1036 = vadd.f32 %v291, %v760
    %v1037 = vadd.f32 %v292, %v763
    %v1038 = vadd.f32 %v293, %v759
    %v1039 = vadd.f32 %v294, %v762
    %v1040 = vadd.f32 %v295, %v766
    %v1041 = vadd.f32 %v296, %v769
    %v1042 = vadd.f32 %v297, %v765
    %v1043 = vadd.f32 %v298, %v768
    %v1044 = vadd.f32 %v299, %v772
    %v1045 = vadd.f32 %v300, %v775
    %v1046 = vadd.f32 %v301, %v771
    %v1047 = vadd.f32 %v302, %v774
    %v1048 = vadd.f32 %v303, %v778
    %v1049 = vadd.f32 %v304, %v781
    %v1050 = vadd.f32 %v305, %v777
    %v1051 = vadd.f32 %v306, %v780
    %v1052 = vadd.f32 %v307, %v784
    %v1053 = vadd.f32 %v308, %v787
    %v1054 = vadd.f32 %v309, %v783
    %v1055 = vadd.f32 %v310, %v786
    %v1056 = vadd.f32 %v311, %v790
    %v1057 = vadd.f32 %v312, %v793
    %v1058 = vadd.f32 %v313, %v789
    %v1059 = vadd.f32 %v314, %v792
    %v1060 = vadd.f32 %v315, %v796
    %v1061 = vadd.f32 %v316, %v799
    %v1062 = vadd.f32 %v317, %v795
    %v1063 = vadd.f32 %v318, %v798
    %v1064 = vadd.f32 %v319, %v802
    %v1065 = vadd.f32 %v320, %v805
    %v1066 = vadd.f32 %v321, %v801
    %v1067 = vadd.f32 %v322, %v804
    %v1068 = vadd.f32 %v323, %v808
    %v1069 = vadd.f32 %v324, %v811
    %v1070 = vadd.f32 %v325, %v807
    %v1071 = vadd.f32 %v326, %v810
    %v1072 = vadd.f32 %v327, %v814
    %v1073 = vadd.f32 %v328, %v817
    %v1074 = vadd.f32 %v329, %v813
    %v1075 = vadd.f32 %v330, %v816
    %v1076 = vadd.f32 %v331, %v820
    %v1077 = vadd.f32 %v332, %v823
    %v1078 = vadd.f32 %v333, %v819
    %v1079 = vadd.f32 %v334, %v822
    %v1080 = vadd.f32 %v335, %v826
    %v1081 = vadd.f32 %v336, %v829
    %v1082 = vadd.f32 %v337, %v825
    %v1083 = vadd.f32 %v338, %v828
    %v1084 = vadd.f32 %v339, %v832
    %v1085 = vadd.f32 %v340, %v835
    %v1086 = vadd.f32 %v341, %v831
    %v1087 = vadd.f32 %v342, %v834
    %v1088 = vadd.f32 %v343, %v838
    %v1089 = vadd.f32 %v344, %v841
    %v1090 = vadd.f32 %v345, %v837
    %v1091 = vadd.f32 %v346, %v840
    %v1092 = vadd.f32 %v347, %v844
    %v1093 = vadd.f32 %v348, %v847
    %v1094 = vadd.f32 %v349, %v843
    %v1095 = vadd.f32 %v350, %v846
    %v1096 = vadd.f32 %v351, %v850
    %v1097 = vadd.f32 %v352, %v853
    %v1098 = vadd.f32 %v353, %v849
    %v1099 = vadd.f32 %v354, %v852
    %v1100 = vadd.f32 %v355, %v856
    %v1101 = vadd.f32 %v356, %v859
    %v1102 = vadd.f32 %v357, %v855
    %v1103 = vadd.f32 %v358, %v858
    %v1104 = vadd.f32 %v359, %v862
    %v1105 = vadd.f32 %v360, %v865
    %v1106 = vadd.f32 %v361, %v861
    %v1107 = vadd.f32 %v362, %v864
    %v1108 = vadd.f32 %v363, %v868
    %v1109 = vadd.f32 %v364, %v871
    %v1110 = vadd.f32 %v365, %v867
    %v1111 = vadd.f32 %v366, %v870
    %v1112 = vadd.f32 %v367, %v874
    %v1113 = vadd.f32 %v368, %v877
    %v1114 = vadd.f32 %v369, %v873
    %v1115 = vadd.f32 %v370, %v876
    %v1116 = vadd.f32 %v371, %v880
    %v1117 = vadd.f32 %v372, %v883
    %v1118 = vadd.f32 %v373, %v879
    %v1119 = vadd.f32 %v374, %v882
    %v1120 = vadd.f32 %v375, %v886
    %v1121 = vadd.f32 %v376, %v889
    %v1122 = vadd.f32 %v377, %v885
    %v1123 = vadd.f32 %v378, %v888
    %v1124 = vadd.f32 %v379, %v892
    %v1125 = vadd.f32 %v380, %v895
    %v1126 = vadd.f32 %v381, %v891
    %v1127 = vadd.f32 %v382, %v894
    %v1128 = vadd.f32 %v383, %v898
    %v1129 = vadd.f32 %v384, %v901
    %v1130 = vadd.f32 %v385, %v897
    %v1131 = vadd.f32 %v386, %v900
    %v1132 = vadd.f32 %v387, %v904
    %v1133 = vadd.f32 %v388, %v907
    %v1134 = vadd.f32 %v389, %v903
    %v1135 = vadd.f32 %v390, %v906
    %v1136 = vadd.f32 %v391, %v910
    %v1137 = vadd.f32 %v392, %v913
    %v1138 = vadd.f32 %v393, %v909
    %v1139 = vadd.f32 %v394, %v912
    %v1140 = vadd.f32 %v395, %v916
    %v1141 = vadd.f32 %v396, %v919
    %v1142 = vadd.f32 %v397, %v915
    %v1143 = vadd.f32 %v398, %v918
    %v1144 = vld [vmem:[%s0] sm:$0xfc]
    %v1145 = vld [vmem:[%s0 + $0x8] sm:$0xfc]
    %v1146 = vld [vmem:[%s0 + $0x10] sm:$0xff]
    %v1147 = vld [vmem:[%s0 + $0x18] sm:$0xff]
    %v1148 = vld [vmem:[%s0 + $0x20] sm:$0xfc]
    %v1149 = vld [vmem:[%s0 + $0x28] sm:$0xfc]
    %v1150 = vld [vmem:[%s0 + $0x30] sm:$0xff]
    %v1151 = vld [vmem:[%s0 + $0x38] sm:$0xff]
    %v1152 = vld [vmem:[%s0 + $0x40] sm:$0xfc]
    %v1153 = vld [vmem:[%s0 + $0x48] sm:$0xfc]
    %v1154 = vld [vmem:[%s0 + $0x50] sm:$0xff]
    %v1155 = vld [vmem:[%s0 + $0x58] sm:$0xff]
    %v1156 = vld [vmem:[%s0 + $0x60] sm:$0xfc]
    %v1157 = vld [vmem:[%s0 + $0x68] sm:$0xfc]
    %v1158 = vld [vmem:[%s0 + $0x70] sm:$0xff]
    %v1159 = vld [vmem:[%s0 + $0x78] sm:$0xff]
    %v1160 = vld [vmem:[%s0 + $0x80] sm:$0xfc]
    %v1161 = vld [vmem:[%s0 + $0x88] sm:$0xfc]
    %v1162 = vld [vmem:[%s0 + $0x90] sm:$0xff]
    %v1163 = vld [vmem:[%s0 + $0x98] sm:$0xff]
    %v1164 = vld [vmem:[%s0 + $0xa0] sm:$0xfc]
    %v1165 = vld [vmem:[%s0 + $0xa8] sm:$0xfc]
    %v1166 = vld [vmem:[%s0 + $0xb0] sm:$0xff]
    %v1167 = vld [vmem:[%s0 + $0xb8] sm:$0xff]
    %v1168 = vld [vmem:[%s0 + $0xc0] sm:$0xfc]
    %v1169 = vld [vmem:[%s0 + $0xc8] sm:$0xfc]
    %v1170 = vld [vmem:[%s0 + $0xd0] sm:$0xff]
    %v1171 = vld [vmem:[%s0 + $0xd8] sm:$0xff]
    %v1172 = vld [vmem:[%s0 + $0xe0] sm:$0xfc]
    %v1173 = vld [vmem:[%s0 + $0xe8] sm:$0xfc]
    %v1174 = vld [vmem:[%s0 + $0xf0] sm:$0xff]
    %v1175 = vld [vmem:[%s0 + $0xf8] sm:$0xff]
    %v1176 = vld [vmem:[%s0 + $0x100] sm:$0xfc]
    %v1177 = vld [vmem:[%s0 + $0x108] sm:$0xfc]
    %v1178 = vld [vmem:[%s0 + $0x110] sm:$0xff]
    %v1179 = vld [vmem:[%s0 + $0x118] sm:$0xff]
    %v1180 = vld [vmem:[%s0 + $0x120] sm:$0xfc]
    %v1181 = vld [vmem:[%s0 + $0x128] sm:$0xfc]
    %v1182 = vld [vmem:[%s0 + $0x130] sm:$0xff]
    %v1183 = vld [vmem:[%s0 + $0x138] sm:$0xff]
    %v1184 = vld [vmem:[%s0 + $0x140] sm:$0xfc]
    %v1185 = vld [vmem:[%s0 + $0x148] sm:$0xfc]
    %v1186 = vld [vmem:[%s0 + $0x150] sm:$0xff]
    %v1187 = vld [vmem:[%s0 + $0x158] sm:$0xff]
    %v1188 = vld [vmem:[%s0 + $0x160] sm:$0xfc]
    %v1189 = vld [vmem:[%s0 + $0x168] sm:$0xfc]
    %v1190 = vld [vmem:[%s0 + $0x170] sm:$0xff]
    %v1191 = vld [vmem:[%s0 + $0x178] sm:$0xff]
    %v1192 = vld [vmem:[%s0 + $0x180] sm:$0xfc]
    %v1193 = vld [vmem:[%s0 + $0x188] sm:$0xfc]
    %v1194 = vld [vmem:[%s0 + $0x190] sm:$0xff]
    %v1195 = vld [vmem:[%s0 + $0x198] sm:$0xff]
    %v1196 = vld [vmem:[%s0 + $0x1a0] sm:$0xfc]
    %v1197 = vld [vmem:[%s0 + $0x1a8] sm:$0xfc]
    %v1198 = vld [vmem:[%s0 + $0x1b0] sm:$0xff]
    %v1199 = vld [vmem:[%s0 + $0x1b8] sm:$0xff]
    %v1200 = vld [vmem:[%s0 + $0x200] sm:$0xfc]
    %v1201 = vld [vmem:[%s0 + $0x208] sm:$0xfc]
    %v1202 = vld [vmem:[%s0 + $0x210] sm:$0xff]
    %v1203 = vld [vmem:[%s0 + $0x218] sm:$0xff]
    %v1204 = vld [vmem:[%s0 + $0x220] sm:$0xfc]
    %v1205 = vld [vmem:[%s0 + $0x228] sm:$0xfc]
    %v1206 = vld [vmem:[%s0 + $0x230] sm:$0xff]
    %v1207 = vld [vmem:[%s0 + $0x238] sm:$0xff]
    %v1208 = vld [vmem:[%s0 + $0x240] sm:$0xfc]
    %v1209 = vld [vmem:[%s0 + $0x248] sm:$0xfc]
    %v1210 = vld [vmem:[%s0 + $0x250] sm:$0xff]
    %v1211 = vld [vmem:[%s0 + $0x258] sm:$0xff]
    %v1212 = vld [vmem:[%s0 + $0x260] sm:$0xfc]
    %v1213 = vld [vmem:[%s0 + $0x268] sm:$0xfc]
    %v1214 = vld [vmem:[%s0 + $0x270] sm:$0xff]
    %v1215 = vld [vmem:[%s0 + $0x278] sm:$0xff]
    %v1216 = vld [vmem:[%s0 + $0x280] sm:$0xfc]
    %v1217 = vld [vmem:[%s0 + $0x288] sm:$0xfc]
    %v1218 = vld [vmem:[%s0 + $0x290] sm:$0xff]
    %v1219 = vld [vmem:[%s0 + $0x298] sm:$0xff]
    %v1220 = vld [vmem:[%s0 + $0x2a0] sm:$0xfc]
    %v1221 = vld [vmem:[%s0 + $0x2a8] sm:$0xfc]
    %v1222 = vld [vmem:[%s0 + $0x2b0] sm:$0xff]
    %v1223 = vld [vmem:[%s0 + $0x2b8] sm:$0xff]
    %v1224 = vld [vmem:[%s0 + $0x2c0] sm:$0xfc]
    %v1225 = vld [vmem:[%s0 + $0x2c8] sm:$0xfc]
    %v1226 = vld [vmem:[%s0 + $0x2d0] sm:$0xff]
    %v1227 = vld [vmem:[%s0 + $0x2d8] sm:$0xff]
    %v1228 = vld [vmem:[%s0 + $0x2e0] sm:$0xfc]
    %v1229 = vld [vmem:[%s0 + $0x2e8] sm:$0xfc]
    %v1230 = vld [vmem:[%s0 + $0x2f0] sm:$0xff]
    %v1231 = vld [vmem:[%s0 + $0x2f8] sm:$0xff]
    %v1232 = vld [vmem:[%s0 + $0x300] sm:$0xfc]
    %v1233 = vld [vmem:[%s0 + $0x308] sm:$0xfc]
    %v1234 = vld [vmem:[%s0 + $0x310] sm:$0xff]
    %v1235 = vld [vmem:[%s0 + $0x318] sm:$0xff]
    %v1236 = vld [vmem:[%s0 + $0x320] sm:$0xfc]
    %v1237 = vld [vmem:[%s0 + $0x328] sm:$0xfc]
    %v1238 = vld [vmem:[%s0 + $0x330] sm:$0xff]
    %v1239 = vld [vmem:[%s0 + $0x338] sm:$0xff]
    %v1240 = vld [vmem:[%s0 + $0x340] sm:$0xfc]
    %v1241 = vld [vmem:[%s0 + $0x348] sm:$0xfc]
    %v1242 = vld [vmem:[%s0 + $0x350] sm:$0xff]
    %v1243 = vld [vmem:[%s0 + $0x358] sm:$0xff]
    %v1244 = vld [vmem:[%s0 + $0x360] sm:$0xfc]
    %v1245 = vld [vmem:[%s0 + $0x368] sm:$0xfc]
    %v1246 = vld [vmem:[%s0 + $0x370] sm:$0xff]
    %v1247 = vld [vmem:[%s0 + $0x378] sm:$0xff]
    %v1248 = vld [vmem:[%s0 + $0x380] sm:$0xfc]
    %v1249 = vld [vmem:[%s0 + $0x388] sm:$0xfc]
    %v1250 = vld [vmem:[%s0 + $0x390] sm:$0xff]
    %v1251 = vld [vmem:[%s0 + $0x398] sm:$0xff]
    %v1252 = vld [vmem:[%s0 + $0x3a0] sm:$0xfc]
    %v1253 = vld [vmem:[%s0 + $0x3a8] sm:$0xfc]
    %v1254 = vld [vmem:[%s0 + $0x3b0] sm:$0xff]
    %v1255 = vld [vmem:[%s0 + $0x3b8] sm:$0xff]
    %v1256 = vlaneseq
    %v1257 = vshrl.u32 %v1256, 7
    %v1258 = vsub.s32 2, %v1257
    %v1259 = vrot.slane %v39, %v1258
    %v1260 = vlaneseq
    %v1261 = vshrl.u32 %v1260, 7
    %v1262 = vsub.s32 2, %v1261
    %v1263 = vrot.slane %v40, %v1262
    %v1264 = vlaneseq
    %v1265 = vshrl.u32 %v1264, 7
    %v1266 = vsub.s32 2, %v1265
    %v1267 = vrot.slane %v43, %v1266
    %v1268 = vlaneseq
    %v1269 = vshrl.u32 %v1268, 7
    %v1270 = vsub.s32 2, %v1269
    %v1271 = vrot.slane %v44, %v1270
    %v1272 = vmul.f32 %v1144, %v1259
    %v1273 = vmul.f32 %v1145, %v1263
    %v1274 = vmul.f32 %v1146, %v1259
    %v1275 = vmul.f32 %v1147, %v1263
    %v1276 = vmul.f32 %v1148, %v1259
    %v1277 = vmul.f32 %v1149, %v1263
    %v1278 = vmul.f32 %v1150, %v1259
    %v1279 = vmul.f32 %v1151, %v1263
    %v1280 = vmul.f32 %v1152, %v1259
    %v1281 = vmul.f32 %v1153, %v1263
    %v1282 = vmul.f32 %v1154, %v1259
    %v1283 = vmul.f32 %v1155, %v1263
    %v1284 = vmul.f32 %v1156, %v1259
    %v1285 = vmul.f32 %v1157, %v1263
    %v1286 = vmul.f32 %v1158, %v1259
    %v1287 = vmul.f32 %v1159, %v1263
    %v1288 = vmul.f32 %v1160, %v1259
    %v1289 = vmul.f32 %v1161, %v1263
    %v1290 = vmul.f32 %v1162, %v1259
    %v1291 = vmul.f32 %v1163, %v1263
    %v1292 = vmul.f32 %v1164, %v1259
    %v1293 = vmul.f32 %v1165, %v1263
    %v1294 = vmul.f32 %v1166, %v1259
    %v1295 = vmul.f32 %v1167, %v1263
    %v1296 = vmul.f32 %v1168, %v1259
    %v1297 = vmul.f32 %v1169, %v1263
    %v1298 = vmul.f32 %v1170, %v1259
    %v1299 = vmul.f32 %v1171, %v1263
    %v1300 = vmul.f32 %v1172, %v1259
    %v1301 = vmul.f32 %v1173, %v1263
    %v1302 = vmul.f32 %v1174, %v1259
    %v1303 = vmul.f32 %v1175, %v1263
    %v1304 = vmul.f32 %v1176, %v1259
    %v1305 = vmul.f32 %v1177, %v1263
    %v1306 = vmul.f32 %v1178, %v1259
    %v1307 = vmul.f32 %v1179, %v1263
    %v1308 = vmul.f32 %v1180, %v1259
    %v1309 = vmul.f32 %v1181, %v1263
    %v1310 = vmul.f32 %v1182, %v1259
    %v1311 = vmul.f32 %v1183, %v1263
    %v1312 = vmul.f32 %v1184, %v1259
    %v1313 = vmul.f32 %v1185, %v1263
    %v1314 = vmul.f32 %v1186, %v1259
    %v1315 = vmul.f32 %v1187, %v1263
    %v1316 = vmul.f32 %v1188, %v1259
    %v1317 = vmul.f32 %v1189, %v1263
    %v1318 = vmul.f32 %v1190, %v1259
    %v1319 = vmul.f32 %v1191, %v1263
    %v1320 = vmul.f32 %v1192, %v1259
    %v1321 = vmul.f32 %v1193, %v1263
    %v1322 = vmul.f32 %v1194, %v1259
    %v1323 = vmul.f32 %v1195, %v1263
    %v1324 = vmul.f32 %v1196, %v1259
    %v1325 = vmul.f32 %v1197, %v1263
    %v1326 = vmul.f32 %v1198, %v1259
    %v1327 = vmul.f32 %v1199, %v1263
    %v1328 = vmul.f32 %v1200, %v1267
    %v1329 = vmul.f32 %v1201, %v1271
    %v1330 = vmul.f32 %v1202, %v1267
    %v1331 = vmul.f32 %v1203, %v1271
    %v1332 = vmul.f32 %v1204, %v1267
    %v1333 = vmul.f32 %v1205, %v1271
    %v1334 = vmul.f32 %v1206, %v1267
    %v1335 = vmul.f32 %v1207, %v1271
    %v1336 = vmul.f32 %v1208, %v1267
    %v1337 = vmul.f32 %v1209, %v1271
    %v1338 = vmul.f32 %v1210, %v1267
    %v1339 = vmul.f32 %v1211, %v1271
    %v1340 = vmul.f32 %v1212, %v1267
    %v1341 = vmul.f32 %v1213, %v1271
    %v1342 = vmul.f32 %v1214, %v1267
    %v1343 = vmul.f32 %v1215, %v1271
    %v1344 = vmul.f32 %v1216, %v1267
    %v1345 = vmul.f32 %v1217, %v1271
    %v1346 = vmul.f32 %v1218, %v1267
    %v1347 = vmul.f32 %v1219, %v1271
    %v1348 = vmul.f32 %v1220, %v1267
    %v1349 = vmul.f32 %v1221, %v1271
    %v1350 = vmul.f32 %v1222, %v1267
    %v1351 = vmul.f32 %v1223, %v1271
    %v1352 = vmul.f32 %v1224, %v1267
    %v1353 = vmul.f32 %v1225, %v1271
    %v1354 = vmul.f32 %v1226, %v1267
    %v1355 = vmul.f32 %v1227, %v1271
    %v1356 = vmul.f32 %v1228, %v1267
    %v1357 = vmul.f32 %v1229, %v1271
    %v1358 = vmul.f32 %v1230, %v1267
    %v1359 = vmul.f32 %v1231, %v1271
    %v1360 = vmul.f32 %v1232, %v1267
    %v1361 = vmul.f32 %v1233, %v1271
    %v1362 = vmul.f32 %v1234, %v1267
    %v1363 = vmul.f32 %v1235, %v1271
    %v1364 = vmul.f32 %v1236, %v1267
    %v1365 = vmul.f32 %v1237, %v1271
    %v1366 = vmul.f32 %v1238, %v1267
    %v1367 = vmul.f32 %v1239, %v1271
    %v1368 = vmul.f32 %v1240, %v1267
    %v1369 = vmul.f32 %v1241, %v1271
    %v1370 = vmul.f32 %v1242, %v1267
    %v1371 = vmul.f32 %v1243, %v1271
    %v1372 = vmul.f32 %v1244, %v1267
    %v1373 = vmul.f32 %v1245, %v1271
    %v1374 = vmul.f32 %v1246, %v1267
    %v1375 = vmul.f32 %v1247, %v1271
    %v1376 = vmul.f32 %v1248, %v1267
    %v1377 = vmul.f32 %v1249, %v1271
    %v1378 = vmul.f32 %v1250, %v1267
    %v1379 = vmul.f32 %v1251, %v1271
    %v1380 = vmul.f32 %v1252, %v1267
    %v1381 = vmul.f32 %v1253, %v1271
    %v1382 = vmul.f32 %v1254, %v1267
    %v1383 = vmul.f32 %v1255, %v1271
    %vm1496 = vcmask 1045504
    %v1497 = vrot.slane %v1272, 2
    %v1498 = vrot.slane %v1274, 2
    %v1499 = vsel %vm1496, %v1497, %v1498
    %v1500 = vrot.slane %v1273, 2
    %v1501 = vrot.slane %v1275, 2
    %v1502 = vsel %vm1496, %v1500, %v1501
    %v1503 = vrot.slane %v1276, 2
    %v1504 = vrot.slane %v1278, 2
    %v1505 = vsel %vm1496, %v1503, %v1504
    %v1506 = vrot.slane %v1277, 2
    %v1507 = vrot.slane %v1279, 2
    %v1508 = vsel %vm1496, %v1506, %v1507
    %v1509 = vrot.slane %v1280, 2
    %v1510 = vrot.slane %v1282, 2
    %v1511 = vsel %vm1496, %v1509, %v1510
    %v1512 = vrot.slane %v1281, 2
    %v1513 = vrot.slane %v1283, 2
    %v1514 = vsel %vm1496, %v1512, %v1513
    %v1515 = vrot.slane %v1284, 2
    %v1516 = vrot.slane %v1286, 2
    %v1517 = vsel %vm1496, %v1515, %v1516
    %v1518 = vrot.slane %v1285, 2
    %v1519 = vrot.slane %v1287, 2
    %v1520 = vsel %vm1496, %v1518, %v1519
    %v1521 = vrot.slane %v1288, 2
    %v1522 = vrot.slane %v1290, 2
    %v1523 = vsel %vm1496, %v1521, %v1522
    %v1524 = vrot.slane %v1289, 2
    %v1525 = vrot.slane %v1291, 2
    %v1526 = vsel %vm1496, %v1524, %v1525
    %v1527 = vrot.slane %v1292, 2
    %v1528 = vrot.slane %v1294, 2
    %v1529 = vsel %vm1496, %v1527, %v1528
    %v1530 = vrot.slane %v1293, 2
    %v1531 = vrot.slane %v1295, 2
    %v1532 = vsel %vm1496, %v1530, %v1531
    %v1533 = vrot.slane %v1296, 2
    %v1534 = vrot.slane %v1298, 2
    %v1535 = vsel %vm1496, %v1533, %v1534
    %v1536 = vrot.slane %v1297, 2
    %v1537 = vrot.slane %v1299, 2
    %v1538 = vsel %vm1496, %v1536, %v1537
    %v1539 = vrot.slane %v1300, 2
    %v1540 = vrot.slane %v1302, 2
    %v1541 = vsel %vm1496, %v1539, %v1540
    %v1542 = vrot.slane %v1301, 2
    %v1543 = vrot.slane %v1303, 2
    %v1544 = vsel %vm1496, %v1542, %v1543
    %v1545 = vrot.slane %v1304, 2
    %v1546 = vrot.slane %v1306, 2
    %v1547 = vsel %vm1496, %v1545, %v1546
    %v1548 = vrot.slane %v1305, 2
    %v1549 = vrot.slane %v1307, 2
    %v1550 = vsel %vm1496, %v1548, %v1549
    %v1551 = vrot.slane %v1308, 2
    %v1552 = vrot.slane %v1310, 2
    %v1553 = vsel %vm1496, %v1551, %v1552
    %v1554 = vrot.slane %v1309, 2
    %v1555 = vrot.slane %v1311, 2
    %v1556 = vsel %vm1496, %v1554, %v1555
    %v1557 = vrot.slane %v1312, 2
    %v1558 = vrot.slane %v1314, 2
    %v1559 = vsel %vm1496, %v1557, %v1558
    %v1560 = vrot.slane %v1313, 2
    %v1561 = vrot.slane %v1315, 2
    %v1562 = vsel %vm1496, %v1560, %v1561
    %v1563 = vrot.slane %v1316, 2
    %v1564 = vrot.slane %v1318, 2
    %v1565 = vsel %vm1496, %v1563, %v1564
    %v1566 = vrot.slane %v1317, 2
    %v1567 = vrot.slane %v1319, 2
    %v1568 = vsel %vm1496, %v1566, %v1567
    %v1569 = vrot.slane %v1320, 2
    %v1570 = vrot.slane %v1322, 2
    %v1571 = vsel %vm1496, %v1569, %v1570
    %v1572 = vrot.slane %v1321, 2
    %v1573 = vrot.slane %v1323, 2
    %v1574 = vsel %vm1496, %v1572, %v1573
    %v1575 = vrot.slane %v1324, 2
    %v1576 = vrot.slane %v1326, 2
    %v1577 = vsel %vm1496, %v1575, %v1576
    %v1578 = vrot.slane %v1325, 2
    %v1579 = vrot.slane %v1327, 2
    %v1580 = vsel %vm1496, %v1578, %v1579
    %v1581 = vrot.slane %v1328, 2
    %v1582 = vrot.slane %v1330, 2
    %v1583 = vsel %vm1496, %v1581, %v1582
    %v1584 = vrot.slane %v1329, 2
    %v1585 = vrot.slane %v1331, 2
    %v1586 = vsel %vm1496, %v1584, %v1585
    %v1587 = vrot.slane %v1332, 2
    %v1588 = vrot.slane %v1334, 2
    %v1589 = vsel %vm1496, %v1587, %v1588
    %v1590 = vrot.slane %v1333, 2
    %v1591 = vrot.slane %v1335, 2
    %v1592 = vsel %vm1496, %v1590, %v1591
    %v1593 = vrot.slane %v1336, 2
    %v1594 = vrot.slane %v1338, 2
    %v1595 = vsel %vm1496, %v1593, %v1594
    %v1596 = vrot.slane %v1337, 2
    %v1597 = vrot.slane %v1339, 2
    %v1598 = vsel %vm1496, %v1596, %v1597
    %v1599 = vrot.slane %v1340, 2
    %v1600 = vrot.slane %v1342, 2
    %v1601 = vsel %vm1496, %v1599, %v1600
    %v1602 = vrot.slane %v1341, 2
    %v1603 = vrot.slane %v1343, 2
    %v1604 = vsel %vm1496, %v1602, %v1603
    %v1605 = vrot.slane %v1344, 2
    %v1606 = vrot.slane %v1346, 2
    %v1607 = vsel %vm1496, %v1605, %v1606
    %v1608 = vrot.slane %v1345, 2
    %v1609 = vrot.slane %v1347, 2
    %v1610 = vsel %vm1496, %v1608, %v1609
    %v1611 = vrot.slane %v1348, 2
    %v1612 = vrot.slane %v1350, 2
    %v1613 = vsel %vm1496, %v1611, %v1612
    %v1614 = vrot.slane %v1349, 2
    %v1615 = vrot.slane %v1351, 2
    %v1616 = vsel %vm1496, %v1614, %v1615
    %v1617 = vrot.slane %v1352, 2
    %v1618 = vrot.slane %v1354, 2
    %v1619 = vsel %vm1496, %v1617, %v1618
    %v1620 = vrot.slane %v1353, 2
    %v1621 = vrot.slane %v1355, 2
    %v1622 = vsel %vm1496, %v1620, %v1621
    %v1623 = vrot.slane %v1356, 2
    %v1624 = vrot.slane %v1358, 2
    %v1625 = vsel %vm1496, %v1623, %v1624
    %v1626 = vrot.slane %v1357, 2
    %v1627 = vrot.slane %v1359, 2
    %v1628 = vsel %vm1496, %v1626, %v1627
    %v1629 = vrot.slane %v1360, 2
    %v1630 = vrot.slane %v1362, 2
    %v1631 = vsel %vm1496, %v1629, %v1630
    %v1632 = vrot.slane %v1361, 2
    %v1633 = vrot.slane %v1363, 2
    %v1634 = vsel %vm1496, %v1632, %v1633
    %v1635 = vrot.slane %v1364, 2
    %v1636 = vrot.slane %v1366, 2
    %v1637 = vsel %vm1496, %v1635, %v1636
    %v1638 = vrot.slane %v1365, 2
    %v1639 = vrot.slane %v1367, 2
    %v1640 = vsel %vm1496, %v1638, %v1639
    %v1641 = vrot.slane %v1368, 2
    %v1642 = vrot.slane %v1370, 2
    %v1643 = vsel %vm1496, %v1641, %v1642
    %v1644 = vrot.slane %v1369, 2
    %v1645 = vrot.slane %v1371, 2
    %v1646 = vsel %vm1496, %v1644, %v1645
    %v1647 = vrot.slane %v1372, 2
    %v1648 = vrot.slane %v1374, 2
    %v1649 = vsel %vm1496, %v1647, %v1648
    %v1650 = vrot.slane %v1373, 2
    %v1651 = vrot.slane %v1375, 2
    %v1652 = vsel %vm1496, %v1650, %v1651
    %v1653 = vrot.slane %v1376, 2
    %v1654 = vrot.slane %v1378, 2
    %v1655 = vsel %vm1496, %v1653, %v1654
    %v1656 = vrot.slane %v1377, 2
    %v1657 = vrot.slane %v1379, 2
    %v1658 = vsel %vm1496, %v1656, %v1657
    %v1659 = vrot.slane %v1380, 2
    %v1660 = vrot.slane %v1382, 2
    %v1661 = vsel %vm1496, %v1659, %v1660
    %v1662 = vrot.slane %v1381, 2
    %v1663 = vrot.slane %v1383, 2
    %v1664 = vsel %vm1496, %v1662, %v1663
    %v1777 = vadd.f32 %v1032, %v1499
    %v1778 = vadd.f32 %v1033, %v1502
    %v1779 = vadd.f32 %v1034, %v1498
    %v1780 = vadd.f32 %v1035, %v1501
    %v1781 = vadd.f32 %v1036, %v1505
    %v1782 = vadd.f32 %v1037, %v1508
    %v1783 = vadd.f32 %v1038, %v1504
    %v1784 = vadd.f32 %v1039, %v1507
    %v1785 = vadd.f32 %v1040, %v1511
    %v1786 = vadd.f32 %v1041, %v1514
    %v1787 = vadd.f32 %v1042, %v1510
    %v1788 = vadd.f32 %v1043, %v1513
    %v1789 = vadd.f32 %v1044, %v1517
    %v1790 = vadd.f32 %v1045, %v1520
    %v1791 = vadd.f32 %v1046, %v1516
    %v1792 = vadd.f32 %v1047, %v1519
    %v1793 = vadd.f32 %v1048, %v1523
    %v1794 = vadd.f32 %v1049, %v1526
    %v1795 = vadd.f32 %v1050, %v1522
    %v1796 = vadd.f32 %v1051, %v1525
    %v1797 = vadd.f32 %v1052, %v1529
    %v1798 = vadd.f32 %v1053, %v1532
    %v1799 = vadd.f32 %v1054, %v1528
    %v1800 = vadd.f32 %v1055, %v1531
    %v1801 = vadd.f32 %v1056, %v1535
    %v1802 = vadd.f32 %v1057, %v1538
    %v1803 = vadd.f32 %v1058, %v1534
    %v1804 = vadd.f32 %v1059, %v1537
    %v1805 = vadd.f32 %v1060, %v1541
    %v1806 = vadd.f32 %v1061, %v1544
    %v1807 = vadd.f32 %v1062, %v1540
    %v1808 = vadd.f32 %v1063, %v1543
    %v1809 = vadd.f32 %v1064, %v1547
    %v1810 = vadd.f32 %v1065, %v1550
    %v1811 = vadd.f32 %v1066, %v1546
    %v1812 = vadd.f32 %v1067, %v1549
    %v1813 = vadd.f32 %v1068, %v1553
    %v1814 = vadd.f32 %v1069, %v1556
    %v1815 = vadd.f32 %v1070, %v1552
    %v1816 = vadd.f32 %v1071, %v1555
    %v1817 = vadd.f32 %v1072, %v1559
    %v1818 = vadd.f32 %v1073, %v1562
    %v1819 = vadd.f32 %v1074, %v1558
    %v1820 = vadd.f32 %v1075, %v1561
    %v1821 = vadd.f32 %v1076, %v1565
    %v1822 = vadd.f32 %v1077, %v1568
    %v1823 = vadd.f32 %v1078, %v1564
    %v1824 = vadd.f32 %v1079, %v1567
    %v1825 = vadd.f32 %v1080, %v1571
    %v1826 = vadd.f32 %v1081, %v1574
    %v1827 = vadd.f32 %v1082, %v1570
    %v1828 = vadd.f32 %v1083, %v1573
    %v1829 = vadd.f32 %v1084, %v1577
    %v1830 = vadd.f32 %v1085, %v1580
    %v1831 = vadd.f32 %v1086, %v1576
    %v1832 = vadd.f32 %v1087, %v1579
    %v1833 = vadd.f32 %v1088, %v1583
    %v1834 = vadd.f32 %v1089, %v1586
    %v1835 = vadd.f32 %v1090, %v1582
    %v1836 = vadd.f32 %v1091, %v1585
    %v1837 = vadd.f32 %v1092, %v1589
    %v1838 = vadd.f32 %v1093, %v1592
    %v1839 = vadd.f32 %v1094, %v1588
    %v1840 = vadd.f32 %v1095, %v1591
    %v1841 = vadd.f32 %v1096, %v1595
    %v1842 = vadd.f32 %v1097, %v1598
    %v1843 = vadd.f32 %v1098, %v1594
    %v1844 = vadd.f32 %v1099, %v1597
    %v1845 = vadd.f32 %v1100, %v1601
    %v1846 = vadd.f32 %v1101, %v1604
    %v1847 = vadd.f32 %v1102, %v1600
    %v1848 = vadd.f32 %v1103, %v1603
    %v1849 = vadd.f32 %v1104, %v1607
    %v1850 = vadd.f32 %v1105, %v1610
    %v1851 = vadd.f32 %v1106, %v1606
    %v1852 = vadd.f32 %v1107, %v1609
    %v1853 = vadd.f32 %v1108, %v1613
    %v1854 = vadd.f32 %v1109, %v1616
    %v1855 = vadd.f32 %v1110, %v1612
    %v1856 = vadd.f32 %v1111, %v1615
    %v1857 = vadd.f32 %v1112, %v1619
    %v1858 = vadd.f32 %v1113, %v1622
    %v1859 = vadd.f32 %v1114, %v1618
    %v1860 = vadd.f32 %v1115, %v1621
    %v1861 = vadd.f32 %v1116, %v1625
    %v1862 = vadd.f32 %v1117, %v1628
    %v1863 = vadd.f32 %v1118, %v1624
    %v1864 = vadd.f32 %v1119, %v1627
    %v1865 = vadd.f32 %v1120, %v1631
    %v1866 = vadd.f32 %v1121, %v1634
    %v1867 = vadd.f32 %v1122, %v1630
    %v1868 = vadd.f32 %v1123, %v1633
    %v1869 = vadd.f32 %v1124, %v1637
    %v1870 = vadd.f32 %v1125, %v1640
    %v1871 = vadd.f32 %v1126, %v1636
    %v1872 = vadd.f32 %v1127, %v1639
    %v1873 = vadd.f32 %v1128, %v1643
    %v1874 = vadd.f32 %v1129, %v1646
    %v1875 = vadd.f32 %v1130, %v1642
    %v1876 = vadd.f32 %v1131, %v1645
    %v1877 = vadd.f32 %v1132, %v1649
    %v1878 = vadd.f32 %v1133, %v1652
    %v1879 = vadd.f32 %v1134, %v1648
    %v1880 = vadd.f32 %v1135, %v1651
    %v1881 = vadd.f32 %v1136, %v1655
    %v1882 = vadd.f32 %v1137, %v1658
    %v1883 = vadd.f32 %v1138, %v1654
    %v1884 = vadd.f32 %v1139, %v1657
    %v1885 = vadd.f32 %v1140, %v1661
    %v1886 = vadd.f32 %v1141, %v1664
    %v1887 = vadd.f32 %v1142, %v1660
    %v1888 = vadd.f32 %v1143, %v1663
    %s1889 = scalar_lea.vmem %s0, 32
    %v1890 = vld [vmem:[%s1889] sm:$0xff]
    %v1891 = vld [vmem:[%s1889 + $0x8] sm:$0xff]
    %v1892 = vld [vmem:[%s1889 + $0x10] sm:$0x3f]
    %v1893 = vld [vmem:[%s1889 + $0x18] sm:$0x3f]
    %v1894 = vld [vmem:[%s1889 + $0x20] sm:$0xff]
    %v1895 = vld [vmem:[%s1889 + $0x28] sm:$0xff]
    %v1896 = vld [vmem:[%s1889 + $0x30] sm:$0x3f]
    %v1897 = vld [vmem:[%s1889 + $0x38] sm:$0x3f]
    %v1898 = vld [vmem:[%s1889 + $0x40] sm:$0xff]
    %v1899 = vld [vmem:[%s1889 + $0x48] sm:$0xff]
    %v1900 = vld [vmem:[%s1889 + $0x50] sm:$0x3f]
    %v1901 = vld [vmem:[%s1889 + $0x58] sm:$0x3f]
    %v1902 = vld [vmem:[%s1889 + $0x60] sm:$0xff]
    %v1903 = vld [vmem:[%s1889 + $0x68] sm:$0xff]
    %v1904 = vld [vmem:[%s1889 + $0x70] sm:$0x3f]
    %v1905 = vld [vmem:[%s1889 + $0x78] sm:$0x3f]
    %v1906 = vld [vmem:[%s1889 + $0x80] sm:$0xff]
    %v1907 = vld [vmem:[%s1889 + $0x88] sm:$0xff]
    %v1908 = vld [vmem:[%s1889 + $0x90] sm:$0x3f]
    %v1909 = vld [vmem:[%s1889 + $0x98] sm:$0x3f]
    %v1910 = vld [vmem:[%s1889 + $0xa0] sm:$0xff]
    %v1911 = vld [vmem:[%s1889 + $0xa8] sm:$0xff]
    %v1912 = vld [vmem:[%s1889 + $0xb0] sm:$0x3f]
    %v1913 = vld [vmem:[%s1889 + $0xb8] sm:$0x3f]
    %v1914 = vld [vmem:[%s1889 + $0xc0] sm:$0xff]
    %v1915 = vld [vmem:[%s1889 + $0xc8] sm:$0xff]
    %v1916 = vld [vmem:[%s1889 + $0xd0] sm:$0x3f]
    %v1917 = vld [vmem:[%s1889 + $0xd8] sm:$0x3f]
    %v1918 = vld [vmem:[%s1889 + $0xe0] sm:$0xff]
    %v1919 = vld [vmem:[%s1889 + $0xe8] sm:$0xff]
    %v1920 = vld [vmem:[%s1889 + $0xf0] sm:$0x3f]
    %v1921 = vld [vmem:[%s1889 + $0xf8] sm:$0x3f]
    %v1922 = vld [vmem:[%s1889 + $0x100] sm:$0xff]
    %v1923 = vld [vmem:[%s1889 + $0x108] sm:$0xff]
    %v1924 = vld [vmem:[%s1889 + $0x110] sm:$0x3f]
    %v1925 = vld [vmem:[%s1889 + $0x118] sm:$0x3f]
    %v1926 = vld [vmem:[%s1889 + $0x120] sm:$0xff]
    %v1927 = vld [vmem:[%s1889 + $0x128] sm:$0xff]
    %v1928 = vld [vmem:[%s1889 + $0x130] sm:$0x3f]
    %v1929 = vld [vmem:[%s1889 + $0x138] sm:$0x3f]
    %v1930 = vld [vmem:[%s1889 + $0x140] sm:$0xff]
    %v1931 = vld [vmem:[%s1889 + $0x148] sm:$0xff]
    %v1932 = vld [vmem:[%s1889 + $0x150] sm:$0x3f]
    %v1933 = vld [vmem:[%s1889 + $0x158] sm:$0x3f]
    %v1934 = vld [vmem:[%s1889 + $0x160] sm:$0xff]
    %v1935 = vld [vmem:[%s1889 + $0x168] sm:$0xff]
    %v1936 = vld [vmem:[%s1889 + $0x170] sm:$0x3f]
    %v1937 = vld [vmem:[%s1889 + $0x178] sm:$0x3f]
    %v1938 = vld [vmem:[%s1889 + $0x180] sm:$0xff]
    %v1939 = vld [vmem:[%s1889 + $0x188] sm:$0xff]
    %v1940 = vld [vmem:[%s1889 + $0x190] sm:$0x3f]
    %v1941 = vld [vmem:[%s1889 + $0x198] sm:$0x3f]
    %v1942 = vld [vmem:[%s1889 + $0x1a0] sm:$0xff]
    %v1943 = vld [vmem:[%s1889 + $0x1a8] sm:$0xff]
    %v1944 = vld [vmem:[%s1889 + $0x1b0] sm:$0x3f]
    %v1945 = vld [vmem:[%s1889 + $0x1b8] sm:$0x3f]
    %v1946 = vld [vmem:[%s1889 + $0x200] sm:$0xff]
    %v1947 = vld [vmem:[%s1889 + $0x208] sm:$0xff]
    %v1948 = vld [vmem:[%s1889 + $0x210] sm:$0x3f]
    %v1949 = vld [vmem:[%s1889 + $0x218] sm:$0x3f]
    %v1950 = vld [vmem:[%s1889 + $0x220] sm:$0xff]
    %v1951 = vld [vmem:[%s1889 + $0x228] sm:$0xff]
    %v1952 = vld [vmem:[%s1889 + $0x230] sm:$0x3f]
    %v1953 = vld [vmem:[%s1889 + $0x238] sm:$0x3f]
    %v1954 = vld [vmem:[%s1889 + $0x240] sm:$0xff]
    %v1955 = vld [vmem:[%s1889 + $0x248] sm:$0xff]
    %v1956 = vld [vmem:[%s1889 + $0x250] sm:$0x3f]
    %v1957 = vld [vmem:[%s1889 + $0x258] sm:$0x3f]
    %v1958 = vld [vmem:[%s1889 + $0x260] sm:$0xff]
    %v1959 = vld [vmem:[%s1889 + $0x268] sm:$0xff]
    %v1960 = vld [vmem:[%s1889 + $0x270] sm:$0x3f]
    %v1961 = vld [vmem:[%s1889 + $0x278] sm:$0x3f]
    %v1962 = vld [vmem:[%s1889 + $0x280] sm:$0xff]
    %v1963 = vld [vmem:[%s1889 + $0x288] sm:$0xff]
    %v1964 = vld [vmem:[%s1889 + $0x290] sm:$0x3f]
    %v1965 = vld [vmem:[%s1889 + $0x298] sm:$0x3f]
    %v1966 = vld [vmem:[%s1889 + $0x2a0] sm:$0xff]
    %v1967 = vld [vmem:[%s1889 + $0x2a8] sm:$0xff]
    %v1968 = vld [vmem:[%s1889 + $0x2b0] sm:$0x3f]
    %v1969 = vld [vmem:[%s1889 + $0x2b8] sm:$0x3f]
    %v1970 = vld [vmem:[%s1889 + $0x2c0] sm:$0xff]
    %v1971 = vld [vmem:[%s1889 + $0x2c8] sm:$0xff]
    %v1972 = vld [vmem:[%s1889 + $0x2d0] sm:$0x3f]
    %v1973 = vld [vmem:[%s1889 + $0x2d8] sm:$0x3f]
    %v1974 = vld [vmem:[%s1889 + $0x2e0] sm:$0xff]
    %v1975 = vld [vmem:[%s1889 + $0x2e8] sm:$0xff]
    %v1976 = vld [vmem:[%s1889 + $0x2f0] sm:$0x3f]
    %v1977 = vld [vmem:[%s1889 + $0x2f8] sm:$0x3f]
    %v1978 = vld [vmem:[%s1889 + $0x300] sm:$0xff]
    %v1979 = vld [vmem:[%s1889 + $0x308] sm:$0xff]
    %v1980 = vld [vmem:[%s1889 + $0x310] sm:$0x3f]
    %v1981 = vld [vmem:[%s1889 + $0x318] sm:$0x3f]
    %v1982 = vld [vmem:[%s1889 + $0x320] sm:$0xff]
    %v1983 = vld [vmem:[%s1889 + $0x328] sm:$0xff]
    %v1984 = vld [vmem:[%s1889 + $0x330] sm:$0x3f]
    %v1985 = vld [vmem:[%s1889 + $0x338] sm:$0x3f]
    %v1986 = vld [vmem:[%s1889 + $0x340] sm:$0xff]
    %v1987 = vld [vmem:[%s1889 + $0x348] sm:$0xff]
    %v1988 = vld [vmem:[%s1889 + $0x350] sm:$0x3f]
    %v1989 = vld [vmem:[%s1889 + $0x358] sm:$0x3f]
    %v1990 = vld [vmem:[%s1889 + $0x360] sm:$0xff]
    %v1991 = vld [vmem:[%s1889 + $0x368] sm:$0xff]
    %v1992 = vld [vmem:[%s1889 + $0x370] sm:$0x3f]
    %v1993 = vld [vmem:[%s1889 + $0x378] sm:$0x3f]
    %v1994 = vld [vmem:[%s1889 + $0x380] sm:$0xff]
    %v1995 = vld [vmem:[%s1889 + $0x388] sm:$0xff]
    %v1996 = vld [vmem:[%s1889 + $0x390] sm:$0x3f]
    %v1997 = vld [vmem:[%s1889 + $0x398] sm:$0x3f]
    %v1998 = vld [vmem:[%s1889 + $0x3a0] sm:$0xff]
    %v1999 = vld [vmem:[%s1889 + $0x3a8] sm:$0xff]
    %v2000 = vld [vmem:[%s1889 + $0x3b0] sm:$0x3f]
    %v2001 = vld [vmem:[%s1889 + $0x3b8] sm:$0x3f]
    %v2002 = vlaneseq
    %v2003 = vshrl.u32 %v2002, 7
    %v2004 = vsub.s32 3, %v2003
    %v2005 = vrot.slane %v39, %v2004
    %v2006 = vlaneseq
    %v2007 = vshrl.u32 %v2006, 7
    %v2008 = vsub.s32 3, %v2007
    %v2009 = vrot.slane %v40, %v2008
    %v2010 = vlaneseq
    %v2011 = vshrl.u32 %v2010, 7
    %v2012 = vsub.s32 3, %v2011
    %v2013 = vrot.slane %v43, %v2012
    %v2014 = vlaneseq
    %v2015 = vshrl.u32 %v2014, 7
    %v2016 = vsub.s32 3, %v2015
    %v2017 = vrot.slane %v44, %v2016
    %v2018 = vmul.f32 %v1890, %v2005
    %v2019 = vmul.f32 %v1891, %v2009
    %v2020 = vmul.f32 %v1892, %v2005
    %v2021 = vmul.f32 %v1893, %v2009
    %v2022 = vmul.f32 %v1894, %v2005
    %v2023 = vmul.f32 %v1895, %v2009
    %v2024 = vmul.f32 %v1896, %v2005
    %v2025 = vmul.f32 %v1897, %v2009
    %v2026 = vmul.f32 %v1898, %v2005
    %v2027 = vmul.f32 %v1899, %v2009
    %v2028 = vmul.f32 %v1900, %v2005
    %v2029 = vmul.f32 %v1901, %v2009
    %v2030 = vmul.f32 %v1902, %v2005
    %v2031 = vmul.f32 %v1903, %v2009
    %v2032 = vmul.f32 %v1904, %v2005
    %v2033 = vmul.f32 %v1905, %v2009
    %v2034 = vmul.f32 %v1906, %v2005
    %v2035 = vmul.f32 %v1907, %v2009
    %v2036 = vmul.f32 %v1908, %v2005
    %v2037 = vmul.f32 %v1909, %v2009
    %v2038 = vmul.f32 %v1910, %v2005
    %v2039 = vmul.f32 %v1911, %v2009
    %v2040 = vmul.f32 %v1912, %v2005
    %v2041 = vmul.f32 %v1913, %v2009
    %v2042 = vmul.f32 %v1914, %v2005
    %v2043 = vmul.f32 %v1915, %v2009
    %v2044 = vmul.f32 %v1916, %v2005
    %v2045 = vmul.f32 %v1917, %v2009
    %v2046 = vmul.f32 %v1918, %v2005
    %v2047 = vmul.f32 %v1919, %v2009
    %v2048 = vmul.f32 %v1920, %v2005
    %v2049 = vmul.f32 %v1921, %v2009
    %v2050 = vmul.f32 %v1922, %v2005
    %v2051 = vmul.f32 %v1923, %v2009
    %v2052 = vmul.f32 %v1924, %v2005
    %v2053 = vmul.f32 %v1925, %v2009
    %v2054 = vmul.f32 %v1926, %v2005
    %v2055 = vmul.f32 %v1927, %v2009
    %v2056 = vmul.f32 %v1928, %v2005
    %v2057 = vmul.f32 %v1929, %v2009
    %v2058 = vmul.f32 %v1930, %v2005
    %v2059 = vmul.f32 %v1931, %v2009
    %v2060 = vmul.f32 %v1932, %v2005
    %v2061 = vmul.f32 %v1933, %v2009
    %v2062 = vmul.f32 %v1934, %v2005
    %v2063 = vmul.f32 %v1935, %v2009
    %v2064 = vmul.f32 %v1936, %v2005
    %v2065 = vmul.f32 %v1937, %v2009
    %v2066 = vmul.f32 %v1938, %v2005
    %v2067 = vmul.f32 %v1939, %v2009
    %v2068 = vmul.f32 %v1940, %v2005
    %v2069 = vmul.f32 %v1941, %v2009
    %v2070 = vmul.f32 %v1942, %v2005
    %v2071 = vmul.f32 %v1943, %v2009
    %v2072 = vmul.f32 %v1944, %v2005
    %v2073 = vmul.f32 %v1945, %v2009
    %v2074 = vmul.f32 %v1946, %v2013
    %v2075 = vmul.f32 %v1947, %v2017
    %v2076 = vmul.f32 %v1948, %v2013
    %v2077 = vmul.f32 %v1949, %v2017
    %v2078 = vmul.f32 %v1950, %v2013
    %v2079 = vmul.f32 %v1951, %v2017
    %v2080 = vmul.f32 %v1952, %v2013
    %v2081 = vmul.f32 %v1953, %v2017
    %v2082 = vmul.f32 %v1954, %v2013
    %v2083 = vmul.f32 %v1955, %v2017
    %v2084 = vmul.f32 %v1956, %v2013
    %v2085 = vmul.f32 %v1957, %v2017
    %v2086 = vmul.f32 %v1958, %v2013
    %v2087 = vmul.f32 %v1959, %v2017
    %v2088 = vmul.f32 %v1960, %v2013
    %v2089 = vmul.f32 %v1961, %v2017
    %v2090 = vmul.f32 %v1962, %v2013
    %v2091 = vmul.f32 %v1963, %v2017
    %v2092 = vmul.f32 %v1964, %v2013
    %v2093 = vmul.f32 %v1965, %v2017
    %v2094 = vmul.f32 %v1966, %v2013
    %v2095 = vmul.f32 %v1967, %v2017
    %v2096 = vmul.f32 %v1968, %v2013
    %v2097 = vmul.f32 %v1969, %v2017
    %v2098 = vmul.f32 %v1970, %v2013
    %v2099 = vmul.f32 %v1971, %v2017
    %v2100 = vmul.f32 %v1972, %v2013
    %v2101 = vmul.f32 %v1973, %v2017
    %v2102 = vmul.f32 %v1974, %v2013
    %v2103 = vmul.f32 %v1975, %v2017
    %v2104 = vmul.f32 %v1976, %v2013
    %v2105 = vmul.f32 %v1977, %v2017
    %v2106 = vmul.f32 %v1978, %v2013
    %v2107 = vmul.f32 %v1979, %v2017
    %v2108 = vmul.f32 %v1980, %v2013
    %v2109 = vmul.f32 %v1981, %v2017
    %v2110 = vmul.f32 %v1982, %v2013
    %v2111 = vmul.f32 %v1983, %v2017
    %v2112 = vmul.f32 %v1984, %v2013
    %v2113 = vmul.f32 %v1985, %v2017
    %v2114 = vmul.f32 %v1986, %v2013
    %v2115 = vmul.f32 %v1987, %v2017
    %v2116 = vmul.f32 %v1988, %v2013
    %v2117 = vmul.f32 %v1989, %v2017
    %v2118 = vmul.f32 %v1990, %v2013
    %v2119 = vmul.f32 %v1991, %v2017
    %v2120 = vmul.f32 %v1992, %v2013
    %v2121 = vmul.f32 %v1993, %v2017
    %v2122 = vmul.f32 %v1994, %v2013
    %v2123 = vmul.f32 %v1995, %v2017
    %v2124 = vmul.f32 %v1996, %v2013
    %v2125 = vmul.f32 %v1997, %v2017
    %v2126 = vmul.f32 %v1998, %v2013
    %v2127 = vmul.f32 %v1999, %v2017
    %v2128 = vmul.f32 %v2000, %v2013
    %v2129 = vmul.f32 %v2001, %v2017
    %v2130 = vadd.f32 %v1777, %v2018
    %v2131 = vadd.f32 %v1778, %v2019
    %v2132 = vadd.f32 %v1779, %v2020
    %v2133 = vadd.f32 %v1780, %v2021
    %v2134 = vadd.f32 %v1781, %v2022
    %v2135 = vadd.f32 %v1782, %v2023
    %v2136 = vadd.f32 %v1783, %v2024
    %v2137 = vadd.f32 %v1784, %v2025
    %v2138 = vadd.f32 %v1785, %v2026
    %v2139 = vadd.f32 %v1786, %v2027
    %v2140 = vadd.f32 %v1787, %v2028
    %v2141 = vadd.f32 %v1788, %v2029
    %v2142 = vadd.f32 %v1789, %v2030
    %v2143 = vadd.f32 %v1790, %v2031
    %v2144 = vadd.f32 %v1791, %v2032
    %v2145 = vadd.f32 %v1792, %v2033
    %v2146 = vadd.f32 %v1793, %v2034
    %v2147 = vadd.f32 %v1794, %v2035
    %v2148 = vadd.f32 %v1795, %v2036
    %v2149 = vadd.f32 %v1796, %v2037
    %v2150 = vadd.f32 %v1797, %v2038
    %v2151 = vadd.f32 %v1798, %v2039
    %v2152 = vadd.f32 %v1799, %v2040
    %v2153 = vadd.f32 %v1800, %v2041
    %v2154 = vadd.f32 %v1801, %v2042
    %v2155 = vadd.f32 %v1802, %v2043
    %v2156 = vadd.f32 %v1803, %v2044
    %v2157 = vadd.f32 %v1804, %v2045
    %v2158 = vadd.f32 %v1805, %v2046
    %v2159 = vadd.f32 %v1806, %v2047
    %v2160 = vadd.f32 %v1807, %v2048
    %v2161 = vadd.f32 %v1808, %v2049
    %v2162 = vadd.f32 %v1809, %v2050
    %v2163 = vadd.f32 %v1810, %v2051
    %v2164 = vadd.f32 %v1811, %v2052
    %v2165 = vadd.f32 %v1812, %v2053
    %v2166 = vadd.f32 %v1813, %v2054
    %v2167 = vadd.f32 %v1814, %v2055
    %v2168 = vadd.f32 %v1815, %v2056
    %v2169 = vadd.f32 %v1816, %v2057
    %v2170 = vadd.f32 %v1817, %v2058
    %v2171 = vadd.f32 %v1818, %v2059
    %v2172 = vadd.f32 %v1819, %v2060
    %v2173 = vadd.f32 %v1820, %v2061
    %v2174 = vadd.f32 %v1821, %v2062
    %v2175 = vadd.f32 %v1822, %v2063
    %v2176 = vadd.f32 %v1823, %v2064
    %v2177 = vadd.f32 %v1824, %v2065
    %v2178 = vadd.f32 %v1825, %v2066
    %v2179 = vadd.f32 %v1826, %v2067
    %v2180 = vadd.f32 %v1827, %v2068
    %v2181 = vadd.f32 %v1828, %v2069
    %v2182 = vadd.f32 %v1829, %v2070
    %v2183 = vadd.f32 %v1830, %v2071
    %v2184 = vadd.f32 %v1831, %v2072
    %v2185 = vadd.f32 %v1832, %v2073
    %v2186 = vadd.f32 %v1833, %v2074
    %v2187 = vadd.f32 %v1834, %v2075
    %v2188 = vadd.f32 %v1835, %v2076
    %v2189 = vadd.f32 %v1836, %v2077
    %v2190 = vadd.f32 %v1837, %v2078
    %v2191 = vadd.f32 %v1838, %v2079
    %v2192 = vadd.f32 %v1839, %v2080
    %v2193 = vadd.f32 %v1840, %v2081
    %v2194 = vadd.f32 %v1841, %v2082
    %v2195 = vadd.f32 %v1842, %v2083
    %v2196 = vadd.f32 %v1843, %v2084
    %v2197 = vadd.f32 %v1844, %v2085
    %v2198 = vadd.f32 %v1845, %v2086
    %v2199 = vadd.f32 %v1846, %v2087
    %v2200 = vadd.f32 %v1847, %v2088
    %v2201 = vadd.f32 %v1848, %v2089
    %v2202 = vadd.f32 %v1849, %v2090
    %v2203 = vadd.f32 %v1850, %v2091
    %v2204 = vadd.f32 %v1851, %v2092
    %v2205 = vadd.f32 %v1852, %v2093
    %v2206 = vadd.f32 %v1853, %v2094
    %v2207 = vadd.f32 %v1854, %v2095
    %v2208 = vadd.f32 %v1855, %v2096
    %v2209 = vadd.f32 %v1856, %v2097
    %v2210 = vadd.f32 %v1857, %v2098
    %v2211 = vadd.f32 %v1858, %v2099
    %v2212 = vadd.f32 %v1859, %v2100
    %v2213 = vadd.f32 %v1860, %v2101
    %v2214 = vadd.f32 %v1861, %v2102
    %v2215 = vadd.f32 %v1862, %v2103
    %v2216 = vadd.f32 %v1863, %v2104
    %v2217 = vadd.f32 %v1864, %v2105
    %v2218 = vadd.f32 %v1865, %v2106
    %v2219 = vadd.f32 %v1866, %v2107
    %v2220 = vadd.f32 %v1867, %v2108
    %v2221 = vadd.f32 %v1868, %v2109
    %v2222 = vadd.f32 %v1869, %v2110
    %v2223 = vadd.f32 %v1870, %v2111
    %v2224 = vadd.f32 %v1871, %v2112
    %v2225 = vadd.f32 %v1872, %v2113
    %v2226 = vadd.f32 %v1873, %v2114
    %v2227 = vadd.f32 %v1874, %v2115
    %v2228 = vadd.f32 %v1875, %v2116
    %v2229 = vadd.f32 %v1876, %v2117
    %v2230 = vadd.f32 %v1877, %v2118
    %v2231 = vadd.f32 %v1878, %v2119
    %v2232 = vadd.f32 %v1879, %v2120
    %v2233 = vadd.f32 %v1880, %v2121
    %v2234 = vadd.f32 %v1881, %v2122
    %v2235 = vadd.f32 %v1882, %v2123
    %v2236 = vadd.f32 %v1883, %v2124
    %v2237 = vadd.f32 %v1884, %v2125
    %v2238 = vadd.f32 %v1885, %v2126
    %v2239 = vadd.f32 %v1886, %v2127
    %v2240 = vadd.f32 %v1887, %v2128
    %v2241 = vadd.f32 %v1888, %v2129
    %v2242 = vld [vmem:[%s1889] sm:$0xfe]
    %v2243 = vld [vmem:[%s1889 + $0x8] sm:$0xfe]
    %v2244 = vld [vmem:[%s1889 + $0x10] sm:$0x7f]
    %v2245 = vld [vmem:[%s1889 + $0x18] sm:$0x7f]
    %v2246 = vld [vmem:[%s1889 + $0x20] sm:$0xfe]
    %v2247 = vld [vmem:[%s1889 + $0x28] sm:$0xfe]
    %v2248 = vld [vmem:[%s1889 + $0x30] sm:$0x7f]
    %v2249 = vld [vmem:[%s1889 + $0x38] sm:$0x7f]
    %v2250 = vld [vmem:[%s1889 + $0x40] sm:$0xfe]
    %v2251 = vld [vmem:[%s1889 + $0x48] sm:$0xfe]
    %v2252 = vld [vmem:[%s1889 + $0x50] sm:$0x7f]
    %v2253 = vld [vmem:[%s1889 + $0x58] sm:$0x7f]
    %v2254 = vld [vmem:[%s1889 + $0x60] sm:$0xfe]
    %v2255 = vld [vmem:[%s1889 + $0x68] sm:$0xfe]
    %v2256 = vld [vmem:[%s1889 + $0x70] sm:$0x7f]
    %v2257 = vld [vmem:[%s1889 + $0x78] sm:$0x7f]
    %v2258 = vld [vmem:[%s1889 + $0x80] sm:$0xfe]
    %v2259 = vld [vmem:[%s1889 + $0x88] sm:$0xfe]
    %v2260 = vld [vmem:[%s1889 + $0x90] sm:$0x7f]
    %v2261 = vld [vmem:[%s1889 + $0x98] sm:$0x7f]
    %v2262 = vld [vmem:[%s1889 + $0xa0] sm:$0xfe]
    %v2263 = vld [vmem:[%s1889 + $0xa8] sm:$0xfe]
    %v2264 = vld [vmem:[%s1889 + $0xb0] sm:$0x7f]
    %v2265 = vld [vmem:[%s1889 + $0xb8] sm:$0x7f]
    %v2266 = vld [vmem:[%s1889 + $0xc0] sm:$0xfe]
    %v2267 = vld [vmem:[%s1889 + $0xc8] sm:$0xfe]
    %v2268 = vld [vmem:[%s1889 + $0xd0] sm:$0x7f]
    %v2269 = vld [vmem:[%s1889 + $0xd8] sm:$0x7f]
    %v2270 = vld [vmem:[%s1889 + $0xe0] sm:$0xfe]
    %v2271 = vld [vmem:[%s1889 + $0xe8] sm:$0xfe]
    %v2272 = vld [vmem:[%s1889 + $0xf0] sm:$0x7f]
    %v2273 = vld [vmem:[%s1889 + $0xf8] sm:$0x7f]
    %v2274 = vld [vmem:[%s1889 + $0x100] sm:$0xfe]
    %v2275 = vld [vmem:[%s1889 + $0x108] sm:$0xfe]
    %v2276 = vld [vmem:[%s1889 + $0x110] sm:$0x7f]
    %v2277 = vld [vmem:[%s1889 + $0x118] sm:$0x7f]
    %v2278 = vld [vmem:[%s1889 + $0x120] sm:$0xfe]
    %v2279 = vld [vmem:[%s1889 + $0x128] sm:$0xfe]
    %v2280 = vld [vmem:[%s1889 + $0x130] sm:$0x7f]
    %v2281 = vld [vmem:[%s1889 + $0x138] sm:$0x7f]
    %v2282 = vld [vmem:[%s1889 + $0x140] sm:$0xfe]
    %v2283 = vld [vmem:[%s1889 + $0x148] sm:$0xfe]
    %v2284 = vld [vmem:[%s1889 + $0x150] sm:$0x7f]
    %v2285 = vld [vmem:[%s1889 + $0x158] sm:$0x7f]
    %v2286 = vld [vmem:[%s1889 + $0x160] sm:$0xfe]
    %v2287 = vld [vmem:[%s1889 + $0x168] sm:$0xfe]
    %v2288 = vld [vmem:[%s1889 + $0x170] sm:$0x7f]
    %v2289 = vld [vmem:[%s1889 + $0x178] sm:$0x7f]
    %v2290 = vld [vmem:[%s1889 + $0x180] sm:$0xfe]
    %v2291 = vld [vmem:[%s1889 + $0x188] sm:$0xfe]
    %v2292 = vld [vmem:[%s1889 + $0x190] sm:$0x7f]
    %v2293 = vld [vmem:[%s1889 + $0x198] sm:$0x7f]
    %v2294 = vld [vmem:[%s1889 + $0x1a0] sm:$0xfe]
    %v2295 = vld [vmem:[%s1889 + $0x1a8] sm:$0xfe]
    %v2296 = vld [vmem:[%s1889 + $0x1b0] sm:$0x7f]
    %v2297 = vld [vmem:[%s1889 + $0x1b8] sm:$0x7f]
    %v2298 = vld [vmem:[%s1889 + $0x200] sm:$0xfe]
    %v2299 = vld [vmem:[%s1889 + $0x208] sm:$0xfe]
    %v2300 = vld [vmem:[%s1889 + $0x210] sm:$0x7f]
    %v2301 = vld [vmem:[%s1889 + $0x218] sm:$0x7f]
    %v2302 = vld [vmem:[%s1889 + $0x220] sm:$0xfe]
    %v2303 = vld [vmem:[%s1889 + $0x228] sm:$0xfe]
    %v2304 = vld [vmem:[%s1889 + $0x230] sm:$0x7f]
    %v2305 = vld [vmem:[%s1889 + $0x238] sm:$0x7f]
    %v2306 = vld [vmem:[%s1889 + $0x240] sm:$0xfe]
    %v2307 = vld [vmem:[%s1889 + $0x248] sm:$0xfe]
    %v2308 = vld [vmem:[%s1889 + $0x250] sm:$0x7f]
    %v2309 = vld [vmem:[%s1889 + $0x258] sm:$0x7f]
    %v2310 = vld [vmem:[%s1889 + $0x260] sm:$0xfe]
    %v2311 = vld [vmem:[%s1889 + $0x268] sm:$0xfe]
    %v2312 = vld [vmem:[%s1889 + $0x270] sm:$0x7f]
    %v2313 = vld [vmem:[%s1889 + $0x278] sm:$0x7f]
    %v2314 = vld [vmem:[%s1889 + $0x280] sm:$0xfe]
    %v2315 = vld [vmem:[%s1889 + $0x288] sm:$0xfe]
    %v2316 = vld [vmem:[%s1889 + $0x290] sm:$0x7f]
    %v2317 = vld [vmem:[%s1889 + $0x298] sm:$0x7f]
    %v2318 = vld [vmem:[%s1889 + $0x2a0] sm:$0xfe]
    %v2319 = vld [vmem:[%s1889 + $0x2a8] sm:$0xfe]
    %v2320 = vld [vmem:[%s1889 + $0x2b0] sm:$0x7f]
    %v2321 = vld [vmem:[%s1889 + $0x2b8] sm:$0x7f]
    %v2322 = vld [vmem:[%s1889 + $0x2c0] sm:$0xfe]
    %v2323 = vld [vmem:[%s1889 + $0x2c8] sm:$0xfe]
    %v2324 = vld [vmem:[%s1889 + $0x2d0] sm:$0x7f]
    %v2325 = vld [vmem:[%s1889 + $0x2d8] sm:$0x7f]
    %v2326 = vld [vmem:[%s1889 + $0x2e0] sm:$0xfe]
    %v2327 = vld [vmem:[%s1889 + $0x2e8] sm:$0xfe]
    %v2328 = vld [vmem:[%s1889 + $0x2f0] sm:$0x7f]
    %v2329 = vld [vmem:[%s1889 + $0x2f8] sm:$0x7f]
    %v2330 = vld [vmem:[%s1889 + $0x300] sm:$0xfe]
    %v2331 = vld [vmem:[%s1889 + $0x308] sm:$0xfe]
    %v2332 = vld [vmem:[%s1889 + $0x310] sm:$0x7f]
    %v2333 = vld [vmem:[%s1889 + $0x318] sm:$0x7f]
    %v2334 = vld [vmem:[%s1889 + $0x320] sm:$0xfe]
    %v2335 = vld [vmem:[%s1889 + $0x328] sm:$0xfe]
    %v2336 = vld [vmem:[%s1889 + $0x330] sm:$0x7f]
    %v2337 = vld [vmem:[%s1889 + $0x338] sm:$0x7f]
    %v2338 = vld [vmem:[%s1889 + $0x340] sm:$0xfe]
    %v2339 = vld [vmem:[%s1889 + $0x348] sm:$0xfe]
    %v2340 = vld [vmem:[%s1889 + $0x350] sm:$0x7f]
    %v2341 = vld [vmem:[%s1889 + $0x358] sm:$0x7f]
    %v2342 = vld [vmem:[%s1889 + $0x360] sm:$0xfe]
    %v2343 = vld [vmem:[%s1889 + $0x368] sm:$0xfe]
    %v2344 = vld [vmem:[%s1889 + $0x370] sm:$0x7f]
    %v2345 = vld [vmem:[%s1889 + $0x378] sm:$0x7f]
    %v2346 = vld [vmem:[%s1889 + $0x380] sm:$0xfe]
    %v2347 = vld [vmem:[%s1889 + $0x388] sm:$0xfe]
    %v2348 = vld [vmem:[%s1889 + $0x390] sm:$0x7f]
    %v2349 = vld [vmem:[%s1889 + $0x398] sm:$0x7f]
    %v2350 = vld [vmem:[%s1889 + $0x3a0] sm:$0xfe]
    %v2351 = vld [vmem:[%s1889 + $0x3a8] sm:$0xfe]
    %v2352 = vld [vmem:[%s1889 + $0x3b0] sm:$0x7f]
    %v2353 = vld [vmem:[%s1889 + $0x3b8] sm:$0x7f]
    %v2354 = vlaneseq
    %v2355 = vshrl.u32 %v2354, 7
    %v2356 = vsub.s32 4, %v2355
    %v2357 = vrot.slane %v39, %v2356
    %v2358 = vlaneseq
    %v2359 = vshrl.u32 %v2358, 7
    %v2360 = vsub.s32 4, %v2359
    %v2361 = vrot.slane %v40, %v2360
    %v2362 = vlaneseq
    %v2363 = vshrl.u32 %v2362, 7
    %v2364 = vsub.s32 4, %v2363
    %v2365 = vrot.slane %v43, %v2364
    %v2366 = vlaneseq
    %v2367 = vshrl.u32 %v2366, 7
    %v2368 = vsub.s32 4, %v2367
    %v2369 = vrot.slane %v44, %v2368
    %v2370 = vmul.f32 %v2242, %v2357
    %v2371 = vmul.f32 %v2243, %v2361
    %v2372 = vmul.f32 %v2244, %v2357
    %v2373 = vmul.f32 %v2245, %v2361
    %v2374 = vmul.f32 %v2246, %v2357
    %v2375 = vmul.f32 %v2247, %v2361
    %v2376 = vmul.f32 %v2248, %v2357
    %v2377 = vmul.f32 %v2249, %v2361
    %v2378 = vmul.f32 %v2250, %v2357
    %v2379 = vmul.f32 %v2251, %v2361
    %v2380 = vmul.f32 %v2252, %v2357
    %v2381 = vmul.f32 %v2253, %v2361
    %v2382 = vmul.f32 %v2254, %v2357
    %v2383 = vmul.f32 %v2255, %v2361
    %v2384 = vmul.f32 %v2256, %v2357
    %v2385 = vmul.f32 %v2257, %v2361
    %v2386 = vmul.f32 %v2258, %v2357
    %v2387 = vmul.f32 %v2259, %v2361
    %v2388 = vmul.f32 %v2260, %v2357
    %v2389 = vmul.f32 %v2261, %v2361
    %v2390 = vmul.f32 %v2262, %v2357
    %v2391 = vmul.f32 %v2263, %v2361
    %v2392 = vmul.f32 %v2264, %v2357
    %v2393 = vmul.f32 %v2265, %v2361
    %v2394 = vmul.f32 %v2266, %v2357
    %v2395 = vmul.f32 %v2267, %v2361
    %v2396 = vmul.f32 %v2268, %v2357
    %v2397 = vmul.f32 %v2269, %v2361
    %v2398 = vmul.f32 %v2270, %v2357
    %v2399 = vmul.f32 %v2271, %v2361
    %v2400 = vmul.f32 %v2272, %v2357
    %v2401 = vmul.f32 %v2273, %v2361
    %v2402 = vmul.f32 %v2274, %v2357
    %v2403 = vmul.f32 %v2275, %v2361
    %v2404 = vmul.f32 %v2276, %v2357
    %v2405 = vmul.f32 %v2277, %v2361
    %v2406 = vmul.f32 %v2278, %v2357
    %v2407 = vmul.f32 %v2279, %v2361
    %v2408 = vmul.f32 %v2280, %v2357
    %v2409 = vmul.f32 %v2281, %v2361
    %v2410 = vmul.f32 %v2282, %v2357
    %v2411 = vmul.f32 %v2283, %v2361
    %v2412 = vmul.f32 %v2284, %v2357
    %v2413 = vmul.f32 %v2285, %v2361
    %v2414 = vmul.f32 %v2286, %v2357
    %v2415 = vmul.f32 %v2287, %v2361
    %v2416 = vmul.f32 %v2288, %v2357
    %v2417 = vmul.f32 %v2289, %v2361
    %v2418 = vmul.f32 %v2290, %v2357
    %v2419 = vmul.f32 %v2291, %v2361
    %v2420 = vmul.f32 %v2292, %v2357
    %v2421 = vmul.f32 %v2293, %v2361
    %v2422 = vmul.f32 %v2294, %v2357
    %v2423 = vmul.f32 %v2295, %v2361
    %v2424 = vmul.f32 %v2296, %v2357
    %v2425 = vmul.f32 %v2297, %v2361
    %v2426 = vmul.f32 %v2298, %v2365
    %v2427 = vmul.f32 %v2299, %v2369
    %v2428 = vmul.f32 %v2300, %v2365
    %v2429 = vmul.f32 %v2301, %v2369
    %v2430 = vmul.f32 %v2302, %v2365
    %v2431 = vmul.f32 %v2303, %v2369
    %v2432 = vmul.f32 %v2304, %v2365
    %v2433 = vmul.f32 %v2305, %v2369
    %v2434 = vmul.f32 %v2306, %v2365
    %v2435 = vmul.f32 %v2307, %v2369
    %v2436 = vmul.f32 %v2308, %v2365
    %v2437 = vmul.f32 %v2309, %v2369
    %v2438 = vmul.f32 %v2310, %v2365
    %v2439 = vmul.f32 %v2311, %v2369
    %v2440 = vmul.f32 %v2312, %v2365
    %v2441 = vmul.f32 %v2313, %v2369
    %v2442 = vmul.f32 %v2314, %v2365
    %v2443 = vmul.f32 %v2315, %v2369
    %v2444 = vmul.f32 %v2316, %v2365
    %v2445 = vmul.f32 %v2317, %v2369
    %v2446 = vmul.f32 %v2318, %v2365
    %v2447 = vmul.f32 %v2319, %v2369
    %v2448 = vmul.f32 %v2320, %v2365
    %v2449 = vmul.f32 %v2321, %v2369
    %v2450 = vmul.f32 %v2322, %v2365
    %v2451 = vmul.f32 %v2323, %v2369
    %v2452 = vmul.f32 %v2324, %v2365
    %v2453 = vmul.f32 %v2325, %v2369
    %v2454 = vmul.f32 %v2326, %v2365
    %v2455 = vmul.f32 %v2327, %v2369
    %v2456 = vmul.f32 %v2328, %v2365
    %v2457 = vmul.f32 %v2329, %v2369
    %v2458 = vmul.f32 %v2330, %v2365
    %v2459 = vmul.f32 %v2331, %v2369
    %v2460 = vmul.f32 %v2332, %v2365
    %v2461 = vmul.f32 %v2333, %v2369
    %v2462 = vmul.f32 %v2334, %v2365
    %v2463 = vmul.f32 %v2335, %v2369
    %v2464 = vmul.f32 %v2336, %v2365
    %v2465 = vmul.f32 %v2337, %v2369
    %v2466 = vmul.f32 %v2338, %v2365
    %v2467 = vmul.f32 %v2339, %v2369
    %v2468 = vmul.f32 %v2340, %v2365
    %v2469 = vmul.f32 %v2341, %v2369
    %v2470 = vmul.f32 %v2342, %v2365
    %v2471 = vmul.f32 %v2343, %v2369
    %v2472 = vmul.f32 %v2344, %v2365
    %v2473 = vmul.f32 %v2345, %v2369
    %v2474 = vmul.f32 %v2346, %v2365
    %v2475 = vmul.f32 %v2347, %v2369
    %v2476 = vmul.f32 %v2348, %v2365
    %v2477 = vmul.f32 %v2349, %v2369
    %v2478 = vmul.f32 %v2350, %v2365
    %v2479 = vmul.f32 %v2351, %v2369
    %v2480 = vmul.f32 %v2352, %v2365
    %v2481 = vmul.f32 %v2353, %v2369
    %v2594 = vrot.slane %v2370, 1
    %v2595 = vrot.slane %v2372, 1
    %v2596 = vsel %vm751, %v2594, %v2595
    %v2597 = vrot.slane %v2371, 1
    %v2598 = vrot.slane %v2373, 1
    %v2599 = vsel %vm751, %v2597, %v2598
    %v2600 = vrot.slane %v2374, 1
    %v2601 = vrot.slane %v2376, 1
    %v2602 = vsel %vm751, %v2600, %v2601
    %v2603 = vrot.slane %v2375, 1
    %v2604 = vrot.slane %v2377, 1
    %v2605 = vsel %vm751, %v2603, %v2604
    %v2606 = vrot.slane %v2378, 1
    %v2607 = vrot.slane %v2380, 1
    %v2608 = vsel %vm751, %v2606, %v2607
    %v2609 = vrot.slane %v2379, 1
    %v2610 = vrot.slane %v2381, 1
    %v2611 = vsel %vm751, %v2609, %v2610
    %v2612 = vrot.slane %v2382, 1
    %v2613 = vrot.slane %v2384, 1
    %v2614 = vsel %vm751, %v2612, %v2613
    %v2615 = vrot.slane %v2383, 1
    %v2616 = vrot.slane %v2385, 1
    %v2617 = vsel %vm751, %v2615, %v2616
    %v2618 = vrot.slane %v2386, 1
    %v2619 = vrot.slane %v2388, 1
    %v2620 = vsel %vm751, %v2618, %v2619
    %v2621 = vrot.slane %v2387, 1
    %v2622 = vrot.slane %v2389, 1
    %v2623 = vsel %vm751, %v2621, %v2622
    %v2624 = vrot.slane %v2390, 1
    %v2625 = vrot.slane %v2392, 1
    %v2626 = vsel %vm751, %v2624, %v2625
    %v2627 = vrot.slane %v2391, 1
    %v2628 = vrot.slane %v2393, 1
    %v2629 = vsel %vm751, %v2627, %v2628
    %v2630 = vrot.slane %v2394, 1
    %v2631 = vrot.slane %v2396, 1
    %v2632 = vsel %vm751, %v2630, %v2631
    %v2633 = vrot.slane %v2395, 1
    %v2634 = vrot.slane %v2397, 1
    %v2635 = vsel %vm751, %v2633, %v2634
    %v2636 = vrot.slane %v2398, 1
    %v2637 = vrot.slane %v2400, 1
    %v2638 = vsel %vm751, %v2636, %v2637
    %v2639 = vrot.slane %v2399, 1
    %v2640 = vrot.slane %v2401, 1
    %v2641 = vsel %vm751, %v2639, %v2640
    %v2642 = vrot.slane %v2402, 1
    %v2643 = vrot.slane %v2404, 1
    %v2644 = vsel %vm751, %v2642, %v2643
    %v2645 = vrot.slane %v2403, 1
    %v2646 = vrot.slane %v2405, 1
    %v2647 = vsel %vm751, %v2645, %v2646
    %v2648 = vrot.slane %v2406, 1
    %v2649 = vrot.slane %v2408, 1
    %v2650 = vsel %vm751, %v2648, %v2649
    %v2651 = vrot.slane %v2407, 1
    %v2652 = vrot.slane %v2409, 1
    %v2653 = vsel %vm751, %v2651, %v2652
    %v2654 = vrot.slane %v2410, 1
    %v2655 = vrot.slane %v2412, 1
    %v2656 = vsel %vm751, %v2654, %v2655
    %v2657 = vrot.slane %v2411, 1
    %v2658 = vrot.slane %v2413, 1
    %v2659 = vsel %vm751, %v2657, %v2658
    %v2660 = vrot.slane %v2414, 1
    %v2661 = vrot.slane %v2416, 1
    %v2662 = vsel %vm751, %v2660, %v2661
    %v2663 = vrot.slane %v2415, 1
    %v2664 = vrot.slane %v2417, 1
    %v2665 = vsel %vm751, %v2663, %v2664
    %v2666 = vrot.slane %v2418, 1
    %v2667 = vrot.slane %v2420, 1
    %v2668 = vsel %vm751, %v2666, %v2667
    %v2669 = vrot.slane %v2419, 1
    %v2670 = vrot.slane %v2421, 1
    %v2671 = vsel %vm751, %v2669, %v2670
    %v2672 = vrot.slane %v2422, 1
    %v2673 = vrot.slane %v2424, 1
    %v2674 = vsel %vm751, %v2672, %v2673
    %v2675 = vrot.slane %v2423, 1
    %v2676 = vrot.slane %v2425, 1
    %v2677 = vsel %vm751, %v2675, %v2676
    %v2678 = vrot.slane %v2426, 1
    %v2679 = vrot.slane %v2428, 1
    %v2680 = vsel %vm751, %v2678, %v2679
    %v2681 = vrot.slane %v2427, 1
    %v2682 = vrot.slane %v2429, 1
    %v2683 = vsel %vm751, %v2681, %v2682
    %v2684 = vrot.slane %v2430, 1
    %v2685 = vrot.slane %v2432, 1
    %v2686 = vsel %vm751, %v2684, %v2685
    %v2687 = vrot.slane %v2431, 1
    %v2688 = vrot.slane %v2433, 1
    %v2689 = vsel %vm751, %v2687, %v2688
    %v2690 = vrot.slane %v2434, 1
    %v2691 = vrot.slane %v2436, 1
    %v2692 = vsel %vm751, %v2690, %v2691
    %v2693 = vrot.slane %v2435, 1
    %v2694 = vrot.slane %v2437, 1
    %v2695 = vsel %vm751, %v2693, %v2694
    %v2696 = vrot.slane %v2438, 1
    %v2697 = vrot.slane %v2440, 1
    %v2698 = vsel %vm751, %v2696, %v2697
    %v2699 = vrot.slane %v2439, 1
    %v2700 = vrot.slane %v2441, 1
    %v2701 = vsel %vm751, %v2699, %v2700
    %v2702 = vrot.slane %v2442, 1
    %v2703 = vrot.slane %v2444, 1
    %v2704 = vsel %vm751, %v2702, %v2703
    %v2705 = vrot.slane %v2443, 1
    %v2706 = vrot.slane %v2445, 1
    %v2707 = vsel %vm751, %v2705, %v2706
    %v2708 = vrot.slane %v2446, 1
    %v2709 = vrot.slane %v2448, 1
    %v2710 = vsel %vm751, %v2708, %v2709
    %v2711 = vrot.slane %v2447, 1
    %v2712 = vrot.slane %v2449, 1
    %v2713 = vsel %vm751, %v2711, %v2712
    %v2714 = vrot.slane %v2450, 1
    %v2715 = vrot.slane %v2452, 1
    %v2716 = vsel %vm751, %v2714, %v2715
    %v2717 = vrot.slane %v2451, 1
    %v2718 = vrot.slane %v2453, 1
    %v2719 = vsel %vm751, %v2717, %v2718
    %v2720 = vrot.slane %v2454, 1
    %v2721 = vrot.slane %v2456, 1
    %v2722 = vsel %vm751, %v2720, %v2721
    %v2723 = vrot.slane %v2455, 1
    %v2724 = vrot.slane %v2457, 1
    %v2725 = vsel %vm751, %v2723, %v2724
    %v2726 = vrot.slane %v2458, 1
    %v2727 = vrot.slane %v2460, 1
    %v2728 = vsel %vm751, %v2726, %v2727
    %v2729 = vrot.slane %v2459, 1
    %v2730 = vrot.slane %v2461, 1
    %v2731 = vsel %vm751, %v2729, %v2730
    %v2732 = vrot.slane %v2462, 1
    %v2733 = vrot.slane %v2464, 1
    %v2734 = vsel %vm751, %v2732, %v2733
    %v2735 = vrot.slane %v2463, 1
    %v2736 = vrot.slane %v2465, 1
    %v2737 = vsel %vm751, %v2735, %v2736
    %v2738 = vrot.slane %v2466, 1
    %v2739 = vrot.slane %v2468, 1
    %v2740 = vsel %vm751, %v2738, %v2739
    %v2741 = vrot.slane %v2467, 1
    %v2742 = vrot.slane %v2469, 1
    %v2743 = vsel %vm751, %v2741, %v2742
    %v2744 = vrot.slane %v2470, 1
    %v2745 = vrot.slane %v2472, 1
    %v2746 = vsel %vm751, %v2744, %v2745
    %v2747 = vrot.slane %v2471, 1
    %v2748 = vrot.slane %v2473, 1
    %v2749 = vsel %vm751, %v2747, %v2748
    %v2750 = vrot.slane %v2474, 1
    %v2751 = vrot.slane %v2476, 1
    %v2752 = vsel %vm751, %v2750, %v2751
    %v2753 = vrot.slane %v2475, 1
    %v2754 = vrot.slane %v2477, 1
    %v2755 = vsel %vm751, %v2753, %v2754
    %v2756 = vrot.slane %v2478, 1
    %v2757 = vrot.slane %v2480, 1
    %v2758 = vsel %vm751, %v2756, %v2757
    %v2759 = vrot.slane %v2479, 1
    %v2760 = vrot.slane %v2481, 1
    %v2761 = vsel %vm751, %v2759, %v2760
    %v2874 = vadd.f32 %v2130, %v2596
    %v2875 = vadd.f32 %v2131, %v2599
    %v2876 = vadd.f32 %v2132, %v2595
    %v2877 = vadd.f32 %v2133, %v2598
    %v2878 = vadd.f32 %v2134, %v2602
    %v2879 = vadd.f32 %v2135, %v2605
    %v2880 = vadd.f32 %v2136, %v2601
    %v2881 = vadd.f32 %v2137, %v2604
    %v2882 = vadd.f32 %v2138, %v2608
    %v2883 = vadd.f32 %v2139, %v2611
    %v2884 = vadd.f32 %v2140, %v2607
    %v2885 = vadd.f32 %v2141, %v2610
    %v2886 = vadd.f32 %v2142, %v2614
    %v2887 = vadd.f32 %v2143, %v2617
    %v2888 = vadd.f32 %v2144, %v2613
    %v2889 = vadd.f32 %v2145, %v2616
    %v2890 = vadd.f32 %v2146, %v2620
    %v2891 = vadd.f32 %v2147, %v2623
    %v2892 = vadd.f32 %v2148, %v2619
    %v2893 = vadd.f32 %v2149, %v2622
    %v2894 = vadd.f32 %v2150, %v2626
    %v2895 = vadd.f32 %v2151, %v2629
    %v2896 = vadd.f32 %v2152, %v2625
    %v2897 = vadd.f32 %v2153, %v2628
    %v2898 = vadd.f32 %v2154, %v2632
    %v2899 = vadd.f32 %v2155, %v2635
    %v2900 = vadd.f32 %v2156, %v2631
    %v2901 = vadd.f32 %v2157, %v2634
    %v2902 = vadd.f32 %v2158, %v2638
    %v2903 = vadd.f32 %v2159, %v2641
    %v2904 = vadd.f32 %v2160, %v2637
    %v2905 = vadd.f32 %v2161, %v2640
    %v2906 = vadd.f32 %v2162, %v2644
    %v2907 = vadd.f32 %v2163, %v2647
    %v2908 = vadd.f32 %v2164, %v2643
    %v2909 = vadd.f32 %v2165, %v2646
    %v2910 = vadd.f32 %v2166, %v2650
    %v2911 = vadd.f32 %v2167, %v2653
    %v2912 = vadd.f32 %v2168, %v2649
    %v2913 = vadd.f32 %v2169, %v2652
    %v2914 = vadd.f32 %v2170, %v2656
    %v2915 = vadd.f32 %v2171, %v2659
    %v2916 = vadd.f32 %v2172, %v2655
    %v2917 = vadd.f32 %v2173, %v2658
    %v2918 = vadd.f32 %v2174, %v2662
    %v2919 = vadd.f32 %v2175, %v2665
    %v2920 = vadd.f32 %v2176, %v2661
    %v2921 = vadd.f32 %v2177, %v2664
    %v2922 = vadd.f32 %v2178, %v2668
    %v2923 = vadd.f32 %v2179, %v2671
    %v2924 = vadd.f32 %v2180, %v2667
    %v2925 = vadd.f32 %v2181, %v2670
    %v2926 = vadd.f32 %v2182, %v2674
    %v2927 = vadd.f32 %v2183, %v2677
    %v2928 = vadd.f32 %v2184, %v2673
    %v2929 = vadd.f32 %v2185, %v2676
    %v2930 = vadd.f32 %v2186, %v2680
    %v2931 = vadd.f32 %v2187, %v2683
    %v2932 = vadd.f32 %v2188, %v2679
    %v2933 = vadd.f32 %v2189, %v2682
    %v2934 = vadd.f32 %v2190, %v2686
    %v2935 = vadd.f32 %v2191, %v2689
    %v2936 = vadd.f32 %v2192, %v2685
    %v2937 = vadd.f32 %v2193, %v2688
    %v2938 = vadd.f32 %v2194, %v2692
    %v2939 = vadd.f32 %v2195, %v2695
    %v2940 = vadd.f32 %v2196, %v2691
    %v2941 = vadd.f32 %v2197, %v2694
    %v2942 = vadd.f32 %v2198, %v2698
    %v2943 = vadd.f32 %v2199, %v2701
    %v2944 = vadd.f32 %v2200, %v2697
    %v2945 = vadd.f32 %v2201, %v2700
    %v2946 = vadd.f32 %v2202, %v2704
    %v2947 = vadd.f32 %v2203, %v2707
    %v2948 = vadd.f32 %v2204, %v2703
    %v2949 = vadd.f32 %v2205, %v2706
    %v2950 = vadd.f32 %v2206, %v2710
    %v2951 = vadd.f32 %v2207, %v2713
    %v2952 = vadd.f32 %v2208, %v2709
    %v2953 = vadd.f32 %v2209, %v2712
    %v2954 = vadd.f32 %v2210, %v2716
    %v2955 = vadd.f32 %v2211, %v2719
    %v2956 = vadd.f32 %v2212, %v2715
    %v2957 = vadd.f32 %v2213, %v2718
    %v2958 = vadd.f32 %v2214, %v2722
    %v2959 = vadd.f32 %v2215, %v2725
    %v2960 = vadd.f32 %v2216, %v2721
    %v2961 = vadd.f32 %v2217, %v2724
    %v2962 = vadd.f32 %v2218, %v2728
    %v2963 = vadd.f32 %v2219, %v2731
    %v2964 = vadd.f32 %v2220, %v2727
    %v2965 = vadd.f32 %v2221, %v2730
    %v2966 = vadd.f32 %v2222, %v2734
    %v2967 = vadd.f32 %v2223, %v2737
    %v2968 = vadd.f32 %v2224, %v2733
    %v2969 = vadd.f32 %v2225, %v2736
    %v2970 = vadd.f32 %v2226, %v2740
    %v2971 = vadd.f32 %v2227, %v2743
    %v2972 = vadd.f32 %v2228, %v2739
    %v2973 = vadd.f32 %v2229, %v2742
    %v2974 = vadd.f32 %v2230, %v2746
    %v2975 = vadd.f32 %v2231, %v2749
    %v2976 = vadd.f32 %v2232, %v2745
    %v2977 = vadd.f32 %v2233, %v2748
    %v2978 = vadd.f32 %v2234, %v2752
    %v2979 = vadd.f32 %v2235, %v2755
    %v2980 = vadd.f32 %v2236, %v2751
    %v2981 = vadd.f32 %v2237, %v2754
    %v2982 = vadd.f32 %v2238, %v2758
    %v2983 = vadd.f32 %v2239, %v2761
    %v2984 = vadd.f32 %v2240, %v2757
    %v2985 = vadd.f32 %v2241, %v2760
    %v2986 = vld [vmem:[%s1889] sm:$0xfc]
    %v2987 = vld [vmem:[%s1889 + $0x8] sm:$0xfc]
    %v2988 = vld [vmem:[%s1889 + $0x10] sm:$0xff]
    %v2989 = vld [vmem:[%s1889 + $0x18] sm:$0xff]
    %v2990 = vld [vmem:[%s1889 + $0x20] sm:$0xfc]
    %v2991 = vld [vmem:[%s1889 + $0x28] sm:$0xfc]
    %v2992 = vld [vmem:[%s1889 + $0x30] sm:$0xff]
    %v2993 = vld [vmem:[%s1889 + $0x38] sm:$0xff]
    %v2994 = vld [vmem:[%s1889 + $0x40] sm:$0xfc]
    %v2995 = vld [vmem:[%s1889 + $0x48] sm:$0xfc]
    %v2996 = vld [vmem:[%s1889 + $0x50] sm:$0xff]
    %v2997 = vld [vmem:[%s1889 + $0x58] sm:$0xff]
    %v2998 = vld [vmem:[%s1889 + $0x60] sm:$0xfc]
    %v2999 = vld [vmem:[%s1889 + $0x68] sm:$0xfc]
    %v3000 = vld [vmem:[%s1889 + $0x70] sm:$0xff]
    %v3001 = vld [vmem:[%s1889 + $0x78] sm:$0xff]
    %v3002 = vld [vmem:[%s1889 + $0x80] sm:$0xfc]
    %v3003 = vld [vmem:[%s1889 + $0x88] sm:$0xfc]
    %v3004 = vld [vmem:[%s1889 + $0x90] sm:$0xff]
    %v3005 = vld [vmem:[%s1889 + $0x98] sm:$0xff]
    %v3006 = vld [vmem:[%s1889 + $0xa0] sm:$0xfc]
    %v3007 = vld [vmem:[%s1889 + $0xa8] sm:$0xfc]
    %v3008 = vld [vmem:[%s1889 + $0xb0] sm:$0xff]
    %v3009 = vld [vmem:[%s1889 + $0xb8] sm:$0xff]
    %v3010 = vld [vmem:[%s1889 + $0xc0] sm:$0xfc]
    %v3011 = vld [vmem:[%s1889 + $0xc8] sm:$0xfc]
    %v3012 = vld [vmem:[%s1889 + $0xd0] sm:$0xff]
    %v3013 = vld [vmem:[%s1889 + $0xd8] sm:$0xff]
    %v3014 = vld [vmem:[%s1889 + $0xe0] sm:$0xfc]
    %v3015 = vld [vmem:[%s1889 + $0xe8] sm:$0xfc]
    %v3016 = vld [vmem:[%s1889 + $0xf0] sm:$0xff]
    %v3017 = vld [vmem:[%s1889 + $0xf8] sm:$0xff]
    %v3018 = vld [vmem:[%s1889 + $0x100] sm:$0xfc]
    %v3019 = vld [vmem:[%s1889 + $0x108] sm:$0xfc]
    %v3020 = vld [vmem:[%s1889 + $0x110] sm:$0xff]
    %v3021 = vld [vmem:[%s1889 + $0x118] sm:$0xff]
    %v3022 = vld [vmem:[%s1889 + $0x120] sm:$0xfc]
    %v3023 = vld [vmem:[%s1889 + $0x128] sm:$0xfc]
    %v3024 = vld [vmem:[%s1889 + $0x130] sm:$0xff]
    %v3025 = vld [vmem:[%s1889 + $0x138] sm:$0xff]
    %v3026 = vld [vmem:[%s1889 + $0x140] sm:$0xfc]
    %v3027 = vld [vmem:[%s1889 + $0x148] sm:$0xfc]
    %v3028 = vld [vmem:[%s1889 + $0x150] sm:$0xff]
    %v3029 = vld [vmem:[%s1889 + $0x158] sm:$0xff]
    %v3030 = vld [vmem:[%s1889 + $0x160] sm:$0xfc]
    %v3031 = vld [vmem:[%s1889 + $0x168] sm:$0xfc]
    %v3032 = vld [vmem:[%s1889 + $0x170] sm:$0xff]
    %v3033 = vld [vmem:[%s1889 + $0x178] sm:$0xff]
    %v3034 = vld [vmem:[%s1889 + $0x180] sm:$0xfc]
    %v3035 = vld [vmem:[%s1889 + $0x188] sm:$0xfc]
    %v3036 = vld [vmem:[%s1889 + $0x190] sm:$0xff]
    %v3037 = vld [vmem:[%s1889 + $0x198] sm:$0xff]
    %v3038 = vld [vmem:[%s1889 + $0x1a0] sm:$0xfc]
    %v3039 = vld [vmem:[%s1889 + $0x1a8] sm:$0xfc]
    %v3040 = vld [vmem:[%s1889 + $0x1b0] sm:$0xff]
    %v3041 = vld [vmem:[%s1889 + $0x1b8] sm:$0xff]
    %v3042 = vld [vmem:[%s1889 + $0x200] sm:$0xfc]
    %v3043 = vld [vmem:[%s1889 + $0x208] sm:$0xfc]
    %v3044 = vld [vmem:[%s1889 + $0x210] sm:$0xff]
    %v3045 = vld [vmem:[%s1889 + $0x218] sm:$0xff]
    %v3046 = vld [vmem:[%s1889 + $0x220] sm:$0xfc]
    %v3047 = vld [vmem:[%s1889 + $0x228] sm:$0xfc]
    %v3048 = vld [vmem:[%s1889 + $0x230] sm:$0xff]
    %v3049 = vld [vmem:[%s1889 + $0x238] sm:$0xff]
    %v3050 = vld [vmem:[%s1889 + $0x240] sm:$0xfc]
    %v3051 = vld [vmem:[%s1889 + $0x248] sm:$0xfc]
    %v3052 = vld [vmem:[%s1889 + $0x250] sm:$0xff]
    %v3053 = vld [vmem:[%s1889 + $0x258] sm:$0xff]
    %v3054 = vld [vmem:[%s1889 + $0x260] sm:$0xfc]
    %v3055 = vld [vmem:[%s1889 + $0x268] sm:$0xfc]
    %v3056 = vld [vmem:[%s1889 + $0x270] sm:$0xff]
    %v3057 = vld [vmem:[%s1889 + $0x278] sm:$0xff]
    %v3058 = vld [vmem:[%s1889 + $0x280] sm:$0xfc]
    %v3059 = vld [vmem:[%s1889 + $0x288] sm:$0xfc]
    %v3060 = vld [vmem:[%s1889 + $0x290] sm:$0xff]
    %v3061 = vld [vmem:[%s1889 + $0x298] sm:$0xff]
    %v3062 = vld [vmem:[%s1889 + $0x2a0] sm:$0xfc]
    %v3063 = vld [vmem:[%s1889 + $0x2a8] sm:$0xfc]
    %v3064 = vld [vmem:[%s1889 + $0x2b0] sm:$0xff]
    %v3065 = vld [vmem:[%s1889 + $0x2b8] sm:$0xff]
    %v3066 = vld [vmem:[%s1889 + $0x2c0] sm:$0xfc]
    %v3067 = vld [vmem:[%s1889 + $0x2c8] sm:$0xfc]
    %v3068 = vld [vmem:[%s1889 + $0x2d0] sm:$0xff]
    %v3069 = vld [vmem:[%s1889 + $0x2d8] sm:$0xff]
    %v3070 = vld [vmem:[%s1889 + $0x2e0] sm:$0xfc]
    %v3071 = vld [vmem:[%s1889 + $0x2e8] sm:$0xfc]
    %v3072 = vld [vmem:[%s1889 + $0x2f0] sm:$0xff]
    %v3073 = vld [vmem:[%s1889 + $0x2f8] sm:$0xff]
    %v3074 = vld [vmem:[%s1889 + $0x300] sm:$0xfc]
    %v3075 = vld [vmem:[%s1889 + $0x308] sm:$0xfc]
    %v3076 = vld [vmem:[%s1889 + $0x310] sm:$0xff]
    %v3077 = vld [vmem:[%s1889 + $0x318] sm:$0xff]
    %v3078 = vld [vmem:[%s1889 + $0x320] sm:$0xfc]
    %v3079 = vld [vmem:[%s1889 + $0x328] sm:$0xfc]
    %v3080 = vld [vmem:[%s1889 + $0x330] sm:$0xff]
    %v3081 = vld [vmem:[%s1889 + $0x338] sm:$0xff]
    %v3082 = vld [vmem:[%s1889 + $0x340] sm:$0xfc]
    %v3083 = vld [vmem:[%s1889 + $0x348] sm:$0xfc]
    %v3084 = vld [vmem:[%s1889 + $0x350] sm:$0xff]
    %v3085 = vld [vmem:[%s1889 + $0x358] sm:$0xff]
    %v3086 = vld [vmem:[%s1889 + $0x360] sm:$0xfc]
    %v3087 = vld [vmem:[%s1889 + $0x368] sm:$0xfc]
    %v3088 = vld [vmem:[%s1889 + $0x370] sm:$0xff]
    %v3089 = vld [vmem:[%s1889 + $0x378] sm:$0xff]
    %v3090 = vld [vmem:[%s1889 + $0x380] sm:$0xfc]
    %v3091 = vld [vmem:[%s1889 + $0x388] sm:$0xfc]
    %v3092 = vld [vmem:[%s1889 + $0x390] sm:$0xff]
    %v3093 = vld [vmem:[%s1889 + $0x398] sm:$0xff]
    %v3094 = vld [vmem:[%s1889 + $0x3a0] sm:$0xfc]
    %v3095 = vld [vmem:[%s1889 + $0x3a8] sm:$0xfc]
    %v3096 = vld [vmem:[%s1889 + $0x3b0] sm:$0xff]
    %v3097 = vld [vmem:[%s1889 + $0x3b8] sm:$0xff]
    %v3098 = vlaneseq
    %v3099 = vshrl.u32 %v3098, 7
    %v3100 = vsub.s32 5, %v3099
    %v3101 = vrot.slane %v39, %v3100
    %v3102 = vlaneseq
    %v3103 = vshrl.u32 %v3102, 7
    %v3104 = vsub.s32 5, %v3103
    %v3105 = vrot.slane %v40, %v3104
    %v3106 = vlaneseq
    %v3107 = vshrl.u32 %v3106, 7
    %v3108 = vsub.s32 5, %v3107
    %v3109 = vrot.slane %v43, %v3108
    %v3110 = vlaneseq
    %v3111 = vshrl.u32 %v3110, 7
    %v3112 = vsub.s32 5, %v3111
    %v3113 = vrot.slane %v44, %v3112
    %v3114 = vmul.f32 %v2986, %v3101
    %v3115 = vmul.f32 %v2987, %v3105
    %v3116 = vmul.f32 %v2988, %v3101
    %v3117 = vmul.f32 %v2989, %v3105
    %v3118 = vmul.f32 %v2990, %v3101
    %v3119 = vmul.f32 %v2991, %v3105
    %v3120 = vmul.f32 %v2992, %v3101
    %v3121 = vmul.f32 %v2993, %v3105
    %v3122 = vmul.f32 %v2994, %v3101
    %v3123 = vmul.f32 %v2995, %v3105
    %v3124 = vmul.f32 %v2996, %v3101
    %v3125 = vmul.f32 %v2997, %v3105
    %v3126 = vmul.f32 %v2998, %v3101
    %v3127 = vmul.f32 %v2999, %v3105
    %v3128 = vmul.f32 %v3000, %v3101
    %v3129 = vmul.f32 %v3001, %v3105
    %v3130 = vmul.f32 %v3002, %v3101
    %v3131 = vmul.f32 %v3003, %v3105
    %v3132 = vmul.f32 %v3004, %v3101
    %v3133 = vmul.f32 %v3005, %v3105
    %v3134 = vmul.f32 %v3006, %v3101
    %v3135 = vmul.f32 %v3007, %v3105
    %v3136 = vmul.f32 %v3008, %v3101
    %v3137 = vmul.f32 %v3009, %v3105
    %v3138 = vmul.f32 %v3010, %v3101
    %v3139 = vmul.f32 %v3011, %v3105
    %v3140 = vmul.f32 %v3012, %v3101
    %v3141 = vmul.f32 %v3013, %v3105
    %v3142 = vmul.f32 %v3014, %v3101
    %v3143 = vmul.f32 %v3015, %v3105
    %v3144 = vmul.f32 %v3016, %v3101
    %v3145 = vmul.f32 %v3017, %v3105
    %v3146 = vmul.f32 %v3018, %v3101
    %v3147 = vmul.f32 %v3019, %v3105
    %v3148 = vmul.f32 %v3020, %v3101
    %v3149 = vmul.f32 %v3021, %v3105
    %v3150 = vmul.f32 %v3022, %v3101
    %v3151 = vmul.f32 %v3023, %v3105
    %v3152 = vmul.f32 %v3024, %v3101
    %v3153 = vmul.f32 %v3025, %v3105
    %v3154 = vmul.f32 %v3026, %v3101
    %v3155 = vmul.f32 %v3027, %v3105
    %v3156 = vmul.f32 %v3028, %v3101
    %v3157 = vmul.f32 %v3029, %v3105
    %v3158 = vmul.f32 %v3030, %v3101
    %v3159 = vmul.f32 %v3031, %v3105
    %v3160 = vmul.f32 %v3032, %v3101
    %v3161 = vmul.f32 %v3033, %v3105
    %v3162 = vmul.f32 %v3034, %v3101
    %v3163 = vmul.f32 %v3035, %v3105
    %v3164 = vmul.f32 %v3036, %v3101
    %v3165 = vmul.f32 %v3037, %v3105
    %v3166 = vmul.f32 %v3038, %v3101
    %v3167 = vmul.f32 %v3039, %v3105
    %v3168 = vmul.f32 %v3040, %v3101
    %v3169 = vmul.f32 %v3041, %v3105
    %v3170 = vmul.f32 %v3042, %v3109
    %v3171 = vmul.f32 %v3043, %v3113
    %v3172 = vmul.f32 %v3044, %v3109
    %v3173 = vmul.f32 %v3045, %v3113
    %v3174 = vmul.f32 %v3046, %v3109
    %v3175 = vmul.f32 %v3047, %v3113
    %v3176 = vmul.f32 %v3048, %v3109
    %v3177 = vmul.f32 %v3049, %v3113
    %v3178 = vmul.f32 %v3050, %v3109
    %v3179 = vmul.f32 %v3051, %v3113
    %v3180 = vmul.f32 %v3052, %v3109
    %v3181 = vmul.f32 %v3053, %v3113
    %v3182 = vmul.f32 %v3054, %v3109
    %v3183 = vmul.f32 %v3055, %v3113
    %v3184 = vmul.f32 %v3056, %v3109
    %v3185 = vmul.f32 %v3057, %v3113
    %v3186 = vmul.f32 %v3058, %v3109
    %v3187 = vmul.f32 %v3059, %v3113
    %v3188 = vmul.f32 %v3060, %v3109
    %v3189 = vmul.f32 %v3061, %v3113
    %v3190 = vmul.f32 %v3062, %v3109
    %v3191 = vmul.f32 %v3063, %v3113
    %v3192 = vmul.f32 %v3064, %v3109
    %v3193 = vmul.f32 %v3065, %v3113
    %v3194 = vmul.f32 %v3066, %v3109
    %v3195 = vmul.f32 %v3067, %v3113
    %v3196 = vmul.f32 %v3068, %v3109
    %v3197 = vmul.f32 %v3069, %v3113
    %v3198 = vmul.f32 %v3070, %v3109
    %v3199 = vmul.f32 %v3071, %v3113
    %v3200 = vmul.f32 %v3072, %v3109
    %v3201 = vmul.f32 %v3073, %v3113
    %v3202 = vmul.f32 %v3074, %v3109
    %v3203 = vmul.f32 %v3075, %v3113
    %v3204 = vmul.f32 %v3076, %v3109
    %v3205 = vmul.f32 %v3077, %v3113
    %v3206 = vmul.f32 %v3078, %v3109
    %v3207 = vmul.f32 %v3079, %v3113
    %v3208 = vmul.f32 %v3080, %v3109
    %v3209 = vmul.f32 %v3081, %v3113
    %v3210 = vmul.f32 %v3082, %v3109
    %v3211 = vmul.f32 %v3083, %v3113
    %v3212 = vmul.f32 %v3084, %v3109
    %v3213 = vmul.f32 %v3085, %v3113
    %v3214 = vmul.f32 %v3086, %v3109
    %v3215 = vmul.f32 %v3087, %v3113
    %v3216 = vmul.f32 %v3088, %v3109
    %v3217 = vmul.f32 %v3089, %v3113
    %v3218 = vmul.f32 %v3090, %v3109
    %v3219 = vmul.f32 %v3091, %v3113
    %v3220 = vmul.f32 %v3092, %v3109
    %v3221 = vmul.f32 %v3093, %v3113
    %v3222 = vmul.f32 %v3094, %v3109
    %v3223 = vmul.f32 %v3095, %v3113
    %v3224 = vmul.f32 %v3096, %v3109
    %v3225 = vmul.f32 %v3097, %v3113
    %v3338 = vrot.slane %v3114, 2
    %v3339 = vrot.slane %v3116, 2
    %v3340 = vsel %vm1496, %v3338, %v3339
    %v3341 = vrot.slane %v3115, 2
    %v3342 = vrot.slane %v3117, 2
    %v3343 = vsel %vm1496, %v3341, %v3342
    %v3344 = vrot.slane %v3118, 2
    %v3345 = vrot.slane %v3120, 2
    %v3346 = vsel %vm1496, %v3344, %v3345
    %v3347 = vrot.slane %v3119, 2
    %v3348 = vrot.slane %v3121, 2
    %v3349 = vsel %vm1496, %v3347, %v3348
    %v3350 = vrot.slane %v3122, 2
    %v3351 = vrot.slane %v3124, 2
    %v3352 = vsel %vm1496, %v3350, %v3351
    %v3353 = vrot.slane %v3123, 2
    %v3354 = vrot.slane %v3125, 2
    %v3355 = vsel %vm1496, %v3353, %v3354
    %v3356 = vrot.slane %v3126, 2
    %v3357 = vrot.slane %v3128, 2
    %v3358 = vsel %vm1496, %v3356, %v3357
    %v3359 = vrot.slane %v3127, 2
    %v3360 = vrot.slane %v3129, 2
    %v3361 = vsel %vm1496, %v3359, %v3360
    %v3362 = vrot.slane %v3130, 2
    %v3363 = vrot.slane %v3132, 2
    %v3364 = vsel %vm1496, %v3362, %v3363
    %v3365 = vrot.slane %v3131, 2
    %v3366 = vrot.slane %v3133, 2
    %v3367 = vsel %vm1496, %v3365, %v3366
    %v3368 = vrot.slane %v3134, 2
    %v3369 = vrot.slane %v3136, 2
    %v3370 = vsel %vm1496, %v3368, %v3369
    %v3371 = vrot.slane %v3135, 2
    %v3372 = vrot.slane %v3137, 2
    %v3373 = vsel %vm1496, %v3371, %v3372
    %v3374 = vrot.slane %v3138, 2
    %v3375 = vrot.slane %v3140, 2
    %v3376 = vsel %vm1496, %v3374, %v3375
    %v3377 = vrot.slane %v3139, 2
    %v3378 = vrot.slane %v3141, 2
    %v3379 = vsel %vm1496, %v3377, %v3378
    %v3380 = vrot.slane %v3142, 2
    %v3381 = vrot.slane %v3144, 2
    %v3382 = vsel %vm1496, %v3380, %v3381
    %v3383 = vrot.slane %v3143, 2
    %v3384 = vrot.slane %v3145, 2
    %v3385 = vsel %vm1496, %v3383, %v3384
    %v3386 = vrot.slane %v3146, 2
    %v3387 = vrot.slane %v3148, 2
    %v3388 = vsel %vm1496, %v3386, %v3387
    %v3389 = vrot.slane %v3147, 2
    %v3390 = vrot.slane %v3149, 2
    %v3391 = vsel %vm1496, %v3389, %v3390
    %v3392 = vrot.slane %v3150, 2
    %v3393 = vrot.slane %v3152, 2
    %v3394 = vsel %vm1496, %v3392, %v3393
    %v3395 = vrot.slane %v3151, 2
    %v3396 = vrot.slane %v3153, 2
    %v3397 = vsel %vm1496, %v3395, %v3396
    %v3398 = vrot.slane %v3154, 2
    %v3399 = vrot.slane %v3156, 2
    %v3400 = vsel %vm1496, %v3398, %v3399
    %v3401 = vrot.slane %v3155, 2
    %v3402 = vrot.slane %v3157, 2
    %v3403 = vsel %vm1496, %v3401, %v3402
    %v3404 = vrot.slane %v3158, 2
    %v3405 = vrot.slane %v3160, 2
    %v3406 = vsel %vm1496, %v3404, %v3405
    %v3407 = vrot.slane %v3159, 2
    %v3408 = vrot.slane %v3161, 2
    %v3409 = vsel %vm1496, %v3407, %v3408
    %v3410 = vrot.slane %v3162, 2
    %v3411 = vrot.slane %v3164, 2
    %v3412 = vsel %vm1496, %v3410, %v3411
    %v3413 = vrot.slane %v3163, 2
    %v3414 = vrot.slane %v3165, 2
    %v3415 = vsel %vm1496, %v3413, %v3414
    %v3416 = vrot.slane %v3166, 2
    %v3417 = vrot.slane %v3168, 2
    %v3418 = vsel %vm1496, %v3416, %v3417
    %v3419 = vrot.slane %v3167, 2
    %v3420 = vrot.slane %v3169, 2
    %v3421 = vsel %vm1496, %v3419, %v3420
    %v3422 = vrot.slane %v3170, 2
    %v3423 = vrot.slane %v3172, 2
    %v3424 = vsel %vm1496, %v3422, %v3423
    %v3425 = vrot.slane %v3171, 2
    %v3426 = vrot.slane %v3173, 2
    %v3427 = vsel %vm1496, %v3425, %v3426
    %v3428 = vrot.slane %v3174, 2
    %v3429 = vrot.slane %v3176, 2
    %v3430 = vsel %vm1496, %v3428, %v3429
    %v3431 = vrot.slane %v3175, 2
    %v3432 = vrot.slane %v3177, 2
    %v3433 = vsel %vm1496, %v3431, %v3432
    %v3434 = vrot.slane %v3178, 2
    %v3435 = vrot.slane %v3180, 2
    %v3436 = vsel %vm1496, %v3434, %v3435
    %v3437 = vrot.slane %v3179, 2
    %v3438 = vrot.slane %v3181, 2
    %v3439 = vsel %vm1496, %v3437, %v3438
    %v3440 = vrot.slane %v3182, 2
    %v3441 = vrot.slane %v3184, 2
    %v3442 = vsel %vm1496, %v3440, %v3441
    %v3443 = vrot.slane %v3183, 2
    %v3444 = vrot.slane %v3185, 2
    %v3445 = vsel %vm1496, %v3443, %v3444
    %v3446 = vrot.slane %v3186, 2
    %v3447 = vrot.slane %v3188, 2
    %v3448 = vsel %vm1496, %v3446, %v3447
    %v3449 = vrot.slane %v3187, 2
    %v3450 = vrot.slane %v3189, 2
    %v3451 = vsel %vm1496, %v3449, %v3450
    %v3452 = vrot.slane %v3190, 2
    %v3453 = vrot.slane %v3192, 2
    %v3454 = vsel %vm1496, %v3452, %v3453
    %v3455 = vrot.slane %v3191, 2
    %v3456 = vrot.slane %v3193, 2
    %v3457 = vsel %vm1496, %v3455, %v3456
    %v3458 = vrot.slane %v3194, 2
    %v3459 = vrot.slane %v3196, 2
    %v3460 = vsel %vm1496, %v3458, %v3459
    %v3461 = vrot.slane %v3195, 2
    %v3462 = vrot.slane %v3197, 2
    %v3463 = vsel %vm1496, %v3461, %v3462
    %v3464 = vrot.slane %v3198, 2
    %v3465 = vrot.slane %v3200, 2
    %v3466 = vsel %vm1496, %v3464, %v3465
    %v3467 = vrot.slane %v3199, 2
    %v3468 = vrot.slane %v3201, 2
    %v3469 = vsel %vm1496, %v3467, %v3468
    %v3470 = vrot.slane %v3202, 2
    %v3471 = vrot.slane %v3204, 2
    %v3472 = vsel %vm1496, %v3470, %v3471
    %v3473 = vrot.slane %v3203, 2
    %v3474 = vrot.slane %v3205, 2
    %v3475 = vsel %vm1496, %v3473, %v3474
    %v3476 = vrot.slane %v3206, 2
    %v3477 = vrot.slane %v3208, 2
    %v3478 = vsel %vm1496, %v3476, %v3477
    %v3479 = vrot.slane %v3207, 2
    %v3480 = vrot.slane %v3209, 2
    %v3481 = vsel %vm1496, %v3479, %v3480
    %v3482 = vrot.slane %v3210, 2
    %v3483 = vrot.slane %v3212, 2
    %v3484 = vsel %vm1496, %v3482, %v3483
    %v3485 = vrot.slane %v3211, 2
    %v3486 = vrot.slane %v3213, 2
    %v3487 = vsel %vm1496, %v3485, %v3486
    %v3488 = vrot.slane %v3214, 2
    %v3489 = vrot.slane %v3216, 2
    %v3490 = vsel %vm1496, %v3488, %v3489
    %v3491 = vrot.slane %v3215, 2
    %v3492 = vrot.slane %v3217, 2
    %v3493 = vsel %vm1496, %v3491, %v3492
    %v3494 = vrot.slane %v3218, 2
    %v3495 = vrot.slane %v3220, 2
    %v3496 = vsel %vm1496, %v3494, %v3495
    %v3497 = vrot.slane %v3219, 2
    %v3498 = vrot.slane %v3221, 2
    %v3499 = vsel %vm1496, %v3497, %v3498
    %v3500 = vrot.slane %v3222, 2
    %v3501 = vrot.slane %v3224, 2
    %v3502 = vsel %vm1496, %v3500, %v3501
    %v3503 = vrot.slane %v3223, 2
    %v3504 = vrot.slane %v3225, 2
    %v3505 = vsel %vm1496, %v3503, %v3504
    %v3618 = vadd.f32 %v2874, %v3340
    %v3619 = vadd.f32 %v2875, %v3343
    %v3620 = vadd.f32 %v2876, %v3339
    %v3621 = vadd.f32 %v2877, %v3342
    %v3622 = vadd.f32 %v2878, %v3346
    %v3623 = vadd.f32 %v2879, %v3349
    %v3624 = vadd.f32 %v2880, %v3345
    %v3625 = vadd.f32 %v2881, %v3348
    %v3626 = vadd.f32 %v2882, %v3352
    %v3627 = vadd.f32 %v2883, %v3355
    %v3628 = vadd.f32 %v2884, %v3351
    %v3629 = vadd.f32 %v2885, %v3354
    %v3630 = vadd.f32 %v2886, %v3358
    %v3631 = vadd.f32 %v2887, %v3361
    %v3632 = vadd.f32 %v2888, %v3357
    %v3633 = vadd.f32 %v2889, %v3360
    %v3634 = vadd.f32 %v2890, %v3364
    %v3635 = vadd.f32 %v2891, %v3367
    %v3636 = vadd.f32 %v2892, %v3363
    %v3637 = vadd.f32 %v2893, %v3366
    %v3638 = vadd.f32 %v2894, %v3370
    %v3639 = vadd.f32 %v2895, %v3373
    %v3640 = vadd.f32 %v2896, %v3369
    %v3641 = vadd.f32 %v2897, %v3372
    %v3642 = vadd.f32 %v2898, %v3376
    %v3643 = vadd.f32 %v2899, %v3379
    %v3644 = vadd.f32 %v2900, %v3375
    %v3645 = vadd.f32 %v2901, %v3378
    %v3646 = vadd.f32 %v2902, %v3382
    %v3647 = vadd.f32 %v2903, %v3385
    %v3648 = vadd.f32 %v2904, %v3381
    %v3649 = vadd.f32 %v2905, %v3384
    %v3650 = vadd.f32 %v2906, %v3388
    %v3651 = vadd.f32 %v2907, %v3391
    %v3652 = vadd.f32 %v2908, %v3387
    %v3653 = vadd.f32 %v2909, %v3390
    %v3654 = vadd.f32 %v2910, %v3394
    %v3655 = vadd.f32 %v2911, %v3397
    %v3656 = vadd.f32 %v2912, %v3393
    %v3657 = vadd.f32 %v2913, %v3396
    %v3658 = vadd.f32 %v2914, %v3400
    %v3659 = vadd.f32 %v2915, %v3403
    %v3660 = vadd.f32 %v2916, %v3399
    %v3661 = vadd.f32 %v2917, %v3402
    %v3662 = vadd.f32 %v2918, %v3406
    %v3663 = vadd.f32 %v2919, %v3409
    %v3664 = vadd.f32 %v2920, %v3405
    %v3665 = vadd.f32 %v2921, %v3408
    %v3666 = vadd.f32 %v2922, %v3412
    %v3667 = vadd.f32 %v2923, %v3415
    %v3668 = vadd.f32 %v2924, %v3411
    %v3669 = vadd.f32 %v2925, %v3414
    %v3670 = vadd.f32 %v2926, %v3418
    %v3671 = vadd.f32 %v2927, %v3421
    %v3672 = vadd.f32 %v2928, %v3417
    %v3673 = vadd.f32 %v2929, %v3420
    %v3674 = vadd.f32 %v2930, %v3424
    %v3675 = vadd.f32 %v2931, %v3427
    %v3676 = vadd.f32 %v2932, %v3423
    %v3677 = vadd.f32 %v2933, %v3426
    %v3678 = vadd.f32 %v2934, %v3430
    %v3679 = vadd.f32 %v2935, %v3433
    %v3680 = vadd.f32 %v2936, %v3429
    %v3681 = vadd.f32 %v2937, %v3432
    %v3682 = vadd.f32 %v2938, %v3436
    %v3683 = vadd.f32 %v2939, %v3439
    %v3684 = vadd.f32 %v2940, %v3435
    %v3685 = vadd.f32 %v2941, %v3438
    %v3686 = vadd.f32 %v2942, %v3442
    %v3687 = vadd.f32 %v2943, %v3445
    %v3688 = vadd.f32 %v2944, %v3441
    %v3689 = vadd.f32 %v2945, %v3444
    %v3690 = vadd.f32 %v2946, %v3448
    %v3691 = vadd.f32 %v2947, %v3451
    %v3692 = vadd.f32 %v2948, %v3447
    %v3693 = vadd.f32 %v2949, %v3450
    %v3694 = vadd.f32 %v2950, %v3454
    %v3695 = vadd.f32 %v2951, %v3457
    %v3696 = vadd.f32 %v2952, %v3453
    %v3697 = vadd.f32 %v2953, %v3456
    %v3698 = vadd.f32 %v2954, %v3460
    %v3699 = vadd.f32 %v2955, %v3463
    %v3700 = vadd.f32 %v2956, %v3459
    %v3701 = vadd.f32 %v2957, %v3462
    %v3702 = vadd.f32 %v2958, %v3466
    %v3703 = vadd.f32 %v2959, %v3469
    %v3704 = vadd.f32 %v2960, %v3465
    %v3705 = vadd.f32 %v2961, %v3468
    %v3706 = vadd.f32 %v2962, %v3472
    %v3707 = vadd.f32 %v2963, %v3475
    %v3708 = vadd.f32 %v2964, %v3471
    %v3709 = vadd.f32 %v2965, %v3474
    %v3710 = vadd.f32 %v2966, %v3478
    %v3711 = vadd.f32 %v2967, %v3481
    %v3712 = vadd.f32 %v2968, %v3477
    %v3713 = vadd.f32 %v2969, %v3480
    %v3714 = vadd.f32 %v2970, %v3484
    %v3715 = vadd.f32 %v2971, %v3487
    %v3716 = vadd.f32 %v2972, %v3483
    %v3717 = vadd.f32 %v2973, %v3486
    %v3718 = vadd.f32 %v2974, %v3490
    %v3719 = vadd.f32 %v2975, %v3493
    %v3720 = vadd.f32 %v2976, %v3489
    %v3721 = vadd.f32 %v2977, %v3492
    %v3722 = vadd.f32 %v2978, %v3496
    %v3723 = vadd.f32 %v2979, %v3499
    %v3724 = vadd.f32 %v2980, %v3495
    %v3725 = vadd.f32 %v2981, %v3498
    %v3726 = vadd.f32 %v2982, %v3502
    %v3727 = vadd.f32 %v2983, %v3505
    %v3728 = vadd.f32 %v2984, %v3501
    %v3729 = vadd.f32 %v2985, %v3504
    %s3730 = scalar_lea.vmem %s0, 64
    %v3731 = vld [vmem:[%s3730] sm:$0xff]
    %v3732 = vld [vmem:[%s3730 + $0x8] sm:$0xff]
    %v3733 = vld [vmem:[%s3730 + $0x10] sm:$0x3f]
    %v3734 = vld [vmem:[%s3730 + $0x18] sm:$0x3f]
    %v3735 = vld [vmem:[%s3730 + $0x20] sm:$0xff]
    %v3736 = vld [vmem:[%s3730 + $0x28] sm:$0xff]
    %v3737 = vld [vmem:[%s3730 + $0x30] sm:$0x3f]
    %v3738 = vld [vmem:[%s3730 + $0x38] sm:$0x3f]
    %v3739 = vld [vmem:[%s3730 + $0x40] sm:$0xff]
    %v3740 = vld [vmem:[%s3730 + $0x48] sm:$0xff]
    %v3741 = vld [vmem:[%s3730 + $0x50] sm:$0x3f]
    %v3742 = vld [vmem:[%s3730 + $0x58] sm:$0x3f]
    %v3743 = vld [vmem:[%s3730 + $0x60] sm:$0xff]
    %v3744 = vld [vmem:[%s3730 + $0x68] sm:$0xff]
    %v3745 = vld [vmem:[%s3730 + $0x70] sm:$0x3f]
    %v3746 = vld [vmem:[%s3730 + $0x78] sm:$0x3f]
    %v3747 = vld [vmem:[%s3730 + $0x80] sm:$0xff]
    %v3748 = vld [vmem:[%s3730 + $0x88] sm:$0xff]
    %v3749 = vld [vmem:[%s3730 + $0x90] sm:$0x3f]
    %v3750 = vld [vmem:[%s3730 + $0x98] sm:$0x3f]
    %v3751 = vld [vmem:[%s3730 + $0xa0] sm:$0xff]
    %v3752 = vld [vmem:[%s3730 + $0xa8] sm:$0xff]
    %v3753 = vld [vmem:[%s3730 + $0xb0] sm:$0x3f]
    %v3754 = vld [vmem:[%s3730 + $0xb8] sm:$0x3f]
    %v3755 = vld [vmem:[%s3730 + $0xc0] sm:$0xff]
    %v3756 = vld [vmem:[%s3730 + $0xc8] sm:$0xff]
    %v3757 = vld [vmem:[%s3730 + $0xd0] sm:$0x3f]
    %v3758 = vld [vmem:[%s3730 + $0xd8] sm:$0x3f]
    %v3759 = vld [vmem:[%s3730 + $0xe0] sm:$0xff]
    %v3760 = vld [vmem:[%s3730 + $0xe8] sm:$0xff]
    %v3761 = vld [vmem:[%s3730 + $0xf0] sm:$0x3f]
    %v3762 = vld [vmem:[%s3730 + $0xf8] sm:$0x3f]
    %v3763 = vld [vmem:[%s3730 + $0x100] sm:$0xff]
    %v3764 = vld [vmem:[%s3730 + $0x108] sm:$0xff]
    %v3765 = vld [vmem:[%s3730 + $0x110] sm:$0x3f]
    %v3766 = vld [vmem:[%s3730 + $0x118] sm:$0x3f]
    %v3767 = vld [vmem:[%s3730 + $0x120] sm:$0xff]
    %v3768 = vld [vmem:[%s3730 + $0x128] sm:$0xff]
    %v3769 = vld [vmem:[%s3730 + $0x130] sm:$0x3f]
    %v3770 = vld [vmem:[%s3730 + $0x138] sm:$0x3f]
    %v3771 = vld [vmem:[%s3730 + $0x140] sm:$0xff]
    %v3772 = vld [vmem:[%s3730 + $0x148] sm:$0xff]
    %v3773 = vld [vmem:[%s3730 + $0x150] sm:$0x3f]
    %v3774 = vld [vmem:[%s3730 + $0x158] sm:$0x3f]
    %v3775 = vld [vmem:[%s3730 + $0x160] sm:$0xff]
    %v3776 = vld [vmem:[%s3730 + $0x168] sm:$0xff]
    %v3777 = vld [vmem:[%s3730 + $0x170] sm:$0x3f]
    %v3778 = vld [vmem:[%s3730 + $0x178] sm:$0x3f]
    %v3779 = vld [vmem:[%s3730 + $0x180] sm:$0xff]
    %v3780 = vld [vmem:[%s3730 + $0x188] sm:$0xff]
    %v3781 = vld [vmem:[%s3730 + $0x190] sm:$0x3f]
    %v3782 = vld [vmem:[%s3730 + $0x198] sm:$0x3f]
    %v3783 = vld [vmem:[%s3730 + $0x1a0] sm:$0xff]
    %v3784 = vld [vmem:[%s3730 + $0x1a8] sm:$0xff]
    %v3785 = vld [vmem:[%s3730 + $0x1b0] sm:$0x3f]
    %v3786 = vld [vmem:[%s3730 + $0x1b8] sm:$0x3f]
    %v3787 = vld [vmem:[%s3730 + $0x200] sm:$0xff]
    %v3788 = vld [vmem:[%s3730 + $0x208] sm:$0xff]
    %v3789 = vld [vmem:[%s3730 + $0x210] sm:$0x3f]
    %v3790 = vld [vmem:[%s3730 + $0x218] sm:$0x3f]
    %v3791 = vld [vmem:[%s3730 + $0x220] sm:$0xff]
    %v3792 = vld [vmem:[%s3730 + $0x228] sm:$0xff]
    %v3793 = vld [vmem:[%s3730 + $0x230] sm:$0x3f]
    %v3794 = vld [vmem:[%s3730 + $0x238] sm:$0x3f]
    %v3795 = vld [vmem:[%s3730 + $0x240] sm:$0xff]
    %v3796 = vld [vmem:[%s3730 + $0x248] sm:$0xff]
    %v3797 = vld [vmem:[%s3730 + $0x250] sm:$0x3f]
    %v3798 = vld [vmem:[%s3730 + $0x258] sm:$0x3f]
    %v3799 = vld [vmem:[%s3730 + $0x260] sm:$0xff]
    %v3800 = vld [vmem:[%s3730 + $0x268] sm:$0xff]
    %v3801 = vld [vmem:[%s3730 + $0x270] sm:$0x3f]
    %v3802 = vld [vmem:[%s3730 + $0x278] sm:$0x3f]
    %v3803 = vld [vmem:[%s3730 + $0x280] sm:$0xff]
    %v3804 = vld [vmem:[%s3730 + $0x288] sm:$0xff]
    %v3805 = vld [vmem:[%s3730 + $0x290] sm:$0x3f]
    %v3806 = vld [vmem:[%s3730 + $0x298] sm:$0x3f]
    %v3807 = vld [vmem:[%s3730 + $0x2a0] sm:$0xff]
    %v3808 = vld [vmem:[%s3730 + $0x2a8] sm:$0xff]
    %v3809 = vld [vmem:[%s3730 + $0x2b0] sm:$0x3f]
    %v3810 = vld [vmem:[%s3730 + $0x2b8] sm:$0x3f]
    %v3811 = vld [vmem:[%s3730 + $0x2c0] sm:$0xff]
    %v3812 = vld [vmem:[%s3730 + $0x2c8] sm:$0xff]
    %v3813 = vld [vmem:[%s3730 + $0x2d0] sm:$0x3f]
    %v3814 = vld [vmem:[%s3730 + $0x2d8] sm:$0x3f]
    %v3815 = vld [vmem:[%s3730 + $0x2e0] sm:$0xff]
    %v3816 = vld [vmem:[%s3730 + $0x2e8] sm:$0xff]
    %v3817 = vld [vmem:[%s3730 + $0x2f0] sm:$0x3f]
    %v3818 = vld [vmem:[%s3730 + $0x2f8] sm:$0x3f]
    %v3819 = vld [vmem:[%s3730 + $0x300] sm:$0xff]
    %v3820 = vld [vmem:[%s3730 + $0x308] sm:$0xff]
    %v3821 = vld [vmem:[%s3730 + $0x310] sm:$0x3f]
    %v3822 = vld [vmem:[%s3730 + $0x318] sm:$0x3f]
    %v3823 = vld [vmem:[%s3730 + $0x320] sm:$0xff]
    %v3824 = vld [vmem:[%s3730 + $0x328] sm:$0xff]
    %v3825 = vld [vmem:[%s3730 + $0x330] sm:$0x3f]
    %v3826 = vld [vmem:[%s3730 + $0x338] sm:$0x3f]
    %v3827 = vld [vmem:[%s3730 + $0x340] sm:$0xff]
    %v3828 = vld [vmem:[%s3730 + $0x348] sm:$0xff]
    %v3829 = vld [vmem:[%s3730 + $0x350] sm:$0x3f]
    %v3830 = vld [vmem:[%s3730 + $0x358] sm:$0x3f]
    %v3831 = vld [vmem:[%s3730 + $0x360] sm:$0xff]
    %v3832 = vld [vmem:[%s3730 + $0x368] sm:$0xff]
    %v3833 = vld [vmem:[%s3730 + $0x370] sm:$0x3f]
    %v3834 = vld [vmem:[%s3730 + $0x378] sm:$0x3f]
    %v3835 = vld [vmem:[%s3730 + $0x380] sm:$0xff]
    %v3836 = vld [vmem:[%s3730 + $0x388] sm:$0xff]
    %v3837 = vld [vmem:[%s3730 + $0x390] sm:$0x3f]
    %v3838 = vld [vmem:[%s3730 + $0x398] sm:$0x3f]
    %v3839 = vld [vmem:[%s3730 + $0x3a0] sm:$0xff]
    %v3840 = vld [vmem:[%s3730 + $0x3a8] sm:$0xff]
    %v3841 = vld [vmem:[%s3730 + $0x3b0] sm:$0x3f]
    %v3842 = vld [vmem:[%s3730 + $0x3b8] sm:$0x3f]
    %v3843 = vlaneseq
    %v3844 = vshrl.u32 %v3843, 7
    %v3845 = vsub.s32 6, %v3844
    %v3846 = vrot.slane %v39, %v3845
    %v3847 = vlaneseq
    %v3848 = vshrl.u32 %v3847, 7
    %v3849 = vsub.s32 6, %v3848
    %v3850 = vrot.slane %v40, %v3849
    %v3851 = vlaneseq
    %v3852 = vshrl.u32 %v3851, 7
    %v3853 = vsub.s32 6, %v3852
    %v3854 = vrot.slane %v43, %v3853
    %v3855 = vlaneseq
    %v3856 = vshrl.u32 %v3855, 7
    %v3857 = vsub.s32 6, %v3856
    %v3858 = vrot.slane %v44, %v3857
    %v3859 = vmul.f32 %v3731, %v3846
    %v3860 = vmul.f32 %v3732, %v3850
    %v3861 = vmul.f32 %v3733, %v3846
    %v3862 = vmul.f32 %v3734, %v3850
    %v3863 = vmul.f32 %v3735, %v3846
    %v3864 = vmul.f32 %v3736, %v3850
    %v3865 = vmul.f32 %v3737, %v3846
    %v3866 = vmul.f32 %v3738, %v3850
    %v3867 = vmul.f32 %v3739, %v3846
    %v3868 = vmul.f32 %v3740, %v3850
    %v3869 = vmul.f32 %v3741, %v3846
    %v3870 = vmul.f32 %v3742, %v3850
    %v3871 = vmul.f32 %v3743, %v3846
    %v3872 = vmul.f32 %v3744, %v3850
    %v3873 = vmul.f32 %v3745, %v3846
    %v3874 = vmul.f32 %v3746, %v3850
    %v3875 = vmul.f32 %v3747, %v3846
    %v3876 = vmul.f32 %v3748, %v3850
    %v3877 = vmul.f32 %v3749, %v3846
    %v3878 = vmul.f32 %v3750, %v3850
    %v3879 = vmul.f32 %v3751, %v3846
    %v3880 = vmul.f32 %v3752, %v3850
    %v3881 = vmul.f32 %v3753, %v3846
    %v3882 = vmul.f32 %v3754, %v3850
    %v3883 = vmul.f32 %v3755, %v3846
    %v3884 = vmul.f32 %v3756, %v3850
    %v3885 = vmul.f32 %v3757, %v3846
    %v3886 = vmul.f32 %v3758, %v3850
    %v3887 = vmul.f32 %v3759, %v3846
    %v3888 = vmul.f32 %v3760, %v3850
    %v3889 = vmul.f32 %v3761, %v3846
    %v3890 = vmul.f32 %v3762, %v3850
    %v3891 = vmul.f32 %v3763, %v3846
    %v3892 = vmul.f32 %v3764, %v3850
    %v3893 = vmul.f32 %v3765, %v3846
    %v3894 = vmul.f32 %v3766, %v3850
    %v3895 = vmul.f32 %v3767, %v3846
    %v3896 = vmul.f32 %v3768, %v3850
    %v3897 = vmul.f32 %v3769, %v3846
    %v3898 = vmul.f32 %v3770, %v3850
    %v3899 = vmul.f32 %v3771, %v3846
    %v3900 = vmul.f32 %v3772, %v3850
    %v3901 = vmul.f32 %v3773, %v3846
    %v3902 = vmul.f32 %v3774, %v3850
    %v3903 = vmul.f32 %v3775, %v3846
    %v3904 = vmul.f32 %v3776, %v3850
    %v3905 = vmul.f32 %v3777, %v3846
    %v3906 = vmul.f32 %v3778, %v3850
    %v3907 = vmul.f32 %v3779, %v3846
    %v3908 = vmul.f32 %v3780, %v3850
    %v3909 = vmul.f32 %v3781, %v3846
    %v3910 = vmul.f32 %v3782, %v3850
    %v3911 = vmul.f32 %v3783, %v3846
    %v3912 = vmul.f32 %v3784, %v3850
    %v3913 = vmul.f32 %v3785, %v3846
    %v3914 = vmul.f32 %v3786, %v3850
    %v3915 = vmul.f32 %v3787, %v3854
    %v3916 = vmul.f32 %v3788, %v3858
    %v3917 = vmul.f32 %v3789, %v3854
    %v3918 = vmul.f32 %v3790, %v3858
    %v3919 = vmul.f32 %v3791, %v3854
    %v3920 = vmul.f32 %v3792, %v3858
    %v3921 = vmul.f32 %v3793, %v3854
    %v3922 = vmul.f32 %v3794, %v3858
    %v3923 = vmul.f32 %v3795, %v3854
    %v3924 = vmul.f32 %v3796, %v3858
    %v3925 = vmul.f32 %v3797, %v3854
    %v3926 = vmul.f32 %v3798, %v3858
    %v3927 = vmul.f32 %v3799, %v3854
    %v3928 = vmul.f32 %v3800, %v3858
    %v3929 = vmul.f32 %v3801, %v3854
    %v3930 = vmul.f32 %v3802, %v3858
    %v3931 = vmul.f32 %v3803, %v3854
    %v3932 = vmul.f32 %v3804, %v3858
    %v3933 = vmul.f32 %v3805, %v3854
    %v3934 = vmul.f32 %v3806, %v3858
    %v3935 = vmul.f32 %v3807, %v3854
    %v3936 = vmul.f32 %v3808, %v3858
    %v3937 = vmul.f32 %v3809, %v3854
    %v3938 = vmul.f32 %v3810, %v3858
    %v3939 = vmul.f32 %v3811, %v3854
    %v3940 = vmul.f32 %v3812, %v3858
    %v3941 = vmul.f32 %v3813, %v3854
    %v3942 = vmul.f32 %v3814, %v3858
    %v3943 = vmul.f32 %v3815, %v3854
    %v3944 = vmul.f32 %v3816, %v3858
    %v3945 = vmul.f32 %v3817, %v3854
    %v3946 = vmul.f32 %v3818, %v3858
    %v3947 = vmul.f32 %v3819, %v3854
    %v3948 = vmul.f32 %v3820, %v3858
    %v3949 = vmul.f32 %v3821, %v3854
    %v3950 = vmul.f32 %v3822, %v3858
    %v3951 = vmul.f32 %v3823, %v3854
    %v3952 = vmul.f32 %v3824, %v3858
    %v3953 = vmul.f32 %v3825, %v3854
    %v3954 = vmul.f32 %v3826, %v3858
    %v3955 = vmul.f32 %v3827, %v3854
    %v3956 = vmul.f32 %v3828, %v3858
    %v3957 = vmul.f32 %v3829, %v3854
    %v3958 = vmul.f32 %v3830, %v3858
    %v3959 = vmul.f32 %v3831, %v3854
    %v3960 = vmul.f32 %v3832, %v3858
    %v3961 = vmul.f32 %v3833, %v3854
    %v3962 = vmul.f32 %v3834, %v3858
    %v3963 = vmul.f32 %v3835, %v3854
    %v3964 = vmul.f32 %v3836, %v3858
    %v3965 = vmul.f32 %v3837, %v3854
    %v3966 = vmul.f32 %v3838, %v3858
    %v3967 = vmul.f32 %v3839, %v3854
    %v3968 = vmul.f32 %v3840, %v3858
    %v3969 = vmul.f32 %v3841, %v3854
    %v3970 = vmul.f32 %v3842, %v3858
    %v3971 = vadd.f32 %v3618, %v3859
    %v3972 = vadd.f32 %v3619, %v3860
    %v3973 = vadd.f32 %v3620, %v3861
    %v3974 = vadd.f32 %v3621, %v3862
    %v3975 = vadd.f32 %v3622, %v3863
    %v3976 = vadd.f32 %v3623, %v3864
    %v3977 = vadd.f32 %v3624, %v3865
    %v3978 = vadd.f32 %v3625, %v3866
    %v3979 = vadd.f32 %v3626, %v3867
    %v3980 = vadd.f32 %v3627, %v3868
    %v3981 = vadd.f32 %v3628, %v3869
    %v3982 = vadd.f32 %v3629, %v3870
    %v3983 = vadd.f32 %v3630, %v3871
    %v3984 = vadd.f32 %v3631, %v3872
    %v3985 = vadd.f32 %v3632, %v3873
    %v3986 = vadd.f32 %v3633, %v3874
    %v3987 = vadd.f32 %v3634, %v3875
    %v3988 = vadd.f32 %v3635, %v3876
    %v3989 = vadd.f32 %v3636, %v3877
    %v3990 = vadd.f32 %v3637, %v3878
    %v3991 = vadd.f32 %v3638, %v3879
    %v3992 = vadd.f32 %v3639, %v3880
    %v3993 = vadd.f32 %v3640, %v3881
    %v3994 = vadd.f32 %v3641, %v3882
    %v3995 = vadd.f32 %v3642, %v3883
    %v3996 = vadd.f32 %v3643, %v3884
    %v3997 = vadd.f32 %v3644, %v3885
    %v3998 = vadd.f32 %v3645, %v3886
    %v3999 = vadd.f32 %v3646, %v3887
    %v4000 = vadd.f32 %v3647, %v3888
    %v4001 = vadd.f32 %v3648, %v3889
    %v4002 = vadd.f32 %v3649, %v3890
    %v4003 = vadd.f32 %v3650, %v3891
    %v4004 = vadd.f32 %v3651, %v3892
    %v4005 = vadd.f32 %v3652, %v3893
    %v4006 = vadd.f32 %v3653, %v3894
    %v4007 = vadd.f32 %v3654, %v3895
    %v4008 = vadd.f32 %v3655, %v3896
    %v4009 = vadd.f32 %v3656, %v3897
    %v4010 = vadd.f32 %v3657, %v3898
    %v4011 = vadd.f32 %v3658, %v3899
    %v4012 = vadd.f32 %v3659, %v3900
    %v4013 = vadd.f32 %v3660, %v3901
    %v4014 = vadd.f32 %v3661, %v3902
    %v4015 = vadd.f32 %v3662, %v3903
    %v4016 = vadd.f32 %v3663, %v3904
    %v4017 = vadd.f32 %v3664, %v3905
    %v4018 = vadd.f32 %v3665, %v3906
    %v4019 = vadd.f32 %v3666, %v3907
    %v4020 = vadd.f32 %v3667, %v3908
    %v4021 = vadd.f32 %v3668, %v3909
    %v4022 = vadd.f32 %v3669, %v3910
    %v4023 = vadd.f32 %v3670, %v3911
    %v4024 = vadd.f32 %v3671, %v3912
    %v4025 = vadd.f32 %v3672, %v3913
    %v4026 = vadd.f32 %v3673, %v3914
    %v4027 = vadd.f32 %v3674, %v3915
    %v4028 = vadd.f32 %v3675, %v3916
    %v4029 = vadd.f32 %v3676, %v3917
    %v4030 = vadd.f32 %v3677, %v3918
    %v4031 = vadd.f32 %v3678, %v3919
    %v4032 = vadd.f32 %v3679, %v3920
    %v4033 = vadd.f32 %v3680, %v3921
    %v4034 = vadd.f32 %v3681, %v3922
    %v4035 = vadd.f32 %v3682, %v3923
    %v4036 = vadd.f32 %v3683, %v3924
    %v4037 = vadd.f32 %v3684, %v3925
    %v4038 = vadd.f32 %v3685, %v3926
    %v4039 = vadd.f32 %v3686, %v3927
    %v4040 = vadd.f32 %v3687, %v3928
    %v4041 = vadd.f32 %v3688, %v3929
    %v4042 = vadd.f32 %v3689, %v3930
    %v4043 = vadd.f32 %v3690, %v3931
    %v4044 = vadd.f32 %v3691, %v3932
    %v4045 = vadd.f32 %v3692, %v3933
    %v4046 = vadd.f32 %v3693, %v3934
    %v4047 = vadd.f32 %v3694, %v3935
    %v4048 = vadd.f32 %v3695, %v3936
    %v4049 = vadd.f32 %v3696, %v3937
    %v4050 = vadd.f32 %v3697, %v3938
    %v4051 = vadd.f32 %v3698, %v3939
    %v4052 = vadd.f32 %v3699, %v3940
    %v4053 = vadd.f32 %v3700, %v3941
    %v4054 = vadd.f32 %v3701, %v3942
    %v4055 = vadd.f32 %v3702, %v3943
    %v4056 = vadd.f32 %v3703, %v3944
    %v4057 = vadd.f32 %v3704, %v3945
    %v4058 = vadd.f32 %v3705, %v3946
    %v4059 = vadd.f32 %v3706, %v3947
    %v4060 = vadd.f32 %v3707, %v3948
    %v4061 = vadd.f32 %v3708, %v3949
    %v4062 = vadd.f32 %v3709, %v3950
    %v4063 = vadd.f32 %v3710, %v3951
    %v4064 = vadd.f32 %v3711, %v3952
    %v4065 = vadd.f32 %v3712, %v3953
    %v4066 = vadd.f32 %v3713, %v3954
    %v4067 = vadd.f32 %v3714, %v3955
    %v4068 = vadd.f32 %v3715, %v3956
    %v4069 = vadd.f32 %v3716, %v3957
    %v4070 = vadd.f32 %v3717, %v3958
    %v4071 = vadd.f32 %v3718, %v3959
    %v4072 = vadd.f32 %v3719, %v3960
    %v4073 = vadd.f32 %v3720, %v3961
    %v4074 = vadd.f32 %v3721, %v3962
    %v4075 = vadd.f32 %v3722, %v3963
    %v4076 = vadd.f32 %v3723, %v3964
    %v4077 = vadd.f32 %v3724, %v3965
    %v4078 = vadd.f32 %v3725, %v3966
    %v4079 = vadd.f32 %v3726, %v3967
    %v4080 = vadd.f32 %v3727, %v3968
    %v4081 = vadd.f32 %v3728, %v3969
    %v4082 = vadd.f32 %v3729, %v3970
    %v4083 = vld [vmem:[%s3730] sm:$0xfe]
    %v4084 = vld [vmem:[%s3730 + $0x8] sm:$0xfe]
    %v4085 = vld [vmem:[%s3730 + $0x10] sm:$0x7f]
    %v4086 = vld [vmem:[%s3730 + $0x18] sm:$0x7f]
    %v4087 = vld [vmem:[%s3730 + $0x20] sm:$0xfe]
    %v4088 = vld [vmem:[%s3730 + $0x28] sm:$0xfe]
    %v4089 = vld [vmem:[%s3730 + $0x30] sm:$0x7f]
    %v4090 = vld [vmem:[%s3730 + $0x38] sm:$0x7f]
    %v4091 = vld [vmem:[%s3730 + $0x40] sm:$0xfe]
    %v4092 = vld [vmem:[%s3730 + $0x48] sm:$0xfe]
    %v4093 = vld [vmem:[%s3730 + $0x50] sm:$0x7f]
    %v4094 = vld [vmem:[%s3730 + $0x58] sm:$0x7f]
    %v4095 = vld [vmem:[%s3730 + $0x60] sm:$0xfe]
    %v4096 = vld [vmem:[%s3730 + $0x68] sm:$0xfe]
    %v4097 = vld [vmem:[%s3730 + $0x70] sm:$0x7f]
    %v4098 = vld [vmem:[%s3730 + $0x78] sm:$0x7f]
    %v4099 = vld [vmem:[%s3730 + $0x80] sm:$0xfe]
    %v4100 = vld [vmem:[%s3730 + $0x88] sm:$0xfe]
    %v4101 = vld [vmem:[%s3730 + $0x90] sm:$0x7f]
    %v4102 = vld [vmem:[%s3730 + $0x98] sm:$0x7f]
    %v4103 = vld [vmem:[%s3730 + $0xa0] sm:$0xfe]
    %v4104 = vld [vmem:[%s3730 + $0xa8] sm:$0xfe]
    %v4105 = vld [vmem:[%s3730 + $0xb0] sm:$0x7f]
    %v4106 = vld [vmem:[%s3730 + $0xb8] sm:$0x7f]
    %v4107 = vld [vmem:[%s3730 + $0xc0] sm:$0xfe]
    %v4108 = vld [vmem:[%s3730 + $0xc8] sm:$0xfe]
    %v4109 = vld [vmem:[%s3730 + $0xd0] sm:$0x7f]
    %v4110 = vld [vmem:[%s3730 + $0xd8] sm:$0x7f]
    %v4111 = vld [vmem:[%s3730 + $0xe0] sm:$0xfe]
    %v4112 = vld [vmem:[%s3730 + $0xe8] sm:$0xfe]
    %v4113 = vld [vmem:[%s3730 + $0xf0] sm:$0x7f]
    %v4114 = vld [vmem:[%s3730 + $0xf8] sm:$0x7f]
    %v4115 = vld [vmem:[%s3730 + $0x100] sm:$0xfe]
    %v4116 = vld [vmem:[%s3730 + $0x108] sm:$0xfe]
    %v4117 = vld [vmem:[%s3730 + $0x110] sm:$0x7f]
    %v4118 = vld [vmem:[%s3730 + $0x118] sm:$0x7f]
    %v4119 = vld [vmem:[%s3730 + $0x120] sm:$0xfe]
    %v4120 = vld [vmem:[%s3730 + $0x128] sm:$0xfe]
    %v4121 = vld [vmem:[%s3730 + $0x130] sm:$0x7f]
    %v4122 = vld [vmem:[%s3730 + $0x138] sm:$0x7f]
    %v4123 = vld [vmem:[%s3730 + $0x140] sm:$0xfe]
    %v4124 = vld [vmem:[%s3730 + $0x148] sm:$0xfe]
    %v4125 = vld [vmem:[%s3730 + $0x150] sm:$0x7f]
    %v4126 = vld [vmem:[%s3730 + $0x158] sm:$0x7f]
    %v4127 = vld [vmem:[%s3730 + $0x160] sm:$0xfe]
    %v4128 = vld [vmem:[%s3730 + $0x168] sm:$0xfe]
    %v4129 = vld [vmem:[%s3730 + $0x170] sm:$0x7f]
    %v4130 = vld [vmem:[%s3730 + $0x178] sm:$0x7f]
    %v4131 = vld [vmem:[%s3730 + $0x180] sm:$0xfe]
    %v4132 = vld [vmem:[%s3730 + $0x188] sm:$0xfe]
    %v4133 = vld [vmem:[%s3730 + $0x190] sm:$0x7f]
    %v4134 = vld [vmem:[%s3730 + $0x198] sm:$0x7f]
    %v4135 = vld [vmem:[%s3730 + $0x1a0] sm:$0xfe]
    %v4136 = vld [vmem:[%s3730 + $0x1a8] sm:$0xfe]
    %v4137 = vld [vmem:[%s3730 + $0x1b0] sm:$0x7f]
    %v4138 = vld [vmem:[%s3730 + $0x1b8] sm:$0x7f]
    %v4139 = vld [vmem:[%s3730 + $0x200] sm:$0xfe]
    %v4140 = vld [vmem:[%s3730 + $0x208] sm:$0xfe]
    %v4141 = vld [vmem:[%s3730 + $0x210] sm:$0x7f]
    %v4142 = vld [vmem:[%s3730 + $0x218] sm:$0x7f]
    %v4143 = vld [vmem:[%s3730 + $0x220] sm:$0xfe]
    %v4144 = vld [vmem:[%s3730 + $0x228] sm:$0xfe]
    %v4145 = vld [vmem:[%s3730 + $0x230] sm:$0x7f]
    %v4146 = vld [vmem:[%s3730 + $0x238] sm:$0x7f]
    %v4147 = vld [vmem:[%s3730 + $0x240] sm:$0xfe]
    %v4148 = vld [vmem:[%s3730 + $0x248] sm:$0xfe]
    %v4149 = vld [vmem:[%s3730 + $0x250] sm:$0x7f]
    %v4150 = vld [vmem:[%s3730 + $0x258] sm:$0x7f]
    %v4151 = vld [vmem:[%s3730 + $0x260] sm:$0xfe]
    %v4152 = vld [vmem:[%s3730 + $0x268] sm:$0xfe]
    %v4153 = vld [vmem:[%s3730 + $0x270] sm:$0x7f]
    %v4154 = vld [vmem:[%s3730 + $0x278] sm:$0x7f]
    %v4155 = vld [vmem:[%s3730 + $0x280] sm:$0xfe]
    %v4156 = vld [vmem:[%s3730 + $0x288] sm:$0xfe]
    %v4157 = vld [vmem:[%s3730 + $0x290] sm:$0x7f]
    %v4158 = vld [vmem:[%s3730 + $0x298] sm:$0x7f]
    %v4159 = vld [vmem:[%s3730 + $0x2a0] sm:$0xfe]
    %v4160 = vld [vmem:[%s3730 + $0x2a8] sm:$0xfe]
    %v4161 = vld [vmem:[%s3730 + $0x2b0] sm:$0x7f]
    %v4162 = vld [vmem:[%s3730 + $0x2b8] sm:$0x7f]
    %v4163 = vld [vmem:[%s3730 + $0x2c0] sm:$0xfe]
    %v4164 = vld [vmem:[%s3730 + $0x2c8] sm:$0xfe]
    %v4165 = vld [vmem:[%s3730 + $0x2d0] sm:$0x7f]
    %v4166 = vld [vmem:[%s3730 + $0x2d8] sm:$0x7f]
    %v4167 = vld [vmem:[%s3730 + $0x2e0] sm:$0xfe]
    %v4168 = vld [vmem:[%s3730 + $0x2e8] sm:$0xfe]
    %v4169 = vld [vmem:[%s3730 + $0x2f0] sm:$0x7f]
    %v4170 = vld [vmem:[%s3730 + $0x2f8] sm:$0x7f]
    %v4171 = vld [vmem:[%s3730 + $0x300] sm:$0xfe]
    %v4172 = vld [vmem:[%s3730 + $0x308] sm:$0xfe]
    %v4173 = vld [vmem:[%s3730 + $0x310] sm:$0x7f]
    %v4174 = vld [vmem:[%s3730 + $0x318] sm:$0x7f]
    %v4175 = vld [vmem:[%s3730 + $0x320] sm:$0xfe]
    %v4176 = vld [vmem:[%s3730 + $0x328] sm:$0xfe]
    %v4177 = vld [vmem:[%s3730 + $0x330] sm:$0x7f]
    %v4178 = vld [vmem:[%s3730 + $0x338] sm:$0x7f]
    %v4179 = vld [vmem:[%s3730 + $0x340] sm:$0xfe]
    %v4180 = vld [vmem:[%s3730 + $0x348] sm:$0xfe]
    %v4181 = vld [vmem:[%s3730 + $0x350] sm:$0x7f]
    %v4182 = vld [vmem:[%s3730 + $0x358] sm:$0x7f]
    %v4183 = vld [vmem:[%s3730 + $0x360] sm:$0xfe]
    %v4184 = vld [vmem:[%s3730 + $0x368] sm:$0xfe]
    %v4185 = vld [vmem:[%s3730 + $0x370] sm:$0x7f]
    %v4186 = vld [vmem:[%s3730 + $0x378] sm:$0x7f]
    %v4187 = vld [vmem:[%s3730 + $0x380] sm:$0xfe]
    %v4188 = vld [vmem:[%s3730 + $0x388] sm:$0xfe]
    %v4189 = vld [vmem:[%s3730 + $0x390] sm:$0x7f]
    %v4190 = vld [vmem:[%s3730 + $0x398] sm:$0x7f]
    %v4191 = vld [vmem:[%s3730 + $0x3a0] sm:$0xfe]
    %v4192 = vld [vmem:[%s3730 + $0x3a8] sm:$0xfe]
    %v4193 = vld [vmem:[%s3730 + $0x3b0] sm:$0x7f]
    %v4194 = vld [vmem:[%s3730 + $0x3b8] sm:$0x7f]
    %v4195 = vlaneseq
    %v4196 = vshrl.u32 %v4195, 7
    %v4197 = vsub.s32 7, %v4196
    %v4198 = vrot.slane %v39, %v4197
    %v4199 = vlaneseq
    %v4200 = vshrl.u32 %v4199, 7
    %v4201 = vsub.s32 7, %v4200
    %v4202 = vrot.slane %v40, %v4201
    %v4203 = vlaneseq
    %v4204 = vshrl.u32 %v4203, 7
    %v4205 = vsub.s32 7, %v4204
    %v4206 = vrot.slane %v43, %v4205
    %v4207 = vlaneseq
    %v4208 = vshrl.u32 %v4207, 7
    %v4209 = vsub.s32 7, %v4208
    %v4210 = vrot.slane %v44, %v4209
    %v4211 = vmul.f32 %v4083, %v4198
    %v4212 = vmul.f32 %v4084, %v4202
    %v4213 = vmul.f32 %v4085, %v4198
    %v4214 = vmul.f32 %v4086, %v4202
    %v4215 = vmul.f32 %v4087, %v4198
    %v4216 = vmul.f32 %v4088, %v4202
    %v4217 = vmul.f32 %v4089, %v4198
    %v4218 = vmul.f32 %v4090, %v4202
    %v4219 = vmul.f32 %v4091, %v4198
    %v4220 = vmul.f32 %v4092, %v4202
    %v4221 = vmul.f32 %v4093, %v4198
    %v4222 = vmul.f32 %v4094, %v4202
    %v4223 = vmul.f32 %v4095, %v4198
    %v4224 = vmul.f32 %v4096, %v4202
    %v4225 = vmul.f32 %v4097, %v4198
    %v4226 = vmul.f32 %v4098, %v4202
    %v4227 = vmul.f32 %v4099, %v4198
    %v4228 = vmul.f32 %v4100, %v4202
    %v4229 = vmul.f32 %v4101, %v4198
    %v4230 = vmul.f32 %v4102, %v4202
    %v4231 = vmul.f32 %v4103, %v4198
    %v4232 = vmul.f32 %v4104, %v4202
    %v4233 = vmul.f32 %v4105, %v4198
    %v4234 = vmul.f32 %v4106, %v4202
    %v4235 = vmul.f32 %v4107, %v4198
    %v4236 = vmul.f32 %v4108, %v4202
    %v4237 = vmul.f32 %v4109, %v4198
    %v4238 = vmul.f32 %v4110, %v4202
    %v4239 = vmul.f32 %v4111, %v4198
    %v4240 = vmul.f32 %v4112, %v4202
    %v4241 = vmul.f32 %v4113, %v4198
    %v4242 = vmul.f32 %v4114, %v4202
    %v4243 = vmul.f32 %v4115, %v4198
    %v4244 = vmul.f32 %v4116, %v4202
    %v4245 = vmul.f32 %v4117, %v4198
    %v4246 = vmul.f32 %v4118, %v4202
    %v4247 = vmul.f32 %v4119, %v4198
    %v4248 = vmul.f32 %v4120, %v4202
    %v4249 = vmul.f32 %v4121, %v4198
    %v4250 = vmul.f32 %v4122, %v4202
    %v4251 = vmul.f32 %v4123, %v4198
    %v4252 = vmul.f32 %v4124, %v4202
    %v4253 = vmul.f32 %v4125, %v4198
    %v4254 = vmul.f32 %v4126, %v4202
    %v4255 = vmul.f32 %v4127, %v4198
    %v4256 = vmul.f32 %v4128, %v4202
    %v4257 = vmul.f32 %v4129, %v4198
    %v4258 = vmul.f32 %v4130, %v4202
    %v4259 = vmul.f32 %v4131, %v4198
    %v4260 = vmul.f32 %v4132, %v4202
    %v4261 = vmul.f32 %v4133, %v4198
    %v4262 = vmul.f32 %v4134, %v4202
    %v4263 = vmul.f32 %v4135, %v4198
    %v4264 = vmul.f32 %v4136, %v4202
    %v4265 = vmul.f32 %v4137, %v4198
    %v4266 = vmul.f32 %v4138, %v4202
    %v4267 = vmul.f32 %v4139, %v4206
    %v4268 = vmul.f32 %v4140, %v4210
    %v4269 = vmul.f32 %v4141, %v4206
    %v4270 = vmul.f32 %v4142, %v4210
    %v4271 = vmul.f32 %v4143, %v4206
    %v4272 = vmul.f32 %v4144, %v4210
    %v4273 = vmul.f32 %v4145, %v4206
    %v4274 = vmul.f32 %v4146, %v4210
    %v4275 = vmul.f32 %v4147, %v4206
    %v4276 = vmul.f32 %v4148, %v4210
    %v4277 = vmul.f32 %v4149, %v4206
    %v4278 = vmul.f32 %v4150, %v4210
    %v4279 = vmul.f32 %v4151, %v4206
    %v4280 = vmul.f32 %v4152, %v4210
    %v4281 = vmul.f32 %v4153, %v4206
    %v4282 = vmul.f32 %v4154, %v4210
    %v4283 = vmul.f32 %v4155, %v4206
    %v4284 = vmul.f32 %v4156, %v4210
    %v4285 = vmul.f32 %v4157, %v4206
    %v4286 = vmul.f32 %v4158, %v4210
    %v4287 = vmul.f32 %v4159, %v4206
    %v4288 = vmul.f32 %v4160, %v4210
    %v4289 = vmul.f32 %v4161, %v4206
    %v4290 = vmul.f32 %v4162, %v4210
    %v4291 = vmul.f32 %v4163, %v4206
    %v4292 = vmul.f32 %v4164, %v4210
    %v4293 = vmul.f32 %v4165, %v4206
    %v4294 = vmul.f32 %v4166, %v4210
    %v4295 = vmul.f32 %v4167, %v4206
    %v4296 = vmul.f32 %v4168, %v4210
    %v4297 = vmul.f32 %v4169, %v4206
    %v4298 = vmul.f32 %v4170, %v4210
    %v4299 = vmul.f32 %v4171, %v4206
    %v4300 = vmul.f32 %v4172, %v4210
    %v4301 = vmul.f32 %v4173, %v4206
    %v4302 = vmul.f32 %v4174, %v4210
    %v4303 = vmul.f32 %v4175, %v4206
    %v4304 = vmul.f32 %v4176, %v4210
    %v4305 = vmul.f32 %v4177, %v4206
    %v4306 = vmul.f32 %v4178, %v4210
    %v4307 = vmul.f32 %v4179, %v4206
    %v4308 = vmul.f32 %v4180, %v4210
    %v4309 = vmul.f32 %v4181, %v4206
    %v4310 = vmul.f32 %v4182, %v4210
    %v4311 = vmul.f32 %v4183, %v4206
    %v4312 = vmul.f32 %v4184, %v4210
    %v4313 = vmul.f32 %v4185, %v4206
    %v4314 = vmul.f32 %v4186, %v4210
    %v4315 = vmul.f32 %v4187, %v4206
    %v4316 = vmul.f32 %v4188, %v4210
    %v4317 = vmul.f32 %v4189, %v4206
    %v4318 = vmul.f32 %v4190, %v4210
    %v4319 = vmul.f32 %v4191, %v4206
    %v4320 = vmul.f32 %v4192, %v4210
    %v4321 = vmul.f32 %v4193, %v4206
    %v4322 = vmul.f32 %v4194, %v4210
    %v4435 = vrot.slane %v4211, 1
    %v4436 = vrot.slane %v4213, 1
    %v4437 = vsel %vm751, %v4435, %v4436
    %v4438 = vrot.slane %v4212, 1
    %v4439 = vrot.slane %v4214, 1
    %v4440 = vsel %vm751, %v4438, %v4439
    %v4441 = vrot.slane %v4215, 1
    %v4442 = vrot.slane %v4217, 1
    %v4443 = vsel %vm751, %v4441, %v4442
    %v4444 = vrot.slane %v4216, 1
    %v4445 = vrot.slane %v4218, 1
    %v4446 = vsel %vm751, %v4444, %v4445
    %v4447 = vrot.slane %v4219, 1
    %v4448 = vrot.slane %v4221, 1
    %v4449 = vsel %vm751, %v4447, %v4448
    %v4450 = vrot.slane %v4220, 1
    %v4451 = vrot.slane %v4222, 1
    %v4452 = vsel %vm751, %v4450, %v4451
    %v4453 = vrot.slane %v4223, 1
    %v4454 = vrot.slane %v4225, 1
    %v4455 = vsel %vm751, %v4453, %v4454
    %v4456 = vrot.slane %v4224, 1
    %v4457 = vrot.slane %v4226, 1
    %v4458 = vsel %vm751, %v4456, %v4457
    %v4459 = vrot.slane %v4227, 1
    %v4460 = vrot.slane %v4229, 1
    %v4461 = vsel %vm751, %v4459, %v4460
    %v4462 = vrot.slane %v4228, 1
    %v4463 = vrot.slane %v4230, 1
    %v4464 = vsel %vm751, %v4462, %v4463
    %v4465 = vrot.slane %v4231, 1
    %v4466 = vrot.slane %v4233, 1
    %v4467 = vsel %vm751, %v4465, %v4466
    %v4468 = vrot.slane %v4232, 1
    %v4469 = vrot.slane %v4234, 1
    %v4470 = vsel %vm751, %v4468, %v4469
    %v4471 = vrot.slane %v4235, 1
    %v4472 = vrot.slane %v4237, 1
    %v4473 = vsel %vm751, %v4471, %v4472
    %v4474 = vrot.slane %v4236, 1
    %v4475 = vrot.slane %v4238, 1
    %v4476 = vsel %vm751, %v4474, %v4475
    %v4477 = vrot.slane %v4239, 1
    %v4478 = vrot.slane %v4241, 1
    %v4479 = vsel %vm751, %v4477, %v4478
    %v4480 = vrot.slane %v4240, 1
    %v4481 = vrot.slane %v4242, 1
    %v4482 = vsel %vm751, %v4480, %v4481
    %v4483 = vrot.slane %v4243, 1
    %v4484 = vrot.slane %v4245, 1
    %v4485 = vsel %vm751, %v4483, %v4484
    %v4486 = vrot.slane %v4244, 1
    %v4487 = vrot.slane %v4246, 1
    %v4488 = vsel %vm751, %v4486, %v4487
    %v4489 = vrot.slane %v4247, 1
    %v4490 = vrot.slane %v4249, 1
    %v4491 = vsel %vm751, %v4489, %v4490
    %v4492 = vrot.slane %v4248, 1
    %v4493 = vrot.slane %v4250, 1
    %v4494 = vsel %vm751, %v4492, %v4493
    %v4495 = vrot.slane %v4251, 1
    %v4496 = vrot.slane %v4253, 1
    %v4497 = vsel %vm751, %v4495, %v4496
    %v4498 = vrot.slane %v4252, 1
    %v4499 = vrot.slane %v4254, 1
    %v4500 = vsel %vm751, %v4498, %v4499
    %v4501 = vrot.slane %v4255, 1
    %v4502 = vrot.slane %v4257, 1
    %v4503 = vsel %vm751, %v4501, %v4502
    %v4504 = vrot.slane %v4256, 1
    %v4505 = vrot.slane %v4258, 1
    %v4506 = vsel %vm751, %v4504, %v4505
    %v4507 = vrot.slane %v4259, 1
    %v4508 = vrot.slane %v4261, 1
    %v4509 = vsel %vm751, %v4507, %v4508
    %v4510 = vrot.slane %v4260, 1
    %v4511 = vrot.slane %v4262, 1
    %v4512 = vsel %vm751, %v4510, %v4511
    %v4513 = vrot.slane %v4263, 1
    %v4514 = vrot.slane %v4265, 1
    %v4515 = vsel %vm751, %v4513, %v4514
    %v4516 = vrot.slane %v4264, 1
    %v4517 = vrot.slane %v4266, 1
    %v4518 = vsel %vm751, %v4516, %v4517
    %v4519 = vrot.slane %v4267, 1
    %v4520 = vrot.slane %v4269, 1
    %v4521 = vsel %vm751, %v4519, %v4520
    %v4522 = vrot.slane %v4268, 1
    %v4523 = vrot.slane %v4270, 1
    %v4524 = vsel %vm751, %v4522, %v4523
    %v4525 = vrot.slane %v4271, 1
    %v4526 = vrot.slane %v4273, 1
    %v4527 = vsel %vm751, %v4525, %v4526
    %v4528 = vrot.slane %v4272, 1
    %v4529 = vrot.slane %v4274, 1
    %v4530 = vsel %vm751, %v4528, %v4529
    %v4531 = vrot.slane %v4275, 1
    %v4532 = vrot.slane %v4277, 1
    %v4533 = vsel %vm751, %v4531, %v4532
    %v4534 = vrot.slane %v4276, 1
    %v4535 = vrot.slane %v4278, 1
    %v4536 = vsel %vm751, %v4534, %v4535
    %v4537 = vrot.slane %v4279, 1
    %v4538 = vrot.slane %v4281, 1
    %v4539 = vsel %vm751, %v4537, %v4538
    %v4540 = vrot.slane %v4280, 1
    %v4541 = vrot.slane %v4282, 1
    %v4542 = vsel %vm751, %v4540, %v4541
    %v4543 = vrot.slane %v4283, 1
    %v4544 = vrot.slane %v4285, 1
    %v4545 = vsel %vm751, %v4543, %v4544
    %v4546 = vrot.slane %v4284, 1
    %v4547 = vrot.slane %v4286, 1
    %v4548 = vsel %vm751, %v4546, %v4547
    %v4549 = vrot.slane %v4287, 1
    %v4550 = vrot.slane %v4289, 1
    %v4551 = vsel %vm751, %v4549, %v4550
    %v4552 = vrot.slane %v4288, 1
    %v4553 = vrot.slane %v4290, 1
    %v4554 = vsel %vm751, %v4552, %v4553
    %v4555 = vrot.slane %v4291, 1
    %v4556 = vrot.slane %v4293, 1
    %v4557 = vsel %vm751, %v4555, %v4556
    %v4558 = vrot.slane %v4292, 1
    %v4559 = vrot.slane %v4294, 1
    %v4560 = vsel %vm751, %v4558, %v4559
    %v4561 = vrot.slane %v4295, 1
    %v4562 = vrot.slane %v4297, 1
    %v4563 = vsel %vm751, %v4561, %v4562
    %v4564 = vrot.slane %v4296, 1
    %v4565 = vrot.slane %v4298, 1
    %v4566 = vsel %vm751, %v4564, %v4565
    %v4567 = vrot.slane %v4299, 1
    %v4568 = vrot.slane %v4301, 1
    %v4569 = vsel %vm751, %v4567, %v4568
    %v4570 = vrot.slane %v4300, 1
    %v4571 = vrot.slane %v4302, 1
    %v4572 = vsel %vm751, %v4570, %v4571
    %v4573 = vrot.slane %v4303, 1
    %v4574 = vrot.slane %v4305, 1
    %v4575 = vsel %vm751, %v4573, %v4574
    %v4576 = vrot.slane %v4304, 1
    %v4577 = vrot.slane %v4306, 1
    %v4578 = vsel %vm751, %v4576, %v4577
    %v4579 = vrot.slane %v4307, 1
    %v4580 = vrot.slane %v4309, 1
    %v4581 = vsel %vm751, %v4579, %v4580
    %v4582 = vrot.slane %v4308, 1
    %v4583 = vrot.slane %v4310, 1
    %v4584 = vsel %vm751, %v4582, %v4583
    %v4585 = vrot.slane %v4311, 1
    %v4586 = vrot.slane %v4313, 1
    %v4587 = vsel %vm751, %v4585, %v4586
    %v4588 = vrot.slane %v4312, 1
    %v4589 = vrot.slane %v4314, 1
    %v4590 = vsel %vm751, %v4588, %v4589
    %v4591 = vrot.slane %v4315, 1
    %v4592 = vrot.slane %v4317, 1
    %v4593 = vsel %vm751, %v4591, %v4592
    %v4594 = vrot.slane %v4316, 1
    %v4595 = vrot.slane %v4318, 1
    %v4596 = vsel %vm751, %v4594, %v4595
    %v4597 = vrot.slane %v4319, 1
    %v4598 = vrot.slane %v4321, 1
    %v4599 = vsel %vm751, %v4597, %v4598
    %v4600 = vrot.slane %v4320, 1
    %v4601 = vrot.slane %v4322, 1
    %v4602 = vsel %vm751, %v4600, %v4601
    %v4715 = vadd.f32 %v3971, %v4437
    %v4716 = vadd.f32 %v3972, %v4440
    %v4717 = vadd.f32 %v3973, %v4436
    %v4718 = vadd.f32 %v3974, %v4439
    %v4719 = vadd.f32 %v3975, %v4443
    %v4720 = vadd.f32 %v3976, %v4446
    %v4721 = vadd.f32 %v3977, %v4442
    %v4722 = vadd.f32 %v3978, %v4445
    %v4723 = vadd.f32 %v3979, %v4449
    %v4724 = vadd.f32 %v3980, %v4452
    %v4725 = vadd.f32 %v3981, %v4448
    %v4726 = vadd.f32 %v3982, %v4451
    %v4727 = vadd.f32 %v3983, %v4455
    %v4728 = vadd.f32 %v3984, %v4458
    %v4729 = vadd.f32 %v3985, %v4454
    %v4730 = vadd.f32 %v3986, %v4457
    %v4731 = vadd.f32 %v3987, %v4461
    %v4732 = vadd.f32 %v3988, %v4464
    %v4733 = vadd.f32 %v3989, %v4460
    %v4734 = vadd.f32 %v3990, %v4463
    %v4735 = vadd.f32 %v3991, %v4467
    %v4736 = vadd.f32 %v3992, %v4470
    %v4737 = vadd.f32 %v3993, %v4466
    %v4738 = vadd.f32 %v3994, %v4469
    %v4739 = vadd.f32 %v3995, %v4473
    %v4740 = vadd.f32 %v3996, %v4476
    %v4741 = vadd.f32 %v3997, %v4472
    %v4742 = vadd.f32 %v3998, %v4475
    %v4743 = vadd.f32 %v3999, %v4479
    %v4744 = vadd.f32 %v4000, %v4482
    %v4745 = vadd.f32 %v4001, %v4478
    %v4746 = vadd.f32 %v4002, %v4481
    %v4747 = vadd.f32 %v4003, %v4485
    %v4748 = vadd.f32 %v4004, %v4488
    %v4749 = vadd.f32 %v4005, %v4484
    %v4750 = vadd.f32 %v4006, %v4487
    %v4751 = vadd.f32 %v4007, %v4491
    %v4752 = vadd.f32 %v4008, %v4494
    %v4753 = vadd.f32 %v4009, %v4490
    %v4754 = vadd.f32 %v4010, %v4493
    %v4755 = vadd.f32 %v4011, %v4497
    %v4756 = vadd.f32 %v4012, %v4500
    %v4757 = vadd.f32 %v4013, %v4496
    %v4758 = vadd.f32 %v4014, %v4499
    %v4759 = vadd.f32 %v4015, %v4503
    %v4760 = vadd.f32 %v4016, %v4506
    %v4761 = vadd.f32 %v4017, %v4502
    %v4762 = vadd.f32 %v4018, %v4505
    %v4763 = vadd.f32 %v4019, %v4509
    %v4764 = vadd.f32 %v4020, %v4512
    %v4765 = vadd.f32 %v4021, %v4508
    %v4766 = vadd.f32 %v4022, %v4511
    %v4767 = vadd.f32 %v4023, %v4515
    %v4768 = vadd.f32 %v4024, %v4518
    %v4769 = vadd.f32 %v4025, %v4514
    %v4770 = vadd.f32 %v4026, %v4517
    %v4771 = vadd.f32 %v4027, %v4521
    %v4772 = vadd.f32 %v4028, %v4524
    %v4773 = vadd.f32 %v4029, %v4520
    %v4774 = vadd.f32 %v4030, %v4523
    %v4775 = vadd.f32 %v4031, %v4527
    %v4776 = vadd.f32 %v4032, %v4530
    %v4777 = vadd.f32 %v4033, %v4526
    %v4778 = vadd.f32 %v4034, %v4529
    %v4779 = vadd.f32 %v4035, %v4533
    %v4780 = vadd.f32 %v4036, %v4536
    %v4781 = vadd.f32 %v4037, %v4532
    %v4782 = vadd.f32 %v4038, %v4535
    %v4783 = vadd.f32 %v4039, %v4539
    %v4784 = vadd.f32 %v4040, %v4542
    %v4785 = vadd.f32 %v4041, %v4538
    %v4786 = vadd.f32 %v4042, %v4541
    %v4787 = vadd.f32 %v4043, %v4545
    %v4788 = vadd.f32 %v4044, %v4548
    %v4789 = vadd.f32 %v4045, %v4544
    %v4790 = vadd.f32 %v4046, %v4547
    %v4791 = vadd.f32 %v4047, %v4551
    %v4792 = vadd.f32 %v4048, %v4554
    %v4793 = vadd.f32 %v4049, %v4550
    %v4794 = vadd.f32 %v4050, %v4553
    %v4795 = vadd.f32 %v4051, %v4557
    %v4796 = vadd.f32 %v4052, %v4560
    %v4797 = vadd.f32 %v4053, %v4556
    %v4798 = vadd.f32 %v4054, %v4559
    %v4799 = vadd.f32 %v4055, %v4563
    %v4800 = vadd.f32 %v4056, %v4566
    %v4801 = vadd.f32 %v4057, %v4562
    %v4802 = vadd.f32 %v4058, %v4565
    %v4803 = vadd.f32 %v4059, %v4569
    %v4804 = vadd.f32 %v4060, %v4572
    %v4805 = vadd.f32 %v4061, %v4568
    %v4806 = vadd.f32 %v4062, %v4571
    %v4807 = vadd.f32 %v4063, %v4575
    %v4808 = vadd.f32 %v4064, %v4578
    %v4809 = vadd.f32 %v4065, %v4574
    %v4810 = vadd.f32 %v4066, %v4577
    %v4811 = vadd.f32 %v4067, %v4581
    %v4812 = vadd.f32 %v4068, %v4584
    %v4813 = vadd.f32 %v4069, %v4580
    %v4814 = vadd.f32 %v4070, %v4583
    %v4815 = vadd.f32 %v4071, %v4587
    %v4816 = vadd.f32 %v4072, %v4590
    %v4817 = vadd.f32 %v4073, %v4586
    %v4818 = vadd.f32 %v4074, %v4589
    %v4819 = vadd.f32 %v4075, %v4593
    %v4820 = vadd.f32 %v4076, %v4596
    %v4821 = vadd.f32 %v4077, %v4592
    %v4822 = vadd.f32 %v4078, %v4595
    %v4823 = vadd.f32 %v4079, %v4599
    %v4824 = vadd.f32 %v4080, %v4602
    %v4825 = vadd.f32 %v4081, %v4598
    %v4826 = vadd.f32 %v4082, %v4601
    %v4827 = vld [vmem:[%s3730] sm:$0xfc]
    %v4828 = vld [vmem:[%s3730 + $0x8] sm:$0xfc]
    %v4829 = vld [vmem:[%s3730 + $0x10] sm:$0xff]
    %v4830 = vld [vmem:[%s3730 + $0x18] sm:$0xff]
    %v4831 = vld [vmem:[%s3730 + $0x20] sm:$0xfc]
    %v4832 = vld [vmem:[%s3730 + $0x28] sm:$0xfc]
    %v4833 = vld [vmem:[%s3730 + $0x30] sm:$0xff]
    %v4834 = vld [vmem:[%s3730 + $0x38] sm:$0xff]
    %v4835 = vld [vmem:[%s3730 + $0x40] sm:$0xfc]
    %v4836 = vld [vmem:[%s3730 + $0x48] sm:$0xfc]
    %v4837 = vld [vmem:[%s3730 + $0x50] sm:$0xff]
    %v4838 = vld [vmem:[%s3730 + $0x58] sm:$0xff]
    %v4839 = vld [vmem:[%s3730 + $0x60] sm:$0xfc]
    %v4840 = vld [vmem:[%s3730 + $0x68] sm:$0xfc]
    %v4841 = vld [vmem:[%s3730 + $0x70] sm:$0xff]
    %v4842 = vld [vmem:[%s3730 + $0x78] sm:$0xff]
    %v4843 = vld [vmem:[%s3730 + $0x80] sm:$0xfc]
    %v4844 = vld [vmem:[%s3730 + $0x88] sm:$0xfc]
    %v4845 = vld [vmem:[%s3730 + $0x90] sm:$0xff]
    %v4846 = vld [vmem:[%s3730 + $0x98] sm:$0xff]
    %v4847 = vld [vmem:[%s3730 + $0xa0] sm:$0xfc]
    %v4848 = vld [vmem:[%s3730 + $0xa8] sm:$0xfc]
    %v4849 = vld [vmem:[%s3730 + $0xb0] sm:$0xff]
    %v4850 = vld [vmem:[%s3730 + $0xb8] sm:$0xff]
    %v4851 = vld [vmem:[%s3730 + $0xc0] sm:$0xfc]
    %v4852 = vld [vmem:[%s3730 + $0xc8] sm:$0xfc]
    %v4853 = vld [vmem:[%s3730 + $0xd0] sm:$0xff]
    %v4854 = vld [vmem:[%s3730 + $0xd8] sm:$0xff]
    %v4855 = vld [vmem:[%s3730 + $0xe0] sm:$0xfc]
    %v4856 = vld [vmem:[%s3730 + $0xe8] sm:$0xfc]
    %v4857 = vld [vmem:[%s3730 + $0xf0] sm:$0xff]
    %v4858 = vld [vmem:[%s3730 + $0xf8] sm:$0xff]
    %v4859 = vld [vmem:[%s3730 + $0x100] sm:$0xfc]
    %v4860 = vld [vmem:[%s3730 + $0x108] sm:$0xfc]
    %v4861 = vld [vmem:[%s3730 + $0x110] sm:$0xff]
    %v4862 = vld [vmem:[%s3730 + $0x118] sm:$0xff]
    %v4863 = vld [vmem:[%s3730 + $0x120] sm:$0xfc]
    %v4864 = vld [vmem:[%s3730 + $0x128] sm:$0xfc]
    %v4865 = vld [vmem:[%s3730 + $0x130] sm:$0xff]
    %v4866 = vld [vmem:[%s3730 + $0x138] sm:$0xff]
    %v4867 = vld [vmem:[%s3730 + $0x140] sm:$0xfc]
    %v4868 = vld [vmem:[%s3730 + $0x148] sm:$0xfc]
    %v4869 = vld [vmem:[%s3730 + $0x150] sm:$0xff]
    %v4870 = vld [vmem:[%s3730 + $0x158] sm:$0xff]
    %v4871 = vld [vmem:[%s3730 + $0x160] sm:$0xfc]
    %v4872 = vld [vmem:[%s3730 + $0x168] sm:$0xfc]
    %v4873 = vld [vmem:[%s3730 + $0x170] sm:$0xff]
    %v4874 = vld [vmem:[%s3730 + $0x178] sm:$0xff]
    %v4875 = vld [vmem:[%s3730 + $0x180] sm:$0xfc]
    %v4876 = vld [vmem:[%s3730 + $0x188] sm:$0xfc]
    %v4877 = vld [vmem:[%s3730 + $0x190] sm:$0xff]
    %v4878 = vld [vmem:[%s3730 + $0x198] sm:$0xff]
    %v4879 = vld [vmem:[%s3730 + $0x1a0] sm:$0xfc]
    %v4880 = vld [vmem:[%s3730 + $0x1a8] sm:$0xfc]
    %v4881 = vld [vmem:[%s3730 + $0x1b0] sm:$0xff]
    %v4882 = vld [vmem:[%s3730 + $0x1b8] sm:$0xff]
    %v4883 = vld [vmem:[%s3730 + $0x200] sm:$0xfc]
    %v4884 = vld [vmem:[%s3730 + $0x208] sm:$0xfc]
    %v4885 = vld [vmem:[%s3730 + $0x210] sm:$0xff]
    %v4886 = vld [vmem:[%s3730 + $0x218] sm:$0xff]
    %v4887 = vld [vmem:[%s3730 + $0x220] sm:$0xfc]
    %v4888 = vld [vmem:[%s3730 + $0x228] sm:$0xfc]
    %v4889 = vld [vmem:[%s3730 + $0x230] sm:$0xff]
    %v4890 = vld [vmem:[%s3730 + $0x238] sm:$0xff]
    %v4891 = vld [vmem:[%s3730 + $0x240] sm:$0xfc]
    %v4892 = vld [vmem:[%s3730 + $0x248] sm:$0xfc]
    %v4893 = vld [vmem:[%s3730 + $0x250] sm:$0xff]
    %v4894 = vld [vmem:[%s3730 + $0x258] sm:$0xff]
    %v4895 = vld [vmem:[%s3730 + $0x260] sm:$0xfc]
    %v4896 = vld [vmem:[%s3730 + $0x268] sm:$0xfc]
    %v4897 = vld [vmem:[%s3730 + $0x270] sm:$0xff]
    %v4898 = vld [vmem:[%s3730 + $0x278] sm:$0xff]
    %v4899 = vld [vmem:[%s3730 + $0x280] sm:$0xfc]
    %v4900 = vld [vmem:[%s3730 + $0x288] sm:$0xfc]
    %v4901 = vld [vmem:[%s3730 + $0x290] sm:$0xff]
    %v4902 = vld [vmem:[%s3730 + $0x298] sm:$0xff]
    %v4903 = vld [vmem:[%s3730 + $0x2a0] sm:$0xfc]
    %v4904 = vld [vmem:[%s3730 + $0x2a8] sm:$0xfc]
    %v4905 = vld [vmem:[%s3730 + $0x2b0] sm:$0xff]
    %v4906 = vld [vmem:[%s3730 + $0x2b8] sm:$0xff]
    %v4907 = vld [vmem:[%s3730 + $0x2c0] sm:$0xfc]
    %v4908 = vld [vmem:[%s3730 + $0x2c8] sm:$0xfc]
    %v4909 = vld [vmem:[%s3730 + $0x2d0] sm:$0xff]
    %v4910 = vld [vmem:[%s3730 + $0x2d8] sm:$0xff]
    %v4911 = vld [vmem:[%s3730 + $0x2e0] sm:$0xfc]
    %v4912 = vld [vmem:[%s3730 + $0x2e8] sm:$0xfc]
    %v4913 = vld [vmem:[%s3730 + $0x2f0] sm:$0xff]
    %v4914 = vld [vmem:[%s3730 + $0x2f8] sm:$0xff]
    %v4915 = vld [vmem:[%s3730 + $0x300] sm:$0xfc]
    %v4916 = vld [vmem:[%s3730 + $0x308] sm:$0xfc]
    %v4917 = vld [vmem:[%s3730 + $0x310] sm:$0xff]
    %v4918 = vld [vmem:[%s3730 + $0x318] sm:$0xff]
    %v4919 = vld [vmem:[%s3730 + $0x320] sm:$0xfc]
    %v4920 = vld [vmem:[%s3730 + $0x328] sm:$0xfc]
    %v4921 = vld [vmem:[%s3730 + $0x330] sm:$0xff]
    %v4922 = vld [vmem:[%s3730 + $0x338] sm:$0xff]
    %v4923 = vld [vmem:[%s3730 + $0x340] sm:$0xfc]
    %v4924 = vld [vmem:[%s3730 + $0x348] sm:$0xfc]
    %v4925 = vld [vmem:[%s3730 + $0x350] sm:$0xff]
    %v4926 = vld [vmem:[%s3730 + $0x358] sm:$0xff]
    %v4927 = vld [vmem:[%s3730 + $0x360] sm:$0xfc]
    %v4928 = vld [vmem:[%s3730 + $0x368] sm:$0xfc]
    %v4929 = vld [vmem:[%s3730 + $0x370] sm:$0xff]
    %v4930 = vld [vmem:[%s3730 + $0x378] sm:$0xff]
    %v4931 = vld [vmem:[%s3730 + $0x380] sm:$0xfc]
    %v4932 = vld [vmem:[%s3730 + $0x388] sm:$0xfc]
    %v4933 = vld [vmem:[%s3730 + $0x390] sm:$0xff]
    %v4934 = vld [vmem:[%s3730 + $0x398] sm:$0xff]
    %v4935 = vld [vmem:[%s3730 + $0x3a0] sm:$0xfc]
    %v4936 = vld [vmem:[%s3730 + $0x3a8] sm:$0xfc]
    %v4937 = vld [vmem:[%s3730 + $0x3b0] sm:$0xff]
    %v4938 = vld [vmem:[%s3730 + $0x3b8] sm:$0xff]
    %v4939 = vlaneseq
    %v4940 = vshrl.u32 %v4939, 7
    %v4941 = vsub.s32 0, %v4940
    %v4942 = vrot.slane %v41, %v4941
    %v4943 = vlaneseq
    %v4944 = vshrl.u32 %v4943, 7
    %v4945 = vsub.s32 0, %v4944
    %v4946 = vrot.slane %v42, %v4945
    %v4947 = vlaneseq
    %v4948 = vshrl.u32 %v4947, 7
    %v4949 = vsub.s32 0, %v4948
    %v4950 = vrot.slane %v45, %v4949
    %v4951 = vlaneseq
    %v4952 = vshrl.u32 %v4951, 7
    %v4953 = vsub.s32 0, %v4952
    %v4954 = vrot.slane %v46, %v4953
    %v4955 = vmul.f32 %v4827, %v4942
    %v4956 = vmul.f32 %v4828, %v4946
    %v4957 = vmul.f32 %v4829, %v4942
    %v4958 = vmul.f32 %v4830, %v4946
    %v4959 = vmul.f32 %v4831, %v4942
    %v4960 = vmul.f32 %v4832, %v4946
    %v4961 = vmul.f32 %v4833, %v4942
    %v4962 = vmul.f32 %v4834, %v4946
    %v4963 = vmul.f32 %v4835, %v4942
    %v4964 = vmul.f32 %v4836, %v4946
    %v4965 = vmul.f32 %v4837, %v4942
    %v4966 = vmul.f32 %v4838, %v4946
    %v4967 = vmul.f32 %v4839, %v4942
    %v4968 = vmul.f32 %v4840, %v4946
    %v4969 = vmul.f32 %v4841, %v4942
    %v4970 = vmul.f32 %v4842, %v4946
    %v4971 = vmul.f32 %v4843, %v4942
    %v4972 = vmul.f32 %v4844, %v4946
    %v4973 = vmul.f32 %v4845, %v4942
    %v4974 = vmul.f32 %v4846, %v4946
    %v4975 = vmul.f32 %v4847, %v4942
    %v4976 = vmul.f32 %v4848, %v4946
    %v4977 = vmul.f32 %v4849, %v4942
    %v4978 = vmul.f32 %v4850, %v4946
    %v4979 = vmul.f32 %v4851, %v4942
    %v4980 = vmul.f32 %v4852, %v4946
    %v4981 = vmul.f32 %v4853, %v4942
    %v4982 = vmul.f32 %v4854, %v4946
    %v4983 = vmul.f32 %v4855, %v4942
    %v4984 = vmul.f32 %v4856, %v4946
    %v4985 = vmul.f32 %v4857, %v4942
    %v4986 = vmul.f32 %v4858, %v4946
    %v4987 = vmul.f32 %v4859, %v4942
    %v4988 = vmul.f32 %v4860, %v4946
    %v4989 = vmul.f32 %v4861, %v4942
    %v4990 = vmul.f32 %v4862, %v4946
    %v4991 = vmul.f32 %v4863, %v4942
    %v4992 = vmul.f32 %v4864, %v4946
    %v4993 = vmul.f32 %v4865, %v4942
    %v4994 = vmul.f32 %v4866, %v4946
    %v4995 = vmul.f32 %v4867, %v4942
    %v4996 = vmul.f32 %v4868, %v4946
    %v4997 = vmul.f32 %v4869, %v4942
    %v4998 = vmul.f32 %v4870, %v4946
    %v4999 = vmul.f32 %v4871, %v4942
    %v5000 = vmul.f32 %v4872, %v4946
    %v5001 = vmul.f32 %v4873, %v4942
    %v5002 = vmul.f32 %v4874, %v4946
    %v5003 = vmul.f32 %v4875, %v4942
    %v5004 = vmul.f32 %v4876, %v4946
    %v5005 = vmul.f32 %v4877, %v4942
    %v5006 = vmul.f32 %v4878, %v4946
    %v5007 = vmul.f32 %v4879, %v4942
    %v5008 = vmul.f32 %v4880, %v4946
    %v5009 = vmul.f32 %v4881, %v4942
    %v5010 = vmul.f32 %v4882, %v4946
    %v5011 = vmul.f32 %v4883, %v4950
    %v5012 = vmul.f32 %v4884, %v4954
    %v5013 = vmul.f32 %v4885, %v4950
    %v5014 = vmul.f32 %v4886, %v4954
    %v5015 = vmul.f32 %v4887, %v4950
    %v5016 = vmul.f32 %v4888, %v4954
    %v5017 = vmul.f32 %v4889, %v4950
    %v5018 = vmul.f32 %v4890, %v4954
    %v5019 = vmul.f32 %v4891, %v4950
    %v5020 = vmul.f32 %v4892, %v4954
    %v5021 = vmul.f32 %v4893, %v4950
    %v5022 = vmul.f32 %v4894, %v4954
    %v5023 = vmul.f32 %v4895, %v4950
    %v5024 = vmul.f32 %v4896, %v4954
    %v5025 = vmul.f32 %v4897, %v4950
    %v5026 = vmul.f32 %v4898, %v4954
    %v5027 = vmul.f32 %v4899, %v4950
    %v5028 = vmul.f32 %v4900, %v4954
    %v5029 = vmul.f32 %v4901, %v4950
    %v5030 = vmul.f32 %v4902, %v4954
    %v5031 = vmul.f32 %v4903, %v4950
    %v5032 = vmul.f32 %v4904, %v4954
    %v5033 = vmul.f32 %v4905, %v4950
    %v5034 = vmul.f32 %v4906, %v4954
    %v5035 = vmul.f32 %v4907, %v4950
    %v5036 = vmul.f32 %v4908, %v4954
    %v5037 = vmul.f32 %v4909, %v4950
    %v5038 = vmul.f32 %v4910, %v4954
    %v5039 = vmul.f32 %v4911, %v4950
    %v5040 = vmul.f32 %v4912, %v4954
    %v5041 = vmul.f32 %v4913, %v4950
    %v5042 = vmul.f32 %v4914, %v4954
    %v5043 = vmul.f32 %v4915, %v4950
    %v5044 = vmul.f32 %v4916, %v4954
    %v5045 = vmul.f32 %v4917, %v4950
    %v5046 = vmul.f32 %v4918, %v4954
    %v5047 = vmul.f32 %v4919, %v4950
    %v5048 = vmul.f32 %v4920, %v4954
    %v5049 = vmul.f32 %v4921, %v4950
    %v5050 = vmul.f32 %v4922, %v4954
    %v5051 = vmul.f32 %v4923, %v4950
    %v5052 = vmul.f32 %v4924, %v4954
    %v5053 = vmul.f32 %v4925, %v4950
    %v5054 = vmul.f32 %v4926, %v4954
    %v5055 = vmul.f32 %v4927, %v4950
    %v5056 = vmul.f32 %v4928, %v4954
    %v5057 = vmul.f32 %v4929, %v4950
    %v5058 = vmul.f32 %v4930, %v4954
    %v5059 = vmul.f32 %v4931, %v4950
    %v5060 = vmul.f32 %v4932, %v4954
    %v5061 = vmul.f32 %v4933, %v4950
    %v5062 = vmul.f32 %v4934, %v4954
    %v5063 = vmul.f32 %v4935, %v4950
    %v5064 = vmul.f32 %v4936, %v4954
    %v5065 = vmul.f32 %v4937, %v4950
    %v5066 = vmul.f32 %v4938, %v4954
    %v5179 = vrot.slane %v4955, 2
    %v5180 = vrot.slane %v4957, 2
    %v5181 = vsel %vm1496, %v5179, %v5180
    %v5182 = vrot.slane %v4956, 2
    %v5183 = vrot.slane %v4958, 2
    %v5184 = vsel %vm1496, %v5182, %v5183
    %v5185 = vrot.slane %v4959, 2
    %v5186 = vrot.slane %v4961, 2
    %v5187 = vsel %vm1496, %v5185, %v5186
    %v5188 = vrot.slane %v4960, 2
    %v5189 = vrot.slane %v4962, 2
    %v5190 = vsel %vm1496, %v5188, %v5189
    %v5191 = vrot.slane %v4963, 2
    %v5192 = vrot.slane %v4965, 2
    %v5193 = vsel %vm1496, %v5191, %v5192
    %v5194 = vrot.slane %v4964, 2
    %v5195 = vrot.slane %v4966, 2
    %v5196 = vsel %vm1496, %v5194, %v5195
    %v5197 = vrot.slane %v4967, 2
    %v5198 = vrot.slane %v4969, 2
    %v5199 = vsel %vm1496, %v5197, %v5198
    %v5200 = vrot.slane %v4968, 2
    %v5201 = vrot.slane %v4970, 2
    %v5202 = vsel %vm1496, %v5200, %v5201
    %v5203 = vrot.slane %v4971, 2
    %v5204 = vrot.slane %v4973, 2
    %v5205 = vsel %vm1496, %v5203, %v5204
    %v5206 = vrot.slane %v4972, 2
    %v5207 = vrot.slane %v4974, 2
    %v5208 = vsel %vm1496, %v5206, %v5207
    %v5209 = vrot.slane %v4975, 2
    %v5210 = vrot.slane %v4977, 2
    %v5211 = vsel %vm1496, %v5209, %v5210
    %v5212 = vrot.slane %v4976, 2
    %v5213 = vrot.slane %v4978, 2
    %v5214 = vsel %vm1496, %v5212, %v5213
    %v5215 = vrot.slane %v4979, 2
    %v5216 = vrot.slane %v4981, 2
    %v5217 = vsel %vm1496, %v5215, %v5216
    %v5218 = vrot.slane %v4980, 2
    %v5219 = vrot.slane %v4982, 2
    %v5220 = vsel %vm1496, %v5218, %v5219
    %v5221 = vrot.slane %v4983, 2
    %v5222 = vrot.slane %v4985, 2
    %v5223 = vsel %vm1496, %v5221, %v5222
    %v5224 = vrot.slane %v4984, 2
    %v5225 = vrot.slane %v4986, 2
    %v5226 = vsel %vm1496, %v5224, %v5225
    %v5227 = vrot.slane %v4987, 2
    %v5228 = vrot.slane %v4989, 2
    %v5229 = vsel %vm1496, %v5227, %v5228
    %v5230 = vrot.slane %v4988, 2
    %v5231 = vrot.slane %v4990, 2
    %v5232 = vsel %vm1496, %v5230, %v5231
    %v5233 = vrot.slane %v4991, 2
    %v5234 = vrot.slane %v4993, 2
    %v5235 = vsel %vm1496, %v5233, %v5234
    %v5236 = vrot.slane %v4992, 2
    %v5237 = vrot.slane %v4994, 2
    %v5238 = vsel %vm1496, %v5236, %v5237
    %v5239 = vrot.slane %v4995, 2
    %v5240 = vrot.slane %v4997, 2
    %v5241 = vsel %vm1496, %v5239, %v5240
    %v5242 = vrot.slane %v4996, 2
    %v5243 = vrot.slane %v4998, 2
    %v5244 = vsel %vm1496, %v5242, %v5243
    %v5245 = vrot.slane %v4999, 2
    %v5246 = vrot.slane %v5001, 2
    %v5247 = vsel %vm1496, %v5245, %v5246
    %v5248 = vrot.slane %v5000, 2
    %v5249 = vrot.slane %v5002, 2
    %v5250 = vsel %vm1496, %v5248, %v5249
    %v5251 = vrot.slane %v5003, 2
    %v5252 = vrot.slane %v5005, 2
    %v5253 = vsel %vm1496, %v5251, %v5252
    %v5254 = vrot.slane %v5004, 2
    %v5255 = vrot.slane %v5006, 2
    %v5256 = vsel %vm1496, %v5254, %v5255
    %v5257 = vrot.slane %v5007, 2
    %v5258 = vrot.slane %v5009, 2
    %v5259 = vsel %vm1496, %v5257, %v5258
    %v5260 = vrot.slane %v5008, 2
    %v5261 = vrot.slane %v5010, 2
    %v5262 = vsel %vm1496, %v5260, %v5261
    %v5263 = vrot.slane %v5011, 2
    %v5264 = vrot.slane %v5013, 2
    %v5265 = vsel %vm1496, %v5263, %v5264
    %v5266 = vrot.slane %v5012, 2
    %v5267 = vrot.slane %v5014, 2
    %v5268 = vsel %vm1496, %v5266, %v5267
    %v5269 = vrot.slane %v5015, 2
    %v5270 = vrot.slane %v5017, 2
    %v5271 = vsel %vm1496, %v5269, %v5270
    %v5272 = vrot.slane %v5016, 2
    %v5273 = vrot.slane %v5018, 2
    %v5274 = vsel %vm1496, %v5272, %v5273
    %v5275 = vrot.slane %v5019, 2
    %v5276 = vrot.slane %v5021, 2
    %v5277 = vsel %vm1496, %v5275, %v5276
    %v5278 = vrot.slane %v5020, 2
    %v5279 = vrot.slane %v5022, 2
    %v5280 = vsel %vm1496, %v5278, %v5279
    %v5281 = vrot.slane %v5023, 2
    %v5282 = vrot.slane %v5025, 2
    %v5283 = vsel %vm1496, %v5281, %v5282
    %v5284 = vrot.slane %v5024, 2
    %v5285 = vrot.slane %v5026, 2
    %v5286 = vsel %vm1496, %v5284, %v5285
    %v5287 = vrot.slane %v5027, 2
    %v5288 = vrot.slane %v5029, 2
    %v5289 = vsel %vm1496, %v5287, %v5288
    %v5290 = vrot.slane %v5028, 2
    %v5291 = vrot.slane %v5030, 2
    %v5292 = vsel %vm1496, %v5290, %v5291
    %v5293 = vrot.slane %v5031, 2
    %v5294 = vrot.slane %v5033, 2
    %v5295 = vsel %vm1496, %v5293, %v5294
    %v5296 = vrot.slane %v5032, 2
    %v5297 = vrot.slane %v5034, 2
    %v5298 = vsel %vm1496, %v5296, %v5297
    %v5299 = vrot.slane %v5035, 2
    %v5300 = vrot.slane %v5037, 2
    %v5301 = vsel %vm1496, %v5299, %v5300
    %v5302 = vrot.slane %v5036, 2
    %v5303 = vrot.slane %v5038, 2
    %v5304 = vsel %vm1496, %v5302, %v5303
    %v5305 = vrot.slane %v5039, 2
    %v5306 = vrot.slane %v5041, 2
    %v5307 = vsel %vm1496, %v5305, %v5306
    %v5308 = vrot.slane %v5040, 2
    %v5309 = vrot.slane %v5042, 2
    %v5310 = vsel %vm1496, %v5308, %v5309
    %v5311 = vrot.slane %v5043, 2
    %v5312 = vrot.slane %v5045, 2
    %v5313 = vsel %vm1496, %v5311, %v5312
    %v5314 = vrot.slane %v5044, 2
    %v5315 = vrot.slane %v5046, 2
    %v5316 = vsel %vm1496, %v5314, %v5315
    %v5317 = vrot.slane %v5047, 2
    %v5318 = vrot.slane %v5049, 2
    %v5319 = vsel %vm1496, %v5317, %v5318
    %v5320 = vrot.slane %v5048, 2
    %v5321 = vrot.slane %v5050, 2
    %v5322 = vsel %vm1496, %v5320, %v5321
    %v5323 = vrot.slane %v5051, 2
    %v5324 = vrot.slane %v5053, 2
    %v5325 = vsel %vm1496, %v5323, %v5324
    %v5326 = vrot.slane %v5052, 2
    %v5327 = vrot.slane %v5054, 2
    %v5328 = vsel %vm1496, %v5326, %v5327
    %v5329 = vrot.slane %v5055, 2
    %v5330 = vrot.slane %v5057, 2
    %v5331 = vsel %vm1496, %v5329, %v5330
    %v5332 = vrot.slane %v5056, 2
    %v5333 = vrot.slane %v5058, 2
    %v5334 = vsel %vm1496, %v5332, %v5333
    %v5335 = vrot.slane %v5059, 2
    %v5336 = vrot.slane %v5061, 2
    %v5337 = vsel %vm1496, %v5335, %v5336
    %v5338 = vrot.slane %v5060, 2
    %v5339 = vrot.slane %v5062, 2
    %v5340 = vsel %vm1496, %v5338, %v5339
    %v5341 = vrot.slane %v5063, 2
    %v5342 = vrot.slane %v5065, 2
    %v5343 = vsel %vm1496, %v5341, %v5342
    %v5344 = vrot.slane %v5064, 2
    %v5345 = vrot.slane %v5066, 2
    %v5346 = vsel %vm1496, %v5344, %v5345
    %v5459 = vadd.f32 %v4715, %v5181
    %v5460 = vadd.f32 %v4716, %v5184
    %v5461 = vadd.f32 %v4717, %v5180
    %v5462 = vadd.f32 %v4718, %v5183
    %v5463 = vadd.f32 %v4719, %v5187
    %v5464 = vadd.f32 %v4720, %v5190
    %v5465 = vadd.f32 %v4721, %v5186
    %v5466 = vadd.f32 %v4722, %v5189
    %v5467 = vadd.f32 %v4723, %v5193
    %v5468 = vadd.f32 %v4724, %v5196
    %v5469 = vadd.f32 %v4725, %v5192
    %v5470 = vadd.f32 %v4726, %v5195
    %v5471 = vadd.f32 %v4727, %v5199
    %v5472 = vadd.f32 %v4728, %v5202
    %v5473 = vadd.f32 %v4729, %v5198
    %v5474 = vadd.f32 %v4730, %v5201
    %v5475 = vadd.f32 %v4731, %v5205
    %v5476 = vadd.f32 %v4732, %v5208
    %v5477 = vadd.f32 %v4733, %v5204
    %v5478 = vadd.f32 %v4734, %v5207
    %v5479 = vadd.f32 %v4735, %v5211
    %v5480 = vadd.f32 %v4736, %v5214
    %v5481 = vadd.f32 %v4737, %v5210
    %v5482 = vadd.f32 %v4738, %v5213
    %v5483 = vadd.f32 %v4739, %v5217
    %v5484 = vadd.f32 %v4740, %v5220
    %v5485 = vadd.f32 %v4741, %v5216
    %v5486 = vadd.f32 %v4742, %v5219
    %v5487 = vadd.f32 %v4743, %v5223
    %v5488 = vadd.f32 %v4744, %v5226
    %v5489 = vadd.f32 %v4745, %v5222
    %v5490 = vadd.f32 %v4746, %v5225
    %v5491 = vadd.f32 %v4747, %v5229
    %v5492 = vadd.f32 %v4748, %v5232
    %v5493 = vadd.f32 %v4749, %v5228
    %v5494 = vadd.f32 %v4750, %v5231
    %v5495 = vadd.f32 %v4751, %v5235
    %v5496 = vadd.f32 %v4752, %v5238
    %v5497 = vadd.f32 %v4753, %v5234
    %v5498 = vadd.f32 %v4754, %v5237
    %v5499 = vadd.f32 %v4755, %v5241
    %v5500 = vadd.f32 %v4756, %v5244
    %v5501 = vadd.f32 %v4757, %v5240
    %v5502 = vadd.f32 %v4758, %v5243
    %v5503 = vadd.f32 %v4759, %v5247
    %v5504 = vadd.f32 %v4760, %v5250
    %v5505 = vadd.f32 %v4761, %v5246
    %v5506 = vadd.f32 %v4762, %v5249
    %v5507 = vadd.f32 %v4763, %v5253
    %v5508 = vadd.f32 %v4764, %v5256
    %v5509 = vadd.f32 %v4765, %v5252
    %v5510 = vadd.f32 %v4766, %v5255
    %v5511 = vadd.f32 %v4767, %v5259
    %v5512 = vadd.f32 %v4768, %v5262
    %v5513 = vadd.f32 %v4769, %v5258
    %v5514 = vadd.f32 %v4770, %v5261
    %v5515 = vadd.f32 %v4771, %v5265
    %v5516 = vadd.f32 %v4772, %v5268
    %v5517 = vadd.f32 %v4773, %v5264
    %v5518 = vadd.f32 %v4774, %v5267
    %v5519 = vadd.f32 %v4775, %v5271
    %v5520 = vadd.f32 %v4776, %v5274
    %v5521 = vadd.f32 %v4777, %v5270
    %v5522 = vadd.f32 %v4778, %v5273
    %v5523 = vadd.f32 %v4779, %v5277
    %v5524 = vadd.f32 %v4780, %v5280
    %v5525 = vadd.f32 %v4781, %v5276
    %v5526 = vadd.f32 %v4782, %v5279
    %v5527 = vadd.f32 %v4783, %v5283
    %v5528 = vadd.f32 %v4784, %v5286
    %v5529 = vadd.f32 %v4785, %v5282
    %v5530 = vadd.f32 %v4786, %v5285
    %v5531 = vadd.f32 %v4787, %v5289
    %v5532 = vadd.f32 %v4788, %v5292
    %v5533 = vadd.f32 %v4789, %v5288
    %v5534 = vadd.f32 %v4790, %v5291
    %v5535 = vadd.f32 %v4791, %v5295
    %v5536 = vadd.f32 %v4792, %v5298
    %v5537 = vadd.f32 %v4793, %v5294
    %v5538 = vadd.f32 %v4794, %v5297
    %v5539 = vadd.f32 %v4795, %v5301
    %v5540 = vadd.f32 %v4796, %v5304
    %v5541 = vadd.f32 %v4797, %v5300
    %v5542 = vadd.f32 %v4798, %v5303
    %v5543 = vadd.f32 %v4799, %v5307
    %v5544 = vadd.f32 %v4800, %v5310
    %v5545 = vadd.f32 %v4801, %v5306
    %v5546 = vadd.f32 %v4802, %v5309
    %v5547 = vadd.f32 %v4803, %v5313
    %v5548 = vadd.f32 %v4804, %v5316
    %v5549 = vadd.f32 %v4805, %v5312
    %v5550 = vadd.f32 %v4806, %v5315
    %v5551 = vadd.f32 %v4807, %v5319
    %v5552 = vadd.f32 %v4808, %v5322
    %v5553 = vadd.f32 %v4809, %v5318
    %v5554 = vadd.f32 %v4810, %v5321
    %v5555 = vadd.f32 %v4811, %v5325
    %v5556 = vadd.f32 %v4812, %v5328
    %v5557 = vadd.f32 %v4813, %v5324
    %v5558 = vadd.f32 %v4814, %v5327
    %v5559 = vadd.f32 %v4815, %v5331
    %v5560 = vadd.f32 %v4816, %v5334
    %v5561 = vadd.f32 %v4817, %v5330
    %v5562 = vadd.f32 %v4818, %v5333
    %v5563 = vadd.f32 %v4819, %v5337
    %v5564 = vadd.f32 %v4820, %v5340
    %v5565 = vadd.f32 %v4821, %v5336
    %v5566 = vadd.f32 %v4822, %v5339
    %v5567 = vadd.f32 %v4823, %v5343
    %v5568 = vadd.f32 %v4824, %v5346
    %v5569 = vadd.f32 %v4825, %v5342
    %v5570 = vadd.f32 %v4826, %v5345
    %v5571 = vadd.f32 %v5459, %v5460
    %5572 = vadd.xlane.f32.xlu0 %v5571
    %v5573 = vpop.xlane.xlu0 %5572
    %v5574 = vsel %vm1496, %v5461, 0.0
    %v5575 = vsel %vm1496, %v5462, 0.0
    %v5576 = vadd.f32 %v5574, %v5575
    %5577 = vadd.xlane.f32.xlu0 %v5576
    %v5578 = vpop.xlane.xlu0 %5577
    %v5579 = vadd.f32 %v5463, %v5464
    %5580 = vadd.xlane.f32.xlu0 %v5579
    %v5581 = vpop.xlane.xlu0 %5580
    %v5582 = vsel %vm1496, %v5465, 0.0
    %v5583 = vsel %vm1496, %v5466, 0.0
    %v5584 = vadd.f32 %v5582, %v5583
    %5585 = vadd.xlane.f32.xlu0 %v5584
    %v5586 = vpop.xlane.xlu0 %5585
    %v5587 = vadd.f32 %v5467, %v5468
    %5588 = vadd.xlane.f32.xlu0 %v5587
    %v5589 = vpop.xlane.xlu0 %5588
    %v5590 = vsel %vm1496, %v5469, 0.0
    %v5591 = vsel %vm1496, %v5470, 0.0
    %v5592 = vadd.f32 %v5590, %v5591
    %5593 = vadd.xlane.f32.xlu0 %v5592
    %v5594 = vpop.xlane.xlu0 %5593
    %v5595 = vadd.f32 %v5471, %v5472
    %5596 = vadd.xlane.f32.xlu0 %v5595
    %v5597 = vpop.xlane.xlu0 %5596
    %v5598 = vsel %vm1496, %v5473, 0.0
    %v5599 = vsel %vm1496, %v5474, 0.0
    %v5600 = vadd.f32 %v5598, %v5599
    %5601 = vadd.xlane.f32.xlu0 %v5600
    %v5602 = vpop.xlane.xlu0 %5601
    %v5603 = vadd.f32 %v5475, %v5476
    %5604 = vadd.xlane.f32.xlu0 %v5603
    %v5605 = vpop.xlane.xlu0 %5604
    %v5606 = vsel %vm1496, %v5477, 0.0
    %v5607 = vsel %vm1496, %v5478, 0.0
    %v5608 = vadd.f32 %v5606, %v5607
    %5609 = vadd.xlane.f32.xlu0 %v5608
    %v5610 = vpop.xlane.xlu0 %5609
    %v5611 = vadd.f32 %v5479, %v5480
    %5612 = vadd.xlane.f32.xlu0 %v5611
    %v5613 = vpop.xlane.xlu0 %5612
    %v5614 = vsel %vm1496, %v5481, 0.0
    %v5615 = vsel %vm1496, %v5482, 0.0
    %v5616 = vadd.f32 %v5614, %v5615
    %5617 = vadd.xlane.f32.xlu0 %v5616
    %v5618 = vpop.xlane.xlu0 %5617
    %v5619 = vadd.f32 %v5483, %v5484
    %5620 = vadd.xlane.f32.xlu0 %v5619
    %v5621 = vpop.xlane.xlu0 %5620
    %v5622 = vsel %vm1496, %v5485, 0.0
    %v5623 = vsel %vm1496, %v5486, 0.0
    %v5624 = vadd.f32 %v5622, %v5623
    %5625 = vadd.xlane.f32.xlu0 %v5624
    %v5626 = vpop.xlane.xlu0 %5625
    %v5627 = vadd.f32 %v5487, %v5488
    %5628 = vadd.xlane.f32.xlu0 %v5627
    %v5629 = vpop.xlane.xlu0 %5628
    %v5630 = vsel %vm1496, %v5489, 0.0
    %v5631 = vsel %vm1496, %v5490, 0.0
    %v5632 = vadd.f32 %v5630, %v5631
    %5633 = vadd.xlane.f32.xlu0 %v5632
    %v5634 = vpop.xlane.xlu0 %5633
    %v5635 = vadd.f32 %v5491, %v5492
    %5636 = vadd.xlane.f32.xlu0 %v5635
    %v5637 = vpop.xlane.xlu0 %5636
    %v5638 = vsel %vm1496, %v5493, 0.0
    %v5639 = vsel %vm1496, %v5494, 0.0
    %v5640 = vadd.f32 %v5638, %v5639
    %5641 = vadd.xlane.f32.xlu0 %v5640
    %v5642 = vpop.xlane.xlu0 %5641
    %v5643 = vadd.f32 %v5495, %v5496
    %5644 = vadd.xlane.f32.xlu0 %v5643
    %v5645 = vpop.xlane.xlu0 %5644
    %v5646 = vsel %vm1496, %v5497, 0.0
    %v5647 = vsel %vm1496, %v5498, 0.0
    %v5648 = vadd.f32 %v5646, %v5647
    %5649 = vadd.xlane.f32.xlu0 %v5648
    %v5650 = vpop.xlane.xlu0 %5649
    %v5651 = vadd.f32 %v5499, %v5500
    %5652 = vadd.xlane.f32.xlu0 %v5651
    %v5653 = vpop.xlane.xlu0 %5652
    %v5654 = vsel %vm1496, %v5501, 0.0
    %v5655 = vsel %vm1496, %v5502, 0.0
    %v5656 = vadd.f32 %v5654, %v5655
    %5657 = vadd.xlane.f32.xlu0 %v5656
    %v5658 = vpop.xlane.xlu0 %5657
    %v5659 = vadd.f32 %v5503, %v5504
    %5660 = vadd.xlane.f32.xlu0 %v5659
    %v5661 = vpop.xlane.xlu0 %5660
    %v5662 = vsel %vm1496, %v5505, 0.0
    %v5663 = vsel %vm1496, %v5506, 0.0
    %v5664 = vadd.f32 %v5662, %v5663
    %5665 = vadd.xlane.f32.xlu0 %v5664
    %v5666 = vpop.xlane.xlu0 %5665
    %v5667 = vadd.f32 %v5507, %v5508
    %5668 = vadd.xlane.f32.xlu0 %v5667
    %v5669 = vpop.xlane.xlu0 %5668
    %v5670 = vsel %vm1496, %v5509, 0.0
    %v5671 = vsel %vm1496, %v5510, 0.0
    %v5672 = vadd.f32 %v5670, %v5671
    %5673 = vadd.xlane.f32.xlu0 %v5672
    %v5674 = vpop.xlane.xlu0 %5673
    %v5675 = vadd.f32 %v5511, %v5512
    %5676 = vadd.xlane.f32.xlu0 %v5675
    %v5677 = vpop.xlane.xlu0 %5676
    %v5678 = vsel %vm1496, %v5513, 0.0
    %v5679 = vsel %vm1496, %v5514, 0.0
    %v5680 = vadd.f32 %v5678, %v5679
    %5681 = vadd.xlane.f32.xlu0 %v5680
    %v5682 = vpop.xlane.xlu0 %5681
    %v5683 = vadd.f32 %v5515, %v5516
    %5684 = vadd.xlane.f32.xlu0 %v5683
    %v5685 = vpop.xlane.xlu0 %5684
    %v5686 = vsel %vm1496, %v5517, 0.0
    %v5687 = vsel %vm1496, %v5518, 0.0
    %v5688 = vadd.f32 %v5686, %v5687
    %5689 = vadd.xlane.f32.xlu0 %v5688
    %v5690 = vpop.xlane.xlu0 %5689
    %v5691 = vadd.f32 %v5519, %v5520
    %5692 = vadd.xlane.f32.xlu0 %v5691
    %v5693 = vpop.xlane.xlu0 %5692
    %v5694 = vsel %vm1496, %v5521, 0.0
    %v5695 = vsel %vm1496, %v5522, 0.0
    %v5696 = vadd.f32 %v5694, %v5695
    %5697 = vadd.xlane.f32.xlu0 %v5696
    %v5698 = vpop.xlane.xlu0 %5697
    %v5699 = vadd.f32 %v5523, %v5524
    %5700 = vadd.xlane.f32.xlu0 %v5699
    %v5701 = vpop.xlane.xlu0 %5700
    %v5702 = vsel %vm1496, %v5525, 0.0
    %v5703 = vsel %vm1496, %v5526, 0.0
    %v5704 = vadd.f32 %v5702, %v5703
    %5705 = vadd.xlane.f32.xlu0 %v5704
    %v5706 = vpop.xlane.xlu0 %5705
    %v5707 = vadd.f32 %v5527, %v5528
    %5708 = vadd.xlane.f32.xlu0 %v5707
    %v5709 = vpop.xlane.xlu0 %5708
    %v5710 = vsel %vm1496, %v5529, 0.0
    %v5711 = vsel %vm1496, %v5530, 0.0
    %v5712 = vadd.f32 %v5710, %v5711
    %5713 = vadd.xlane.f32.xlu0 %v5712
    %v5714 = vpop.xlane.xlu0 %5713
    %v5715 = vadd.f32 %v5531, %v5532
    %5716 = vadd.xlane.f32.xlu0 %v5715
    %v5717 = vpop.xlane.xlu0 %5716
    %v5718 = vsel %vm1496, %v5533, 0.0
    %v5719 = vsel %vm1496, %v5534, 0.0
    %v5720 = vadd.f32 %v5718, %v5719
    %5721 = vadd.xlane.f32.xlu0 %v5720
    %v5722 = vpop.xlane.xlu0 %5721
    %v5723 = vadd.f32 %v5535, %v5536
    %5724 = vadd.xlane.f32.xlu0 %v5723
    %v5725 = vpop.xlane.xlu0 %5724
    %v5726 = vsel %vm1496, %v5537, 0.0
    %v5727 = vsel %vm1496, %v5538, 0.0
    %v5728 = vadd.f32 %v5726, %v5727
    %5729 = vadd.xlane.f32.xlu0 %v5728
    %v5730 = vpop.xlane.xlu0 %5729
    %v5731 = vadd.f32 %v5539, %v5540
    %5732 = vadd.xlane.f32.xlu0 %v5731
    %v5733 = vpop.xlane.xlu0 %5732
    %v5734 = vsel %vm1496, %v5541, 0.0
    %v5735 = vsel %vm1496, %v5542, 0.0
    %v5736 = vadd.f32 %v5734, %v5735
    %5737 = vadd.xlane.f32.xlu0 %v5736
    %v5738 = vpop.xlane.xlu0 %5737
    %v5739 = vadd.f32 %v5543, %v5544
    %5740 = vadd.xlane.f32.xlu0 %v5739
    %v5741 = vpop.xlane.xlu0 %5740
    %v5742 = vsel %vm1496, %v5545, 0.0
    %v5743 = vsel %vm1496, %v5546, 0.0
    %v5744 = vadd.f32 %v5742, %v5743
    %5745 = vadd.xlane.f32.xlu0 %v5744
    %v5746 = vpop.xlane.xlu0 %5745
    %v5747 = vadd.f32 %v5547, %v5548
    %5748 = vadd.xlane.f32.xlu0 %v5747
    %v5749 = vpop.xlane.xlu0 %5748
    %v5750 = vsel %vm1496, %v5549, 0.0
    %v5751 = vsel %vm1496, %v5550, 0.0
    %v5752 = vadd.f32 %v5750, %v5751
    %5753 = vadd.xlane.f32.xlu0 %v5752
    %v5754 = vpop.xlane.xlu0 %5753
    %v5755 = vadd.f32 %v5551, %v5552
    %5756 = vadd.xlane.f32.xlu0 %v5755
    %v5757 = vpop.xlane.xlu0 %5756
    %v5758 = vsel %vm1496, %v5553, 0.0
    %v5759 = vsel %vm1496, %v5554, 0.0
    %v5760 = vadd.f32 %v5758, %v5759
    %5761 = vadd.xlane.f32.xlu0 %v5760
    %v5762 = vpop.xlane.xlu0 %5761
    %v5763 = vadd.f32 %v5555, %v5556
    %5764 = vadd.xlane.f32.xlu0 %v5763
    %v5765 = vpop.xlane.xlu0 %5764
    %v5766 = vsel %vm1496, %v5557, 0.0
    %v5767 = vsel %vm1496, %v5558, 0.0
    %v5768 = vadd.f32 %v5766, %v5767
    %5769 = vadd.xlane.f32.xlu0 %v5768
    %v5770 = vpop.xlane.xlu0 %5769
    %v5771 = vadd.f32 %v5559, %v5560
    %5772 = vadd.xlane.f32.xlu0 %v5771
    %v5773 = vpop.xlane.xlu0 %5772
    %v5774 = vsel %vm1496, %v5561, 0.0
    %v5775 = vsel %vm1496, %v5562, 0.0
    %v5776 = vadd.f32 %v5774, %v5775
    %5777 = vadd.xlane.f32.xlu0 %v5776
    %v5778 = vpop.xlane.xlu0 %5777
    %v5779 = vadd.f32 %v5563, %v5564
    %5780 = vadd.xlane.f32.xlu0 %v5779
    %v5781 = vpop.xlane.xlu0 %5780
    %v5782 = vsel %vm1496, %v5565, 0.0
    %v5783 = vsel %vm1496, %v5566, 0.0
    %v5784 = vadd.f32 %v5782, %v5783
    %5785 = vadd.xlane.f32.xlu0 %v5784
    %v5786 = vpop.xlane.xlu0 %5785
    %v5787 = vadd.f32 %v5567, %v5568
    %5788 = vadd.xlane.f32.xlu0 %v5787
    %v5789 = vpop.xlane.xlu0 %5788
    %v5790 = vsel %vm1496, %v5569, 0.0
    %v5791 = vsel %vm1496, %v5570, 0.0
    %v5792 = vadd.f32 %v5790, %v5791
    %5793 = vadd.xlane.f32.xlu0 %v5792
    %v5794 = vpop.xlane.xlu0 %5793
    %s5795 = sld [smem:[#allocation3]]
    %v5796 = vstv %s5795
    %v5797 = vadd.f32 %v5573, %v5796
    %v5798 = vadd.f32 %v5578, %v5796
    %v5799 = vadd.f32 %v5581, %v5796
    %v5800 = vadd.f32 %v5586, %v5796
    %v5801 = vadd.f32 %v5589, %v5796
    %v5802 = vadd.f32 %v5594, %v5796
    %v5803 = vadd.f32 %v5597, %v5796
    %v5804 = vadd.f32 %v5602, %v5796
    %v5805 = vadd.f32 %v5605, %v5796
    %v5806 = vadd.f32 %v5610, %v5796
    %v5807 = vadd.f32 %v5613, %v5796
    %v5808 = vadd.f32 %v5618, %v5796
    %v5809 = vadd.f32 %v5621, %v5796
    %v5810 = vadd.f32 %v5626, %v5796
    %v5811 = vadd.f32 %v5629, %v5796
    %v5812 = vadd.f32 %v5634, %v5796
    %v5813 = vadd.f32 %v5637, %v5796
    %v5814 = vadd.f32 %v5642, %v5796
    %v5815 = vadd.f32 %v5645, %v5796
    %v5816 = vadd.f32 %v5650, %v5796
    %v5817 = vadd.f32 %v5653, %v5796
    %v5818 = vadd.f32 %v5658, %v5796
    %v5819 = vadd.f32 %v5661, %v5796
    %v5820 = vadd.f32 %v5666, %v5796
    %v5821 = vadd.f32 %v5669, %v5796
    %v5822 = vadd.f32 %v5674, %v5796
    %v5823 = vadd.f32 %v5677, %v5796
    %v5824 = vadd.f32 %v5682, %v5796
    %v5853 = vlaneseq
    %v5854 = vand.u32 %v5853, 127
    %v5855 = vlaneseq
    %v5856 = vshrl.u32 %v5855, 7
    %v5857 = vsub.s32 %v5854, %v5856
    %v5858 = vrot.slane %v5797, %v5857
    %v5859 = vadd.s32 %v5854, 4294967288
    %v5860 = vlaneseq
    %v5861 = vshrl.u32 %v5860, 7
    %v5862 = vsub.s32 %v5859, %v5861
    %v5863 = vrot.slane %v5798, %v5862
    %vm5864 = vcmask 130112
    %v5865 = vsel %vm5864, %v5863, %v5858
    %v5866 = vlaneseq
    %v5867 = vshrl.u32 %v5866, 7
    %v5868 = vsub.s32 %v5854, %v5867
    %v5869 = vrot.slane %v5799, %v5868
    %v5870 = vlaneseq
    %v5871 = vshrl.u32 %v5870, 7
    %v5872 = vsub.s32 %v5859, %v5871
    %v5873 = vrot.slane %v5800, %v5872
    %v5874 = vsel %vm5864, %v5873, %v5869
    %v5875 = vlaneseq
    %v5876 = vshrl.u32 %v5875, 7
    %v5877 = vsub.s32 %v5854, %v5876
    %v5878 = vrot.slane %v5801, %v5877
    %v5879 = vlaneseq
    %v5880 = vshrl.u32 %v5879, 7
    %v5881 = vsub.s32 %v5859, %v5880
    %v5882 = vrot.slane %v5802, %v5881
    %v5883 = vsel %vm5864, %v5882, %v5878
    %v5884 = vlaneseq
    %v5885 = vshrl.u32 %v5884, 7
    %v5886 = vsub.s32 %v5854, %v5885
    %v5887 = vrot.slane %v5803, %v5886
    %v5888 = vlaneseq
    %v5889 = vshrl.u32 %v5888, 7
    %v5890 = vsub.s32 %v5859, %v5889
    %v5891 = vrot.slane %v5804, %v5890
    %v5892 = vsel %vm5864, %v5891, %v5887
    %v5893 = vlaneseq
    %v5894 = vshrl.u32 %v5893, 7
    %v5895 = vsub.s32 %v5854, %v5894
    %v5896 = vrot.slane %v5805, %v5895
    %v5897 = vlaneseq
    %v5898 = vshrl.u32 %v5897, 7
    %v5899 = vsub.s32 %v5859, %v5898
    %v5900 = vrot.slane %v5806, %v5899
    %v5901 = vsel %vm5864, %v5900, %v5896
    %v5902 = vlaneseq
    %v5903 = vshrl.u32 %v5902, 7
    %v5904 = vsub.s32 %v5854, %v5903
    %v5905 = vrot.slane %v5807, %v5904
    %v5906 = vlaneseq
    %v5907 = vshrl.u32 %v5906, 7
    %v5908 = vsub.s32 %v5859, %v5907
    %v5909 = vrot.slane %v5808, %v5908
    %v5910 = vsel %vm5864, %v5909, %v5905
    %v5911 = vlaneseq
    %v5912 = vshrl.u32 %v5911, 7
    %v5913 = vsub.s32 %v5854, %v5912
    %v5914 = vrot.slane %v5809, %v5913
    %v5915 = vlaneseq
    %v5916 = vshrl.u32 %v5915, 7
    %v5917 = vsub.s32 %v5859, %v5916
    %v5918 = vrot.slane %v5810, %v5917
    %v5919 = vsel %vm5864, %v5918, %v5914
    %v5920 = vlaneseq
    %v5921 = vshrl.u32 %v5920, 7
    %v5922 = vsub.s32 %v5854, %v5921
    %v5923 = vrot.slane %v5811, %v5922
    %v5924 = vlaneseq
    %v5925 = vshrl.u32 %v5924, 7
    %v5926 = vsub.s32 %v5859, %v5925
    %v5927 = vrot.slane %v5812, %v5926
    %v5928 = vsel %vm5864, %v5927, %v5923
    %v5929 = vlaneseq
    %v5930 = vshrl.u32 %v5929, 7
    %v5931 = vsub.s32 %v5854, %v5930
    %v5932 = vrot.slane %v5813, %v5931
    %v5933 = vlaneseq
    %v5934 = vshrl.u32 %v5933, 7
    %v5935 = vsub.s32 %v5859, %v5934
    %v5936 = vrot.slane %v5814, %v5935
    %v5937 = vsel %vm5864, %v5936, %v5932
    %v5938 = vlaneseq
    %v5939 = vshrl.u32 %v5938, 7
    %v5940 = vsub.s32 %v5854, %v5939
    %v5941 = vrot.slane %v5815, %v5940
    %v5942 = vlaneseq
    %v5943 = vshrl.u32 %v5942, 7
    %v5944 = vsub.s32 %v5859, %v5943
    %v5945 = vrot.slane %v5816, %v5944
    %v5946 = vsel %vm5864, %v5945, %v5941
    %v5947 = vlaneseq
    %v5948 = vshrl.u32 %v5947, 7
    %v5949 = vsub.s32 %v5854, %v5948
    %v5950 = vrot.slane %v5817, %v5949
    %v5951 = vlaneseq
    %v5952 = vshrl.u32 %v5951, 7
    %v5953 = vsub.s32 %v5859, %v5952
    %v5954 = vrot.slane %v5818, %v5953
    %v5955 = vsel %vm5864, %v5954, %v5950
    %v5956 = vlaneseq
    %v5957 = vshrl.u32 %v5956, 7
    %v5958 = vsub.s32 %v5854, %v5957
    %v5959 = vrot.slane %v5819, %v5958
    %v5960 = vlaneseq
    %v5961 = vshrl.u32 %v5960, 7
    %v5962 = vsub.s32 %v5859, %v5961
    %v5963 = vrot.slane %v5820, %v5962
    %v5964 = vsel %vm5864, %v5963, %v5959
    %v5965 = vlaneseq
    %v5966 = vshrl.u32 %v5965, 7
    %v5967 = vsub.s32 %v5854, %v5966
    %v5968 = vrot.slane %v5821, %v5967
    %v5969 = vlaneseq
    %v5970 = vshrl.u32 %v5969, 7
    %v5971 = vsub.s32 %v5859, %v5970
    %v5972 = vrot.slane %v5822, %v5971
    %v5973 = vsel %vm5864, %v5972, %v5968
    %v5974 = vlaneseq
    %v5975 = vshrl.u32 %v5974, 7
    %v5976 = vsub.s32 %v5854, %v5975
    %v5977 = vrot.slane %v5823, %v5976
    %v5978 = vlaneseq
    %v5979 = vshrl.u32 %v5978, 7
    %v5980 = vsub.s32 %v5859, %v5979
    %v5981 = vrot.slane %v5824, %v5980
    %v5982 = vsel %vm5864, %v5981, %v5977
    %vm5983 = vcmask 1041409
    %v5984 = vsel %vm5983, %v5874, %v5865
    %vm5985 = vcmask 1042434
    %v5986 = vsel %vm5985, %v5883, %v5984
    %vm5987 = vcmask 1043459
    %v5988 = vsel %vm5987, %v5892, %v5986
    %vm5989 = vcmask 1044484
    %v5990 = vsel %vm5989, %v5901, %v5988
    %vm5991 = vcmask 1045509
    %v5992 = vsel %vm5991, %v5910, %v5990
    %vm5993 = vcmask 1046534
    %v5994 = vsel %vm5993, %v5919, %v5992
    %vm5995 = vcmask 1047559
    %v5996 = vsel %vm5995, %v5928, %v5994
    %v5997 = vsel %vm5983, %v5946, %v5937
    %v5998 = vsel %vm5985, %v5955, %v5997
    %v5999 = vsel %vm5987, %v5964, %v5998
    %v6000 = vsel %vm5989, %v5973, %v5999
    %v6001 = vsel %vm5991, %v5982, %v6000
    %vm6004 = vcmask 113664
    %6005 = vst.msk [vmem:[%s6] sm:$0xff] %vm6004, %v5996
    %vm6006 = vcmask 111616
    %6007 = vst.msk [vmem:[%s6 + $0x8] sm:$0x3f] %vm6006, %v6001
    %s6008 = sld [smem:[#allocation3 + $0x1]]
    %v6009 = vstv %s6008
    %v6010 = vadd.f32 %v5685, %v6009
    %v6011 = vadd.f32 %v5690, %v6009
    %v6012 = vadd.f32 %v5693, %v6009
    %v6013 = vadd.f32 %v5698, %v6009
    %v6014 = vadd.f32 %v5701, %v6009
    %v6015 = vadd.f32 %v5706, %v6009
    %v6016 = vadd.f32 %v5709, %v6009
    %v6017 = vadd.f32 %v5714, %v6009
    %v6018 = vadd.f32 %v5717, %v6009
    %v6019 = vadd.f32 %v5722, %v6009
    %v6020 = vadd.f32 %v5725, %v6009
    %v6021 = vadd.f32 %v5730, %v6009
    %v6022 = vadd.f32 %v5733, %v6009
    %v6023 = vadd.f32 %v5738, %v6009
    %v6024 = vadd.f32 %v5741, %v6009
    %v6025 = vadd.f32 %v5746, %v6009
    %v6026 = vadd.f32 %v5749, %v6009
    %v6027 = vadd.f32 %v5754, %v6009
    %v6028 = vadd.f32 %v5757, %v6009
    %v6029 = vadd.f32 %v5762, %v6009
    %v6030 = vadd.f32 %v5765, %v6009
    %v6031 = vadd.f32 %v5770, %v6009
    %v6032 = vadd.f32 %v5773, %v6009
    %v6033 = vadd.f32 %v5778, %v6009
    %v6034 = vadd.f32 %v5781, %v6009
    %v6035 = vadd.f32 %v5786, %v6009
    %v6036 = vadd.f32 %v5789, %v6009
    %v6037 = vadd.f32 %v5794, %v6009
    %v6066 = vlaneseq
    %v6067 = vshrl.u32 %v6066, 7
    %v6068 = vsub.s32 %v5854, %v6067
    %v6069 = vrot.slane %v6010, %v6068
    %v6070 = vlaneseq
    %v6071 = vshrl.u32 %v6070, 7
    %v6072 = vsub.s32 %v5859, %v6071
    %v6073 = vrot.slane %v6011, %v6072
    %v6074 = vsel %vm5864, %v6073, %v6069
    %v6075 = vlaneseq
    %v6076 = vshrl.u32 %v6075, 7
    %v6077 = vsub.s32 %v5854, %v6076
    %v6078 = vrot.slane %v6012, %v6077
    %v6079 = vlaneseq
    %v6080 = vshrl.u32 %v6079, 7
    %v6081 = vsub.s32 %v5859, %v6080
    %v6082 = vrot.slane %v6013, %v6081
    %v6083 = vsel %vm5864, %v6082, %v6078
    %v6084 = vlaneseq
    %v6085 = vshrl.u32 %v6084, 7
    %v6086 = vsub.s32 %v5854, %v6085
    %v6087 = vrot.slane %v6014, %v6086
    %v6088 = vlaneseq
    %v6089 = vshrl.u32 %v6088, 7
    %v6090 = vsub.s32 %v5859, %v6089
    %v6091 = vrot.slane %v6015, %v6090
    %v6092 = vsel %vm5864, %v6091, %v6087
    %v6093 = vlaneseq
    %v6094 = vshrl.u32 %v6093, 7
    %v6095 = vsub.s32 %v5854, %v6094
    %v6096 = vrot.slane %v6016, %v6095
    %v6097 = vlaneseq
    %v6098 = vshrl.u32 %v6097, 7
    %v6099 = vsub.s32 %v5859, %v6098
    %v6100 = vrot.slane %v6017, %v6099
    %v6101 = vsel %vm5864, %v6100, %v6096
    %v6102 = vlaneseq
    %v6103 = vshrl.u32 %v6102, 7
    %v6104 = vsub.s32 %v5854, %v6103
    %v6105 = vrot.slane %v6018, %v6104
    %v6106 = vlaneseq
    %v6107 = vshrl.u32 %v6106, 7
    %v6108 = vsub.s32 %v5859, %v6107
    %v6109 = vrot.slane %v6019, %v6108
    %v6110 = vsel %vm5864, %v6109, %v6105
    %v6111 = vlaneseq
    %v6112 = vshrl.u32 %v6111, 7
    %v6113 = vsub.s32 %v5854, %v6112
    %v6114 = vrot.slane %v6020, %v6113
    %v6115 = vlaneseq
    %v6116 = vshrl.u32 %v6115, 7
    %v6117 = vsub.s32 %v5859, %v6116
    %v6118 = vrot.slane %v6021, %v6117
    %v6119 = vsel %vm5864, %v6118, %v6114
    %v6120 = vlaneseq
    %v6121 = vshrl.u32 %v6120, 7
    %v6122 = vsub.s32 %v5854, %v6121
    %v6123 = vrot.slane %v6022, %v6122
    %v6124 = vlaneseq
    %v6125 = vshrl.u32 %v6124, 7
    %v6126 = vsub.s32 %v5859, %v6125
    %v6127 = vrot.slane %v6023, %v6126
    %v6128 = vsel %vm5864, %v6127, %v6123
    %v6129 = vlaneseq
    %v6130 = vshrl.u32 %v6129, 7
    %v6131 = vsub.s32 %v5854, %v6130
    %v6132 = vrot.slane %v6024, %v6131
    %v6133 = vlaneseq
    %v6134 = vshrl.u32 %v6133, 7
    %v6135 = vsub.s32 %v5859, %v6134
    %v6136 = vrot.slane %v6025, %v6135
    %v6137 = vsel %vm5864, %v6136, %v6132
    %v6138 = vlaneseq
    %v6139 = vshrl.u32 %v6138, 7
    %v6140 = vsub.s32 %v5854, %v6139
    %v6141 = vrot.slane %v6026, %v6140
    %v6142 = vlaneseq
    %v6143 = vshrl.u32 %v6142, 7
    %v6144 = vsub.s32 %v5859, %v6143
    %v6145 = vrot.slane %v6027, %v6144
    %v6146 = vsel %vm5864, %v6145, %v6141
    %v6147 = vlaneseq
    %v6148 = vshrl.u32 %v6147, 7
    %v6149 = vsub.s32 %v5854, %v6148
    %v6150 = vrot.slane %v6028, %v6149
    %v6151 = vlaneseq
    %v6152 = vshrl.u32 %v6151, 7
    %v6153 = vsub.s32 %v5859, %v6152
    %v6154 = vrot.slane %v6029, %v6153
    %v6155 = vsel %vm5864, %v6154, %v6150
    %v6156 = vlaneseq
    %v6157 = vshrl.u32 %v6156, 7
    %v6158 = vsub.s32 %v5854, %v6157
    %v6159 = vrot.slane %v6030, %v6158
    %v6160 = vlaneseq
    %v6161 = vshrl.u32 %v6160, 7
    %v6162 = vsub.s32 %v5859, %v6161
    %v6163 = vrot.slane %v6031, %v6162
    %v6164 = vsel %vm5864, %v6163, %v6159
    %v6165 = vlaneseq
    %v6166 = vshrl.u32 %v6165, 7
    %v6167 = vsub.s32 %v5854, %v6166
    %v6168 = vrot.slane %v6032, %v6167
    %v6169 = vlaneseq
    %v6170 = vshrl.u32 %v6169, 7
    %v6171 = vsub.s32 %v5859, %v6170
    %v6172 = vrot.slane %v6033, %v6171
    %v6173 = vsel %vm5864, %v6172, %v6168
    %v6174 = vlaneseq
    %v6175 = vshrl.u32 %v6174, 7
    %v6176 = vsub.s32 %v5854, %v6175
    %v6177 = vrot.slane %v6034, %v6176
    %v6178 = vlaneseq
    %v6179 = vshrl.u32 %v6178, 7
    %v6180 = vsub.s32 %v5859, %v6179
    %v6181 = vrot.slane %v6035, %v6180
    %v6182 = vsel %vm5864, %v6181, %v6177
    %v6183 = vlaneseq
    %v6184 = vshrl.u32 %v6183, 7
    %v6185 = vsub.s32 %v5854, %v6184
    %v6186 = vrot.slane %v6036, %v6185
    %v6187 = vlaneseq
    %v6188 = vshrl.u32 %v6187, 7
    %v6189 = vsub.s32 %v5859, %v6188
    %v6190 = vrot.slane %v6037, %v6189
    %v6191 = vsel %vm5864, %v6190, %v6186
    %v6192 = vsel %vm5983, %v6083, %v6074
    %v6193 = vsel %vm5985, %v6092, %v6192
    %v6194 = vsel %vm5987, %v6101, %v6193
    %v6195 = vsel %vm5989, %v6110, %v6194
    %v6196 = vsel %vm5991, %v6119, %v6195
    %v6197 = vsel %vm5993, %v6128, %v6196
    %v6198 = vsel %vm5995, %v6137, %v6197
    %v6199 = vsel %vm5983, %v6155, %v6146
    %v6200 = vsel %vm5985, %v6164, %v6199
    %v6201 = vsel %vm5987, %v6173, %v6200
    %v6202 = vsel %vm5989, %v6182, %v6201
    %v6203 = vsel %vm5991, %v6191, %v6202
    %s6206 = scalar_lea.vmem %s6, 16
    %6207 = vst.msk [vmem:[%s6206] sm:$0xff] %vm6004, %v6198
    %6208 = vst.msk [vmem:[%s6206 + $0x8] sm:$0x3f] %vm6006, %v6203
    %v6209 = vld [vmem:[%s3] sm:$0xff]
    %v6210 = vld [vmem:[%s3 + $0x8] sm:$0x1]
    %v6211 = vld [vmem:[%s2] sm:$0xff]
    %v6212 = vld [vmem:[%s2 + $0x8] sm:$0x3f]
    %v6213 = vld [vmem:[%s2 + $0x10] sm:$0xff]
    %v6214 = vld [vmem:[%s2 + $0x18] sm:$0x3f]
    %v6215 = vld [vmem:[%s2 + $0x20] sm:$0xff]
    %v6216 = vld [vmem:[%s2 + $0x28] sm:$0x3f]
    %v6217 = vld [vmem:[%s2 + $0x30] sm:$0xff]
    %v6218 = vld [vmem:[%s2 + $0x38] sm:$0x3f]
    %v6219 = vld [vmem:[%s2 + $0x40] sm:$0xff]
    %v6220 = vld [vmem:[%s2 + $0x48] sm:$0x3f]
    %v6221 = vld [vmem:[%s2 + $0x50] sm:$0xff]
    %v6222 = vld [vmem:[%s2 + $0x58] sm:$0x3f]
    %v6223 = vld [vmem:[%s2 + $0x60] sm:$0xff]
    %v6224 = vld [vmem:[%s2 + $0x68] sm:$0x3f]
    %v6225 = vld [vmem:[%s2 + $0x70] sm:$0xff]
    %v6226 = vld [vmem:[%s2 + $0x78] sm:$0x3f]
    %v6227 = vld [vmem:[%s2 + $0x80] sm:$0xff]
    %v6228 = vld [vmem:[%s2 + $0x88] sm:$0x3f]
    %v6229 = vld [vmem:[%s2 + $0x90] sm:$0xff]
    %v6230 = vld [vmem:[%s2 + $0x98] sm:$0x3f]
    %v6231 = vld [vmem:[%s2 + $0xa0] sm:$0xff]
    %v6232 = vld [vmem:[%s2 + $0xa8] sm:$0x3f]
    %v6233 = vld [vmem:[%s2 + $0xb0] sm:$0xff]
    %v6234 = vld [vmem:[%s2 + $0xb8] sm:$0x3f]
    %v6235 = vld [vmem:[%s2 + $0xc0] sm:$0xff]
    %v6236 = vld [vmem:[%s2 + $0xc8] sm:$0x3f]
    %v6237 = vld [vmem:[%s2 + $0xd0] sm:$0xff]
    %v6238 = vld [vmem:[%s2 + $0xd8] sm:$0x3f]
    %v6239 = vlaneseq
    %v6240 = vshrl.u32 %v6239, 7
    %v6241 = vsub.s32 0, %v6240
    %v6242 = vrot.slane %v6209, %v6241
    %v6243 = vmul.f32 %v6211, %v6242
    %v6244 = vmul.f32 %v6212, %v6242
    %v6245 = vmul.f32 %v6213, %v6242
    %v6246 = vmul.f32 %v6214, %v6242
    %v6247 = vmul.f32 %v6215, %v6242
    %v6248 = vmul.f32 %v6216, %v6242
    %v6249 = vmul.f32 %v6217, %v6242
    %v6250 = vmul.f32 %v6218, %v6242
    %v6251 = vmul.f32 %v6219, %v6242
    %v6252 = vmul.f32 %v6220, %v6242
    %v6253 = vmul.f32 %v6221, %v6242
    %v6254 = vmul.f32 %v6222, %v6242
    %v6255 = vmul.f32 %v6223, %v6242
    %v6256 = vmul.f32 %v6224, %v6242
    %v6257 = vmul.f32 %v6225, %v6242
    %v6258 = vmul.f32 %v6226, %v6242
    %v6259 = vmul.f32 %v6227, %v6242
    %v6260 = vmul.f32 %v6228, %v6242
    %v6261 = vmul.f32 %v6229, %v6242
    %v6262 = vmul.f32 %v6230, %v6242
    %v6263 = vmul.f32 %v6231, %v6242
    %v6264 = vmul.f32 %v6232, %v6242
    %v6265 = vmul.f32 %v6233, %v6242
    %v6266 = vmul.f32 %v6234, %v6242
    %v6267 = vmul.f32 %v6235, %v6242
    %v6268 = vmul.f32 %v6236, %v6242
    %v6269 = vmul.f32 %v6237, %v6242
    %v6270 = vmul.f32 %v6238, %v6242
    %v6271 = vadd.f32 %v6243, 0.0
    %v6272 = vadd.f32 %v6244, 0.0
    %v6273 = vadd.f32 %v6245, 0.0
    %v6274 = vadd.f32 %v6246, 0.0
    %v6275 = vadd.f32 %v6247, 0.0
    %v6276 = vadd.f32 %v6248, 0.0
    %v6277 = vadd.f32 %v6249, 0.0
    %v6278 = vadd.f32 %v6250, 0.0
    %v6279 = vadd.f32 %v6251, 0.0
    %v6280 = vadd.f32 %v6252, 0.0
    %v6281 = vadd.f32 %v6253, 0.0
    %v6282 = vadd.f32 %v6254, 0.0
    %v6283 = vadd.f32 %v6255, 0.0
    %v6284 = vadd.f32 %v6256, 0.0
    %v6285 = vadd.f32 %v6257, 0.0
    %v6286 = vadd.f32 %v6258, 0.0
    %v6287 = vadd.f32 %v6259, 0.0
    %v6288 = vadd.f32 %v6260, 0.0
    %v6289 = vadd.f32 %v6261, 0.0
    %v6290 = vadd.f32 %v6262, 0.0
    %v6291 = vadd.f32 %v6263, 0.0
    %v6292 = vadd.f32 %v6264, 0.0
    %v6293 = vadd.f32 %v6265, 0.0
    %v6294 = vadd.f32 %v6266, 0.0
    %v6295 = vadd.f32 %v6267, 0.0
    %v6296 = vadd.f32 %v6268, 0.0
    %v6297 = vadd.f32 %v6269, 0.0
    %v6298 = vadd.f32 %v6270, 0.0
    %v6299 = vld [vmem:[%s2 + $0x1] sm:$0xff]
    %v6300 = vld [vmem:[%s2 + $0x9] sm:$0x3f]
    %v6301 = vld [vmem:[%s2 + $0x11] sm:$0xff]
    %v6302 = vld [vmem:[%s2 + $0x19] sm:$0x3f]
    %v6303 = vld [vmem:[%s2 + $0x21] sm:$0xff]
    %v6304 = vld [vmem:[%s2 + $0x29] sm:$0x3f]
    %v6305 = vld [vmem:[%s2 + $0x31] sm:$0xff]
    %v6306 = vld [vmem:[%s2 + $0x39] sm:$0x3f]
    %v6307 = vld [vmem:[%s2 + $0x41] sm:$0xff]
    %v6308 = vld [vmem:[%s2 + $0x49] sm:$0x3f]
    %v6309 = vld [vmem:[%s2 + $0x51] sm:$0xff]
    %v6310 = vld [vmem:[%s2 + $0x59] sm:$0x3f]
    %v6311 = vld [vmem:[%s2 + $0x61] sm:$0xff]
    %v6312 = vld [vmem:[%s2 + $0x69] sm:$0x3f]
    %v6313 = vld [vmem:[%s2 + $0x71] sm:$0xff]
    %v6314 = vld [vmem:[%s2 + $0x79] sm:$0x3f]
    %v6315 = vld [vmem:[%s2 + $0x81] sm:$0xff]
    %v6316 = vld [vmem:[%s2 + $0x89] sm:$0x3f]
    %v6317 = vld [vmem:[%s2 + $0x91] sm:$0xff]
    %v6318 = vld [vmem:[%s2 + $0x99] sm:$0x3f]
    %v6319 = vld [vmem:[%s2 + $0xa1] sm:$0xff]
    %v6320 = vld [vmem:[%s2 + $0xa9] sm:$0x3f]
    %v6321 = vld [vmem:[%s2 + $0xb1] sm:$0xff]
    %v6322 = vld [vmem:[%s2 + $0xb9] sm:$0x3f]
    %v6323 = vld [vmem:[%s2 + $0xc1] sm:$0xff]
    %v6324 = vld [vmem:[%s2 + $0xc9] sm:$0x3f]
    %v6325 = vld [vmem:[%s2 + $0xd1] sm:$0xff]
    %v6326 = vld [vmem:[%s2 + $0xd9] sm:$0x3f]
    %v6327 = vlaneseq
    %v6328 = vshrl.u32 %v6327, 7
    %v6329 = vsub.s32 1, %v6328
    %v6330 = vrot.slane %v6209, %v6329
    %v6331 = vmul.f32 %v6299, %v6330
    %v6332 = vmul.f32 %v6300, %v6330
    %v6333 = vmul.f32 %v6301, %v6330
    %v6334 = vmul.f32 %v6302, %v6330
    %v6335 = vmul.f32 %v6303, %v6330
    %v6336 = vmul.f32 %v6304, %v6330
    %v6337 = vmul.f32 %v6305, %v6330
    %v6338 = vmul.f32 %v6306, %v6330
    %v6339 = vmul.f32 %v6307, %v6330
    %v6340 = vmul.f32 %v6308, %v6330
    %v6341 = vmul.f32 %v6309, %v6330
    %v6342 = vmul.f32 %v6310, %v6330
    %v6343 = vmul.f32 %v6311, %v6330
    %v6344 = vmul.f32 %v6312, %v6330
    %v6345 = vmul.f32 %v6313, %v6330
    %v6346 = vmul.f32 %v6314, %v6330
    %v6347 = vmul.f32 %v6315, %v6330
    %v6348 = vmul.f32 %v6316, %v6330
    %v6349 = vmul.f32 %v6317, %v6330
    %v6350 = vmul.f32 %v6318, %v6330
    %v6351 = vmul.f32 %v6319, %v6330
    %v6352 = vmul.f32 %v6320, %v6330
    %v6353 = vmul.f32 %v6321, %v6330
    %v6354 = vmul.f32 %v6322, %v6330
    %v6355 = vmul.f32 %v6323, %v6330
    %v6356 = vmul.f32 %v6324, %v6330
    %v6357 = vmul.f32 %v6325, %v6330
    %v6358 = vmul.f32 %v6326, %v6330
    %v6359 = vadd.f32 %v6271, %v6331
    %v6360 = vadd.f32 %v6272, %v6332
    %v6361 = vadd.f32 %v6273, %v6333
    %v6362 = vadd.f32 %v6274, %v6334
    %v6363 = vadd.f32 %v6275, %v6335
    %v6364 = vadd.f32 %v6276, %v6336
    %v6365 = vadd.f32 %v6277, %v6337
    %v6366 = vadd.f32 %v6278, %v6338
    %v6367 = vadd.f32 %v6279, %v6339
    %v6368 = vadd.f32 %v6280, %v6340
    %v6369 = vadd.f32 %v6281, %v6341
    %v6370 = vadd.f32 %v6282, %v6342
    %v6371 = vadd.f32 %v6283, %v6343
    %v6372 = vadd.f32 %v6284, %v6344
    %v6373 = vadd.f32 %v6285, %v6345
    %v6374 = vadd.f32 %v6286, %v6346
    %v6375 = vadd.f32 %v6287, %v6347
    %v6376 = vadd.f32 %v6288, %v6348
    %v6377 = vadd.f32 %v6289, %v6349
    %v6378 = vadd.f32 %v6290, %v6350
    %v6379 = vadd.f32 %v6291, %v6351
    %v6380 = vadd.f32 %v6292, %v6352
    %v6381 = vadd.f32 %v6293, %v6353
    %v6382 = vadd.f32 %v6294, %v6354
    %v6383 = vadd.f32 %v6295, %v6355
    %v6384 = vadd.f32 %v6296, %v6356
    %v6385 = vadd.f32 %v6297, %v6357
    %v6386 = vadd.f32 %v6298, %v6358
    %v6387 = vld [vmem:[%s2 + $0x2] sm:$0xff]
    %v6388 = vld [vmem:[%s2 + $0xa] sm:$0x3f]
    %v6389 = vld [vmem:[%s2 + $0x12] sm:$0xff]
    %v6390 = vld [vmem:[%s2 + $0x1a] sm:$0x3f]
    %v6391 = vld [vmem:[%s2 + $0x22] sm:$0xff]
    %v6392 = vld [vmem:[%s2 + $0x2a] sm:$0x3f]
    %v6393 = vld [vmem:[%s2 + $0x32] sm:$0xff]
    %v6394 = vld [vmem:[%s2 + $0x3a] sm:$0x3f]
    %v6395 = vld [vmem:[%s2 + $0x42] sm:$0xff]
    %v6396 = vld [vmem:[%s2 + $0x4a] sm:$0x3f]
    %v6397 = vld [vmem:[%s2 + $0x52] sm:$0xff]
    %v6398 = vld [vmem:[%s2 + $0x5a] sm:$0x3f]
    %v6399 = vld [vmem:[%s2 + $0x62] sm:$0xff]
    %v6400 = vld [vmem:[%s2 + $0x6a] sm:$0x3f]
    %v6401 = vld [vmem:[%s2 + $0x72] sm:$0xff]
    %v6402 = vld [vmem:[%s2 + $0x7a] sm:$0x3f]
    %v6403 = vld [vmem:[%s2 + $0x82] sm:$0xff]
    %v6404 = vld [vmem:[%s2 + $0x8a] sm:$0x3f]
    %v6405 = vld [vmem:[%s2 + $0x92] sm:$0xff]
    %v6406 = vld [vmem:[%s2 + $0x9a] sm:$0x3f]
    %v6407 = vld [vmem:[%s2 + $0xa2] sm:$0xff]
    %v6408 = vld [vmem:[%s2 + $0xaa] sm:$0x3f]
    %v6409 = vld [vmem:[%s2 + $0xb2] sm:$0xff]
    %v6410 = vld [vmem:[%s2 + $0xba] sm:$0x3f]
    %v6411 = vld [vmem:[%s2 + $0xc2] sm:$0xff]
    %v6412 = vld [vmem:[%s2 + $0xca] sm:$0x3f]
    %v6413 = vld [vmem:[%s2 + $0xd2] sm:$0xff]
    %v6414 = vld [vmem:[%s2 + $0xda] sm:$0x3f]
    %v6415 = vlaneseq
    %v6416 = vshrl.u32 %v6415, 7
    %v6417 = vsub.s32 2, %v6416
    %v6418 = vrot.slane %v6209, %v6417
    %v6419 = vmul.f32 %v6387, %v6418
    %v6420 = vmul.f32 %v6388, %v6418
    %v6421 = vmul.f32 %v6389, %v6418
    %v6422 = vmul.f32 %v6390, %v6418
    %v6423 = vmul.f32 %v6391, %v6418
    %v6424 = vmul.f32 %v6392, %v6418
    %v6425 = vmul.f32 %v6393, %v6418
    %v6426 = vmul.f32 %v6394, %v6418
    %v6427 = vmul.f32 %v6395, %v6418
    %v6428 = vmul.f32 %v6396, %v6418
    %v6429 = vmul.f32 %v6397, %v6418
    %v6430 = vmul.f32 %v6398, %v6418
    %v6431 = vmul.f32 %v6399, %v6418
    %v6432 = vmul.f32 %v6400, %v6418
    %v6433 = vmul.f32 %v6401, %v6418
    %v6434 = vmul.f32 %v6402, %v6418
    %v6435 = vmul.f32 %v6403, %v6418
    %v6436 = vmul.f32 %v6404, %v6418
    %v6437 = vmul.f32 %v6405, %v6418
    %v6438 = vmul.f32 %v6406, %v6418
    %v6439 = vmul.f32 %v6407, %v6418
    %v6440 = vmul.f32 %v6408, %v6418
    %v6441 = vmul.f32 %v6409, %v6418
    %v6442 = vmul.f32 %v6410, %v6418
    %v6443 = vmul.f32 %v6411, %v6418
    %v6444 = vmul.f32 %v6412, %v6418
    %v6445 = vmul.f32 %v6413, %v6418
    %v6446 = vmul.f32 %v6414, %v6418
    %v6447 = vadd.f32 %v6359, %v6419
    %v6448 = vadd.f32 %v6360, %v6420
    %v6449 = vadd.f32 %v6361, %v6421
    %v6450 = vadd.f32 %v6362, %v6422
    %v6451 = vadd.f32 %v6363, %v6423
    %v6452 = vadd.f32 %v6364, %v6424
    %v6453 = vadd.f32 %v6365, %v6425
    %v6454 = vadd.f32 %v6366, %v6426
    %v6455 = vadd.f32 %v6367, %v6427
    %v6456 = vadd.f32 %v6368, %v6428
    %v6457 = vadd.f32 %v6369, %v6429
    %v6458 = vadd.f32 %v6370, %v6430
    %v6459 = vadd.f32 %v6371, %v6431
    %v6460 = vadd.f32 %v6372, %v6432
    %v6461 = vadd.f32 %v6373, %v6433
    %v6462 = vadd.f32 %v6374, %v6434
    %v6463 = vadd.f32 %v6375, %v6435
    %v6464 = vadd.f32 %v6376, %v6436
    %v6465 = vadd.f32 %v6377, %v6437
    %v6466 = vadd.f32 %v6378, %v6438
    %v6467 = vadd.f32 %v6379, %v6439
    %v6468 = vadd.f32 %v6380, %v6440
    %v6469 = vadd.f32 %v6381, %v6441
    %v6470 = vadd.f32 %v6382, %v6442
    %v6471 = vadd.f32 %v6383, %v6443
    %v6472 = vadd.f32 %v6384, %v6444
    %v6473 = vadd.f32 %v6385, %v6445
    %v6474 = vadd.f32 %v6386, %v6446
    %s6475 = scalar_lea.vmem %s2, 16
    %v6476 = vld [vmem:[%s6475] sm:$0xff]
    %v6477 = vld [vmem:[%s6475 + $0x8] sm:$0x3f]
    %v6478 = vld [vmem:[%s6475 + $0x10] sm:$0xff]
    %v6479 = vld [vmem:[%s6475 + $0x18] sm:$0x3f]
    %v6480 = vld [vmem:[%s6475 + $0x20] sm:$0xff]
    %v6481 = vld [vmem:[%s6475 + $0x28] sm:$0x3f]
    %v6482 = vld [vmem:[%s6475 + $0x30] sm:$0xff]
    %v6483 = vld [vmem:[%s6475 + $0x38] sm:$0x3f]
    %v6484 = vld [vmem:[%s6475 + $0x40] sm:$0xff]
    %v6485 = vld [vmem:[%s6475 + $0x48] sm:$0x3f]
    %v6486 = vld [vmem:[%s6475 + $0x50] sm:$0xff]
    %v6487 = vld [vmem:[%s6475 + $0x58] sm:$0x3f]
    %v6488 = vld [vmem:[%s6475 + $0x60] sm:$0xff]
    %v6489 = vld [vmem:[%s6475 + $0x68] sm:$0x3f]
    %v6490 = vld [vmem:[%s6475 + $0x70] sm:$0xff]
    %v6491 = vld [vmem:[%s6475 + $0x78] sm:$0x3f]
    %v6492 = vld [vmem:[%s6475 + $0x80] sm:$0xff]
    %v6493 = vld [vmem:[%s6475 + $0x88] sm:$0x3f]
    %v6494 = vld [vmem:[%s6475 + $0x90] sm:$0xff]
    %v6495 = vld [vmem:[%s6475 + $0x98] sm:$0x3f]
    %v6496 = vld [vmem:[%s6475 + $0xa0] sm:$0xff]
    %v6497 = vld [vmem:[%s6475 + $0xa8] sm:$0x3f]
    %v6498 = vld [vmem:[%s6475 + $0xb0] sm:$0xff]
    %v6499 = vld [vmem:[%s6475 + $0xb8] sm:$0x3f]
    %v6500 = vld [vmem:[%s6475 + $0xc0] sm:$0xff]
    %v6501 = vld [vmem:[%s6475 + $0xc8] sm:$0x3f]
    %v6502 = vld [vmem:[%s6475 + $0xd0] sm:$0xff]
    %v6503 = vld [vmem:[%s6475 + $0xd8] sm:$0x3f]
    %v6504 = vlaneseq
    %v6505 = vshrl.u32 %v6504, 7
    %v6506 = vsub.s32 3, %v6505
    %v6507 = vrot.slane %v6209, %v6506
    %v6508 = vmul.f32 %v6476, %v6507
    %v6509 = vmul.f32 %v6477, %v6507
    %v6510 = vmul.f32 %v6478, %v6507
    %v6511 = vmul.f32 %v6479, %v6507
    %v6512 = vmul.f32 %v6480, %v6507
    %v6513 = vmul.f32 %v6481, %v6507
    %v6514 = vmul.f32 %v6482, %v6507
    %v6515 = vmul.f32 %v6483, %v6507
    %v6516 = vmul.f32 %v6484, %v6507
    %v6517 = vmul.f32 %v6485, %v6507
    %v6518 = vmul.f32 %v6486, %v6507
    %v6519 = vmul.f32 %v6487, %v6507
    %v6520 = vmul.f32 %v6488, %v6507
    %v6521 = vmul.f32 %v6489, %v6507
    %v6522 = vmul.f32 %v6490, %v6507
    %v6523 = vmul.f32 %v6491, %v6507
    %v6524 = vmul.f32 %v6492, %v6507
    %v6525 = vmul.f32 %v6493, %v6507
    %v6526 = vmul.f32 %v6494, %v6507
    %v6527 = vmul.f32 %v6495, %v6507
    %v6528 = vmul.f32 %v6496, %v6507
    %v6529 = vmul.f32 %v6497, %v6507
    %v6530 = vmul.f32 %v6498, %v6507
    %v6531 = vmul.f32 %v6499, %v6507
    %v6532 = vmul.f32 %v6500, %v6507
    %v6533 = vmul.f32 %v6501, %v6507
    %v6534 = vmul.f32 %v6502, %v6507
    %v6535 = vmul.f32 %v6503, %v6507
    %v6536 = vadd.f32 %v6447, %v6508
    %v6537 = vadd.f32 %v6448, %v6509
    %v6538 = vadd.f32 %v6449, %v6510
    %v6539 = vadd.f32 %v6450, %v6511
    %v6540 = vadd.f32 %v6451, %v6512
    %v6541 = vadd.f32 %v6452, %v6513
    %v6542 = vadd.f32 %v6453, %v6514
    %v6543 = vadd.f32 %v6454, %v6515
    %v6544 = vadd.f32 %v6455, %v6516
    %v6545 = vadd.f32 %v6456, %v6517
    %v6546 = vadd.f32 %v6457, %v6518
    %v6547 = vadd.f32 %v6458, %v6519
    %v6548 = vadd.f32 %v6459, %v6520
    %v6549 = vadd.f32 %v6460, %v6521
    %v6550 = vadd.f32 %v6461, %v6522
    %v6551 = vadd.f32 %v6462, %v6523
    %v6552 = vadd.f32 %v6463, %v6524
    %v6553 = vadd.f32 %v6464, %v6525
    %v6554 = vadd.f32 %v6465, %v6526
    %v6555 = vadd.f32 %v6466, %v6527
    %v6556 = vadd.f32 %v6467, %v6528
    %v6557 = vadd.f32 %v6468, %v6529
    %v6558 = vadd.f32 %v6469, %v6530
    %v6559 = vadd.f32 %v6470, %v6531
    %v6560 = vadd.f32 %v6471, %v6532
    %v6561 = vadd.f32 %v6472, %v6533
    %v6562 = vadd.f32 %v6473, %v6534
    %v6563 = vadd.f32 %v6474, %v6535
    %v6564 = vld [vmem:[%s6475 + $0x1] sm:$0xff]
    %v6565 = vld [vmem:[%s6475 + $0x9] sm:$0x3f]
    %v6566 = vld [vmem:[%s6475 + $0x11] sm:$0xff]
    %v6567 = vld [vmem:[%s6475 + $0x19] sm:$0x3f]
    %v6568 = vld [vmem:[%s6475 + $0x21] sm:$0xff]
    %v6569 = vld [vmem:[%s6475 + $0x29] sm:$0x3f]
    %v6570 = vld [vmem:[%s6475 + $0x31] sm:$0xff]
    %v6571 = vld [vmem:[%s6475 + $0x39] sm:$0x3f]
    %v6572 = vld [vmem:[%s6475 + $0x41] sm:$0xff]
    %v6573 = vld [vmem:[%s6475 + $0x49] sm:$0x3f]
    %v6574 = vld [vmem:[%s6475 + $0x51] sm:$0xff]
    %v6575 = vld [vmem:[%s6475 + $0x59] sm:$0x3f]
    %v6576 = vld [vmem:[%s6475 + $0x61] sm:$0xff]
    %v6577 = vld [vmem:[%s6475 + $0x69] sm:$0x3f]
    %v6578 = vld [vmem:[%s6475 + $0x71] sm:$0xff]
    %v6579 = vld [vmem:[%s6475 + $0x79] sm:$0x3f]
    %v6580 = vld [vmem:[%s6475 + $0x81] sm:$0xff]
    %v6581 = vld [vmem:[%s6475 + $0x89] sm:$0x3f]
    %v6582 = vld [vmem:[%s6475 + $0x91] sm:$0xff]
    %v6583 = vld [vmem:[%s6475 + $0x99] sm:$0x3f]
    %v6584 = vld [vmem:[%s6475 + $0xa1] sm:$0xff]
    %v6585 = vld [vmem:[%s6475 + $0xa9] sm:$0x3f]
    %v6586 = vld [vmem:[%s6475 + $0xb1] sm:$0xff]
    %v6587 = vld [vmem:[%s6475 + $0xb9] sm:$0x3f]
    %v6588 = vld [vmem:[%s6475 + $0xc1] sm:$0xff]
    %v6589 = vld [vmem:[%s6475 + $0xc9] sm:$0x3f]
    %v6590 = vld [vmem:[%s6475 + $0xd1] sm:$0xff]
    %v6591 = vld [vmem:[%s6475 + $0xd9] sm:$0x3f]
    %v6592 = vlaneseq
    %v6593 = vshrl.u32 %v6592, 7
    %v6594 = vsub.s32 4, %v6593
    %v6595 = vrot.slane %v6209, %v6594
    %v6596 = vmul.f32 %v6564, %v6595
    %v6597 = vmul.f32 %v6565, %v6595
    %v6598 = vmul.f32 %v6566, %v6595
    %v6599 = vmul.f32 %v6567, %v6595
    %v6600 = vmul.f32 %v6568, %v6595
    %v6601 = vmul.f32 %v6569, %v6595
    %v6602 = vmul.f32 %v6570, %v6595
    %v6603 = vmul.f32 %v6571, %v6595
    %v6604 = vmul.f32 %v6572, %v6595
    %v6605 = vmul.f32 %v6573, %v6595
    %v6606 = vmul.f32 %v6574, %v6595
    %v6607 = vmul.f32 %v6575, %v6595
    %v6608 = vmul.f32 %v6576, %v6595
    %v6609 = vmul.f32 %v6577, %v6595
    %v6610 = vmul.f32 %v6578, %v6595
    %v6611 = vmul.f32 %v6579, %v6595
    %v6612 = vmul.f32 %v6580, %v6595
    %v6613 = vmul.f32 %v6581, %v6595
    %v6614 = vmul.f32 %v6582, %v6595
    %v6615 = vmul.f32 %v6583, %v6595
    %v6616 = vmul.f32 %v6584, %v6595
    %v6617 = vmul.f32 %v6585, %v6595
    %v6618 = vmul.f32 %v6586, %v6595
    %v6619 = vmul.f32 %v6587, %v6595
    %v6620 = vmul.f32 %v6588, %v6595
    %v6621 = vmul.f32 %v6589, %v6595
    %v6622 = vmul.f32 %v6590, %v6595
    %v6623 = vmul.f32 %v6591, %v6595
    %v6624 = vadd.f32 %v6536, %v6596
    %v6625 = vadd.f32 %v6537, %v6597
    %v6626 = vadd.f32 %v6538, %v6598
    %v6627 = vadd.f32 %v6539, %v6599
    %v6628 = vadd.f32 %v6540, %v6600
    %v6629 = vadd.f32 %v6541, %v6601
    %v6630 = vadd.f32 %v6542, %v6602
    %v6631 = vadd.f32 %v6543, %v6603
    %v6632 = vadd.f32 %v6544, %v6604
    %v6633 = vadd.f32 %v6545, %v6605
    %v6634 = vadd.f32 %v6546, %v6606
    %v6635 = vadd.f32 %v6547, %v6607
    %v6636 = vadd.f32 %v6548, %v6608
    %v6637 = vadd.f32 %v6549, %v6609
    %v6638 = vadd.f32 %v6550, %v6610
    %v6639 = vadd.f32 %v6551, %v6611
    %v6640 = vadd.f32 %v6552, %v6612
    %v6641 = vadd.f32 %v6553, %v6613
    %v6642 = vadd.f32 %v6554, %v6614
    %v6643 = vadd.f32 %v6555, %v6615
    %v6644 = vadd.f32 %v6556, %v6616
    %v6645 = vadd.f32 %v6557, %v6617
    %v6646 = vadd.f32 %v6558, %v6618
    %v6647 = vadd.f32 %v6559, %v6619
    %v6648 = vadd.f32 %v6560, %v6620
    %v6649 = vadd.f32 %v6561, %v6621
    %v6650 = vadd.f32 %v6562, %v6622
    %v6651 = vadd.f32 %v6563, %v6623
    %v6652 = vld [vmem:[%s6475 + $0x2] sm:$0xff]
    %v6653 = vld [vmem:[%s6475 + $0xa] sm:$0x3f]
    %v6654 = vld [vmem:[%s6475 + $0x12] sm:$0xff]
    %v6655 = vld [vmem:[%s6475 + $0x1a] sm:$0x3f]
    %v6656 = vld [vmem:[%s6475 + $0x22] sm:$0xff]
    %v6657 = vld [vmem:[%s6475 + $0x2a] sm:$0x3f]
    %v6658 = vld [vmem:[%s6475 + $0x32] sm:$0xff]
    %v6659 = vld [vmem:[%s6475 + $0x3a] sm:$0x3f]
    %v6660 = vld [vmem:[%s6475 + $0x42] sm:$0xff]
    %v6661 = vld [vmem:[%s6475 + $0x4a] sm:$0x3f]
    %v6662 = vld [vmem:[%s6475 + $0x52] sm:$0xff]
    %v6663 = vld [vmem:[%s6475 + $0x5a] sm:$0x3f]
    %v6664 = vld [vmem:[%s6475 + $0x62] sm:$0xff]
    %v6665 = vld [vmem:[%s6475 + $0x6a] sm:$0x3f]
    %v6666 = vld [vmem:[%s6475 + $0x72] sm:$0xff]
    %v6667 = vld [vmem:[%s6475 + $0x7a] sm:$0x3f]
    %v6668 = vld [vmem:[%s6475 + $0x82] sm:$0xff]
    %v6669 = vld [vmem:[%s6475 + $0x8a] sm:$0x3f]
    %v6670 = vld [vmem:[%s6475 + $0x92] sm:$0xff]
    %v6671 = vld [vmem:[%s6475 + $0x9a] sm:$0x3f]
    %v6672 = vld [vmem:[%s6475 + $0xa2] sm:$0xff]
    %v6673 = vld [vmem:[%s6475 + $0xaa] sm:$0x3f]
    %v6674 = vld [vmem:[%s6475 + $0xb2] sm:$0xff]
    %v6675 = vld [vmem:[%s6475 + $0xba] sm:$0x3f]
    %v6676 = vld [vmem:[%s6475 + $0xc2] sm:$0xff]
    %v6677 = vld [vmem:[%s6475 + $0xca] sm:$0x3f]
    %v6678 = vld [vmem:[%s6475 + $0xd2] sm:$0xff]
    %v6679 = vld [vmem:[%s6475 + $0xda] sm:$0x3f]
    %v6680 = vlaneseq
    %v6681 = vshrl.u32 %v6680, 7
    %v6682 = vsub.s32 5, %v6681
    %v6683 = vrot.slane %v6209, %v6682
    %v6684 = vmul.f32 %v6652, %v6683
    %v6685 = vmul.f32 %v6653, %v6683
    %v6686 = vmul.f32 %v6654, %v6683
    %v6687 = vmul.f32 %v6655, %v6683
    %v6688 = vmul.f32 %v6656, %v6683
    %v6689 = vmul.f32 %v6657, %v6683
    %v6690 = vmul.f32 %v6658, %v6683
    %v6691 = vmul.f32 %v6659, %v6683
    %v6692 = vmul.f32 %v6660, %v6683
    %v6693 = vmul.f32 %v6661, %v6683
    %v6694 = vmul.f32 %v6662, %v6683
    %v6695 = vmul.f32 %v6663, %v6683
    %v6696 = vmul.f32 %v6664, %v6683
    %v6697 = vmul.f32 %v6665, %v6683
    %v6698 = vmul.f32 %v6666, %v6683
    %v6699 = vmul.f32 %v6667, %v6683
    %v6700 = vmul.f32 %v6668, %v6683
    %v6701 = vmul.f32 %v6669, %v6683
    %v6702 = vmul.f32 %v6670, %v6683
    %v6703 = vmul.f32 %v6671, %v6683
    %v6704 = vmul.f32 %v6672, %v6683
    %v6705 = vmul.f32 %v6673, %v6683
    %v6706 = vmul.f32 %v6674, %v6683
    %v6707 = vmul.f32 %v6675, %v6683
    %v6708 = vmul.f32 %v6676, %v6683
    %v6709 = vmul.f32 %v6677, %v6683
    %v6710 = vmul.f32 %v6678, %v6683
    %v6711 = vmul.f32 %v6679, %v6683
    %v6712 = vadd.f32 %v6624, %v6684
    %v6713 = vadd.f32 %v6625, %v6685
    %v6714 = vadd.f32 %v6626, %v6686
    %v6715 = vadd.f32 %v6627, %v6687
    %v6716 = vadd.f32 %v6628, %v6688
    %v6717 = vadd.f32 %v6629, %v6689
    %v6718 = vadd.f32 %v6630, %v6690
    %v6719 = vadd.f32 %v6631, %v6691
    %v6720 = vadd.f32 %v6632, %v6692
    %v6721 = vadd.f32 %v6633, %v6693
    %v6722 = vadd.f32 %v6634, %v6694
    %v6723 = vadd.f32 %v6635, %v6695
    %v6724 = vadd.f32 %v6636, %v6696
    %v6725 = vadd.f32 %v6637, %v6697
    %v6726 = vadd.f32 %v6638, %v6698
    %v6727 = vadd.f32 %v6639, %v6699
    %v6728 = vadd.f32 %v6640, %v6700
    %v6729 = vadd.f32 %v6641, %v6701
    %v6730 = vadd.f32 %v6642, %v6702
    %v6731 = vadd.f32 %v6643, %v6703
    %v6732 = vadd.f32 %v6644, %v6704
    %v6733 = vadd.f32 %v6645, %v6705
    %v6734 = vadd.f32 %v6646, %v6706
    %v6735 = vadd.f32 %v6647, %v6707
    %v6736 = vadd.f32 %v6648, %v6708
    %v6737 = vadd.f32 %v6649, %v6709
    %v6738 = vadd.f32 %v6650, %v6710
    %v6739 = vadd.f32 %v6651, %v6711
    %s6740 = scalar_lea.vmem %s2, 32
    %v6741 = vld [vmem:[%s6740] sm:$0xff]
    %v6742 = vld [vmem:[%s6740 + $0x8] sm:$0x3f]
    %v6743 = vld [vmem:[%s6740 + $0x10] sm:$0xff]
    %v6744 = vld [vmem:[%s6740 + $0x18] sm:$0x3f]
    %v6745 = vld [vmem:[%s6740 + $0x20] sm:$0xff]
    %v6746 = vld [vmem:[%s6740 + $0x28] sm:$0x3f]
    %v6747 = vld [vmem:[%s6740 + $0x30] sm:$0xff]
    %v6748 = vld [vmem:[%s6740 + $0x38] sm:$0x3f]
    %v6749 = vld [vmem:[%s6740 + $0x40] sm:$0xff]
    %v6750 = vld [vmem:[%s6740 + $0x48] sm:$0x3f]
    %v6751 = vld [vmem:[%s6740 + $0x50] sm:$0xff]
    %v6752 = vld [vmem:[%s6740 + $0x58] sm:$0x3f]
    %v6753 = vld [vmem:[%s6740 + $0x60] sm:$0xff]
    %v6754 = vld [vmem:[%s6740 + $0x68] sm:$0x3f]
    %v6755 = vld [vmem:[%s6740 + $0x70] sm:$0xff]
    %v6756 = vld [vmem:[%s6740 + $0x78] sm:$0x3f]
    %v6757 = vld [vmem:[%s6740 + $0x80] sm:$0xff]
    %v6758 = vld [vmem:[%s6740 + $0x88] sm:$0x3f]
    %v6759 = vld [vmem:[%s6740 + $0x90] sm:$0xff]
    %v6760 = vld [vmem:[%s6740 + $0x98] sm:$0x3f]
    %v6761 = vld [vmem:[%s6740 + $0xa0] sm:$0xff]
    %v6762 = vld [vmem:[%s6740 + $0xa8] sm:$0x3f]
    %v6763 = vld [vmem:[%s6740 + $0xb0] sm:$0xff]
    %v6764 = vld [vmem:[%s6740 + $0xb8] sm:$0x3f]
    %v6765 = vld [vmem:[%s6740 + $0xc0] sm:$0xff]
    %v6766 = vld [vmem:[%s6740 + $0xc8] sm:$0x3f]
    %v6767 = vld [vmem:[%s6740 + $0xd0] sm:$0xff]
    %v6768 = vld [vmem:[%s6740 + $0xd8] sm:$0x3f]
    %v6769 = vlaneseq
    %v6770 = vshrl.u32 %v6769, 7
    %v6771 = vsub.s32 6, %v6770
    %v6772 = vrot.slane %v6209, %v6771
    %v6773 = vmul.f32 %v6741, %v6772
    %v6774 = vmul.f32 %v6742, %v6772
    %v6775 = vmul.f32 %v6743, %v6772
    %v6776 = vmul.f32 %v6744, %v6772
    %v6777 = vmul.f32 %v6745, %v6772
    %v6778 = vmul.f32 %v6746, %v6772
    %v6779 = vmul.f32 %v6747, %v6772
    %v6780 = vmul.f32 %v6748, %v6772
    %v6781 = vmul.f32 %v6749, %v6772
    %v6782 = vmul.f32 %v6750, %v6772
    %v6783 = vmul.f32 %v6751, %v6772
    %v6784 = vmul.f32 %v6752, %v6772
    %v6785 = vmul.f32 %v6753, %v6772
    %v6786 = vmul.f32 %v6754, %v6772
    %v6787 = vmul.f32 %v6755, %v6772
    %v6788 = vmul.f32 %v6756, %v6772
    %v6789 = vmul.f32 %v6757, %v6772
    %v6790 = vmul.f32 %v6758, %v6772
    %v6791 = vmul.f32 %v6759, %v6772
    %v6792 = vmul.f32 %v6760, %v6772
    %v6793 = vmul.f32 %v6761, %v6772
    %v6794 = vmul.f32 %v6762, %v6772
    %v6795 = vmul.f32 %v6763, %v6772
    %v6796 = vmul.f32 %v6764, %v6772
    %v6797 = vmul.f32 %v6765, %v6772
    %v6798 = vmul.f32 %v6766, %v6772
    %v6799 = vmul.f32 %v6767, %v6772
    %v6800 = vmul.f32 %v6768, %v6772
    %v6801 = vadd.f32 %v6712, %v6773
    %v6802 = vadd.f32 %v6713, %v6774
    %v6803 = vadd.f32 %v6714, %v6775
    %v6804 = vadd.f32 %v6715, %v6776
    %v6805 = vadd.f32 %v6716, %v6777
    %v6806 = vadd.f32 %v6717, %v6778
    %v6807 = vadd.f32 %v6718, %v6779
    %v6808 = vadd.f32 %v6719, %v6780
    %v6809 = vadd.f32 %v6720, %v6781
    %v6810 = vadd.f32 %v6721, %v6782
    %v6811 = vadd.f32 %v6722, %v6783
    %v6812 = vadd.f32 %v6723, %v6784
    %v6813 = vadd.f32 %v6724, %v6785
    %v6814 = vadd.f32 %v6725, %v6786
    %v6815 = vadd.f32 %v6726, %v6787
    %v6816 = vadd.f32 %v6727, %v6788
    %v6817 = vadd.f32 %v6728, %v6789
    %v6818 = vadd.f32 %v6729, %v6790
    %v6819 = vadd.f32 %v6730, %v6791
    %v6820 = vadd.f32 %v6731, %v6792
    %v6821 = vadd.f32 %v6732, %v6793
    %v6822 = vadd.f32 %v6733, %v6794
    %v6823 = vadd.f32 %v6734, %v6795
    %v6824 = vadd.f32 %v6735, %v6796
    %v6825 = vadd.f32 %v6736, %v6797
    %v6826 = vadd.f32 %v6737, %v6798
    %v6827 = vadd.f32 %v6738, %v6799
    %v6828 = vadd.f32 %v6739, %v6800
    %v6829 = vld [vmem:[%s6740 + $0x1] sm:$0xff]
    %v6830 = vld [vmem:[%s6740 + $0x9] sm:$0x3f]
    %v6831 = vld [vmem:[%s6740 + $0x11] sm:$0xff]
    %v6832 = vld [vmem:[%s6740 + $0x19] sm:$0x3f]
    %v6833 = vld [vmem:[%s6740 + $0x21] sm:$0xff]
    %v6834 = vld [vmem:[%s6740 + $0x29] sm:$0x3f]
    %v6835 = vld [vmem:[%s6740 + $0x31] sm:$0xff]
    %v6836 = vld [vmem:[%s6740 + $0x39] sm:$0x3f]
    %v6837 = vld [vmem:[%s6740 + $0x41] sm:$0xff]
    %v6838 = vld [vmem:[%s6740 + $0x49] sm:$0x3f]
    %v6839 = vld [vmem:[%s6740 + $0x51] sm:$0xff]
    %v6840 = vld [vmem:[%s6740 + $0x59] sm:$0x3f]
    %v6841 = vld [vmem:[%s6740 + $0x61] sm:$0xff]
    %v6842 = vld [vmem:[%s6740 + $0x69] sm:$0x3f]
    %v6843 = vld [vmem:[%s6740 + $0x71] sm:$0xff]
    %v6844 = vld [vmem:[%s6740 + $0x79] sm:$0x3f]
    %v6845 = vld [vmem:[%s6740 + $0x81] sm:$0xff]
    %v6846 = vld [vmem:[%s6740 + $0x89] sm:$0x3f]
    %v6847 = vld [vmem:[%s6740 + $0x91] sm:$0xff]
    %v6848 = vld [vmem:[%s6740 + $0x99] sm:$0x3f]
    %v6849 = vld [vmem:[%s6740 + $0xa1] sm:$0xff]
    %v6850 = vld [vmem:[%s6740 + $0xa9] sm:$0x3f]
    %v6851 = vld [vmem:[%s6740 + $0xb1] sm:$0xff]
    %v6852 = vld [vmem:[%s6740 + $0xb9] sm:$0x3f]
    %v6853 = vld [vmem:[%s6740 + $0xc1] sm:$0xff]
    %v6854 = vld [vmem:[%s6740 + $0xc9] sm:$0x3f]
    %v6855 = vld [vmem:[%s6740 + $0xd1] sm:$0xff]
    %v6856 = vld [vmem:[%s6740 + $0xd9] sm:$0x3f]
    %v6857 = vlaneseq
    %v6858 = vshrl.u32 %v6857, 7
    %v6859 = vsub.s32 7, %v6858
    %v6860 = vrot.slane %v6209, %v6859
    %v6861 = vmul.f32 %v6829, %v6860
    %v6862 = vmul.f32 %v6830, %v6860
    %v6863 = vmul.f32 %v6831, %v6860
    %v6864 = vmul.f32 %v6832, %v6860
    %v6865 = vmul.f32 %v6833, %v6860
    %v6866 = vmul.f32 %v6834, %v6860
    %v6867 = vmul.f32 %v6835, %v6860
    %v6868 = vmul.f32 %v6836, %v6860
    %v6869 = vmul.f32 %v6837, %v6860
    %v6870 = vmul.f32 %v6838, %v6860
    %v6871 = vmul.f32 %v6839, %v6860
    %v6872 = vmul.f32 %v6840, %v6860
    %v6873 = vmul.f32 %v6841, %v6860
    %v6874 = vmul.f32 %v6842, %v6860
    %v6875 = vmul.f32 %v6843, %v6860
    %v6876 = vmul.f32 %v6844, %v6860
    %v6877 = vmul.f32 %v6845, %v6860
    %v6878 = vmul.f32 %v6846, %v6860
    %v6879 = vmul.f32 %v6847, %v6860
    %v6880 = vmul.f32 %v6848, %v6860
    %v6881 = vmul.f32 %v6849, %v6860
    %v6882 = vmul.f32 %v6850, %v6860
    %v6883 = vmul.f32 %v6851, %v6860
    %v6884 = vmul.f32 %v6852, %v6860
    %v6885 = vmul.f32 %v6853, %v6860
    %v6886 = vmul.f32 %v6854, %v6860
    %v6887 = vmul.f32 %v6855, %v6860
    %v6888 = vmul.f32 %v6856, %v6860
    %v6889 = vadd.f32 %v6801, %v6861
    %v6890 = vadd.f32 %v6802, %v6862
    %v6891 = vadd.f32 %v6803, %v6863
    %v6892 = vadd.f32 %v6804, %v6864
    %v6893 = vadd.f32 %v6805, %v6865
    %v6894 = vadd.f32 %v6806, %v6866
    %v6895 = vadd.f32 %v6807, %v6867
    %v6896 = vadd.f32 %v6808, %v6868
    %v6897 = vadd.f32 %v6809, %v6869
    %v6898 = vadd.f32 %v6810, %v6870
    %v6899 = vadd.f32 %v6811, %v6871
    %v6900 = vadd.f32 %v6812, %v6872
    %v6901 = vadd.f32 %v6813, %v6873
    %v6902 = vadd.f32 %v6814, %v6874
    %v6903 = vadd.f32 %v6815, %v6875
    %v6904 = vadd.f32 %v6816, %v6876
    %v6905 = vadd.f32 %v6817, %v6877
    %v6906 = vadd.f32 %v6818, %v6878
    %v6907 = vadd.f32 %v6819, %v6879
    %v6908 = vadd.f32 %v6820, %v6880
    %v6909 = vadd.f32 %v6821, %v6881
    %v6910 = vadd.f32 %v6822, %v6882
    %v6911 = vadd.f32 %v6823, %v6883
    %v6912 = vadd.f32 %v6824, %v6884
    %v6913 = vadd.f32 %v6825, %v6885
    %v6914 = vadd.f32 %v6826, %v6886
    %v6915 = vadd.f32 %v6827, %v6887
    %v6916 = vadd.f32 %v6828, %v6888
    %v6917 = vld [vmem:[%s6740 + $0x2] sm:$0xff]
    %v6918 = vld [vmem:[%s6740 + $0xa] sm:$0x3f]
    %v6919 = vld [vmem:[%s6740 + $0x12] sm:$0xff]
    %v6920 = vld [vmem:[%s6740 + $0x1a] sm:$0x3f]
    %v6921 = vld [vmem:[%s6740 + $0x22] sm:$0xff]
    %v6922 = vld [vmem:[%s6740 + $0x2a] sm:$0x3f]
    %v6923 = vld [vmem:[%s6740 + $0x32] sm:$0xff]
    %v6924 = vld [vmem:[%s6740 + $0x3a] sm:$0x3f]
    %v6925 = vld [vmem:[%s6740 + $0x42] sm:$0xff]
    %v6926 = vld [vmem:[%s6740 + $0x4a] sm:$0x3f]
    %v6927 = vld [vmem:[%s6740 + $0x52] sm:$0xff]
    %v6928 = vld [vmem:[%s6740 + $0x5a] sm:$0x3f]
    %v6929 = vld [vmem:[%s6740 + $0x62] sm:$0xff]
    %v6930 = vld [vmem:[%s6740 + $0x6a] sm:$0x3f]
    %v6931 = vld [vmem:[%s6740 + $0x72] sm:$0xff]
    %v6932 = vld [vmem:[%s6740 + $0x7a] sm:$0x3f]
    %v6933 = vld [vmem:[%s6740 + $0x82] sm:$0xff]
    %v6934 = vld [vmem:[%s6740 + $0x8a] sm:$0x3f]
    %v6935 = vld [vmem:[%s6740 + $0x92] sm:$0xff]
    %v6936 = vld [vmem:[%s6740 + $0x9a] sm:$0x3f]
    %v6937 = vld [vmem:[%s6740 + $0xa2] sm:$0xff]
    %v6938 = vld [vmem:[%s6740 + $0xaa] sm:$0x3f]
    %v6939 = vld [vmem:[%s6740 + $0xb2] sm:$0xff]
    %v6940 = vld [vmem:[%s6740 + $0xba] sm:$0x3f]
    %v6941 = vld [vmem:[%s6740 + $0xc2] sm:$0xff]
    %v6942 = vld [vmem:[%s6740 + $0xca] sm:$0x3f]
    %v6943 = vld [vmem:[%s6740 + $0xd2] sm:$0xff]
    %v6944 = vld [vmem:[%s6740 + $0xda] sm:$0x3f]
    %v6945 = vlaneseq
    %v6946 = vshrl.u32 %v6945, 7
    %v6947 = vsub.s32 0, %v6946
    %v6948 = vrot.slane %v6210, %v6947
    %v6949 = vmul.f32 %v6917, %v6948
    %v6950 = vmul.f32 %v6918, %v6948
    %v6951 = vmul.f32 %v6919, %v6948
    %v6952 = vmul.f32 %v6920, %v6948
    %v6953 = vmul.f32 %v6921, %v6948
    %v6954 = vmul.f32 %v6922, %v6948
    %v6955 = vmul.f32 %v6923, %v6948
    %v6956 = vmul.f32 %v6924, %v6948
    %v6957 = vmul.f32 %v6925, %v6948
    %v6958 = vmul.f32 %v6926, %v6948
    %v6959 = vmul.f32 %v6927, %v6948
    %v6960 = vmul.f32 %v6928, %v6948
    %v6961 = vmul.f32 %v6929, %v6948
    %v6962 = vmul.f32 %v6930, %v6948
    %v6963 = vmul.f32 %v6931, %v6948
    %v6964 = vmul.f32 %v6932, %v6948
    %v6965 = vmul.f32 %v6933, %v6948
    %v6966 = vmul.f32 %v6934, %v6948
    %v6967 = vmul.f32 %v6935, %v6948
    %v6968 = vmul.f32 %v6936, %v6948
    %v6969 = vmul.f32 %v6937, %v6948
    %v6970 = vmul.f32 %v6938, %v6948
    %v6971 = vmul.f32 %v6939, %v6948
    %v6972 = vmul.f32 %v6940, %v6948
    %v6973 = vmul.f32 %v6941, %v6948
    %v6974 = vmul.f32 %v6942, %v6948
    %v6975 = vmul.f32 %v6943, %v6948
    %v6976 = vmul.f32 %v6944, %v6948
    %v6977 = vadd.f32 %v6889, %v6949
    %v6978 = vadd.f32 %v6890, %v6950
    %v6979 = vadd.f32 %v6891, %v6951
    %v6980 = vadd.f32 %v6892, %v6952
    %v6981 = vadd.f32 %v6893, %v6953
    %v6982 = vadd.f32 %v6894, %v6954
    %v6983 = vadd.f32 %v6895, %v6955
    %v6984 = vadd.f32 %v6896, %v6956
    %v6985 = vadd.f32 %v6897, %v6957
    %v6986 = vadd.f32 %v6898, %v6958
    %v6987 = vadd.f32 %v6899, %v6959
    %v6988 = vadd.f32 %v6900, %v6960
    %v6989 = vadd.f32 %v6901, %v6961
    %v6990 = vadd.f32 %v6902, %v6962
    %v6991 = vadd.f32 %v6903, %v6963
    %v6992 = vadd.f32 %v6904, %v6964
    %v6993 = vadd.f32 %v6905, %v6965
    %v6994 = vadd.f32 %v6906, %v6966
    %v6995 = vadd.f32 %v6907, %v6967
    %v6996 = vadd.f32 %v6908, %v6968
    %v6997 = vadd.f32 %v6909, %v6969
    %v6998 = vadd.f32 %v6910, %v6970
    %v6999 = vadd.f32 %v6911, %v6971
    %v7000 = vadd.f32 %v6912, %v6972
    %v7001 = vadd.f32 %v6913, %v6973
    %v7002 = vadd.f32 %v6914, %v6974
    %v7003 = vadd.f32 %v6915, %v6975
    %v7004 = vadd.f32 %v6916, %v6976
    %vm7005 = vcmask 523264
    %v7006 = vsel %vm7005, %v6977, 0.0
    %7007 = vadd.xlane.f32.xlu0 %v7006
    %v7008 = vpop.xlane.xlu0 %7007
    %vm7009 = vcmask 521216
    %v7010 = vsel %vm7009, %v6978, 0.0
    %7011 = vadd.xlane.f32.xlu0 %v7010
    %v7012 = vpop.xlane.xlu0 %7011
    %v7013 = vsel %vm7005, %v6979, 0.0
    %7014 = vadd.xlane.f32.xlu0 %v7013
    %v7015 = vpop.xlane.xlu0 %7014
    %v7016 = vsel %vm7009, %v6980, 0.0
    %7017 = vadd.xlane.f32.xlu0 %v7016
    %v7018 = vpop.xlane.xlu0 %7017
    %v7019 = vsel %vm7005, %v6981, 0.0
    %7020 = vadd.xlane.f32.xlu0 %v7019
    %v7021 = vpop.xlane.xlu0 %7020
    %v7022 = vsel %vm7009, %v6982, 0.0
    %7023 = vadd.xlane.f32.xlu0 %v7022
    %v7024 = vpop.xlane.xlu0 %7023
    %v7025 = vsel %vm7005, %v6983, 0.0
    %7026 = vadd.xlane.f32.xlu0 %v7025
    %v7027 = vpop.xlane.xlu0 %7026
    %v7028 = vsel %vm7009, %v6984, 0.0
    %7029 = vadd.xlane.f32.xlu0 %v7028
    %v7030 = vpop.xlane.xlu0 %7029
    %v7031 = vsel %vm7005, %v6985, 0.0
    %7032 = vadd.xlane.f32.xlu0 %v7031
    %v7033 = vpop.xlane.xlu0 %7032
    %v7034 = vsel %vm7009, %v6986, 0.0
    %7035 = vadd.xlane.f32.xlu0 %v7034
    %v7036 = vpop.xlane.xlu0 %7035
    %v7037 = vsel %vm7005, %v6987, 0.0
    %7038 = vadd.xlane.f32.xlu0 %v7037
    %v7039 = vpop.xlane.xlu0 %7038
    %v7040 = vsel %vm7009, %v6988, 0.0
    %7041 = vadd.xlane.f32.xlu0 %v7040
    %v7042 = vpop.xlane.xlu0 %7041
    %v7043 = vsel %vm7005, %v6989, 0.0
    %7044 = vadd.xlane.f32.xlu0 %v7043
    %v7045 = vpop.xlane.xlu0 %7044
    %v7046 = vsel %vm7009, %v6990, 0.0
    %7047 = vadd.xlane.f32.xlu0 %v7046
    %v7048 = vpop.xlane.xlu0 %7047
    %v7049 = vsel %vm7005, %v6991, 0.0
    %7050 = vadd.xlane.f32.xlu0 %v7049
    %v7051 = vpop.xlane.xlu0 %7050
    %v7052 = vsel %vm7009, %v6992, 0.0
    %7053 = vadd.xlane.f32.xlu0 %v7052
    %v7054 = vpop.xlane.xlu0 %7053
    %v7055 = vsel %vm7005, %v6993, 0.0
    %7056 = vadd.xlane.f32.xlu0 %v7055
    %v7057 = vpop.xlane.xlu0 %7056
    %v7058 = vsel %vm7009, %v6994, 0.0
    %7059 = vadd.xlane.f32.xlu0 %v7058
    %v7060 = vpop.xlane.xlu0 %7059
    %v7061 = vsel %vm7005, %v6995, 0.0
    %7062 = vadd.xlane.f32.xlu0 %v7061
    %v7063 = vpop.xlane.xlu0 %7062
    %v7064 = vsel %vm7009, %v6996, 0.0
    %7065 = vadd.xlane.f32.xlu0 %v7064
    %v7066 = vpop.xlane.xlu0 %7065
    %v7067 = vsel %vm7005, %v6997, 0.0
    %7068 = vadd.xlane.f32.xlu0 %v7067
    %v7069 = vpop.xlane.xlu0 %7068
    %v7070 = vsel %vm7009, %v6998, 0.0
    %7071 = vadd.xlane.f32.xlu0 %v7070
    %v7072 = vpop.xlane.xlu0 %7071
    %v7073 = vsel %vm7005, %v6999, 0.0
    %7074 = vadd.xlane.f32.xlu0 %v7073
    %v7075 = vpop.xlane.xlu0 %7074
    %v7076 = vsel %vm7009, %v7000, 0.0
    %7077 = vadd.xlane.f32.xlu0 %v7076
    %v7078 = vpop.xlane.xlu0 %7077
    %v7079 = vsel %vm7005, %v7001, 0.0
    %7080 = vadd.xlane.f32.xlu0 %v7079
    %v7081 = vpop.xlane.xlu0 %7080
    %v7082 = vsel %vm7009, %v7002, 0.0
    %7083 = vadd.xlane.f32.xlu0 %v7082
    %v7084 = vpop.xlane.xlu0 %7083
    %v7085 = vsel %vm7005, %v7003, 0.0
    %7086 = vadd.xlane.f32.xlu0 %v7085
    %v7087 = vpop.xlane.xlu0 %7086
    %v7088 = vsel %vm7009, %v7004, 0.0
    %7089 = vadd.xlane.f32.xlu0 %v7088
    %v7090 = vpop.xlane.xlu0 %7089
    %s7091 = sld [smem:[#allocation2]]
    %v7092 = vstv %s7091
    %v7093 = vadd.f32 %v7008, %v7092
    %v7094 = vadd.f32 %v7012, %v7092
    %v7095 = vadd.f32 %v7015, %v7092
    %v7096 = vadd.f32 %v7018, %v7092
    %v7097 = vadd.f32 %v7021, %v7092
    %v7098 = vadd.f32 %v7024, %v7092
    %v7099 = vadd.f32 %v7027, %v7092
    %v7100 = vadd.f32 %v7030, %v7092
    %v7101 = vadd.f32 %v7033, %v7092
    %v7102 = vadd.f32 %v7036, %v7092
    %v7103 = vadd.f32 %v7039, %v7092
    %v7104 = vadd.f32 %v7042, %v7092
    %v7105 = vadd.f32 %v7045, %v7092
    %v7106 = vadd.f32 %v7048, %v7092
    %v7107 = vadd.f32 %v7051, %v7092
    %v7108 = vadd.f32 %v7054, %v7092
    %v7109 = vadd.f32 %v7057, %v7092
    %v7110 = vadd.f32 %v7060, %v7092
    %v7111 = vadd.f32 %v7063, %v7092
    %v7112 = vadd.f32 %v7066, %v7092
    %v7113 = vadd.f32 %v7069, %v7092
    %v7114 = vadd.f32 %v7072, %v7092
    %v7115 = vadd.f32 %v7075, %v7092
    %v7116 = vadd.f32 %v7078, %v7092
    %v7117 = vadd.f32 %v7081, %v7092
    %v7118 = vadd.f32 %v7084, %v7092
    %v7119 = vadd.f32 %v7087, %v7092
    %v7120 = vadd.f32 %v7090, %v7092
    %v7149 = vlaneseq
    %v7150 = vshrl.u32 %v7149, 7
    %v7151 = vsub.s32 %v5854, %v7150
    %v7152 = vrot.slane %v7093, %v7151
    %v7153 = vlaneseq
    %v7154 = vshrl.u32 %v7153, 7
    %v7155 = vsub.s32 %v5859, %v7154
    %v7156 = vrot.slane %v7094, %v7155
    %v7157 = vsel %vm5864, %v7156, %v7152
    %v7158 = vlaneseq
    %v7159 = vshrl.u32 %v7158, 7
    %v7160 = vsub.s32 %v5854, %v7159
    %v7161 = vrot.slane %v7095, %v7160
    %v7162 = vlaneseq
    %v7163 = vshrl.u32 %v7162, 7
    %v7164 = vsub.s32 %v5859, %v7163
    %v7165 = vrot.slane %v7096, %v7164
    %v7166 = vsel %vm5864, %v7165, %v7161
    %v7167 = vlaneseq
    %v7168 = vshrl.u32 %v7167, 7
    %v7169 = vsub.s32 %v5854, %v7168
    %v7170 = vrot.slane %v7097, %v7169
    %v7171 = vlaneseq
    %v7172 = vshrl.u32 %v7171, 7
    %v7173 = vsub.s32 %v5859, %v7172
    %v7174 = vrot.slane %v7098, %v7173
    %v7175 = vsel %vm5864, %v7174, %v7170
    %v7176 = vlaneseq
    %v7177 = vshrl.u32 %v7176, 7
    %v7178 = vsub.s32 %v5854, %v7177
    %v7179 = vrot.slane %v7099, %v7178
    %v7180 = vlaneseq
    %v7181 = vshrl.u32 %v7180, 7
    %v7182 = vsub.s32 %v5859, %v7181
    %v7183 = vrot.slane %v7100, %v7182
    %v7184 = vsel %vm5864, %v7183, %v7179
    %v7185 = vlaneseq
    %v7186 = vshrl.u32 %v7185, 7
    %v7187 = vsub.s32 %v5854, %v7186
    %v7188 = vrot.slane %v7101, %v7187
    %v7189 = vlaneseq
    %v7190 = vshrl.u32 %v7189, 7
    %v7191 = vsub.s32 %v5859, %v7190
    %v7192 = vrot.slane %v7102, %v7191
    %v7193 = vsel %vm5864, %v7192, %v7188
    %v7194 = vlaneseq
    %v7195 = vshrl.u32 %v7194, 7
    %v7196 = vsub.s32 %v5854, %v7195
    %v7197 = vrot.slane %v7103, %v7196
    %v7198 = vlaneseq
    %v7199 = vshrl.u32 %v7198, 7
    %v7200 = vsub.s32 %v5859, %v7199
    %v7201 = vrot.slane %v7104, %v7200
    %v7202 = vsel %vm5864, %v7201, %v7197
    %v7203 = vlaneseq
    %v7204 = vshrl.u32 %v7203, 7
    %v7205 = vsub.s32 %v5854, %v7204
    %v7206 = vrot.slane %v7105, %v7205
    %v7207 = vlaneseq
    %v7208 = vshrl.u32 %v7207, 7
    %v7209 = vsub.s32 %v5859, %v7208
    %v7210 = vrot.slane %v7106, %v7209
    %v7211 = vsel %vm5864, %v7210, %v7206
    %v7212 = vlaneseq
    %v7213 = vshrl.u32 %v7212, 7
    %v7214 = vsub.s32 %v5854, %v7213
    %v7215 = vrot.slane %v7107, %v7214
    %v7216 = vlaneseq
    %v7217 = vshrl.u32 %v7216, 7
    %v7218 = vsub.s32 %v5859, %v7217
    %v7219 = vrot.slane %v7108, %v7218
    %v7220 = vsel %vm5864, %v7219, %v7215
    %v7221 = vlaneseq
    %v7222 = vshrl.u32 %v7221, 7
    %v7223 = vsub.s32 %v5854, %v7222
    %v7224 = vrot.slane %v7109, %v7223
    %v7225 = vlaneseq
    %v7226 = vshrl.u32 %v7225, 7
    %v7227 = vsub.s32 %v5859, %v7226
    %v7228 = vrot.slane %v7110, %v7227
    %v7229 = vsel %vm5864, %v7228, %v7224
    %v7230 = vlaneseq
    %v7231 = vshrl.u32 %v7230, 7
    %v7232 = vsub.s32 %v5854, %v7231
    %v7233 = vrot.slane %v7111, %v7232
    %v7234 = vlaneseq
    %v7235 = vshrl.u32 %v7234, 7
    %v7236 = vsub.s32 %v5859, %v7235
    %v7237 = vrot.slane %v7112, %v7236
    %v7238 = vsel %vm5864, %v7237, %v7233
    %v7239 = vlaneseq
    %v7240 = vshrl.u32 %v7239, 7
    %v7241 = vsub.s32 %v5854, %v7240
    %v7242 = vrot.slane %v7113, %v7241
    %v7243 = vlaneseq
    %v7244 = vshrl.u32 %v7243, 7
    %v7245 = vsub.s32 %v5859, %v7244
    %v7246 = vrot.slane %v7114, %v7245
    %v7247 = vsel %vm5864, %v7246, %v7242
    %v7248 = vlaneseq
    %v7249 = vshrl.u32 %v7248, 7
    %v7250 = vsub.s32 %v5854, %v7249
    %v7251 = vrot.slane %v7115, %v7250
    %v7252 = vlaneseq
    %v7253 = vshrl.u32 %v7252, 7
    %v7254 = vsub.s32 %v5859, %v7253
    %v7255 = vrot.slane %v7116, %v7254
    %v7256 = vsel %vm5864, %v7255, %v7251
    %v7257 = vlaneseq
    %v7258 = vshrl.u32 %v7257, 7
    %v7259 = vsub.s32 %v5854, %v7258
    %v7260 = vrot.slane %v7117, %v7259
    %v7261 = vlaneseq
    %v7262 = vshrl.u32 %v7261, 7
    %v7263 = vsub.s32 %v5859, %v7262
    %v7264 = vrot.slane %v7118, %v7263
    %v7265 = vsel %vm5864, %v7264, %v7260
    %v7266 = vlaneseq
    %v7267 = vshrl.u32 %v7266, 7
    %v7268 = vsub.s32 %v5854, %v7267
    %v7269 = vrot.slane %v7119, %v7268
    %v7270 = vlaneseq
    %v7271 = vshrl.u32 %v7270, 7
    %v7272 = vsub.s32 %v5859, %v7271
    %v7273 = vrot.slane %v7120, %v7272
    %v7274 = vsel %vm5864, %v7273, %v7269
    %v7275 = vsel %vm5983, %v7166, %v7157
    %v7276 = vsel %vm5985, %v7175, %v7275
    %v7277 = vsel %vm5987, %v7184, %v7276
    %v7278 = vsel %vm5989, %v7193, %v7277
    %v7279 = vsel %vm5991, %v7202, %v7278
    %v7280 = vsel %vm5993, %v7211, %v7279
    %v7281 = vsel %vm5995, %v7220, %v7280
    %v7282 = vsel %vm5983, %v7238, %v7229
    %v7283 = vsel %vm5985, %v7247, %v7282
    %v7284 = vsel %vm5987, %v7256, %v7283
    %v7285 = vsel %vm5989, %v7265, %v7284
    %v7286 = vsel %vm5991, %v7274, %v7285
    %7289 = vst.msk [vmem:[%s7] sm:$0xff] %vm6004, %v7281
    %7290 = vst.msk [vmem:[%s7 + $0x8] sm:$0x3f] %vm6006, %v7286
    // Predicated region
    $region30: #{encoder_forward.9} parent=1 // pred_check
      _
    $region31: #{encoder_forward.9} parent=1 // pred_check_branch
      %7292 = sbr.rel (0) target = $region33
    $region32: #{encoder_forward.9} parent=1 // pred_region
      _
    $region33: #{encoder_forward.9} parent=1 // pred_fallthru
      _
    // Predicated region
    $region34: #{encoder_forward.9} parent=1 // pred_check
      _
    $region35: #{encoder_forward.9} parent=1 // pred_check_branch
      %7294 = sbr.rel (0) target = $region37
    $region36: #{encoder_forward.9} parent=1 // pred_region
      _
    $region37: #{encoder_forward.9} parent=1 // pred_fallthru
      _
    // Predicated region
    $region38: #{encoder_forward.9} parent=1 // pred_check
      _
    $region39: #{encoder_forward.9} parent=1 // pred_check_branch
      %7296 = sbr.rel (0) target = $region41
    $region40: #{encoder_forward.9} parent=1 // pred_region
      _
    $region41: #{encoder_forward.9} parent=1 // pred_fallthru
      _
    // Predicated region
    $region42: #{encoder_forward.9} parent=1 // pred_check
      _
    $region43: #{encoder_forward.9} parent=1 // pred_check_branch
      %7298 = sbr.rel (0) target = $region45
    $region44: #{encoder_forward.9} parent=1 // pred_region
      _
    $region45: #{encoder_forward.9} parent=1 // pred_fallthru
      _
    %7299 = vsyncpa [#allocation4], 1

// kernel: encoder_forward.6
$region0: #{encoder_forward.6}
  #allocation0 [shape = 'u32[]', space=smem, size = 0x4, offset = 0x4, fixed_abs, tag = 'smem constant byte address 0x4 - core index']
  #allocation1 [shape = 'u32[144,128]{1,0:T(1,128)}', space=vmem, size = 0x12000, scoped, tag = 'internal scratch']
  %s0 = inlined_call_operand.vmem [shape: bf16[1568,192], index: 0, kind: input, shape index: {}]
  %s1 = inlined_call_operand.vmem [shape: bf16[192,128], index: 1, kind: input, shape index: {}]
  %s2 = inlined_call_operand.vmem [shape: f32[1,128], index: 2, kind: input, shape index: {}]
  %s3 = inlined_call_operand.vmem [shape: f32[1568,128], index: 3, kind: output, shape index: {}]
  %s4 = sld [smem:[#allocation0]]
  $region45: #{encoder_forward.6} parent=0
    _
  %s6 = ssub.s32 1, %s4
  %s7 = scalar_select 0, %s6, %s4
  loop: start=0, step=1, limit=4
  $region2: #{encoder_forward.6} parent=0 // loop_pre_header
    _
  $region3: #{encoder_forward.6} parent=0 // loop_header
    %s9 = sphi 0, %s13
    %p10 = scmp.ge.s32.totalorder %s9, 4
    %s19 = sphi 0, %s21
    %s22 = sphi 0, %s19
    %s23 = sphi 0, %s22
    %s39 = sphi 0, %s23
    %s43 = sphi 0, %s43
    %s45 = sphi 0, %s43
    %s46 = sphi 0, %s45
    %s60 = sphi 0, %s46
    %s64 = sphi 0, %s64
    %s66 = sphi 0, %s64
    %s67 = sphi 0, %s66
    %s81 = sphi 0, %s67
    %s87 = sphi 0, %s89
    %s90 = sphi 0, %s87
    %s91 = sphi 0, %s90
    %s107 = sphi 0, %s91
  $region4: #{encoder_forward.6} parent=0 // loop_header_branch
    %12 = sbr.rel (%p10) target = $region8
  $region5: #{encoder_forward.6} parent=0 // loop_body
    %s14 = ssub.s32 %s9, 1
    %s15 = ssub.s32 %s9, 2
    %s16 = sadd.s32 %s9, 1
    %s17 = ssub.s32 %s9, %s16
    %p18 = scmp.eq.s32.totalorder %s17, 0
    %s20 = sadd.s32 %s19, 1
    %s21 = scalar_select %p18, %s19, %s20
    %p24 = pneg %p18
    %p25 = scmp.eq.s32.totalorder %s9, 1
    %p26 = por %p24, %p25
    %p27 = scmp.ne.s32.totalorder %s19, %s22
    %p28 = scmp.eq.s32.totalorder %s9, 0
    %p29 = por %p27, %p28
    %p30 = scmp.ne.s32.totalorder %s19, %s22
    %p31 = scmp.eq.s32.totalorder %s14, 1
    %p32 = por %p30, %p31
    %p33 = scmp.ne.s32.totalorder %s22, %s23
    %p34 = scmp.eq.s32.totalorder %s14, 0
    %p35 = por %p33, %p34
    %p36 = scmp.ne.s32.totalorder %s22, %s23
    %p37 = scmp.eq.s32.totalorder %s15, 1
    %p38 = por %p36, %p37
    %p40 = scmp.ne.s32.totalorder %s23, %s39
    %p41 = scmp.eq.s32.totalorder %s15, 0
    %p42 = por %p40, %p41
    %s44 = sadd.s32 %s43, 1
    %p47 = scmp.eq.s32.totalorder %s9, 1
    %p48 = scmp.ne.s32.totalorder %s43, %s45
    %p49 = scmp.eq.s32.totalorder %s9, 0
    %p50 = por %p48, %p49
    %p51 = scmp.ne.s32.totalorder %s43, %s45
    %p52 = scmp.eq.s32.totalorder %s14, 1
    %p53 = por %p51, %p52
    %p54 = scmp.ne.s32.totalorder %s45, %s46
    %p55 = scmp.eq.s32.totalorder %s14, 0
    %p56 = por %p54, %p55
    %p57 = scmp.ne.s32.totalorder %s45, %s46
    %p58 = scmp.eq.s32.totalorder %s15, 1
    %p59 = por %p57, %p58
    %p61 = scmp.ne.s32.totalorder %s46, %s60
    %p62 = scmp.eq.s32.totalorder %s15, 0
    %p63 = por %p61, %p62
    %s65 = sadd.s32 %s64, 1
    %p68 = scmp.eq.s32.totalorder %s9, 1
    %p69 = scmp.ne.s32.totalorder %s64, %s66
    %p70 = scmp.eq.s32.totalorder %s9, 0
    %p71 = por %p69, %p70
    %p72 = scmp.ne.s32.totalorder %s64, %s66
    %p73 = scmp.eq.s32.totalorder %s14, 1
    %p74 = por %p72, %p73
    %p75 = scmp.ne.s32.totalorder %s66, %s67
    %p76 = scmp.eq.s32.totalorder %s14, 0
    %p77 = por %p75, %p76
    %p78 = scmp.ne.s32.totalorder %s66, %s67
    %p79 = scmp.eq.s32.totalorder %s15, 1
    %p80 = por %p78, %p79
    %p82 = scmp.ne.s32.totalorder %s67, %s81
    %p83 = scmp.eq.s32.totalorder %s15, 0
    %p84 = por %p82, %p83
    %s85 = ssub.s32 %s9, %s16
    %p86 = scmp.eq.s32.totalorder %s85, 0
    %s88 = sadd.s32 %s87, 1
    %s89 = scalar_select %p86, %s87, %s88
    %p92 = pneg %p86
    %p93 = scmp.eq.s32.totalorder %s9, 1
    %p94 = por %p92, %p93
    %p95 = scmp.ne.s32.totalorder %s87, %s90
    %p96 = scmp.eq.s32.totalorder %s9, 0
    %p97 = por %p95, %p96
    %p98 = scmp.ne.s32.totalorder %s87, %s90
    %p99 = scmp.eq.s32.totalorder %s14, 1
    %p100 = por %p98, %p99
    %p101 = scmp.ne.s32.totalorder %s90, %s91
    %p102 = scmp.eq.s32.totalorder %s14, 0
    %p103 = por %p101, %p102
    %p104 = scmp.ne.s32.totalorder %s90, %s91
    %p105 = scmp.eq.s32.totalorder %s15, 1
    %p106 = por %p104, %p105
    %p108 = scmp.ne.s32.totalorder %s91, %s107
    %p109 = scmp.eq.s32.totalorder %s15, 0
    %p110 = por %p108, %p109
    %p111 = scmp.le.s32.totalorder 1, %s9
    %p112 = scmp.lt.s32.totalorder %s9, 3
    %p113 = pnand %p111, %p112
    %p114 = pneg %p113
    // Predicated region
    $region9: #{encoder_forward.6} parent=5 // pred_check
      _
    $region10: #{encoder_forward.6} parent=5 // pred_check_branch
      %116 = sbr.rel (%p113) target = $region12
    $region11: #{encoder_forward.6} parent=5 // pred_region
      %s117 = ssub.s32 %s9, 1
      // Predicated region
      $region13: #{encoder_forward.6} parent=11 // pred_check
        %p118 = pneg %p56
      $region14: #{encoder_forward.6} parent=11 // pred_check_branch
        %120 = sbr.rel (%p118) target = $region16
      $region15: #{encoder_forward.6} parent=11 // pred_region
        _
      $region16: #{encoder_forward.6} parent=11 // pred_fallthru
        _
      // Predicated region
      $region17: #{encoder_forward.6} parent=11 // pred_check
        %p121 = pneg %p77
      $region18: #{encoder_forward.6} parent=11 // pred_check_branch
        %123 = sbr.rel (%p121) target = $region20
      $region19: #{encoder_forward.6} parent=11 // pred_region
        _
      $region20: #{encoder_forward.6} parent=11 // pred_fallthru
        _
    $region12: #{encoder_forward.6} parent=5 // pred_fallthru
      _
    %p124 = scmp.lt.s32.totalorder %s9, 2
    // Predicated region
    $region21: #{encoder_forward.6} parent=5 // pred_check
      %p125 = pneg %p124
    $region22: #{encoder_forward.6} parent=5 // pred_check_branch
      %127 = sbr.rel (%p125) target = $region24
    $region23: #{encoder_forward.6} parent=5 // pred_region
      // Predicated region
      $region25: #{encoder_forward.6} parent=23 // pred_check
        %p128 = pneg %p29
      $region26: #{encoder_forward.6} parent=23 // pred_check_branch
        %130 = sbr.rel (%p128) target = $region28
      $region27: #{encoder_forward.6} parent=23 // pred_region
        %s131 = smul.u32 98, %s9
        %p132 = scmp.lt.s32.totalorder %s131, 195
        %s133 = scalar_select %p132, %s131, 195
        %s134 = smul.addr %s133, 2
        %s135 = smul.addr %s134, 4
        %s136 = scalar_lea.vmem %s0, %s135
        %s137 = smul.u32 98, %s9
      $region28: #{encoder_forward.6} parent=23 // pred_fallthru
        _
    $region24: #{encoder_forward.6} parent=5 // pred_fallthru
      _
    %p138 = scmp.le.s32.totalorder 1, %s9
    %p139 = scmp.lt.s32.totalorder %s9, 3
    %p140 = pnand %p138, %p139
    %p141 = pneg %p140
    // Predicated region
    $region29: #{encoder_forward.6} parent=5 // pred_check
      _
    $region30: #{encoder_forward.6} parent=5 // pred_check_branch
      %143 = sbr.rel (%p140) target = $region32
    $region31: #{encoder_forward.6} parent=5 // pred_region
      %s144 = ssub.s32 %s9, 1
      %s145 = smul.u32 98, %s14
      %p146 = scmp.lt.s32.totalorder %s145, 195
      %s147 = scalar_select %p146, %s145, 195
      %s148 = smul.addr %s147, 2
      %s149 = smul.addr %s148, 4
      %s150 = scalar_lea.vmem %s0, %s149
      %p151 = pneg %p35
      %p152 = pneg %p32
      %p153 = pneg %p56
      %p154 = pneg %p53
      %p155 = pneg %p77
      %p156 = pneg %p74
      %p157 = pneg %p103
      %p158 = pneg %p100
      %s159 = smul.u32 98, %s14
      %p160 = scmp.lt.s32.totalorder %s159, 195
      %s161 = scalar_select %p160, %s159, 195
      %s162 = smul.addr %s161, 8
      %s163 = scalar_lea.vmem %s3, %s162
      %s164 = smul.u32 98, %s14
      %p165 = scmp.lt.s32.totalorder %s164, 195
      %s166 = scalar_select %p165, %s164, 195
      %s167 = smul.addr %s166, 2
      %s168 = smul.addr %s167, 4
      %s169 = scalar_lea.vmem %s0, %s168
      %s170 = smul.u32 98, %s14
      %s171 = smul.u32 98, %s14
      %p172 = scmp.lt.s32.totalorder %s171, 195
      %s173 = scalar_select %p172, %s171, 195
      %s174 = smul.addr %s173, 8
      %s175 = scalar_lea.vmem %s3, %s174
      %s176 = smul.u32 98, %s14
      %v178 = vld [vmem:[%s169] sm:$0xff]
      %v179 = vld [vmem:[%s169 + $0x8] sm:$0xff]
      %v180 = vld [vmem:[%s169 + $0x10] sm:$0xff]
      %v181 = vld [vmem:[%s169 + $0x18] sm:$0xff]
      %v182 = vld [vmem:[%s169 + $0x20] sm:$0xff]
      %v183 = vld [vmem:[%s169 + $0x28] sm:$0xff]
      %v184 = vld [vmem:[%s169 + $0x30] sm:$0xff]
      %v185 = vld [vmem:[%s169 + $0x38] sm:$0xff]
      %v186 = vld [vmem:[%s169 + $0x40] sm:$0xff]
      %v187 = vld [vmem:[%s169 + $0x48] sm:$0xff]
      %v188 = vld [vmem:[%s169 + $0x50] sm:$0xff]
      %v189 = vld [vmem:[%s169 + $0x58] sm:$0xff]
      %v190 = vld [vmem:[%s169 + $0x60] sm:$0xff]
      %v191 = vld [vmem:[%s169 + $0x68] sm:$0xff]
      %v192 = vld [vmem:[%s169 + $0x70] sm:$0xff]
      %v193 = vld [vmem:[%s169 + $0x78] sm:$0xff]
      %v194 = vld [vmem:[%s169 + $0x80] sm:$0xff]
      %v195 = vld [vmem:[%s169 + $0x88] sm:$0xff]
      %v196 = vld [vmem:[%s169 + $0x90] sm:$0xff]
      %v197 = vld [vmem:[%s169 + $0x98] sm:$0xff]
      %v198 = vld [vmem:[%s169 + $0xa0] sm:$0xff]
      %v199 = vld [vmem:[%s169 + $0xa8] sm:$0xff]
      %v200 = vld [vmem:[%s169 + $0xb0] sm:$0xff]
      %v201 = vld [vmem:[%s169 + $0xb8] sm:$0xff]
      %v202 = vld [vmem:[%s169 + $0xc0] sm:$0xff]
      %v203 = vld [vmem:[%s169 + $0xc8] sm:$0xff]
      %v204 = vld [vmem:[%s169 + $0xd0] sm:$0xff]
      %v205 = vld [vmem:[%s169 + $0xd8] sm:$0xff]
      %v206 = vld [vmem:[%s169 + $0xe0] sm:$0xff]
      %v207 = vld [vmem:[%s169 + $0xe8] sm:$0xff]
      %v208 = vld [vmem:[%s169 + $0xf0] sm:$0xff]
      %v209 = vld [vmem:[%s169 + $0xf8] sm:$0xff]
      %v210 = vld [vmem:[%s169 + $0x100] sm:$0xff]
      %v211 = vld [vmem:[%s169 + $0x108] sm:$0xff]
      %v212 = vld [vmem:[%s169 + $0x110] sm:$0xff]
      %v213 = vld [vmem:[%s169 + $0x118] sm:$0xff]
      %v214 = vld [vmem:[%s169 + $0x120] sm:$0xff]
      %v215 = vld [vmem:[%s169 + $0x128] sm:$0xff]
      %v216 = vld [vmem:[%s169 + $0x130] sm:$0xff]
      %v217 = vld [vmem:[%s169 + $0x138] sm:$0xff]
      %v218 = vld [vmem:[%s169 + $0x140] sm:$0xff]
      %v219 = vld [vmem:[%s169 + $0x148] sm:$0xff]
      %v220 = vld [vmem:[%s169 + $0x150] sm:$0xff]
      %v221 = vld [vmem:[%s169 + $0x158] sm:$0xff]
      %v222 = vld [vmem:[%s169 + $0x160] sm:$0xff]
      %v223 = vld [vmem:[%s169 + $0x168] sm:$0xff]
      %v224 = vld [vmem:[%s169 + $0x170] sm:$0xff]
      %v225 = vld [vmem:[%s169 + $0x178] sm:$0xff]
      %v226 = vld [vmem:[%s169 + $0x180] sm:$0xff]
      %v227 = vld [vmem:[%s169 + $0x188] sm:$0xff]
      %v228 = vld [vmem:[%s169 + $0x190] sm:$0xff]
      %v229 = vld [vmem:[%s169 + $0x198] sm:$0xff]
      %v230 = vld [vmem:[%s169 + $0x1a0] sm:$0xff]
      %v231 = vld [vmem:[%s169 + $0x1a8] sm:$0xff]
      %v232 = vld [vmem:[%s169 + $0x1b0] sm:$0xff]
      %v233 = vld [vmem:[%s169 + $0x1b8] sm:$0xff]
      %v234 = vld [vmem:[%s169 + $0x1c0] sm:$0xff]
      %v235 = vld [vmem:[%s169 + $0x1c8] sm:$0xff]
      %v236 = vld [vmem:[%s169 + $0x1d0] sm:$0xff]
      %v237 = vld [vmem:[%s169 + $0x1d8] sm:$0xff]
      %v238 = vld [vmem:[%s169 + $0x1e0] sm:$0xff]
      %v239 = vld [vmem:[%s169 + $0x1e8] sm:$0xff]
      %v240 = vld [vmem:[%s169 + $0x1f0] sm:$0xff]
      %v241 = vld [vmem:[%s169 + $0x1f8] sm:$0xff]
      %v242 = vld [vmem:[%s169 + $0x200] sm:$0xff]
      %v243 = vld [vmem:[%s169 + $0x208] sm:$0xff]
      %v244 = vld [vmem:[%s169 + $0x210] sm:$0xff]
      %v245 = vld [vmem:[%s169 + $0x218] sm:$0xff]
      %v246 = vld [vmem:[%s169 + $0x220] sm:$0xff]
      %v247 = vld [vmem:[%s169 + $0x228] sm:$0xff]
      %v248 = vld [vmem:[%s169 + $0x230] sm:$0xff]
      %v249 = vld [vmem:[%s169 + $0x238] sm:$0xff]
      %v250 = vld [vmem:[%s169 + $0x240] sm:$0xff]
      %v251 = vld [vmem:[%s169 + $0x248] sm:$0xff]
      %v252 = vld [vmem:[%s169 + $0x250] sm:$0xff]
      %v253 = vld [vmem:[%s169 + $0x258] sm:$0xff]
      %v254 = vld [vmem:[%s169 + $0x260] sm:$0xff]
      %v255 = vld [vmem:[%s169 + $0x268] sm:$0xff]
      %v256 = vld [vmem:[%s169 + $0x270] sm:$0xff]
      %v257 = vld [vmem:[%s169 + $0x278] sm:$0xff]
      %v258 = vld [vmem:[%s169 + $0x280] sm:$0xff]
      %v259 = vld [vmem:[%s169 + $0x288] sm:$0xff]
      %v260 = vld [vmem:[%s169 + $0x290] sm:$0xff]
      %v261 = vld [vmem:[%s169 + $0x298] sm:$0xff]
      %v262 = vld [vmem:[%s169 + $0x2a0] sm:$0xff]
      %v263 = vld [vmem:[%s169 + $0x2a8] sm:$0xff]
      %v264 = vld [vmem:[%s169 + $0x2b0] sm:$0xff]
      %v265 = vld [vmem:[%s169 + $0x2b8] sm:$0xff]
      %v266 = vld [vmem:[%s169 + $0x2c0] sm:$0xff]
      %v267 = vld [vmem:[%s169 + $0x2c8] sm:$0xff]
      %v268 = vld [vmem:[%s169 + $0x2d0] sm:$0xff]
      %v269 = vld [vmem:[%s169 + $0x2d8] sm:$0xff]
      %v270 = vld [vmem:[%s169 + $0x2e0] sm:$0xff]
      %v271 = vld [vmem:[%s169 + $0x2e8] sm:$0xff]
      %v272 = vld [vmem:[%s169 + $0x2f0] sm:$0xff]
      %v273 = vld [vmem:[%s169 + $0x2f8] sm:$0xff]
      %v274 = vld [vmem:[%s169 + $0x300] sm:$0xff]
      %v275 = vld [vmem:[%s169 + $0x308] sm:$0xff]
      %v276 = vld [vmem:[%s1] sm:$0xf]
      %v277 = vld [vmem:[%s1 + $0x4] sm:$0xf]
      %v278 = vld [vmem:[%s1 + $0x8] sm:$0xf]
      %v279 = vld [vmem:[%s1 + $0xc] sm:$0xf]
      %v280 = vld [vmem:[%s1 + $0x10] sm:$0xf]
      %v281 = vld [vmem:[%s1 + $0x14] sm:$0xf]
      %v282 = vld [vmem:[%s1 + $0x18] sm:$0xf]
      %v283 = vld [vmem:[%s1 + $0x1c] sm:$0xf]
      %v284 = vld [vmem:[%s1 + $0x20] sm:$0xf]
      %v285 = vld [vmem:[%s1 + $0x24] sm:$0xf]
      %v286 = vld [vmem:[%s1 + $0x28] sm:$0xf]
      %v287 = vld [vmem:[%s1 + $0x2c] sm:$0xf]
      %v288 = vld [vmem:[%s1 + $0x30] sm:$0xf]
      %v289 = vld [vmem:[%s1 + $0x34] sm:$0xf]
      %v290 = vld [vmem:[%s1 + $0x38] sm:$0xf]
      %v291 = vld [vmem:[%s1 + $0x3c] sm:$0xf]
      %v292 = vld [vmem:[%s1 + $0x40] sm:$0xf]
      %v293 = vld [vmem:[%s1 + $0x44] sm:$0xf]
      %v294 = vld [vmem:[%s1 + $0x48] sm:$0xf]
      %v295 = vld [vmem:[%s1 + $0x4c] sm:$0xf]
      %v296 = vld [vmem:[%s1 + $0x50] sm:$0xf]
      %v297 = vld [vmem:[%s1 + $0x54] sm:$0xf]
      %v298 = vld [vmem:[%s1 + $0x58] sm:$0xf]
      %v299 = vld [vmem:[%s1 + $0x5c] sm:$0xf]
      %v300 = vld [vmem:[%s2] sm:$0x1]
      %v302 = vlaneseq
      %v303 = vshrl.u32 %v302, 7
      %v304 = vsub.s32 0, %v303
      %v305 = vrot.slane %v300, %v304
      %v405 = vunpack.c.l.b16 %v178
      %v406 = vunpack.c.h.b16 %v178
      %v407 = vunpack.c.l.b16 %v179
      %v408 = vunpack.c.h.b16 %v179
      %v409 = vunpack.c.l.b16 %v180
      %v410 = vunpack.c.h.b16 %v180
      %v411 = vunpack.c.l.b16 %v181
      %v412 = vunpack.c.h.b16 %v181
      %v413 = vunpack.c.l.b16 %v182
      %v414 = vunpack.c.h.b16 %v182
      %v415 = vunpack.c.l.b16 %v183
      %v416 = vunpack.c.h.b16 %v183
      %v417 = vunpack.c.l.b16 %v184
      %v418 = vunpack.c.h.b16 %v184
      %v419 = vunpack.c.l.b16 %v185
      %v420 = vunpack.c.h.b16 %v185
      %v421 = vunpack.c.l.b16 %v186
      %v422 = vunpack.c.h.b16 %v186
      %v423 = vunpack.c.l.b16 %v187
      %v424 = vunpack.c.h.b16 %v187
      %v425 = vunpack.c.l.b16 %v188
      %v426 = vunpack.c.h.b16 %v188
      %v427 = vunpack.c.l.b16 %v189
      %v428 = vunpack.c.h.b16 %v189
      %v429 = vunpack.c.l.b16 %v190
      %v430 = vunpack.c.h.b16 %v190
      %v431 = vunpack.c.l.b16 %v191
      %v432 = vunpack.c.h.b16 %v191
      %v433 = vunpack.c.l.b16 %v192
      %v434 = vunpack.c.h.b16 %v192
      %v435 = vunpack.c.l.b16 %v193
      %v436 = vunpack.c.h.b16 %v193
      %v437 = vunpack.c.l.b16 %v194
      %v438 = vunpack.c.h.b16 %v194
      %v439 = vunpack.c.l.b16 %v195
      %v440 = vunpack.c.h.b16 %v195
      %v441 = vunpack.c.l.b16 %v196
      %v442 = vunpack.c.h.b16 %v196
      %v443 = vunpack.c.l.b16 %v197
      %v444 = vunpack.c.h.b16 %v197
      %v445 = vunpack.c.l.b16 %v198
      %v446 = vunpack.c.h.b16 %v198
      %v447 = vunpack.c.l.b16 %v199
      %v448 = vunpack.c.h.b16 %v199
      %v449 = vunpack.c.l.b16 %v200
      %v450 = vunpack.c.h.b16 %v200
      %v451 = vunpack.c.l.b16 %v201
      %v452 = vunpack.c.h.b16 %v201
      %v453 = vunpack.c.l.b16 %v202
      %v454 = vunpack.c.h.b16 %v202
      %v455 = vunpack.c.l.b16 %v203
      %v456 = vunpack.c.h.b16 %v203
      %v457 = vunpack.c.l.b16 %v204
      %v458 = vunpack.c.h.b16 %v204
      %v459 = vunpack.c.l.b16 %v205
      %v460 = vunpack.c.h.b16 %v205
      %v461 = vunpack.c.l.b16 %v206
      %v462 = vunpack.c.h.b16 %v206
      %v463 = vunpack.c.l.b16 %v207
      %v464 = vunpack.c.h.b16 %v207
      %v465 = vunpack.c.l.b16 %v208
      %v466 = vunpack.c.h.b16 %v208
      %v467 = vunpack.c.l.b16 %v209
      %v468 = vunpack.c.h.b16 %v209
      %v469 = vunpack.c.l.b16 %v210
      %v470 = vunpack.c.h.b16 %v210
      %v471 = vunpack.c.l.b16 %v211
      %v472 = vunpack.c.h.b16 %v211
      %v473 = vunpack.c.l.b16 %v212
      %v474 = vunpack.c.h.b16 %v212
      %v475 = vunpack.c.l.b16 %v213
      %v476 = vunpack.c.h.b16 %v213
      %v477 = vunpack.c.l.b16 %v214
      %v478 = vunpack.c.h.b16 %v214
      %v479 = vunpack.c.l.b16 %v215
      %v480 = vunpack.c.h.b16 %v215
      %v481 = vunpack.c.l.b16 %v216
      %v482 = vunpack.c.h.b16 %v216
      %v483 = vunpack.c.l.b16 %v217
      %v484 = vunpack.c.h.b16 %v217
      %v485 = vunpack.c.l.b16 %v218
      %v486 = vunpack.c.h.b16 %v218
      %v487 = vunpack.c.l.b16 %v219
      %v488 = vunpack.c.h.b16 %v219
      %v489 = vunpack.c.l.b16 %v220
      %v490 = vunpack.c.h.b16 %v220
      %v491 = vunpack.c.l.b16 %v221
      %v492 = vunpack.c.h.b16 %v221
      %v493 = vunpack.c.l.b16 %v222
      %v494 = vunpack.c.h.b16 %v222
      %v495 = vunpack.c.l.b16 %v223
      %v496 = vunpack.c.h.b16 %v223
      %v497 = vunpack.c.l.b16 %v224
      %v498 = vunpack.c.h.b16 %v224
      %v499 = vunpack.c.l.b16 %v225
      %v500 = vunpack.c.h.b16 %v225
      %v501 = vunpack.c.l.b16 %v226
      %v502 = vunpack.c.h.b16 %v226
      %v503 = vunpack.c.l.b16 %v227
      %v504 = vunpack.c.h.b16 %v227
      %v505 = vunpack.c.l.b16 %v228
      %v506 = vunpack.c.h.b16 %v228
      %v507 = vunpack.c.l.b16 %v229
      %v508 = vunpack.c.h.b16 %v229
      %v509 = vunpack.c.l.b16 %v230
      %v510 = vunpack.c.h.b16 %v230
      %v511 = vunpack.c.l.b16 %v231
      %v512 = vunpack.c.h.b16 %v231
      %v513 = vunpack.c.l.b16 %v232
      %v514 = vunpack.c.h.b16 %v232
      %v515 = vunpack.c.l.b16 %v233
      %v516 = vunpack.c.h.b16 %v233
      %v517 = vunpack.c.l.b16 %v234
      %v518 = vunpack.c.h.b16 %v234
      %v519 = vunpack.c.l.b16 %v235
      %v520 = vunpack.c.h.b16 %v235
      %v521 = vunpack.c.l.b16 %v236
      %v522 = vunpack.c.h.b16 %v236
      %v523 = vunpack.c.l.b16 %v237
      %v524 = vunpack.c.h.b16 %v237
      %v525 = vunpack.c.l.b16 %v238
      %v526 = vunpack.c.h.b16 %v238
      %v527 = vunpack.c.l.b16 %v239
      %v528 = vunpack.c.h.b16 %v239
      %v529 = vunpack.c.l.b16 %v240
      %v530 = vunpack.c.h.b16 %v240
      %v531 = vunpack.c.l.b16 %v241
      %v532 = vunpack.c.h.b16 %v241
      %v533 = vunpack.c.l.b16 %v242
      %v534 = vunpack.c.h.b16 %v242
      %v535 = vunpack.c.l.b16 %v243
      %v536 = vunpack.c.h.b16 %v243
      %v537 = vunpack.c.l.b16 %v244
      %v538 = vunpack.c.h.b16 %v244
      %v539 = vunpack.c.l.b16 %v245
      %v540 = vunpack.c.h.b16 %v245
      %v541 = vunpack.c.l.b16 %v246
      %v542 = vunpack.c.h.b16 %v246
      %v543 = vunpack.c.l.b16 %v247
      %v544 = vunpack.c.h.b16 %v247
      %v545 = vunpack.c.l.b16 %v248
      %v546 = vunpack.c.h.b16 %v248
      %v547 = vunpack.c.l.b16 %v249
      %v548 = vunpack.c.h.b16 %v249
      %v549 = vunpack.c.l.b16 %v250
      %v550 = vunpack.c.h.b16 %v250
      %v551 = vunpack.c.l.b16 %v251
      %v552 = vunpack.c.h.b16 %v251
      %v553 = vunpack.c.l.b16 %v252
      %v554 = vunpack.c.h.b16 %v252
      %v555 = vunpack.c.l.b16 %v253
      %v556 = vunpack.c.h.b16 %v253
      %v557 = vunpack.c.l.b16 %v254
      %v558 = vunpack.c.h.b16 %v254
      %v559 = vunpack.c.l.b16 %v255
      %v560 = vunpack.c.h.b16 %v255
      %v561 = vunpack.c.l.b16 %v256
      %v562 = vunpack.c.h.b16 %v256
      %v563 = vunpack.c.l.b16 %v257
      %v564 = vunpack.c.h.b16 %v257
      %v565 = vunpack.c.l.b16 %v258
      %v566 = vunpack.c.h.b16 %v258
      %v567 = vunpack.c.l.b16 %v259
      %v568 = vunpack.c.h.b16 %v259
      %v569 = vunpack.c.l.b16 %v260
      %v570 = vunpack.c.h.b16 %v260
      %v571 = vunpack.c.l.b16 %v261
      %v572 = vunpack.c.h.b16 %v261
      %v573 = vunpack.c.l.b16 %v262
      %v574 = vunpack.c.h.b16 %v262
      %v575 = vunpack.c.l.b16 %v263
      %v576 = vunpack.c.h.b16 %v263
      %v577 = vunpack.c.l.b16 %v264
      %v578 = vunpack.c.h.b16 %v264
      %v579 = vunpack.c.l.b16 %v265
      %v580 = vunpack.c.h.b16 %v265
      %v581 = vunpack.c.l.b16 %v266
      %v582 = vunpack.c.h.b16 %v266
      %v583 = vunpack.c.l.b16 %v267
      %v584 = vunpack.c.h.b16 %v267
      %v585 = vunpack.c.l.b16 %v268
      %v586 = vunpack.c.h.b16 %v268
      %v587 = vunpack.c.l.b16 %v269
      %v588 = vunpack.c.h.b16 %v269
      %v589 = vunpack.c.l.b16 %v270
      %v590 = vunpack.c.h.b16 %v270
      %v591 = vunpack.c.l.b16 %v271
      %v592 = vunpack.c.h.b16 %v271
      %v593 = vunpack.c.l.b16 %v272
      %v594 = vunpack.c.h.b16 %v272
      %v595 = vunpack.c.l.b16 %v273
      %v596 = vunpack.c.h.b16 %v273
      %v597 = vunpack.c.l.b16 %v274
      %v598 = vunpack.c.h.b16 %v274
      %v599 = vunpack.c.l.b16 %v275
      %v600 = vunpack.c.h.b16 %v275
      %v601 = vpack.c.b16 %v407, %v405
      %v602 = vpack.c.b16 %v408, %v406
      %v603 = vpack.c.b16 %v411, %v409
      %v604 = vpack.c.b16 %v412, %v410
      %v605 = vpack.c.b16 %v415, %v413
      %v606 = vpack.c.b16 %v416, %v414
      %v607 = vpack.c.b16 %v419, %v417
      %v608 = vpack.c.b16 %v420, %v418
      %v609 = vpack.c.b16 %v423, %v421
      %v610 = vpack.c.b16 %v424, %v422
      %v611 = vpack.c.b16 %v427, %v425
      %v612 = vpack.c.b16 %v428, %v426
      %v613 = vpack.c.b16 %v431, %v429
      %v614 = vpack.c.b16 %v432, %v430
      %v615 = vpack.c.b16 %v435, %v433
      %v616 = vpack.c.b16 %v436, %v434
      %v617 = vpack.c.b16 %v439, %v437
      %v618 = vpack.c.b16 %v440, %v438
      %v619 = vpack.c.b16 %v443, %v441
      %v620 = vpack.c.b16 %v444, %v442
      %v621 = vpack.c.b16 %v447, %v445
      %v622 = vpack.c.b16 %v448, %v446
      %v623 = vpack.c.b16 %v451, %v449
      %v624 = vpack.c.b16 %v452, %v450
      %v625 = vpack.c.b16 %v455, %v453
      %v626 = vpack.c.b16 %v456, %v454
      %v627 = vpack.c.b16 %v459, %v457
      %v628 = vpack.c.b16 %v460, %v458
      %v629 = vpack.c.b16 %v463, %v461
      %v630 = vpack.c.b16 %v464, %v462
      %v631 = vpack.c.b16 %v467, %v465
      %v632 = vpack.c.b16 %v468, %v466
      %v633 = vpack.c.b16 %v471, %v469
      %v634 = vpack.c.b16 %v472, %v470
      %v635 = vpack.c.b16 %v475, %v473
      %v636 = vpack.c.b16 %v476, %v474
      %v637 = vpack.c.b16 %v479, %v477
      %v638 = vpack.c.b16 %v480, %v478
      %v639 = vpack.c.b16 %v483, %v481
      %v640 = vpack.c.b16 %v484, %v482
      %v641 = vpack.c.b16 %v487, %v485
      %v642 = vpack.c.b16 %v488, %v486
      %v643 = vpack.c.b16 %v491, %v489
      %v644 = vpack.c.b16 %v492, %v490
      %v645 = vpack.c.b16 %v495, %v493
      %v646 = vpack.c.b16 %v496, %v494
      %v647 = vpack.c.b16 %v499, %v497
      %v648 = vpack.c.b16 %v500, %v498
      %v649 = vpack.c.b16 %v503, %v501
      %v650 = vpack.c.b16 %v504, %v502
      %v651 = vpack.c.b16 %v507, %v505
      %v652 = vpack.c.b16 %v508, %v506
      %v653 = vpack.c.b16 %v511, %v509
      %v654 = vpack.c.b16 %v512, %v510
      %v655 = vpack.c.b16 %v515, %v513
      %v656 = vpack.c.b16 %v516, %v514
      %v657 = vpack.c.b16 %v519, %v517
      %v658 = vpack.c.b16 %v520, %v518
      %v659 = vpack.c.b16 %v523, %v521
      %v660 = vpack.c.b16 %v524, %v522
      %v661 = vpack.c.b16 %v527, %v525
      %v662 = vpack.c.b16 %v528, %v526
      %v663 = vpack.c.b16 %v531, %v529
      %v664 = vpack.c.b16 %v532, %v530
      %v665 = vpack.c.b16 %v535, %v533
      %v666 = vpack.c.b16 %v536, %v534
      %v667 = vpack.c.b16 %v539, %v537
      %v668 = vpack.c.b16 %v540, %v538
      %v669 = vpack.c.b16 %v543, %v541
      %v670 = vpack.c.b16 %v544, %v542
      %v671 = vpack.c.b16 %v547, %v545
      %v672 = vpack.c.b16 %v548, %v546
      %v673 = vpack.c.b16 %v551, %v549
      %v674 = vpack.c.b16 %v552, %v550
      %v675 = vpack.c.b16 %v555, %v553
      %v676 = vpack.c.b16 %v556, %v554
      %v677 = vpack.c.b16 %v559, %v557
      %v678 = vpack.c.b16 %v560, %v558
      %v679 = vpack.c.b16 %v563, %v561
      %v680 = vpack.c.b16 %v564, %v562
      %v681 = vpack.c.b16 %v567, %v565
      %v682 = vpack.c.b16 %v568, %v566
      %v683 = vpack.c.b16 %v571, %v569
      %v684 = vpack.c.b16 %v572, %v570
      %v685 = vpack.c.b16 %v575, %v573
      %v686 = vpack.c.b16 %v576, %v574
      %v687 = vpack.c.b16 %v579, %v577
      %v688 = vpack.c.b16 %v580, %v578
      %v689 = vpack.c.b16 %v583, %v581
      %v690 = vpack.c.b16 %v584, %v582
      %v691 = vpack.c.b16 %v587, %v585
      %v692 = vpack.c.b16 %v588, %v586
      %v693 = vpack.c.b16 %v591, %v589
      %v694 = vpack.c.b16 %v592, %v590
      %v695 = vpack.c.b16 %v595, %v593
      %v696 = vpack.c.b16 %v596, %v594
      %v697 = vpack.c.b16 %v599, %v597
      %v698 = vpack.c.b16 %v600, %v598
      %v772 = vunpack.c.l.b16 %v276
      %v773 = vunpack.c.l.b16 %v277
      %v774 = vunpack.c.l.b16 %v278
      %v775 = vunpack.c.l.b16 %v279
      %v776 = vunpack.c.l.b16 %v280
      %v777 = vunpack.c.l.b16 %v281
      %v778 = vunpack.c.l.b16 %v282
      %v779 = vunpack.c.l.b16 %v283
      %v780 = vunpack.c.l.b16 %v284
      %v781 = vunpack.c.l.b16 %v285
      %v782 = vunpack.c.l.b16 %v286
      %v783 = vunpack.c.l.b16 %v287
      %v784 = vunpack.c.l.b16 %v288
      %v785 = vunpack.c.l.b16 %v289
      %v786 = vunpack.c.l.b16 %v290
      %v787 = vunpack.c.l.b16 %v291
      %v788 = vunpack.c.l.b16 %v292
      %v789 = vunpack.c.l.b16 %v293
      %v790 = vunpack.c.l.b16 %v294
      %v791 = vunpack.c.l.b16 %v295
      %v792 = vunpack.c.l.b16 %v296
      %v793 = vunpack.c.l.b16 %v297
      %v794 = vunpack.c.l.b16 %v298
      %v795 = vunpack.c.l.b16 %v299
      %v796 = vpack.c.b16 %v773, %v772
      %v797 = vpack.c.b16 %v775, %v774
      %v798 = vpack.c.b16 %v777, %v776
      %v799 = vpack.c.b16 %v779, %v778
      %v800 = vpack.c.b16 %v781, %v780
      %v801 = vpack.c.b16 %v783, %v782
      %v802 = vpack.c.b16 %v785, %v784
      %v803 = vpack.c.b16 %v787, %v786
      %v804 = vpack.c.b16 %v789, %v788
      %v805 = vpack.c.b16 %v791, %v790
      %v806 = vpack.c.b16 %v793, %v792
      %v807 = vpack.c.b16 %v795, %v794
      %vm820 = vcmask 523264
      %v822 = vsel %vm820, %v602, 0
      %v825 = vsel %vm820, %v604, 0
      %v828 = vsel %vm820, %v606, 0
      %v831 = vsel %vm820, %v608, 0
      %v834 = vsel %vm820, %v610, 0
      %v837 = vsel %vm820, %v612, 0
      %v840 = vsel %vm820, %v614, 0
      %v843 = vsel %vm820, %v616, 0
      %v846 = vsel %vm820, %v618, 0
      %v849 = vsel %vm820, %v620, 0
      %v852 = vsel %vm820, %v622, 0
      %v855 = vsel %vm820, %v624, 0
      %v858 = vsel %vm820, %v626, 0
      %v861 = vsel %vm820, %v628, 0
      %v864 = vsel %vm820, %v630, 0
      %v867 = vsel %vm820, %v632, 0
      %v870 = vsel %vm820, %v634, 0
      %v873 = vsel %vm820, %v636, 0
      %v876 = vsel %vm820, %v638, 0
      %v879 = vsel %vm820, %v640, 0
      %v882 = vsel %vm820, %v642, 0
      %v885 = vsel %vm820, %v644, 0
      %v888 = vsel %vm820, %v646, 0
      %v891 = vsel %vm820, %v648, 0
      %v894 = vsel %vm820, %v650, 0
      %v897 = vsel %vm820, %v652, 0
      %v900 = vsel %vm820, %v654, 0
      %v903 = vsel %vm820, %v656, 0
      %v906 = vsel %vm820, %v658, 0
      %v909 = vsel %vm820, %v660, 0
      %v912 = vsel %vm820, %v662, 0
      %v915 = vsel %vm820, %v664, 0
      %v918 = vsel %vm820, %v666, 0
      %v921 = vsel %vm820, %v668, 0
      %v924 = vsel %vm820, %v670, 0
      %v927 = vsel %vm820, %v672, 0
      %v930 = vsel %vm820, %v674, 0
      %v933 = vsel %vm820, %v676, 0
      %v936 = vsel %vm820, %v678, 0
      %v939 = vsel %vm820, %v680, 0
      %v942 = vsel %vm820, %v682, 0
      %v945 = vsel %vm820, %v684, 0
      %v948 = vsel %vm820, %v686, 0
      %v951 = vsel %vm820, %v688, 0
      %v954 = vsel %vm820, %v690, 0
      %v957 = vsel %vm820, %v692, 0
      %v960 = vsel %vm820, %v694, 0
      %v963 = vsel %vm820, %v696, 0
      %v966 = vsel %vm820, %v698, 0
      %968 = vmatprep.subr.bf16.mxu0 0
      %969 = vmatpush1.bf16.msra.mxu0 %v796
      %970 = vmatprep.subr.bf16.mxu0 0
      %971 = vmatpush1.bf16.msra.mxu0 %v797
      %972 = vmatprep.subr.bf16.mxu0 0
      %973 = vmatpush1.bf16.msra.mxu0 %v798
      %974 = vmatprep.subr.bf16.mxu0 0
      %975 = vmatpush1.bf16.msra.mxu0 %v799
      %976 = vmatprep.subr.bf16.mxu0 0
      %977 = vmatpush1.bf16.msra.mxu0 %v800
      %978 = vmatprep.subr.bf16.mxu0 0
      %979 = vmatpush1.bf16.msra.mxu0 %v801
      %980 = vmatprep.subr.bf16.mxu0 0
      %981 = vmatpush1.bf16.msra.mxu0 %v802
      %982 = vmatprep.subr.bf16.mxu0 0
      %983 = vmatpush1.bf16.msra.mxu0 %v803
      %984 = vmatprep.subr.bf16.mxu0 0
      %985 = vmatpush1.bf16.msra.mxu0 %v804
      %986 = vmatprep.subr.bf16.mxu0 0
      %987 = vmatpush1.bf16.msra.mxu0 %v805
      %988 = vmatprep.subr.bf16.mxu0 0
      %989 = vmatpush1.bf16.msra.mxu0 %v806
      %990 = vmatprep.subr.bf16.mxu0 0
      %991 = vmatpush1.bf16.msra.mxu0 %v807
      %992 = vmatprep.subr.bf16.mxu0 0
      %993 = vmatpush1.bf16.msra.mxu0 0
      %994 = vmatprep.subr.bf16.mxu0 0
      %995 = vmatpush1.bf16.msra.mxu0 0
      %996 = vmatprep.subr.bf16.mxu0 0
      %997 = vmatpush1.bf16.msra.mxu0 0
      %998 = vmatprep.subr.bf16.mxu0 0
      %999 = vmatpush1.bf16.msra.mxu0 0
      %1000 = vmatprep.mubr.bf16.mxu0 %v822
      %1001 = vmatmul.mubr.bf16.gmra.mrb[0].mxu0 %v601
      %v1002 = vpop.f32.mrb[0].mxu0
      %v1003 = vadd.f32 %v305, %v1002
      %v1004 = vpop.f32.mrb[0].mxu0
      %v1005 = vpop.f32.mrb[0].mxu0
      %v1006 = vadd.f32 %v305, %v1005
      %v1007 = vpop.f32.mrb[0].mxu0
      %1008 = vmatprep.mubr.bf16.mxu0 %v825
      %1009 = vmatmul.mubr.bf16.gmra.mrb[0].mxu0 %v603
      %v1010 = vpop.f32.mrb[0].mxu0
      %v1011 = vadd.f32 %v305, %v1010
      %v1012 = vpop.f32.mrb[0].mxu0
      %v1013 = vpop.f32.mrb[0].mxu0
      %v1014 = vadd.f32 %v305, %v1013
      %v1015 = vpop.f32.mrb[0].mxu0
      %1016 = vmatprep.mubr.bf16.mxu0 %v828
      %1017 = vmatmul.mubr.bf16.gmra.mrb[0].mxu0 %v605
      %v1018 = vpop.f32.mrb[0].mxu0
      %v1019 = vadd.f32 %v305, %v1018
      %v1020 = vpop.f32.mrb[0].mxu0
      %v1021 = vpop.f32.mrb[0].mxu0
      %v1022 = vadd.f32 %v305, %v1021
      %v1023 = vpop.f32.mrb[0].mxu0
      %1024 = vmatprep.mubr.bf16.mxu0 %v831
      %1025 = vmatmul.mubr.bf16.gmra.mrb[0].mxu0 %v607
      %v1026 = vpop.f32.mrb[0].mxu0
      %v1027 = vadd.f32 %v305, %v1026
      %v1028 = vpop.f32.mrb[0].mxu0
      %v1029 = vpop.f32.mrb[0].mxu0
      %v1030 = vadd.f32 %v305, %v1029
      %v1031 = vpop.f32.mrb[0].mxu0
      %1032 = vmatprep.mubr.bf16.mxu0 %v834
      %1033 = vmatmul.mubr.bf16.gmra.mrb[0].mxu0 %v609
      %v1034 = vpop.f32.mrb[0].mxu0
      %v1035 = vadd.f32 %v305, %v1034
      %v1036 = vpop.f32.mrb[0].mxu0
      %v1037 = vpop.f32.mrb[0].mxu0
      %v1038 = vadd.f32 %v305, %v1037
      %v1039 = vpop.f32.mrb[0].mxu0
      %1040 = vmatprep.mubr.bf16.mxu0 %v837
      %1041 = vmatmul.mubr.bf16.gmra.mrb[0].mxu0 %v611
      %v1042 = vpop.f32.mrb[0].mxu0
      %v1043 = vadd.f32 %v305, %v1042
      %v1044 = vpop.f32.mrb[0].mxu0
      %v1045 = vpop.f32.mrb[0].mxu0
      %v1046 = vadd.f32 %v305, %v1045
      %v1047 = vpop.f32.mrb[0].mxu0
      %1048 = vmatprep.mubr.bf16.mxu0 %v840
      %1049 = vmatmul.mubr.bf16.gmra.mrb[0].mxu0 %v613
      %v1050 = vpop.f32.mrb[0].mxu0
      %v1051 = vadd.f32 %v305, %v1050
      %v1052 = vpop.f32.mrb[0].mxu0
      %v1053 = vpop.f32.mrb[0].mxu0
      %v1054 = vadd.f32 %v305, %v1053
      %v1055 = vpop.f32.mrb[0].mxu0
      %1056 = vmatprep.mubr.bf16.mxu0 %v843
      %1057 = vmatmul.mubr.bf16.gmra.mrb[0].mxu0 %v615
      %v1058 = vpop.f32.mrb[0].mxu0
      %v1059 = vadd.f32 %v305, %v1058
      %v1060 = vpop.f32.mrb[0].mxu0
      %v1061 = vpop.f32.mrb[0].mxu0
      %v1062 = vadd.f32 %v305, %v1061
      %v1063 = vpop.f32.mrb[0].mxu0
      %1064 = vmatprep.mubr.bf16.mxu0 %v846
      %1065 = vmatmul.mubr.bf16.gmra.mrb[0].mxu0 %v617
      %v1066 = vpop.f32.mrb[0].mxu0
      %v1067 = vadd.f32 %v305, %v1066
      %v1068 = vpop.f32.mrb[0].mxu0
      %v1069 = vpop.f32.mrb[0].mxu0
      %v1070 = vadd.f32 %v305, %v1069
      %v1071 = vpop.f32.mrb[0].mxu0
      %1072 = vmatprep.mubr.bf16.mxu0 %v849
      %1073 = vmatmul.mubr.bf16.gmra.mrb[0].mxu0 %v619
      %v1074 = vpop.f32.mrb[0].mxu0
      %v1075 = vadd.f32 %v305, %v1074
      %v1076 = vpop.f32.mrb[0].mxu0
      %v1077 = vpop.f32.mrb[0].mxu0
      %v1078 = vadd.f32 %v305, %v1077
      %v1079 = vpop.f32.mrb[0].mxu0
      %1080 = vmatprep.mubr.bf16.mxu0 %v852
      %1081 = vmatmul.mubr.bf16.gmra.mrb[0].mxu0 %v621
      %v1082 = vpop.f32.mrb[0].mxu0
      %v1083 = vadd.f32 %v305, %v1082
      %v1084 = vpop.f32.mrb[0].mxu0
      %v1085 = vpop.f32.mrb[0].mxu0
      %v1086 = vadd.f32 %v305, %v1085
      %v1087 = vpop.f32.mrb[0].mxu0
      %1088 = vmatprep.mubr.bf16.mxu0 %v855
      %1089 = vmatmul.mubr.bf16.gmra.mrb[0].mxu0 %v623
      %v1090 = vpop.f32.mrb[0].mxu0
      %v1091 = vadd.f32 %v305, %v1090
      %v1092 = vpop.f32.mrb[0].mxu0
      %v1093 = vpop.f32.mrb[0].mxu0
      %v1094 = vadd.f32 %v305, %v1093
      %v1095 = vpop.f32.mrb[0].mxu0
      %1096 = vmatprep.mubr.bf16.mxu0 %v858
      %1097 = vmatmul.mubr.bf16.gmra.mrb[0].mxu0 %v625
      %v1098 = vpop.f32.mrb[0].mxu0
      %v1099 = vadd.f32 %v305, %v1098
      %v1100 = vpop.f32.mrb[0].mxu0
      %v1101 = vpop.f32.mrb[0].mxu0
      %v1102 = vadd.f32 %v305, %v1101
      %v1103 = vpop.f32.mrb[0].mxu0
      %1104 = vmatprep.mubr.bf16.mxu0 %v861
      %1105 = vmatmul.mubr.bf16.gmra.mrb[0].mxu0 %v627
      %v1106 = vpop.f32.mrb[0].mxu0
      %v1107 = vadd.f32 %v305, %v1106
      %v1108 = vpop.f32.mrb[0].mxu0
      %v1109 = vpop.f32.mrb[0].mxu0
      %v1110 = vadd.f32 %v305, %v1109
      %v1111 = vpop.f32.mrb[0].mxu0
      %1112 = vmatprep.mubr.bf16.mxu0 %v864
      %1113 = vmatmul.mubr.bf16.gmra.mrb[0].mxu0 %v629
      %v1114 = vpop.f32.mrb[0].mxu0
      %v1115 = vadd.f32 %v305, %v1114
      %v1116 = vpop.f32.mrb[0].mxu0
      %v1117 = vpop.f32.mrb[0].mxu0
      %v1118 = vadd.f32 %v305, %v1117
      %v1119 = vpop.f32.mrb[0].mxu0
      %1120 = vmatprep.mubr.bf16.mxu0 %v867
      %1121 = vmatmul.mubr.bf16.gmra.mrb[0].mxu0 %v631
      %v1122 = vpop.f32.mrb[0].mxu0
      %v1123 = vadd.f32 %v305, %v1122
      %v1124 = vpop.f32.mrb[0].mxu0
      %v1125 = vpop.f32.mrb[0].mxu0
      %v1126 = vadd.f32 %v305, %v1125
      %v1127 = vpop.f32.mrb[0].mxu0
      %1128 = vmatprep.mubr.bf16.mxu0 %v870
      %1129 = vmatmul.mubr.bf16.gmra.mrb[0].mxu0 %v633
      %v1130 = vpop.f32.mrb[0].mxu0
      %v1131 = vadd.f32 %v305, %v1130
      %v1132 = vpop.f32.mrb[0].mxu0
      %v1133 = vpop.f32.mrb[0].mxu0
      %v1134 = vadd.f32 %v305, %v1133
      %v1135 = vpop.f32.mrb[0].mxu0
      %1136 = vmatprep.mubr.bf16.mxu0 %v873
      %1137 = vmatmul.mubr.bf16.gmra.mrb[0].mxu0 %v635
      %v1138 = vpop.f32.mrb[0].mxu0
      %v1139 = vadd.f32 %v305, %v1138
      %v1140 = vpop.f32.mrb[0].mxu0
      %v1141 = vpop.f32.mrb[0].mxu0
      %v1142 = vadd.f32 %v305, %v1141
      %v1143 = vpop.f32.mrb[0].mxu0
      %1144 = vmatprep.mubr.bf16.mxu0 %v876
      %1145 = vmatmul.mubr.bf16.gmra.mrb[0].mxu0 %v637
      %v1146 = vpop.f32.mrb[0].mxu0
      %v1147 = vadd.f32 %v305, %v1146
      %v1148 = vpop.f32.mrb[0].mxu0
      %v1149 = vpop.f32.mrb[0].mxu0
      %v1150 = vadd.f32 %v305, %v1149
      %v1151 = vpop.f32.mrb[0].mxu0
      %1152 = vmatprep.mubr.bf16.mxu0 %v879
      %1153 = vmatmul.mubr.bf16.gmra.mrb[0].mxu0 %v639
      %v1154 = vpop.f32.mrb[0].mxu0
      %v1155 = vadd.f32 %v305, %v1154
      %v1156 = vpop.f32.mrb[0].mxu0
      %v1157 = vpop.f32.mrb[0].mxu0
      %v1158 = vadd.f32 %v305, %v1157
      %v1159 = vpop.f32.mrb[0].mxu0
      %1160 = vmatprep.mubr.bf16.mxu0 %v882
      %1161 = vmatmul.mubr.bf16.gmra.mrb[0].mxu0 %v641
      %v1162 = vpop.f32.mrb[0].mxu0
      %v1163 = vadd.f32 %v305, %v1162
      %v1164 = vpop.f32.mrb[0].mxu0
      %v1165 = vpop.f32.mrb[0].mxu0
      %v1166 = vadd.f32 %v305, %v1165
      %v1167 = vpop.f32.mrb[0].mxu0
      %1168 = vmatprep.mubr.bf16.mxu0 %v885
      %1169 = vmatmul.mubr.bf16.gmra.mrb[0].mxu0 %v643
      %v1170 = vpop.f32.mrb[0].mxu0
      %v1171 = vadd.f32 %v305, %v1170
      %v1172 = vpop.f32.mrb[0].mxu0
      %v1173 = vpop.f32.mrb[0].mxu0
      %v1174 = vadd.f32 %v305, %v1173
      %v1175 = vpop.f32.mrb[0].mxu0
      %1176 = vmatprep.mubr.bf16.mxu0 %v888
      %1177 = vmatmul.mubr.bf16.gmra.mrb[0].mxu0 %v645
      %v1178 = vpop.f32.mrb[0].mxu0
      %v1179 = vadd.f32 %v305, %v1178
      %v1180 = vpop.f32.mrb[0].mxu0
      %v1181 = vpop.f32.mrb[0].mxu0
      %v1182 = vadd.f32 %v305, %v1181
      %v1183 = vpop.f32.mrb[0].mxu0
      %1184 = vmatprep.mubr.bf16.mxu0 %v891
      %1185 = vmatmul.mubr.bf16.gmra.mrb[0].mxu0 %v647
      %v1186 = vpop.f32.mrb[0].mxu0
      %v1187 = vadd.f32 %v305, %v1186
      %v1188 = vpop.f32.mrb[0].mxu0
      %v1189 = vpop.f32.mrb[0].mxu0
      %v1190 = vadd.f32 %v305, %v1189
      %v1191 = vpop.f32.mrb[0].mxu0
      %1192 = vmatprep.mubr.bf16.mxu0 %v894
      %1193 = vmatmul.mubr.bf16.gmra.mrb[0].mxu0 %v649
      %v1194 = vpop.f32.mrb[0].mxu0
      %v1195 = vadd.f32 %v305, %v1194
      %v1196 = vpop.f32.mrb[0].mxu0
      %v1197 = vpop.f32.mrb[0].mxu0
      %v1198 = vadd.f32 %v305, %v1197
      %v1199 = vpop.f32.mrb[0].mxu0
      %1200 = vmatprep.mubr.bf16.mxu0 %v897
      %1201 = vmatmul.mubr.bf16.gmra.mrb[0].mxu0 %v651
      %v1202 = vpop.f32.mrb[0].mxu0
      %v1203 = vadd.f32 %v305, %v1202
      %v1204 = vpop.f32.mrb[0].mxu0
      %v1205 = vpop.f32.mrb[0].mxu0
      %v1206 = vadd.f32 %v305, %v1205
      %v1207 = vpop.f32.mrb[0].mxu0
      %1208 = vmatprep.mubr.bf16.mxu0 %v900
      %1209 = vmatmul.mubr.bf16.gmra.mrb[0].mxu0 %v653
      %v1210 = vpop.f32.mrb[0].mxu0
      %v1211 = vadd.f32 %v305, %v1210
      %v1212 = vpop.f32.mrb[0].mxu0
      %v1213 = vpop.f32.mrb[0].mxu0
      %v1214 = vadd.f32 %v305, %v1213
      %v1215 = vpop.f32.mrb[0].mxu0
      %1216 = vmatprep.mubr.bf16.mxu0 %v903
      %1217 = vmatmul.mubr.bf16.gmra.mrb[0].mxu0 %v655
      %v1218 = vpop.f32.mrb[0].mxu0
      %v1219 = vadd.f32 %v305, %v1218
      %v1220 = vpop.f32.mrb[0].mxu0
      %v1221 = vpop.f32.mrb[0].mxu0
      %v1222 = vadd.f32 %v305, %v1221
      %v1223 = vpop.f32.mrb[0].mxu0
      %1224 = vmatprep.mubr.bf16.mxu0 %v906
      %1225 = vmatmul.mubr.bf16.gmra.mrb[0].mxu0 %v657
      %v1226 = vpop.f32.mrb[0].mxu0
      %v1227 = vadd.f32 %v305, %v1226
      %v1228 = vpop.f32.mrb[0].mxu0
      %v1229 = vpop.f32.mrb[0].mxu0
      %v1230 = vadd.f32 %v305, %v1229
      %v1231 = vpop.f32.mrb[0].mxu0
      %1232 = vmatprep.mubr.bf16.mxu0 %v909
      %1233 = vmatmul.mubr.bf16.gmra.mrb[0].mxu0 %v659
      %v1234 = vpop.f32.mrb[0].mxu0
      %v1235 = vadd.f32 %v305, %v1234
      %v1236 = vpop.f32.mrb[0].mxu0
      %v1237 = vpop.f32.mrb[0].mxu0
      %v1238 = vadd.f32 %v305, %v1237
      %v1239 = vpop.f32.mrb[0].mxu0
      %1240 = vmatprep.mubr.bf16.mxu0 %v912
      %1241 = vmatmul.mubr.bf16.gmra.mrb[0].mxu0 %v661
      %v1242 = vpop.f32.mrb[0].mxu0
      %v1243 = vadd.f32 %v305, %v1242
      %v1244 = vpop.f32.mrb[0].mxu0
      %v1245 = vpop.f32.mrb[0].mxu0
      %v1246 = vadd.f32 %v305, %v1245
      %v1247 = vpop.f32.mrb[0].mxu0
      %1248 = vmatprep.mubr.bf16.mxu0 %v915
      %1249 = vmatmul.mubr.bf16.gmra.mrb[0].mxu0 %v663
      %v1250 = vpop.f32.mrb[0].mxu0
      %v1251 = vadd.f32 %v305, %v1250
      %v1252 = vpop.f32.mrb[0].mxu0
      %v1253 = vpop.f32.mrb[0].mxu0
      %v1254 = vadd.f32 %v305, %v1253
      %v1255 = vpop.f32.mrb[0].mxu0
      %1256 = vmatprep.mubr.bf16.mxu0 %v918
      %1257 = vmatmul.mubr.bf16.gmra.mrb[0].mxu0 %v665
      %v1258 = vpop.f32.mrb[0].mxu0
      %v1259 = vadd.f32 %v305, %v1258
      %v1260 = vpop.f32.mrb[0].mxu0
      %v1261 = vpop.f32.mrb[0].mxu0
      %v1262 = vadd.f32 %v305, %v1261
      %v1263 = vpop.f32.mrb[0].mxu0
      %1264 = vmatprep.mubr.bf16.mxu0 %v921
      %1265 = vmatmul.mubr.bf16.gmra.mrb[0].mxu0 %v667
      %v1266 = vpop.f32.mrb[0].mxu0
      %v1267 = vadd.f32 %v305, %v1266
      %v1268 = vpop.f32.mrb[0].mxu0
      %v1269 = vpop.f32.mrb[0].mxu0
      %v1270 = vadd.f32 %v305, %v1269
      %v1271 = vpop.f32.mrb[0].mxu0
      %1272 = vmatprep.mubr.bf16.mxu0 %v924
      %1273 = vmatmul.mubr.bf16.gmra.mrb[0].mxu0 %v669
      %v1274 = vpop.f32.mrb[0].mxu0
      %v1275 = vadd.f32 %v305, %v1274
      %v1276 = vpop.f32.mrb[0].mxu0
      %v1277 = vpop.f32.mrb[0].mxu0
      %v1278 = vadd.f32 %v305, %v1277
      %v1279 = vpop.f32.mrb[0].mxu0
      %1280 = vmatprep.mubr.bf16.mxu0 %v927
      %1281 = vmatmul.mubr.bf16.gmra.mrb[0].mxu0 %v671
      %v1282 = vpop.f32.mrb[0].mxu0
      %v1283 = vadd.f32 %v305, %v1282
      %v1284 = vpop.f32.mrb[0].mxu0
      %v1285 = vpop.f32.mrb[0].mxu0
      %v1286 = vadd.f32 %v305, %v1285
      %v1287 = vpop.f32.mrb[0].mxu0
      %1288 = vmatprep.mubr.bf16.mxu0 %v930
      %1289 = vmatmul.mubr.bf16.gmra.mrb[0].mxu0 %v673
      %v1290 = vpop.f32.mrb[0].mxu0
      %v1291 = vadd.f32 %v305, %v1290
      %v1292 = vpop.f32.mrb[0].mxu0
      %v1293 = vpop.f32.mrb[0].mxu0
      %v1294 = vadd.f32 %v305, %v1293
      %v1295 = vpop.f32.mrb[0].mxu0
      %1296 = vmatprep.mubr.bf16.mxu0 %v933
      %1297 = vmatmul.mubr.bf16.gmra.mrb[0].mxu0 %v675
      %v1298 = vpop.f32.mrb[0].mxu0
      %v1299 = vadd.f32 %v305, %v1298
      %v1300 = vpop.f32.mrb[0].mxu0
      %v1301 = vpop.f32.mrb[0].mxu0
      %v1302 = vadd.f32 %v305, %v1301
      %v1303 = vpop.f32.mrb[0].mxu0
      %1304 = vmatprep.mubr.bf16.mxu0 %v936
      %1305 = vmatmul.mubr.bf16.gmra.mrb[0].mxu0 %v677
      %v1306 = vpop.f32.mrb[0].mxu0
      %v1307 = vadd.f32 %v305, %v1306
      %v1308 = vpop.f32.mrb[0].mxu0
      %v1309 = vpop.f32.mrb[0].mxu0
      %v1310 = vadd.f32 %v305, %v1309
      %v1311 = vpop.f32.mrb[0].mxu0
      %1312 = vmatprep.mubr.bf16.mxu0 %v939
      %1313 = vmatmul.mubr.bf16.gmra.mrb[0].mxu0 %v679
      %v1314 = vpop.f32.mrb[0].mxu0
      %v1315 = vadd.f32 %v305, %v1314
      %v1316 = vpop.f32.mrb[0].mxu0
      %v1317 = vpop.f32.mrb[0].mxu0
      %v1318 = vadd.f32 %v305, %v1317
      %v1319 = vpop.f32.mrb[0].mxu0
      %1320 = vmatprep.mubr.bf16.mxu0 %v942
      %1321 = vmatmul.mubr.bf16.gmra.mrb[0].mxu0 %v681
      %v1322 = vpop.f32.mrb[0].mxu0
      %v1323 = vadd.f32 %v305, %v1322
      %v1324 = vpop.f32.mrb[0].mxu0
      %v1325 = vpop.f32.mrb[0].mxu0
      %v1326 = vadd.f32 %v305, %v1325
      %v1327 = vpop.f32.mrb[0].mxu0
      %1328 = vmatprep.mubr.bf16.mxu0 %v945
      %1329 = vmatmul.mubr.bf16.gmra.mrb[0].mxu0 %v683
      %v1330 = vpop.f32.mrb[0].mxu0
      %v1331 = vadd.f32 %v305, %v1330
      %v1332 = vpop.f32.mrb[0].mxu0
      %v1333 = vpop.f32.mrb[0].mxu0
      %v1334 = vadd.f32 %v305, %v1333
      %v1335 = vpop.f32.mrb[0].mxu0
      %1336 = vmatprep.mubr.bf16.mxu0 %v948
      %1337 = vmatmul.mubr.bf16.gmra.mrb[0].mxu0 %v685
      %v1338 = vpop.f32.mrb[0].mxu0
      %v1339 = vadd.f32 %v305, %v1338
      %v1340 = vpop.f32.mrb[0].mxu0
      %v1341 = vpop.f32.mrb[0].mxu0
      %v1342 = vadd.f32 %v305, %v1341
      %v1343 = vpop.f32.mrb[0].mxu0
      %1344 = vmatprep.mubr.bf16.mxu0 %v951
      %1345 = vmatmul.mubr.bf16.gmra.mrb[0].mxu0 %v687
      %v1346 = vpop.f32.mrb[0].mxu0
      %v1347 = vadd.f32 %v305, %v1346
      %v1348 = vpop.f32.mrb[0].mxu0
      %v1349 = vpop.f32.mrb[0].mxu0
      %v1350 = vadd.f32 %v305, %v1349
      %v1351 = vpop.f32.mrb[0].mxu0
      %1352 = vmatprep.mubr.bf16.mxu0 %v954
      %1353 = vmatmul.mubr.bf16.gmra.mrb[0].mxu0 %v689
      %v1354 = vpop.f32.mrb[0].mxu0
      %v1355 = vadd.f32 %v305, %v1354
      %v1356 = vpop.f32.mrb[0].mxu0
      %v1357 = vpop.f32.mrb[0].mxu0
      %v1358 = vadd.f32 %v305, %v1357
      %v1359 = vpop.f32.mrb[0].mxu0
      %1360 = vmatprep.mubr.bf16.mxu0 %v957
      %1361 = vmatmul.mubr.bf16.gmra.mrb[0].mxu0 %v691
      %v1362 = vpop.f32.mrb[0].mxu0
      %v1363 = vadd.f32 %v305, %v1362
      %v1364 = vpop.f32.mrb[0].mxu0
      %v1365 = vpop.f32.mrb[0].mxu0
      %v1366 = vadd.f32 %v305, %v1365
      %v1367 = vpop.f32.mrb[0].mxu0
      %1368 = vmatprep.mubr.bf16.mxu0 %v960
      %1369 = vmatmul.mubr.bf16.gmra.mrb[0].mxu0 %v693
      %v1370 = vpop.f32.mrb[0].mxu0
      %v1371 = vadd.f32 %v305, %v1370
      %v1372 = vpop.f32.mrb[0].mxu0
      %v1373 = vpop.f32.mrb[0].mxu0
      %v1374 = vadd.f32 %v305, %v1373
      %v1375 = vpop.f32.mrb[0].mxu0
      %1376 = vmatprep.mubr.bf16.mxu0 %v963
      %1377 = vmatmul.mubr.bf16.gmra.mrb[0].mxu0 %v695
      %v1378 = vpop.f32.mrb[0].mxu0
      %v1379 = vadd.f32 %v305, %v1378
      %v1380 = vpop.f32.mrb[0].mxu0
      %v1381 = vpop.f32.mrb[0].mxu0
      %v1382 = vadd.f32 %v305, %v1381
      %v1383 = vpop.f32.mrb[0].mxu0
      %1384 = vmatprep.mubr.bf16.mxu0 %v966
      %1385 = vmatmul.mubr.bf16.gmra.mrb[0].mxu0 %v697
      %v1386 = vpop.f32.mrb[0].mxu0
      %v1387 = vadd.f32 %v305, %v1386
      %v1388 = vpop.f32.mrb[0].mxu0
      %v1389 = vpop.f32.mrb[0].mxu0
      %v1390 = vadd.f32 %v305, %v1389
      %v1391 = vpop.f32.mrb[0].mxu0
      %1392 = vdwg.mxu0
      %1393 = vst [vmem:[%s175] sm:$0xff] %v1003
      %1394 = vst [vmem:[%s175 + $0x8] sm:$0xff] %v1006
      %1395 = vst [vmem:[%s175 + $0x10] sm:$0xff] %v1011
      %1396 = vst [vmem:[%s175 + $0x18] sm:$0xff] %v1014
      %1397 = vst [vmem:[%s175 + $0x20] sm:$0xff] %v1019
      %1398 = vst [vmem:[%s175 + $0x28] sm:$0xff] %v1022
      %1399 = vst [vmem:[%s175 + $0x30] sm:$0xff] %v1027
      %1400 = vst [vmem:[%s175 + $0x38] sm:$0xff] %v1030
      %1401 = vst [vmem:[%s175 + $0x40] sm:$0xff] %v1035
      %1402 = vst [vmem:[%s175 + $0x48] sm:$0xff] %v1038
      %1403 = vst [vmem:[%s175 + $0x50] sm:$0xff] %v1043
      %1404 = vst [vmem:[%s175 + $0x58] sm:$0xff] %v1046
      %1405 = vst [vmem:[%s175 + $0x60] sm:$0xff] %v1051
      %1406 = vst [vmem:[%s175 + $0x68] sm:$0xff] %v1054
      %1407 = vst [vmem:[%s175 + $0x70] sm:$0xff] %v1059
      %1408 = vst [vmem:[%s175 + $0x78] sm:$0xff] %v1062
      %1409 = vst [vmem:[%s175 + $0x80] sm:$0xff] %v1067
      %1410 = vst [vmem:[%s175 + $0x88] sm:$0xff] %v1070
      %1411 = vst [vmem:[%s175 + $0x90] sm:$0xff] %v1075
      %1412 = vst [vmem:[%s175 + $0x98] sm:$0xff] %v1078
      %1413 = vst [vmem:[%s175 + $0xa0] sm:$0xff] %v1083
      %1414 = vst [vmem:[%s175 + $0xa8] sm:$0xff] %v1086
      %1415 = vst [vmem:[%s175 + $0xb0] sm:$0xff] %v1091
      %1416 = vst [vmem:[%s175 + $0xb8] sm:$0xff] %v1094
      %1417 = vst [vmem:[%s175 + $0xc0] sm:$0xff] %v1099
      %1418 = vst [vmem:[%s175 + $0xc8] sm:$0xff] %v1102
      %1419 = vst [vmem:[%s175 + $0xd0] sm:$0xff] %v1107
      %1420 = vst [vmem:[%s175 + $0xd8] sm:$0xff] %v1110
      %1421 = vst [vmem:[%s175 + $0xe0] sm:$0xff] %v1115
      %1422 = vst [vmem:[%s175 + $0xe8] sm:$0xff] %v1118
      %1423 = vst [vmem:[%s175 + $0xf0] sm:$0xff] %v1123
      %1424 = vst [vmem:[%s175 + $0xf8] sm:$0xff] %v1126
      %1425 = vst [vmem:[%s175 + $0x100] sm:$0xff] %v1131
      %1426 = vst [vmem:[%s175 + $0x108] sm:$0xff] %v1134
      %1427 = vst [vmem:[%s175 + $0x110] sm:$0xff] %v1139
      %1428 = vst [vmem:[%s175 + $0x118] sm:$0xff] %v1142
      %1429 = vst [vmem:[%s175 + $0x120] sm:$0xff] %v1147
      %1430 = vst [vmem:[%s175 + $0x128] sm:$0xff] %v1150
      %1431 = vst [vmem:[%s175 + $0x130] sm:$0xff] %v1155
      %1432 = vst [vmem:[%s175 + $0x138] sm:$0xff] %v1158
      %1433 = vst [vmem:[%s175 + $0x140] sm:$0xff] %v1163
      %1434 = vst [vmem:[%s175 + $0x148] sm:$0xff] %v1166
      %1435 = vst [vmem:[%s175 + $0x150] sm:$0xff] %v1171
      %1436 = vst [vmem:[%s175 + $0x158] sm:$0xff] %v1174
      %1437 = vst [vmem:[%s175 + $0x160] sm:$0xff] %v1179
      %1438 = vst [vmem:[%s175 + $0x168] sm:$0xff] %v1182
      %1439 = vst [vmem:[%s175 + $0x170] sm:$0xff] %v1187
      %1440 = vst [vmem:[%s175 + $0x178] sm:$0xff] %v1190
      %1441 = vst [vmem:[%s175 + $0x180] sm:$0xff] %v1195
      %1442 = vst [vmem:[%s175 + $0x188] sm:$0xff] %v1198
      %1443 = vst [vmem:[%s175 + $0x190] sm:$0xff] %v1203
      %1444 = vst [vmem:[%s175 + $0x198] sm:$0xff] %v1206
      %1445 = vst [vmem:[%s175 + $0x1a0] sm:$0xff] %v1211
      %1446 = vst [vmem:[%s175 + $0x1a8] sm:$0xff] %v1214
      %1447 = vst [vmem:[%s175 + $0x1b0] sm:$0xff] %v1219
      %1448 = vst [vmem:[%s175 + $0x1b8] sm:$0xff] %v1222
      %1449 = vst [vmem:[%s175 + $0x1c0] sm:$0xff] %v1227
      %1450 = vst [vmem:[%s175 + $0x1c8] sm:$0xff] %v1230
      %1451 = vst [vmem:[%s175 + $0x1d0] sm:$0xff] %v1235
      %1452 = vst [vmem:[%s175 + $0x1d8] sm:$0xff] %v1238
      %1453 = vst [vmem:[%s175 + $0x1e0] sm:$0xff] %v1243
      %1454 = vst [vmem:[%s175 + $0x1e8] sm:$0xff] %v1246
      %1455 = vst [vmem:[%s175 + $0x1f0] sm:$0xff] %v1251
      %1456 = vst [vmem:[%s175 + $0x1f8] sm:$0xff] %v1254
      %1457 = vst [vmem:[%s175 + $0x200] sm:$0xff] %v1259
      %1458 = vst [vmem:[%s175 + $0x208] sm:$0xff] %v1262
      %1459 = vst [vmem:[%s175 + $0x210] sm:$0xff] %v1267
      %1460 = vst [vmem:[%s175 + $0x218] sm:$0xff] %v1270
      %1461 = vst [vmem:[%s175 + $0x220] sm:$0xff] %v1275
      %1462 = vst [vmem:[%s175 + $0x228] sm:$0xff] %v1278
      %1463 = vst [vmem:[%s175 + $0x230] sm:$0xff] %v1283
      %1464 = vst [vmem:[%s175 + $0x238] sm:$0xff] %v1286
      %1465 = vst [vmem:[%s175 + $0x240] sm:$0xff] %v1291
      %1466 = vst [vmem:[%s175 + $0x248] sm:$0xff] %v1294
      %1467 = vst [vmem:[%s175 + $0x250] sm:$0xff] %v1299
      %1468 = vst [vmem:[%s175 + $0x258] sm:$0xff] %v1302
      %1469 = vst [vmem:[%s175 + $0x260] sm:$0xff] %v1307
      %1470 = vst [vmem:[%s175 + $0x268] sm:$0xff] %v1310
      %1471 = vst [vmem:[%s175 + $0x270] sm:$0xff] %v1315
      %1472 = vst [vmem:[%s175 + $0x278] sm:$0xff] %v1318
      %1473 = vst [vmem:[%s175 + $0x280] sm:$0xff] %v1323
      %1474 = vst [vmem:[%s175 + $0x288] sm:$0xff] %v1326
      %1475 = vst [vmem:[%s175 + $0x290] sm:$0xff] %v1331
      %1476 = vst [vmem:[%s175 + $0x298] sm:$0xff] %v1334
      %1477 = vst [vmem:[%s175 + $0x2a0] sm:$0xff] %v1339
      %1478 = vst [vmem:[%s175 + $0x2a8] sm:$0xff] %v1342
      %1479 = vst [vmem:[%s175 + $0x2b0] sm:$0xff] %v1347
      %1480 = vst [vmem:[%s175 + $0x2b8] sm:$0xff] %v1350
      %1481 = vst [vmem:[%s175 + $0x2c0] sm:$0xff] %v1355
      %1482 = vst [vmem:[%s175 + $0x2c8] sm:$0xff] %v1358
      %1483 = vst [vmem:[%s175 + $0x2d0] sm:$0xff] %v1363
      %1484 = vst [vmem:[%s175 + $0x2d8] sm:$0xff] %v1366
      %1485 = vst [vmem:[%s175 + $0x2e0] sm:$0xff] %v1371
      %1486 = vst [vmem:[%s175 + $0x2e8] sm:$0xff] %v1374
      %1487 = vst [vmem:[%s175 + $0x2f0] sm:$0xff] %v1379
      %1488 = vst [vmem:[%s175 + $0x2f8] sm:$0xff] %v1382
      %1489 = vst [vmem:[%s175 + $0x300] sm:$0xff] %v1387
      %1490 = vst [vmem:[%s175 + $0x308] sm:$0xff] %v1390
      %s1491 = smul.u32 98, %s14
      %p1492 = scmp.lt.s32.totalorder %s1491, 195
      %s1493 = scalar_select %p1492, %s1491, 195
      %s1494 = smul.addr %s1493, 8
      %s1495 = scalar_lea.vmem %s3, %s1494
      // Predicated region
      $region33: #{encoder_forward.6} parent=31 // pred_check
        %p1496 = pneg %p100
      $region34: #{encoder_forward.6} parent=31 // pred_check_branch
        %1498 = sbr.rel (%p1496) target = $region36
      $region35: #{encoder_forward.6} parent=31 // pred_region
        %s1499 = smul.u32 98, %s14
      $region36: #{encoder_forward.6} parent=31 // pred_fallthru
        _
    $region32: #{encoder_forward.6} parent=5 // pred_fallthru
      _
    %p1500 = scmp.le.s32.totalorder 2, %s9
    // Predicated region
    $region37: #{encoder_forward.6} parent=5 // pred_check
      %p1501 = pneg %p1500
    $region38: #{encoder_forward.6} parent=5 // pred_check_branch
      %1503 = sbr.rel (%p1501) target = $region40
    $region39: #{encoder_forward.6} parent=5 // pred_region
      %s1504 = ssub.s32 %s9, 2
      // Predicated region
      $region41: #{encoder_forward.6} parent=39 // pred_check
        %p1505 = pneg %p106
      $region42: #{encoder_forward.6} parent=39 // pred_check_branch
        %1507 = sbr.rel (%p1505) target = $region44
      $region43: #{encoder_forward.6} parent=39 // pred_region
        %s1508 = smul.u32 98, %s15
        %p1509 = scmp.lt.s32.totalorder %s1508, 195
        %s1510 = scalar_select %p1509, %s1508, 195
        %s1511 = smul.addr %s1510, 8
        %s1512 = scalar_lea.vmem %s3, %s1511
      $region44: #{encoder_forward.6} parent=39 // pred_fallthru
        _
    $region40: #{encoder_forward.6} parent=5 // pred_fallthru
      _
  $region6: #{encoder_forward.6} parent=0 // loop_footer
    %s13 = sadd.s32 1, %s9
  $region7: #{encoder_forward.6} parent=0 // loop_footer_branch
    %8 = sbr.rel target = $region3
  $region8: #{encoder_forward.6} parent=0 // loop_exit
    _

// kernel: encoder_forward.7
$region0: #{encoder_forward.7}
  #allocation0 [shape = 'u32[]', space=smem, size = 0x4, offset = 0x4, fixed_abs, tag = 'smem constant byte address 0x4 - core index']
  #allocation1 [shape = 'u32[144,128]{1,0:T(1,128)}', space=vmem, size = 0x12000, scoped, tag = 'internal scratch']
  %s0 = inlined_call_operand.vmem [shape: bf16[6272,48], index: 0, kind: input, shape index: {}]
  %s1 = inlined_call_operand.vmem [shape: bf16[48,128], index: 1, kind: input, shape index: {}]
  %s2 = inlined_call_operand.vmem [shape: f32[1,128], index: 2, kind: input, shape index: {}]
  %s3 = inlined_call_operand.vmem [shape: f32[6272,128], index: 3, kind: output, shape index: {}]
  %s4 = sld [smem:[#allocation0]]
  $region45: #{encoder_forward.7} parent=0
    _
  %s6 = ssub.s32 1, %s4
  %s7 = scalar_select 0, %s6, %s4
  loop: start=0, step=1, limit=10
  $region2: #{encoder_forward.7} parent=0 // loop_pre_header
    _
  $region3: #{encoder_forward.7} parent=0 // loop_header
    %s9 = sphi 0, %s13
    %p10 = scmp.ge.s32.totalorder %s9, 10
    %s19 = sphi 0, %s21
    %s22 = sphi 0, %s19
    %s23 = sphi 0, %s22
    %s39 = sphi 0, %s23
    %s43 = sphi 0, %s43
    %s45 = sphi 0, %s43
    %s46 = sphi 0, %s45
    %s60 = sphi 0, %s46
    %s64 = sphi 0, %s64
    %s66 = sphi 0, %s64
    %s67 = sphi 0, %s66
    %s81 = sphi 0, %s67
    %s87 = sphi 0, %s89
    %s90 = sphi 0, %s87
    %s91 = sphi 0, %s90
    %s107 = sphi 0, %s91
  $region4: #{encoder_forward.7} parent=0 // loop_header_branch
    %12 = sbr.rel (%p10) target = $region8
  $region5: #{encoder_forward.7} parent=0 // loop_body
    %s14 = ssub.s32 %s9, 1
    %s15 = ssub.s32 %s9, 2
    %s16 = sadd.s32 %s9, 1
    %s17 = ssub.s32 %s9, %s16
    %p18 = scmp.eq.s32.totalorder %s17, 0
    %s20 = sadd.s32 %s19, 1
    %s21 = scalar_select %p18, %s19, %s20
    %p24 = pneg %p18
    %p25 = scmp.eq.s32.totalorder %s9, 7
    %p26 = por %p24, %p25
    %p27 = scmp.ne.s32.totalorder %s19, %s22
    %p28 = scmp.eq.s32.totalorder %s9, 0
    %p29 = por %p27, %p28
    %p30 = scmp.ne.s32.totalorder %s19, %s22
    %p31 = scmp.eq.s32.totalorder %s14, 7
    %p32 = por %p30, %p31
    %p33 = scmp.ne.s32.totalorder %s22, %s23
    %p34 = scmp.eq.s32.totalorder %s14, 0
    %p35 = por %p33, %p34
    %p36 = scmp.ne.s32.totalorder %s22, %s23
    %p37 = scmp.eq.s32.totalorder %s15, 7
    %p38 = por %p36, %p37
    %p40 = scmp.ne.s32.totalorder %s23, %s39
    %p41 = scmp.eq.s32.totalorder %s15, 0
    %p42 = por %p40, %p41
    %s44 = sadd.s32 %s43, 1
    %p47 = scmp.eq.s32.totalorder %s9, 7
    %p48 = scmp.ne.s32.totalorder %s43, %s45
    %p49 = scmp.eq.s32.totalorder %s9, 0
    %p50 = por %p48, %p49
    %p51 = scmp.ne.s32.totalorder %s43, %s45
    %p52 = scmp.eq.s32.totalorder %s14, 7
    %p53 = por %p51, %p52
    %p54 = scmp.ne.s32.totalorder %s45, %s46
    %p55 = scmp.eq.s32.totalorder %s14, 0
    %p56 = por %p54, %p55
    %p57 = scmp.ne.s32.totalorder %s45, %s46
    %p58 = scmp.eq.s32.totalorder %s15, 7
    %p59 = por %p57, %p58
    %p61 = scmp.ne.s32.totalorder %s46, %s60
    %p62 = scmp.eq.s32.totalorder %s15, 0
    %p63 = por %p61, %p62
    %s65 = sadd.s32 %s64, 1
    %p68 = scmp.eq.s32.totalorder %s9, 7
    %p69 = scmp.ne.s32.totalorder %s64, %s66
    %p70 = scmp.eq.s32.totalorder %s9, 0
    %p71 = por %p69, %p70
    %p72 = scmp.ne.s32.totalorder %s64, %s66
    %p73 = scmp.eq.s32.totalorder %s14, 7
    %p74 = por %p72, %p73
    %p75 = scmp.ne.s32.totalorder %s66, %s67
    %p76 = scmp.eq.s32.totalorder %s14, 0
    %p77 = por %p75, %p76
    %p78 = scmp.ne.s32.totalorder %s66, %s67
    %p79 = scmp.eq.s32.totalorder %s15, 7
    %p80 = por %p78, %p79
    %p82 = scmp.ne.s32.totalorder %s67, %s81
    %p83 = scmp.eq.s32.totalorder %s15, 0
    %p84 = por %p82, %p83
    %s85 = ssub.s32 %s9, %s16
    %p86 = scmp.eq.s32.totalorder %s85, 0
    %s88 = sadd.s32 %s87, 1
    %s89 = scalar_select %p86, %s87, %s88
    %p92 = pneg %p86
    %p93 = scmp.eq.s32.totalorder %s9, 7
    %p94 = por %p92, %p93
    %p95 = scmp.ne.s32.totalorder %s87, %s90
    %p96 = scmp.eq.s32.totalorder %s9, 0
    %p97 = por %p95, %p96
    %p98 = scmp.ne.s32.totalorder %s87, %s90
    %p99 = scmp.eq.s32.totalorder %s14, 7
    %p100 = por %p98, %p99
    %p101 = scmp.ne.s32.totalorder %s90, %s91
    %p102 = scmp.eq.s32.totalorder %s14, 0
    %p103 = por %p101, %p102
    %p104 = scmp.ne.s32.totalorder %s90, %s91
    %p105 = scmp.eq.s32.totalorder %s15, 7
    %p106 = por %p104, %p105
    %p108 = scmp.ne.s32.totalorder %s91, %s107
    %p109 = scmp.eq.s32.totalorder %s15, 0
    %p110 = por %p108, %p109
    %p111 = scmp.le.s32.totalorder 1, %s9
    %p112 = scmp.lt.s32.totalorder %s9, 9
    %p113 = pnand %p111, %p112
    %p114 = pneg %p113
    // Predicated region
    $region9: #{encoder_forward.7} parent=5 // pred_check
      _
    $region10: #{encoder_forward.7} parent=5 // pred_check_branch
      %116 = sbr.rel (%p113) target = $region12
    $region11: #{encoder_forward.7} parent=5 // pred_region
      %s117 = ssub.s32 %s9, 1
      // Predicated region
      $region13: #{encoder_forward.7} parent=11 // pred_check
        %p118 = pneg %p56
      $region14: #{encoder_forward.7} parent=11 // pred_check_branch
        %120 = sbr.rel (%p118) target = $region16
      $region15: #{encoder_forward.7} parent=11 // pred_region
        _
      $region16: #{encoder_forward.7} parent=11 // pred_fallthru
        _
      // Predicated region
      $region17: #{encoder_forward.7} parent=11 // pred_check
        %p121 = pneg %p77
      $region18: #{encoder_forward.7} parent=11 // pred_check_branch
        %123 = sbr.rel (%p121) target = $region20
      $region19: #{encoder_forward.7} parent=11 // pred_region
        _
      $region20: #{encoder_forward.7} parent=11 // pred_fallthru
        _
    $region12: #{encoder_forward.7} parent=5 // pred_fallthru
      _
    %p124 = scmp.lt.s32.totalorder %s9, 8
    // Predicated region
    $region21: #{encoder_forward.7} parent=5 // pred_check
      %p125 = pneg %p124
    $region22: #{encoder_forward.7} parent=5 // pred_check_branch
      %127 = sbr.rel (%p125) target = $region24
    $region23: #{encoder_forward.7} parent=5 // pred_region
      // Predicated region
      $region25: #{encoder_forward.7} parent=23 // pred_check
        %p128 = pneg %p29
      $region26: #{encoder_forward.7} parent=23 // pred_check_branch
        %130 = sbr.rel (%p128) target = $region28
      $region27: #{encoder_forward.7} parent=23 // pred_region
        %s131 = smul.u32 98, %s9
        %p132 = scmp.lt.s32.totalorder %s131, 783
        %s133 = scalar_select %p132, %s131, 783
        %s134 = smul.addr %s133, 4
        %s135 = scalar_lea.vmem %s0, %s134
        %s136 = smul.u32 98, %s9
      $region28: #{encoder_forward.7} parent=23 // pred_fallthru
        _
    $region24: #{encoder_forward.7} parent=5 // pred_fallthru
      _
    %p137 = scmp.le.s32.totalorder 1, %s9
    %p138 = scmp.lt.s32.totalorder %s9, 9
    %p139 = pnand %p137, %p138
    %p140 = pneg %p139
    // Predicated region
    $region29: #{encoder_forward.7} parent=5 // pred_check
      _
    $region30: #{encoder_forward.7} parent=5 // pred_check_branch
      %142 = sbr.rel (%p139) target = $region32
    $region31: #{encoder_forward.7} parent=5 // pred_region
      %s143 = ssub.s32 %s9, 1
      %s144 = smul.u32 98, %s14
      %p145 = scmp.lt.s32.totalorder %s144, 783
      %s146 = scalar_select %p145, %s144, 783
      %s147 = smul.addr %s146, 4
      %s148 = scalar_lea.vmem %s0, %s147
      %p149 = pneg %p35
      %p150 = pneg %p32
      %p151 = pneg %p56
      %p152 = pneg %p53
      %p153 = pneg %p77
      %p154 = pneg %p74
      %p155 = pneg %p103
      %p156 = pneg %p100
      %s157 = smul.u32 98, %s14
      %p158 = scmp.lt.s32.totalorder %s157, 783
      %s159 = scalar_select %p158, %s157, 783
      %s160 = smul.addr %s159, 8
      %s161 = scalar_lea.vmem %s3, %s160
      %s162 = smul.u32 98, %s14
      %p163 = scmp.lt.s32.totalorder %s162, 783
      %s164 = scalar_select %p163, %s162, 783
      %s165 = smul.addr %s164, 4
      %s166 = scalar_lea.vmem %s0, %s165
      %s167 = smul.u32 98, %s14
      %s168 = smul.u32 98, %s14
      %p169 = scmp.lt.s32.totalorder %s168, 783
      %s170 = scalar_select %p169, %s168, 783
      %s171 = smul.addr %s170, 8
      %s172 = scalar_lea.vmem %s3, %s171
      %s173 = smul.u32 98, %s14
      %v175 = vld [vmem:[%s166] sm:$0xf]
      %v176 = vld [vmem:[%s166 + $0x4] sm:$0xf]
      %v177 = vld [vmem:[%s166 + $0x8] sm:$0xf]
      %v178 = vld [vmem:[%s166 + $0xc] sm:$0xf]
      %v179 = vld [vmem:[%s166 + $0x10] sm:$0xf]
      %v180 = vld [vmem:[%s166 + $0x14] sm:$0xf]
      %v181 = vld [vmem:[%s166 + $0x18] sm:$0xf]
      %v182 = vld [vmem:[%s166 + $0x1c] sm:$0xf]
      %v183 = vld [vmem:[%s166 + $0x20] sm:$0xf]
      %v184 = vld [vmem:[%s166 + $0x24] sm:$0xf]
      %v185 = vld [vmem:[%s166 + $0x28] sm:$0xf]
      %v186 = vld [vmem:[%s166 + $0x2c] sm:$0xf]
      %v187 = vld [vmem:[%s166 + $0x30] sm:$0xf]
      %v188 = vld [vmem:[%s166 + $0x34] sm:$0xf]
      %v189 = vld [vmem:[%s166 + $0x38] sm:$0xf]
      %v190 = vld [vmem:[%s166 + $0x3c] sm:$0xf]
      %v191 = vld [vmem:[%s166 + $0x40] sm:$0xf]
      %v192 = vld [vmem:[%s166 + $0x44] sm:$0xf]
      %v193 = vld [vmem:[%s166 + $0x48] sm:$0xf]
      %v194 = vld [vmem:[%s166 + $0x4c] sm:$0xf]
      %v195 = vld [vmem:[%s166 + $0x50] sm:$0xf]
      %v196 = vld [vmem:[%s166 + $0x54] sm:$0xf]
      %v197 = vld [vmem:[%s166 + $0x58] sm:$0xf]
      %v198 = vld [vmem:[%s166 + $0x5c] sm:$0xf]
      %v199 = vld [vmem:[%s166 + $0x60] sm:$0xf]
      %v200 = vld [vmem:[%s166 + $0x64] sm:$0xf]
      %v201 = vld [vmem:[%s166 + $0x68] sm:$0xf]
      %v202 = vld [vmem:[%s166 + $0x6c] sm:$0xf]
      %v203 = vld [vmem:[%s166 + $0x70] sm:$0xf]
      %v204 = vld [vmem:[%s166 + $0x74] sm:$0xf]
      %v205 = vld [vmem:[%s166 + $0x78] sm:$0xf]
      %v206 = vld [vmem:[%s166 + $0x7c] sm:$0xf]
      %v207 = vld [vmem:[%s166 + $0x80] sm:$0xf]
      %v208 = vld [vmem:[%s166 + $0x84] sm:$0xf]
      %v209 = vld [vmem:[%s166 + $0x88] sm:$0xf]
      %v210 = vld [vmem:[%s166 + $0x8c] sm:$0xf]
      %v211 = vld [vmem:[%s166 + $0x90] sm:$0xf]
      %v212 = vld [vmem:[%s166 + $0x94] sm:$0xf]
      %v213 = vld [vmem:[%s166 + $0x98] sm:$0xf]
      %v214 = vld [vmem:[%s166 + $0x9c] sm:$0xf]
      %v215 = vld [vmem:[%s166 + $0xa0] sm:$0xf]
      %v216 = vld [vmem:[%s166 + $0xa4] sm:$0xf]
      %v217 = vld [vmem:[%s166 + $0xa8] sm:$0xf]
      %v218 = vld [vmem:[%s166 + $0xac] sm:$0xf]
      %v219 = vld [vmem:[%s166 + $0xb0] sm:$0xf]
      %v220 = vld [vmem:[%s166 + $0xb4] sm:$0xf]
      %v221 = vld [vmem:[%s166 + $0xb8] sm:$0xf]
      %v222 = vld [vmem:[%s166 + $0xbc] sm:$0xf]
      %v223 = vld [vmem:[%s166 + $0xc0] sm:$0xf]
      %v224 = vld [vmem:[%s166 + $0xc4] sm:$0xf]
      %v225 = vld [vmem:[%s166 + $0xc8] sm:$0xf]
      %v226 = vld [vmem:[%s166 + $0xcc] sm:$0xf]
      %v227 = vld [vmem:[%s166 + $0xd0] sm:$0xf]
      %v228 = vld [vmem:[%s166 + $0xd4] sm:$0xf]
      %v229 = vld [vmem:[%s166 + $0xd8] sm:$0xf]
      %v230 = vld [vmem:[%s166 + $0xdc] sm:$0xf]
      %v231 = vld [vmem:[%s166 + $0xe0] sm:$0xf]
      %v232 = vld [vmem:[%s166 + $0xe4] sm:$0xf]
      %v233 = vld [vmem:[%s166 + $0xe8] sm:$0xf]
      %v234 = vld [vmem:[%s166 + $0xec] sm:$0xf]
      %v235 = vld [vmem:[%s166 + $0xf0] sm:$0xf]
      %v236 = vld [vmem:[%s166 + $0xf4] sm:$0xf]
      %v237 = vld [vmem:[%s166 + $0xf8] sm:$0xf]
      %v238 = vld [vmem:[%s166 + $0xfc] sm:$0xf]
      %v239 = vld [vmem:[%s166 + $0x100] sm:$0xf]
      %v240 = vld [vmem:[%s166 + $0x104] sm:$0xf]
      %v241 = vld [vmem:[%s166 + $0x108] sm:$0xf]
      %v242 = vld [vmem:[%s166 + $0x10c] sm:$0xf]
      %v243 = vld [vmem:[%s166 + $0x110] sm:$0xf]
      %v244 = vld [vmem:[%s166 + $0x114] sm:$0xf]
      %v245 = vld [vmem:[%s166 + $0x118] sm:$0xf]
      %v246 = vld [vmem:[%s166 + $0x11c] sm:$0xf]
      %v247 = vld [vmem:[%s166 + $0x120] sm:$0xf]
      %v248 = vld [vmem:[%s166 + $0x124] sm:$0xf]
      %v249 = vld [vmem:[%s166 + $0x128] sm:$0xf]
      %v250 = vld [vmem:[%s166 + $0x12c] sm:$0xf]
      %v251 = vld [vmem:[%s166 + $0x130] sm:$0xf]
      %v252 = vld [vmem:[%s166 + $0x134] sm:$0xf]
      %v253 = vld [vmem:[%s166 + $0x138] sm:$0xf]
      %v254 = vld [vmem:[%s166 + $0x13c] sm:$0xf]
      %v255 = vld [vmem:[%s166 + $0x140] sm:$0xf]
      %v256 = vld [vmem:[%s166 + $0x144] sm:$0xf]
      %v257 = vld [vmem:[%s166 + $0x148] sm:$0xf]
      %v258 = vld [vmem:[%s166 + $0x14c] sm:$0xf]
      %v259 = vld [vmem:[%s166 + $0x150] sm:$0xf]
      %v260 = vld [vmem:[%s166 + $0x154] sm:$0xf]
      %v261 = vld [vmem:[%s166 + $0x158] sm:$0xf]
      %v262 = vld [vmem:[%s166 + $0x15c] sm:$0xf]
      %v263 = vld [vmem:[%s166 + $0x160] sm:$0xf]
      %v264 = vld [vmem:[%s166 + $0x164] sm:$0xf]
      %v265 = vld [vmem:[%s166 + $0x168] sm:$0xf]
      %v266 = vld [vmem:[%s166 + $0x16c] sm:$0xf]
      %v267 = vld [vmem:[%s166 + $0x170] sm:$0xf]
      %v268 = vld [vmem:[%s166 + $0x174] sm:$0xf]
      %v269 = vld [vmem:[%s166 + $0x178] sm:$0xf]
      %v270 = vld [vmem:[%s166 + $0x17c] sm:$0xf]
      %v271 = vld [vmem:[%s166 + $0x180] sm:$0xf]
      %v272 = vld [vmem:[%s166 + $0x184] sm:$0xf]
      %v273 = vld [vmem:[%s1] sm:$0xf]
      %v274 = vld [vmem:[%s1 + $0x4] sm:$0xf]
      %v275 = vld [vmem:[%s1 + $0x8] sm:$0xf]
      %v276 = vld [vmem:[%s1 + $0xc] sm:$0xf]
      %v277 = vld [vmem:[%s1 + $0x10] sm:$0xf]
      %v278 = vld [vmem:[%s1 + $0x14] sm:$0xf]
      %v279 = vld [vmem:[%s2] sm:$0x1]
      %v281 = vlaneseq
      %v282 = vshrl.u32 %v281, 7
      %v283 = vsub.s32 0, %v282
      %v284 = vrot.slane %v279, %v283
      %v384 = vunpack.c.l.b16 %v175
      %v385 = vunpack.c.l.b16 %v176
      %v386 = vunpack.c.l.b16 %v177
      %v387 = vunpack.c.l.b16 %v178
      %v388 = vunpack.c.l.b16 %v179
      %v389 = vunpack.c.l.b16 %v180
      %v390 = vunpack.c.l.b16 %v181
      %v391 = vunpack.c.l.b16 %v182
      %v392 = vunpack.c.l.b16 %v183
      %v393 = vunpack.c.l.b16 %v184
      %v394 = vunpack.c.l.b16 %v185
      %v395 = vunpack.c.l.b16 %v186
      %v396 = vunpack.c.l.b16 %v187
      %v397 = vunpack.c.l.b16 %v188
      %v398 = vunpack.c.l.b16 %v189
      %v399 = vunpack.c.l.b16 %v190
      %v400 = vunpack.c.l.b16 %v191
      %v401 = vunpack.c.l.b16 %v192
      %v402 = vunpack.c.l.b16 %v193
      %v403 = vunpack.c.l.b16 %v194
      %v404 = vunpack.c.l.b16 %v195
      %v405 = vunpack.c.l.b16 %v196
      %v406 = vunpack.c.l.b16 %v197
      %v407 = vunpack.c.l.b16 %v198
      %v408 = vunpack.c.l.b16 %v199
      %v409 = vunpack.c.l.b16 %v200
      %v410 = vunpack.c.l.b16 %v201
      %v411 = vunpack.c.l.b16 %v202
      %v412 = vunpack.c.l.b16 %v203
      %v413 = vunpack.c.l.b16 %v204
      %v414 = vunpack.c.l.b16 %v205
      %v415 = vunpack.c.l.b16 %v206
      %v416 = vunpack.c.l.b16 %v207
      %v417 = vunpack.c.l.b16 %v208
      %v418 = vunpack.c.l.b16 %v209
      %v419 = vunpack.c.l.b16 %v210
      %v420 = vunpack.c.l.b16 %v211
      %v421 = vunpack.c.l.b16 %v212
      %v422 = vunpack.c.l.b16 %v213
      %v423 = vunpack.c.l.b16 %v214
      %v424 = vunpack.c.l.b16 %v215
      %v425 = vunpack.c.l.b16 %v216
      %v426 = vunpack.c.l.b16 %v217
      %v427 = vunpack.c.l.b16 %v218
      %v428 = vunpack.c.l.b16 %v219
      %v429 = vunpack.c.l.b16 %v220
      %v430 = vunpack.c.l.b16 %v221
      %v431 = vunpack.c.l.b16 %v222
      %v432 = vunpack.c.l.b16 %v223
      %v433 = vunpack.c.l.b16 %v224
      %v434 = vunpack.c.l.b16 %v225
      %v435 = vunpack.c.l.b16 %v226
      %v436 = vunpack.c.l.b16 %v227
      %v437 = vunpack.c.l.b16 %v228
      %v438 = vunpack.c.l.b16 %v229
      %v439 = vunpack.c.l.b16 %v230
      %v440 = vunpack.c.l.b16 %v231
      %v441 = vunpack.c.l.b16 %v232
      %v442 = vunpack.c.l.b16 %v233
      %v443 = vunpack.c.l.b16 %v234
      %v444 = vunpack.c.l.b16 %v235
      %v445 = vunpack.c.l.b16 %v236
      %v446 = vunpack.c.l.b16 %v237
      %v447 = vunpack.c.l.b16 %v238
      %v448 = vunpack.c.l.b16 %v239
      %v449 = vunpack.c.l.b16 %v240
      %v450 = vunpack.c.l.b16 %v241
      %v451 = vunpack.c.l.b16 %v242
      %v452 = vunpack.c.l.b16 %v243
      %v453 = vunpack.c.l.b16 %v244
      %v454 = vunpack.c.l.b16 %v245
      %v455 = vunpack.c.l.b16 %v246
      %v456 = vunpack.c.l.b16 %v247
      %v457 = vunpack.c.l.b16 %v248
      %v458 = vunpack.c.l.b16 %v249
      %v459 = vunpack.c.l.b16 %v250
      %v460 = vunpack.c.l.b16 %v251
      %v461 = vunpack.c.l.b16 %v252
      %v462 = vunpack.c.l.b16 %v253
      %v463 = vunpack.c.l.b16 %v254
      %v464 = vunpack.c.l.b16 %v255
      %v465 = vunpack.c.l.b16 %v256
      %v466 = vunpack.c.l.b16 %v257
      %v467 = vunpack.c.l.b16 %v258
      %v468 = vunpack.c.l.b16 %v259
      %v469 = vunpack.c.l.b16 %v260
      %v470 = vunpack.c.l.b16 %v261
      %v471 = vunpack.c.l.b16 %v262
      %v472 = vunpack.c.l.b16 %v263
      %v473 = vunpack.c.l.b16 %v264
      %v474 = vunpack.c.l.b16 %v265
      %v475 = vunpack.c.l.b16 %v266
      %v476 = vunpack.c.l.b16 %v267
      %v477 = vunpack.c.l.b16 %v268
      %v478 = vunpack.c.l.b16 %v269
      %v479 = vunpack.c.l.b16 %v270
      %v480 = vunpack.c.l.b16 %v271
      %v481 = vunpack.c.l.b16 %v272
      %v482 = vpack.c.b16 %v385, %v384
      %v483 = vpack.c.b16 %v387, %v386
      %v484 = vpack.c.b16 %v389, %v388
      %v485 = vpack.c.b16 %v391, %v390
      %v486 = vpack.c.b16 %v393, %v392
      %v487 = vpack.c.b16 %v395, %v394
      %v488 = vpack.c.b16 %v397, %v396
      %v489 = vpack.c.b16 %v399, %v398
      %v490 = vpack.c.b16 %v401, %v400
      %v491 = vpack.c.b16 %v403, %v402
      %v492 = vpack.c.b16 %v405, %v404
      %v493 = vpack.c.b16 %v407, %v406
      %v494 = vpack.c.b16 %v409, %v408
      %v495 = vpack.c.b16 %v411, %v410
      %v496 = vpack.c.b16 %v413, %v412
      %v497 = vpack.c.b16 %v415, %v414
      %v498 = vpack.c.b16 %v417, %v416
      %v499 = vpack.c.b16 %v419, %v418
      %v500 = vpack.c.b16 %v421, %v420
      %v501 = vpack.c.b16 %v423, %v422
      %v502 = vpack.c.b16 %v425, %v424
      %v503 = vpack.c.b16 %v427, %v426
      %v504 = vpack.c.b16 %v429, %v428
      %v505 = vpack.c.b16 %v431, %v430
      %v506 = vpack.c.b16 %v433, %v432
      %v507 = vpack.c.b16 %v435, %v434
      %v508 = vpack.c.b16 %v437, %v436
      %v509 = vpack.c.b16 %v439, %v438
      %v510 = vpack.c.b16 %v441, %v440
      %v511 = vpack.c.b16 %v443, %v442
      %v512 = vpack.c.b16 %v445, %v444
      %v513 = vpack.c.b16 %v447, %v446
      %v514 = vpack.c.b16 %v449, %v448
      %v515 = vpack.c.b16 %v451, %v450
      %v516 = vpack.c.b16 %v453, %v452
      %v517 = vpack.c.b16 %v455, %v454
      %v518 = vpack.c.b16 %v457, %v456
      %v519 = vpack.c.b16 %v459, %v458
      %v520 = vpack.c.b16 %v461, %v460
      %v521 = vpack.c.b16 %v463, %v462
      %v522 = vpack.c.b16 %v465, %v464
      %v523 = vpack.c.b16 %v467, %v466
      %v524 = vpack.c.b16 %v469, %v468
      %v525 = vpack.c.b16 %v471, %v470
      %v526 = vpack.c.b16 %v473, %v472
      %v527 = vpack.c.b16 %v475, %v474
      %v528 = vpack.c.b16 %v477, %v476
      %v529 = vpack.c.b16 %v479, %v478
      %v530 = vpack.c.b16 %v481, %v480
      %v537 = vunpack.c.l.b16 %v273
      %v538 = vunpack.c.l.b16 %v274
      %v539 = vunpack.c.l.b16 %v275
      %v540 = vunpack.c.l.b16 %v276
      %v541 = vunpack.c.l.b16 %v277
      %v542 = vunpack.c.l.b16 %v278
      %v543 = vpack.c.b16 %v538, %v537
      %v544 = vpack.c.b16 %v540, %v539
      %v545 = vpack.c.b16 %v542, %v541
      %vm549 = vcmask 392192
      %v551 = vsel %vm549, %v482, 0
      %v554 = vsel %vm549, %v483, 0
      %v557 = vsel %vm549, %v484, 0
      %v560 = vsel %vm549, %v485, 0
      %v563 = vsel %vm549, %v486, 0
      %v566 = vsel %vm549, %v487, 0
      %v569 = vsel %vm549, %v488, 0
      %v572 = vsel %vm549, %v489, 0
      %v575 = vsel %vm549, %v490, 0
      %v578 = vsel %vm549, %v491, 0
      %v581 = vsel %vm549, %v492, 0
      %v584 = vsel %vm549, %v493, 0
      %v587 = vsel %vm549, %v494, 0
      %v590 = vsel %vm549, %v495, 0
      %v593 = vsel %vm549, %v496, 0
      %v596 = vsel %vm549, %v497, 0
      %v599 = vsel %vm549, %v498, 0
      %v602 = vsel %vm549, %v499, 0
      %v605 = vsel %vm549, %v500, 0
      %v608 = vsel %vm549, %v501, 0
      %v611 = vsel %vm549, %v502, 0
      %v614 = vsel %vm549, %v503, 0
      %v617 = vsel %vm549, %v504, 0
      %v620 = vsel %vm549, %v505, 0
      %v623 = vsel %vm549, %v506, 0
      %v626 = vsel %vm549, %v507, 0
      %v629 = vsel %vm549, %v508, 0
      %v632 = vsel %vm549, %v509, 0
      %v635 = vsel %vm549, %v510, 0
      %v638 = vsel %vm549, %v511, 0
      %v641 = vsel %vm549, %v512, 0
      %v644 = vsel %vm549, %v513, 0
      %v647 = vsel %vm549, %v514, 0
      %v650 = vsel %vm549, %v515, 0
      %v653 = vsel %vm549, %v516, 0
      %v656 = vsel %vm549, %v517, 0
      %v659 = vsel %vm549, %v518, 0
      %v662 = vsel %vm549, %v519, 0
      %v665 = vsel %vm549, %v520, 0
      %v668 = vsel %vm549, %v521, 0
      %v671 = vsel %vm549, %v522, 0
      %v674 = vsel %vm549, %v523, 0
      %v677 = vsel %vm549, %v524, 0
      %v680 = vsel %vm549, %v525, 0
      %v683 = vsel %vm549, %v526, 0
      %v686 = vsel %vm549, %v527, 0
      %v689 = vsel %vm549, %v528, 0
      %v692 = vsel %vm549, %v529, 0
      %v695 = vsel %vm549, %v530, 0
      %697 = vmatprep.subr.bf16.mxu0 0
      %698 = vmatpush1.bf16.msra.mxu0 %v543
      %699 = vmatprep.subr.bf16.mxu0 0
      %700 = vmatpush1.bf16.msra.mxu0 %v544
      %701 = vmatprep.subr.bf16.mxu0 0
      %702 = vmatpush1.bf16.msra.mxu0 %v545
      %703 = vmatprep.subr.bf16.mxu0 0
      %704 = vmatpush1.bf16.msra.mxu0 0
      %705 = vmatprep.subr.bf16.mxu0 0
      %706 = vmatpush1.bf16.msra.mxu0 0
      %707 = vmatprep.subr.bf16.mxu0 0
      %708 = vmatpush1.bf16.msra.mxu0 0
      %709 = vmatprep.subr.bf16.mxu0 0
      %710 = vmatpush1.bf16.msra.mxu0 0
      %711 = vmatprep.subr.bf16.mxu0 0
      %712 = vmatpush1.bf16.msra.mxu0 0
      %713 = vmatprep.subr.bf16.mxu0 0
      %714 = vmatpush1.bf16.msra.mxu0 0
      %715 = vmatprep.subr.bf16.mxu0 0
      %716 = vmatpush1.bf16.msra.mxu0 0
      %717 = vmatprep.subr.bf16.mxu0 0
      %718 = vmatpush1.bf16.msra.mxu0 0
      %719 = vmatprep.subr.bf16.mxu0 0
      %720 = vmatpush1.bf16.msra.mxu0 0
      %721 = vmatprep.subr.bf16.mxu0 0
      %722 = vmatpush1.bf16.msra.mxu0 0
      %723 = vmatprep.subr.bf16.mxu0 0
      %724 = vmatpush1.bf16.msra.mxu0 0
      %725 = vmatprep.subr.bf16.mxu0 0
      %726 = vmatpush1.bf16.msra.mxu0 0
      %727 = vmatprep.subr.bf16.mxu0 0
      %728 = vmatpush1.bf16.msra.mxu0 0
      %729 = vmatprep.mubr.bf16.mxu0 0
      %730 = vmatmul.mubr.bf16.gmra.mrb[0].mxu0 %v551
      %v731 = vpop.f32.mrb[0].mxu0
      %v732 = vadd.f32 %v284, %v731
      %v733 = vpop.f32.mrb[0].mxu0
      %v734 = vpop.f32.mrb[0].mxu0
      %v735 = vadd.f32 %v284, %v734
      %v736 = vpop.f32.mrb[0].mxu0
      %737 = vmatprep.mubr.bf16.mxu0 0
      %738 = vmatmul.mubr.bf16.gmra.mrb[0].mxu0 %v554
      %v739 = vpop.f32.mrb[0].mxu0
      %v740 = vadd.f32 %v284, %v739
      %v741 = vpop.f32.mrb[0].mxu0
      %v742 = vpop.f32.mrb[0].mxu0
      %v743 = vadd.f32 %v284, %v742
      %v744 = vpop.f32.mrb[0].mxu0
      %745 = vmatprep.mubr.bf16.mxu0 0
      %746 = vmatmul.mubr.bf16.gmra.mrb[0].mxu0 %v557
      %v747 = vpop.f32.mrb[0].mxu0
      %v748 = vadd.f32 %v284, %v747
      %v749 = vpop.f32.mrb[0].mxu0
      %v750 = vpop.f32.mrb[0].mxu0
      %v751 = vadd.f32 %v284, %v750
      %v752 = vpop.f32.mrb[0].mxu0
      %753 = vmatprep.mubr.bf16.mxu0 0
      %754 = vmatmul.mubr.bf16.gmra.mrb[0].mxu0 %v560
      %v755 = vpop.f32.mrb[0].mxu0
      %v756 = vadd.f32 %v284, %v755
      %v757 = vpop.f32.mrb[0].mxu0
      %v758 = vpop.f32.mrb[0].mxu0
      %v759 = vadd.f32 %v284, %v758
      %v760 = vpop.f32.mrb[0].mxu0
      %761 = vmatprep.mubr.bf16.mxu0 0
      %762 = vmatmul.mubr.bf16.gmra.mrb[0].mxu0 %v563
      %v763 = vpop.f32.mrb[0].mxu0
      %v764 = vadd.f32 %v284, %v763
      %v765 = vpop.f32.mrb[0].mxu0
      %v766 = vpop.f32.mrb[0].mxu0
      %v767 = vadd.f32 %v284, %v766
      %v768 = vpop.f32.mrb[0].mxu0
      %769 = vmatprep.mubr.bf16.mxu0 0
      %770 = vmatmul.mubr.bf16.gmra.mrb[0].mxu0 %v566
      %v771 = vpop.f32.mrb[0].mxu0
      %v772 = vadd.f32 %v284, %v771
      %v773 = vpop.f32.mrb[0].mxu0
      %v774 = vpop.f32.mrb[0].mxu0
      %v775 = vadd.f32 %v284, %v774
      %v776 = vpop.f32.mrb[0].mxu0
      %777 = vmatprep.mubr.bf16.mxu0 0
      %778 = vmatmul.mubr.bf16.gmra.mrb[0].mxu0 %v569
      %v779 = vpop.f32.mrb[0].mxu0
      %v780 = vadd.f32 %v284, %v779
      %v781 = vpop.f32.mrb[0].mxu0
      %v782 = vpop.f32.mrb[0].mxu0
      %v783 = vadd.f32 %v284, %v782
      %v784 = vpop.f32.mrb[0].mxu0
      %785 = vmatprep.mubr.bf16.mxu0 0
      %786 = vmatmul.mubr.bf16.gmra.mrb[0].mxu0 %v572
      %v787 = vpop.f32.mrb[0].mxu0
      %v788 = vadd.f32 %v284, %v787
      %v789 = vpop.f32.mrb[0].mxu0
      %v790 = vpop.f32.mrb[0].mxu0
      %v791 = vadd.f32 %v284, %v790
      %v792 = vpop.f32.mrb[0].mxu0
      %793 = vmatprep.mubr.bf16.mxu0 0
      %794 = vmatmul.mubr.bf16.gmra.mrb[0].mxu0 %v575
      %v795 = vpop.f32.mrb[0].mxu0
      %v796 = vadd.f32 %v284, %v795
      %v797 = vpop.f32.mrb[0].mxu0
      %v798 = vpop.f32.mrb[0].mxu0
      %v799 = vadd.f32 %v284, %v798
      %v800 = vpop.f32.mrb[0].mxu0
      %801 = vmatprep.mubr.bf16.mxu0 0
      %802 = vmatmul.mubr.bf16.gmra.mrb[0].mxu0 %v578
      %v803 = vpop.f32.mrb[0].mxu0
      %v804 = vadd.f32 %v284, %v803
      %v805 = vpop.f32.mrb[0].mxu0
      %v806 = vpop.f32.mrb[0].mxu0
      %v807 = vadd.f32 %v284, %v806
      %v808 = vpop.f32.mrb[0].mxu0
      %809 = vmatprep.mubr.bf16.mxu0 0
      %810 = vmatmul.mubr.bf16.gmra.mrb[0].mxu0 %v581
      %v811 = vpop.f32.mrb[0].mxu0
      %v812 = vadd.f32 %v284, %v811
      %v813 = vpop.f32.mrb[0].mxu0
      %v814 = vpop.f32.mrb[0].mxu0
      %v815 = vadd.f32 %v284, %v814
      %v816 = vpop.f32.mrb[0].mxu0
      %817 = vmatprep.mubr.bf16.mxu0 0
      %818 = vmatmul.mubr.bf16.gmra.mrb[0].mxu0 %v584
      %v819 = vpop.f32.mrb[0].mxu0
      %v820 = vadd.f32 %v284, %v819
      %v821 = vpop.f32.mrb[0].mxu0
      %v822 = vpop.f32.mrb[0].mxu0
      %v823 = vadd.f32 %v284, %v822
      %v824 = vpop.f32.mrb[0].mxu0
      %825 = vmatprep.mubr.bf16.mxu0 0
      %826 = vmatmul.mubr.bf16.gmra.mrb[0].mxu0 %v587
      %v827 = vpop.f32.mrb[0].mxu0
      %v828 = vadd.f32 %v284, %v827
      %v829 = vpop.f32.mrb[0].mxu0
      %v830 = vpop.f32.mrb[0].mxu0
      %v831 = vadd.f32 %v284, %v830
      %v832 = vpop.f32.mrb[0].mxu0
      %833 = vmatprep.mubr.bf16.mxu0 0
      %834 = vmatmul.mubr.bf16.gmra.mrb[0].mxu0 %v590
      %v835 = vpop.f32.mrb[0].mxu0
      %v836 = vadd.f32 %v284, %v835
      %v837 = vpop.f32.mrb[0].mxu0
      %v838 = vpop.f32.mrb[0].mxu0
      %v839 = vadd.f32 %v284, %v838
      %v840 = vpop.f32.mrb[0].mxu0
      %841 = vmatprep.mubr.bf16.mxu0 0
      %842 = vmatmul.mubr.bf16.gmra.mrb[0].mxu0 %v593
      %v843 = vpop.f32.mrb[0].mxu0
      %v844 = vadd.f32 %v284, %v843
      %v845 = vpop.f32.mrb[0].mxu0
      %v846 = vpop.f32.mrb[0].mxu0
      %v847 = vadd.f32 %v284, %v846
      %v848 = vpop.f32.mrb[0].mxu0
      %849 = vmatprep.mubr.bf16.mxu0 0
      %850 = vmatmul.mubr.bf16.gmra.mrb[0].mxu0 %v596
      %v851 = vpop.f32.mrb[0].mxu0
      %v852 = vadd.f32 %v284, %v851
      %v853 = vpop.f32.mrb[0].mxu0
      %v854 = vpop.f32.mrb[0].mxu0
      %v855 = vadd.f32 %v284, %v854
      %v856 = vpop.f32.mrb[0].mxu0
      %857 = vmatprep.mubr.bf16.mxu0 0
      %858 = vmatmul.mubr.bf16.gmra.mrb[0].mxu0 %v599
      %v859 = vpop.f32.mrb[0].mxu0
      %v860 = vadd.f32 %v284, %v859
      %v861 = vpop.f32.mrb[0].mxu0
      %v862 = vpop.f32.mrb[0].mxu0
      %v863 = vadd.f32 %v284, %v862
      %v864 = vpop.f32.mrb[0].mxu0
      %865 = vmatprep.mubr.bf16.mxu0 0
      %866 = vmatmul.mubr.bf16.gmra.mrb[0].mxu0 %v602
      %v867 = vpop.f32.mrb[0].mxu0
      %v868 = vadd.f32 %v284, %v867
      %v869 = vpop.f32.mrb[0].mxu0
      %v870 = vpop.f32.mrb[0].mxu0
      %v871 = vadd.f32 %v284, %v870
      %v872 = vpop.f32.mrb[0].mxu0
      %873 = vmatprep.mubr.bf16.mxu0 0
      %874 = vmatmul.mubr.bf16.gmra.mrb[0].mxu0 %v605
      %v875 = vpop.f32.mrb[0].mxu0
      %v876 = vadd.f32 %v284, %v875
      %v877 = vpop.f32.mrb[0].mxu0
      %v878 = vpop.f32.mrb[0].mxu0
      %v879 = vadd.f32 %v284, %v878
      %v880 = vpop.f32.mrb[0].mxu0
      %881 = vmatprep.mubr.bf16.mxu0 0
      %882 = vmatmul.mubr.bf16.gmra.mrb[0].mxu0 %v608
      %v883 = vpop.f32.mrb[0].mxu0
      %v884 = vadd.f32 %v284, %v883
      %v885 = vpop.f32.mrb[0].mxu0
      %v886 = vpop.f32.mrb[0].mxu0
      %v887 = vadd.f32 %v284, %v886
      %v888 = vpop.f32.mrb[0].mxu0
      %889 = vmatprep.mubr.bf16.mxu0 0
      %890 = vmatmul.mubr.bf16.gmra.mrb[0].mxu0 %v611
      %v891 = vpop.f32.mrb[0].mxu0
      %v892 = vadd.f32 %v284, %v891
      %v893 = vpop.f32.mrb[0].mxu0
      %v894 = vpop.f32.mrb[0].mxu0
      %v895 = vadd.f32 %v284, %v894
      %v896 = vpop.f32.mrb[0].mxu0
      %897 = vmatprep.mubr.bf16.mxu0 0
      %898 = vmatmul.mubr.bf16.gmra.mrb[0].mxu0 %v614
      %v899 = vpop.f32.mrb[0].mxu0
      %v900 = vadd.f32 %v284, %v899
      %v901 = vpop.f32.mrb[0].mxu0
      %v902 = vpop.f32.mrb[0].mxu0
      %v903 = vadd.f32 %v284, %v902
      %v904 = vpop.f32.mrb[0].mxu0
      %905 = vmatprep.mubr.bf16.mxu0 0
      %906 = vmatmul.mubr.bf16.gmra.mrb[0].mxu0 %v617
      %v907 = vpop.f32.mrb[0].mxu0
      %v908 = vadd.f32 %v284, %v907
      %v909 = vpop.f32.mrb[0].mxu0
      %v910 = vpop.f32.mrb[0].mxu0
      %v911 = vadd.f32 %v284, %v910
      %v912 = vpop.f32.mrb[0].mxu0
      %913 = vmatprep.mubr.bf16.mxu0 0
      %914 = vmatmul.mubr.bf16.gmra.mrb[0].mxu0 %v620
      %v915 = vpop.f32.mrb[0].mxu0
      %v916 = vadd.f32 %v284, %v915
      %v917 = vpop.f32.mrb[0].mxu0
      %v918 = vpop.f32.mrb[0].mxu0
      %v919 = vadd.f32 %v284, %v918
      %v920 = vpop.f32.mrb[0].mxu0
      %921 = vmatprep.mubr.bf16.mxu0 0
      %922 = vmatmul.mubr.bf16.gmra.mrb[0].mxu0 %v623
      %v923 = vpop.f32.mrb[0].mxu0
      %v924 = vadd.f32 %v284, %v923
      %v925 = vpop.f32.mrb[0].mxu0
      %v926 = vpop.f32.mrb[0].mxu0
      %v927 = vadd.f32 %v284, %v926
      %v928 = vpop.f32.mrb[0].mxu0
      %929 = vmatprep.mubr.bf16.mxu0 0
      %930 = vmatmul.mubr.bf16.gmra.mrb[0].mxu0 %v626
      %v931 = vpop.f32.mrb[0].mxu0
      %v932 = vadd.f32 %v284, %v931
      %v933 = vpop.f32.mrb[0].mxu0
      %v934 = vpop.f32.mrb[0].mxu0
      %v935 = vadd.f32 %v284, %v934
      %v936 = vpop.f32.mrb[0].mxu0
      %937 = vmatprep.mubr.bf16.mxu0 0
      %938 = vmatmul.mubr.bf16.gmra.mrb[0].mxu0 %v629
      %v939 = vpop.f32.mrb[0].mxu0
      %v940 = vadd.f32 %v284, %v939
      %v941 = vpop.f32.mrb[0].mxu0
      %v942 = vpop.f32.mrb[0].mxu0
      %v943 = vadd.f32 %v284, %v942
      %v944 = vpop.f32.mrb[0].mxu0
      %945 = vmatprep.mubr.bf16.mxu0 0
      %946 = vmatmul.mubr.bf16.gmra.mrb[0].mxu0 %v632
      %v947 = vpop.f32.mrb[0].mxu0
      %v948 = vadd.f32 %v284, %v947
      %v949 = vpop.f32.mrb[0].mxu0
      %v950 = vpop.f32.mrb[0].mxu0
      %v951 = vadd.f32 %v284, %v950
      %v952 = vpop.f32.mrb[0].mxu0
      %953 = vmatprep.mubr.bf16.mxu0 0
      %954 = vmatmul.mubr.bf16.gmra.mrb[0].mxu0 %v635
      %v955 = vpop.f32.mrb[0].mxu0
      %v956 = vadd.f32 %v284, %v955
      %v957 = vpop.f32.mrb[0].mxu0
      %v958 = vpop.f32.mrb[0].mxu0
      %v959 = vadd.f32 %v284, %v958
      %v960 = vpop.f32.mrb[0].mxu0
      %961 = vmatprep.mubr.bf16.mxu0 0
      %962 = vmatmul.mubr.bf16.gmra.mrb[0].mxu0 %v638
      %v963 = vpop.f32.mrb[0].mxu0
      %v964 = vadd.f32 %v284, %v963
      %v965 = vpop.f32.mrb[0].mxu0
      %v966 = vpop.f32.mrb[0].mxu0
      %v967 = vadd.f32 %v284, %v966
      %v968 = vpop.f32.mrb[0].mxu0
      %969 = vmatprep.mubr.bf16.mxu0 0
      %970 = vmatmul.mubr.bf16.gmra.mrb[0].mxu0 %v641
      %v971 = vpop.f32.mrb[0].mxu0
      %v972 = vadd.f32 %v284, %v971
      %v973 = vpop.f32.mrb[0].mxu0
      %v974 = vpop.f32.mrb[0].mxu0
      %v975 = vadd.f32 %v284, %v974
      %v976 = vpop.f32.mrb[0].mxu0
      %977 = vmatprep.mubr.bf16.mxu0 0
      %978 = vmatmul.mubr.bf16.gmra.mrb[0].mxu0 %v644
      %v979 = vpop.f32.mrb[0].mxu0
      %v980 = vadd.f32 %v284, %v979
      %v981 = vpop.f32.mrb[0].mxu0
      %v982 = vpop.f32.mrb[0].mxu0
      %v983 = vadd.f32 %v284, %v982
      %v984 = vpop.f32.mrb[0].mxu0
      %985 = vmatprep.mubr.bf16.mxu0 0
      %986 = vmatmul.mubr.bf16.gmra.mrb[0].mxu0 %v647
      %v987 = vpop.f32.mrb[0].mxu0
      %v988 = vadd.f32 %v284, %v987
      %v989 = vpop.f32.mrb[0].mxu0
      %v990 = vpop.f32.mrb[0].mxu0
      %v991 = vadd.f32 %v284, %v990
      %v992 = vpop.f32.mrb[0].mxu0
      %993 = vmatprep.mubr.bf16.mxu0 0
      %994 = vmatmul.mubr.bf16.gmra.mrb[0].mxu0 %v650
      %v995 = vpop.f32.mrb[0].mxu0
      %v996 = vadd.f32 %v284, %v995
      %v997 = vpop.f32.mrb[0].mxu0
      %v998 = vpop.f32.mrb[0].mxu0
      %v999 = vadd.f32 %v284, %v998
      %v1000 = vpop.f32.mrb[0].mxu0
      %1001 = vmatprep.mubr.bf16.mxu0 0
      %1002 = vmatmul.mubr.bf16.gmra.mrb[0].mxu0 %v653
      %v1003 = vpop.f32.mrb[0].mxu0
      %v1004 = vadd.f32 %v284, %v1003
      %v1005 = vpop.f32.mrb[0].mxu0
      %v1006 = vpop.f32.mrb[0].mxu0
      %v1007 = vadd.f32 %v284, %v1006
      %v1008 = vpop.f32.mrb[0].mxu0
      %1009 = vmatprep.mubr.bf16.mxu0 0
      %1010 = vmatmul.mubr.bf16.gmra.mrb[0].mxu0 %v656
      %v1011 = vpop.f32.mrb[0].mxu0
      %v1012 = vadd.f32 %v284, %v1011
      %v1013 = vpop.f32.mrb[0].mxu0
      %v1014 = vpop.f32.mrb[0].mxu0
      %v1015 = vadd.f32 %v284, %v1014
      %v1016 = vpop.f32.mrb[0].mxu0
      %1017 = vmatprep.mubr.bf16.mxu0 0
      %1018 = vmatmul.mubr.bf16.gmra.mrb[0].mxu0 %v659
      %v1019 = vpop.f32.mrb[0].mxu0
      %v1020 = vadd.f32 %v284, %v1019
      %v1021 = vpop.f32.mrb[0].mxu0
      %v1022 = vpop.f32.mrb[0].mxu0
      %v1023 = vadd.f32 %v284, %v1022
      %v1024 = vpop.f32.mrb[0].mxu0
      %1025 = vmatprep.mubr.bf16.mxu0 0
      %1026 = vmatmul.mubr.bf16.gmra.mrb[0].mxu0 %v662
      %v1027 = vpop.f32.mrb[0].mxu0
      %v1028 = vadd.f32 %v284, %v1027
      %v1029 = vpop.f32.mrb[0].mxu0
      %v1030 = vpop.f32.mrb[0].mxu0
      %v1031 = vadd.f32 %v284, %v1030
      %v1032 = vpop.f32.mrb[0].mxu0
      %1033 = vmatprep.mubr.bf16.mxu0 0
      %1034 = vmatmul.mubr.bf16.gmra.mrb[0].mxu0 %v665
      %v1035 = vpop.f32.mrb[0].mxu0
      %v1036 = vadd.f32 %v284, %v1035
      %v1037 = vpop.f32.mrb[0].mxu0
      %v1038 = vpop.f32.mrb[0].mxu0
      %v1039 = vadd.f32 %v284, %v1038
      %v1040 = vpop.f32.mrb[0].mxu0
      %1041 = vmatprep.mubr.bf16.mxu0 0
      %1042 = vmatmul.mubr.bf16.gmra.mrb[0].mxu0 %v668
      %v1043 = vpop.f32.mrb[0].mxu0
      %v1044 = vadd.f32 %v284, %v1043
      %v1045 = vpop.f32.mrb[0].mxu0
      %v1046 = vpop.f32.mrb[0].mxu0
      %v1047 = vadd.f32 %v284, %v1046
      %v1048 = vpop.f32.mrb[0].mxu0
      %1049 = vmatprep.mubr.bf16.mxu0 0
      %1050 = vmatmul.mubr.bf16.gmra.mrb[0].mxu0 %v671
      %v1051 = vpop.f32.mrb[0].mxu0
      %v1052 = vadd.f32 %v284, %v1051
      %v1053 = vpop.f32.mrb[0].mxu0
      %v1054 = vpop.f32.mrb[0].mxu0
      %v1055 = vadd.f32 %v284, %v1054
      %v1056 = vpop.f32.mrb[0].mxu0
      %1057 = vmatprep.mubr.bf16.mxu0 0
      %1058 = vmatmul.mubr.bf16.gmra.mrb[0].mxu0 %v674
      %v1059 = vpop.f32.mrb[0].mxu0
      %v1060 = vadd.f32 %v284, %v1059
      %v1061 = vpop.f32.mrb[0].mxu0
      %v1062 = vpop.f32.mrb[0].mxu0
      %v1063 = vadd.f32 %v284, %v1062
      %v1064 = vpop.f32.mrb[0].mxu0
      %1065 = vmatprep.mubr.bf16.mxu0 0
      %1066 = vmatmul.mubr.bf16.gmra.mrb[0].mxu0 %v677
      %v1067 = vpop.f32.mrb[0].mxu0
      %v1068 = vadd.f32 %v284, %v1067
      %v1069 = vpop.f32.mrb[0].mxu0
      %v1070 = vpop.f32.mrb[0].mxu0
      %v1071 = vadd.f32 %v284, %v1070
      %v1072 = vpop.f32.mrb[0].mxu0
      %1073 = vmatprep.mubr.bf16.mxu0 0
      %1074 = vmatmul.mubr.bf16.gmra.mrb[0].mxu0 %v680
      %v1075 = vpop.f32.mrb[0].mxu0
      %v1076 = vadd.f32 %v284, %v1075
      %v1077 = vpop.f32.mrb[0].mxu0
      %v1078 = vpop.f32.mrb[0].mxu0
      %v1079 = vadd.f32 %v284, %v1078
      %v1080 = vpop.f32.mrb[0].mxu0
      %1081 = vmatprep.mubr.bf16.mxu0 0
      %1082 = vmatmul.mubr.bf16.gmra.mrb[0].mxu0 %v683
      %v1083 = vpop.f32.mrb[0].mxu0
      %v1084 = vadd.f32 %v284, %v1083
      %v1085 = vpop.f32.mrb[0].mxu0
      %v1086 = vpop.f32.mrb[0].mxu0
      %v1087 = vadd.f32 %v284, %v1086
      %v1088 = vpop.f32.mrb[0].mxu0
      %1089 = vmatprep.mubr.bf16.mxu0 0
      %1090 = vmatmul.mubr.bf16.gmra.mrb[0].mxu0 %v686
      %v1091 = vpop.f32.mrb[0].mxu0
      %v1092 = vadd.f32 %v284, %v1091
      %v1093 = vpop.f32.mrb[0].mxu0
      %v1094 = vpop.f32.mrb[0].mxu0
      %v1095 = vadd.f32 %v284, %v1094
      %v1096 = vpop.f32.mrb[0].mxu0
      %1097 = vmatprep.mubr.bf16.mxu0 0
      %1098 = vmatmul.mubr.bf16.gmra.mrb[0].mxu0 %v689
      %v1099 = vpop.f32.mrb[0].mxu0
      %v1100 = vadd.f32 %v284, %v1099
      %v1101 = vpop.f32.mrb[0].mxu0
      %v1102 = vpop.f32.mrb[0].mxu0
      %v1103 = vadd.f32 %v284, %v1102
      %v1104 = vpop.f32.mrb[0].mxu0
      %1105 = vmatprep.mubr.bf16.mxu0 0
      %1106 = vmatmul.mubr.bf16.gmra.mrb[0].mxu0 %v692
      %v1107 = vpop.f32.mrb[0].mxu0
      %v1108 = vadd.f32 %v284, %v1107
      %v1109 = vpop.f32.mrb[0].mxu0
      %v1110 = vpop.f32.mrb[0].mxu0
      %v1111 = vadd.f32 %v284, %v1110
      %v1112 = vpop.f32.mrb[0].mxu0
      %1113 = vmatprep.mubr.bf16.mxu0 0
      %1114 = vmatmul.mubr.bf16.gmra.mrb[0].mxu0 %v695
      %v1115 = vpop.f32.mrb[0].mxu0
      %v1116 = vadd.f32 %v284, %v1115
      %v1117 = vpop.f32.mrb[0].mxu0
      %v1118 = vpop.f32.mrb[0].mxu0
      %v1119 = vadd.f32 %v284, %v1118
      %v1120 = vpop.f32.mrb[0].mxu0
      %1121 = vdwg.mxu0
      %1122 = vst [vmem:[%s172] sm:$0xff] %v732
      %1123 = vst [vmem:[%s172 + $0x8] sm:$0xff] %v735
      %1124 = vst [vmem:[%s172 + $0x10] sm:$0xff] %v740
      %1125 = vst [vmem:[%s172 + $0x18] sm:$0xff] %v743
      %1126 = vst [vmem:[%s172 + $0x20] sm:$0xff] %v748
      %1127 = vst [vmem:[%s172 + $0x28] sm:$0xff] %v751
      %1128 = vst [vmem:[%s172 + $0x30] sm:$0xff] %v756
      %1129 = vst [vmem:[%s172 + $0x38] sm:$0xff] %v759
      %1130 = vst [vmem:[%s172 + $0x40] sm:$0xff] %v764
      %1131 = vst [vmem:[%s172 + $0x48] sm:$0xff] %v767
      %1132 = vst [vmem:[%s172 + $0x50] sm:$0xff] %v772
      %1133 = vst [vmem:[%s172 + $0x58] sm:$0xff] %v775
      %1134 = vst [vmem:[%s172 + $0x60] sm:$0xff] %v780
      %1135 = vst [vmem:[%s172 + $0x68] sm:$0xff] %v783
      %1136 = vst [vmem:[%s172 + $0x70] sm:$0xff] %v788
      %1137 = vst [vmem:[%s172 + $0x78] sm:$0xff] %v791
      %1138 = vst [vmem:[%s172 + $0x80] sm:$0xff] %v796
      %1139 = vst [vmem:[%s172 + $0x88] sm:$0xff] %v799
      %1140 = vst [vmem:[%s172 + $0x90] sm:$0xff] %v804
      %1141 = vst [vmem:[%s172 + $0x98] sm:$0xff] %v807
      %1142 = vst [vmem:[%s172 + $0xa0] sm:$0xff] %v812
      %1143 = vst [vmem:[%s172 + $0xa8] sm:$0xff] %v815
      %1144 = vst [vmem:[%s172 + $0xb0] sm:$0xff] %v820
      %1145 = vst [vmem:[%s172 + $0xb8] sm:$0xff] %v823
      %1146 = vst [vmem:[%s172 + $0xc0] sm:$0xff] %v828
      %1147 = vst [vmem:[%s172 + $0xc8] sm:$0xff] %v831
      %1148 = vst [vmem:[%s172 + $0xd0] sm:$0xff] %v836
      %1149 = vst [vmem:[%s172 + $0xd8] sm:$0xff] %v839
      %1150 = vst [vmem:[%s172 + $0xe0] sm:$0xff] %v844
      %1151 = vst [vmem:[%s172 + $0xe8] sm:$0xff] %v847
      %1152 = vst [vmem:[%s172 + $0xf0] sm:$0xff] %v852
      %1153 = vst [vmem:[%s172 + $0xf8] sm:$0xff] %v855
      %1154 = vst [vmem:[%s172 + $0x100] sm:$0xff] %v860
      %1155 = vst [vmem:[%s172 + $0x108] sm:$0xff] %v863
      %1156 = vst [vmem:[%s172 + $0x110] sm:$0xff] %v868
      %1157 = vst [vmem:[%s172 + $0x118] sm:$0xff] %v871
      %1158 = vst [vmem:[%s172 + $0x120] sm:$0xff] %v876
      %1159 = vst [vmem:[%s172 + $0x128] sm:$0xff] %v879
      %1160 = vst [vmem:[%s172 + $0x130] sm:$0xff] %v884
      %1161 = vst [vmem:[%s172 + $0x138] sm:$0xff] %v887
      %1162 = vst [vmem:[%s172 + $0x140] sm:$0xff] %v892
      %1163 = vst [vmem:[%s172 + $0x148] sm:$0xff] %v895
      %1164 = vst [vmem:[%s172 + $0x150] sm:$0xff] %v900
      %1165 = vst [vmem:[%s172 + $0x158] sm:$0xff] %v903
      %1166 = vst [vmem:[%s172 + $0x160] sm:$0xff] %v908
      %1167 = vst [vmem:[%s172 + $0x168] sm:$0xff] %v911
      %1168 = vst [vmem:[%s172 + $0x170] sm:$0xff] %v916
      %1169 = vst [vmem:[%s172 + $0x178] sm:$0xff] %v919
      %1170 = vst [vmem:[%s172 + $0x180] sm:$0xff] %v924
      %1171 = vst [vmem:[%s172 + $0x188] sm:$0xff] %v927
      %1172 = vst [vmem:[%s172 + $0x190] sm:$0xff] %v932
      %1173 = vst [vmem:[%s172 + $0x198] sm:$0xff] %v935
      %1174 = vst [vmem:[%s172 + $0x1a0] sm:$0xff] %v940
      %1175 = vst [vmem:[%s172 + $0x1a8] sm:$0xff] %v943
      %1176 = vst [vmem:[%s172 + $0x1b0] sm:$0xff] %v948
      %1177 = vst [vmem:[%s172 + $0x1b8] sm:$0xff] %v951
      %1178 = vst [vmem:[%s172 + $0x1c0] sm:$0xff] %v956
      %1179 = vst [vmem:[%s172 + $0x1c8] sm:$0xff] %v959
      %1180 = vst [vmem:[%s172 + $0x1d0] sm:$0xff] %v964
      %1181 = vst [vmem:[%s172 + $0x1d8] sm:$0xff] %v967
      %1182 = vst [vmem:[%s172 + $0x1e0] sm:$0xff] %v972
      %1183 = vst [vmem:[%s172 + $0x1e8] sm:$0xff] %v975
      %1184 = vst [vmem:[%s172 + $0x1f0] sm:$0xff] %v980
      %1185 = vst [vmem:[%s172 + $0x1f8] sm:$0xff] %v983
      %1186 = vst [vmem:[%s172 + $0x200] sm:$0xff] %v988
      %1187 = vst [vmem:[%s172 + $0x208] sm:$0xff] %v991
      %1188 = vst [vmem:[%s172 + $0x210] sm:$0xff] %v996
      %1189 = vst [vmem:[%s172 + $0x218] sm:$0xff] %v999
      %1190 = vst [vmem:[%s172 + $0x220] sm:$0xff] %v1004
      %1191 = vst [vmem:[%s172 + $0x228] sm:$0xff] %v1007
      %1192 = vst [vmem:[%s172 + $0x230] sm:$0xff] %v1012
      %1193 = vst [vmem:[%s172 + $0x238] sm:$0xff] %v1015
      %1194 = vst [vmem:[%s172 + $0x240] sm:$0xff] %v1020
      %1195 = vst [vmem:[%s172 + $0x248] sm:$0xff] %v1023
      %1196 = vst [vmem:[%s172 + $0x250] sm:$0xff] %v1028
      %1197 = vst [vmem:[%s172 + $0x258] sm:$0xff] %v1031
      %1198 = vst [vmem:[%s172 + $0x260] sm:$0xff] %v1036
      %1199 = vst [vmem:[%s172 + $0x268] sm:$0xff] %v1039
      %1200 = vst [vmem:[%s172 + $0x270] sm:$0xff] %v1044
      %1201 = vst [vmem:[%s172 + $0x278] sm:$0xff] %v1047
      %1202 = vst [vmem:[%s172 + $0x280] sm:$0xff] %v1052
      %1203 = vst [vmem:[%s172 + $0x288] sm:$0xff] %v1055
      %1204 = vst [vmem:[%s172 + $0x290] sm:$0xff] %v1060
      %1205 = vst [vmem:[%s172 + $0x298] sm:$0xff] %v1063
      %1206 = vst [vmem:[%s172 + $0x2a0] sm:$0xff] %v1068
      %1207 = vst [vmem:[%s172 + $0x2a8] sm:$0xff] %v1071
      %1208 = vst [vmem:[%s172 + $0x2b0] sm:$0xff] %v1076
      %1209 = vst [vmem:[%s172 + $0x2b8] sm:$0xff] %v1079
      %1210 = vst [vmem:[%s172 + $0x2c0] sm:$0xff] %v1084
      %1211 = vst [vmem:[%s172 + $0x2c8] sm:$0xff] %v1087
      %1212 = vst [vmem:[%s172 + $0x2d0] sm:$0xff] %v1092
      %1213 = vst [vmem:[%s172 + $0x2d8] sm:$0xff] %v1095
      %1214 = vst [vmem:[%s172 + $0x2e0] sm:$0xff] %v1100
      %1215 = vst [vmem:[%s172 + $0x2e8] sm:$0xff] %v1103
      %1216 = vst [vmem:[%s172 + $0x2f0] sm:$0xff] %v1108
      %1217 = vst [vmem:[%s172 + $0x2f8] sm:$0xff] %v1111
      %1218 = vst [vmem:[%s172 + $0x300] sm:$0xff] %v1116
      %1219 = vst [vmem:[%s172 + $0x308] sm:$0xff] %v1119
      %s1220 = smul.u32 98, %s14
      %p1221 = scmp.lt.s32.totalorder %s1220, 783
      %s1222 = scalar_select %p1221, %s1220, 783
      %s1223 = smul.addr %s1222, 8
      %s1224 = scalar_lea.vmem %s3, %s1223
      // Predicated region
      $region33: #{encoder_forward.7} parent=31 // pred_check
        %p1225 = pneg %p100
      $region34: #{encoder_forward.7} parent=31 // pred_check_branch
        %1227 = sbr.rel (%p1225) target = $region36
      $region35: #{encoder_forward.7} parent=31 // pred_region
        %s1228 = smul.u32 98, %s14
      $region36: #{encoder_forward.7} parent=31 // pred_fallthru
        _
    $region32: #{encoder_forward.7} parent=5 // pred_fallthru
      _
    %p1229 = scmp.le.s32.totalorder 2, %s9
    // Predicated region
    $region37: #{encoder_forward.7} parent=5 // pred_check
      %p1230 = pneg %p1229
    $region38: #{encoder_forward.7} parent=5 // pred_check_branch
      %1232 = sbr.rel (%p1230) target = $region40
    $region39: #{encoder_forward.7} parent=5 // pred_region
      %s1233 = ssub.s32 %s9, 2
      // Predicated region
      $region41: #{encoder_forward.7} parent=39 // pred_check
        %p1234 = pneg %p106
      $region42: #{encoder_forward.7} parent=39 // pred_check_branch
        %1236 = sbr.rel (%p1234) target = $region44
      $region43: #{encoder_forward.7} parent=39 // pred_region
        %s1237 = smul.u32 98, %s15
        %p1238 = scmp.lt.s32.totalorder %s1237, 783
        %s1239 = scalar_select %p1238, %s1237, 783
        %s1240 = smul.addr %s1239, 8
        %s1241 = scalar_lea.vmem %s3, %s1240
      $region44: #{encoder_forward.7} parent=39 // pred_fallthru
        _
    $region40: #{encoder_forward.7} parent=5 // pred_fallthru
      _
  $region6: #{encoder_forward.7} parent=0 // loop_footer
    %s13 = sadd.s32 1, %s9
  $region7: #{encoder_forward.7} parent=0 // loop_footer_branch
    %8 = sbr.rel target = $region3
  $region8: #{encoder_forward.7} parent=0 // loop_exit
    _

</llo_original>
